<compile_context>
chip_gen: v5e
topology: v5e:2x2
jax: 0.10.0
libtpu: 0.0.40
codegen_flags: <defaults>
</compile_context>

<pallas_src>
import jax
import jax.numpy as jnp
from jax.experimental import pallas as pl
from jax.experimental.pallas import tpu as pltpu

EPS = 1e-5            # InstanceNorm2d default eps
RES_SCALE = 0.1       # ResBlock: out = x + 0.1 * residual
MXU_DTYPE = jnp.bfloat16   # MXU operand dtype (bf16-native on v5e/v6e/v7x)

_TAPS = tuple((dy, dx) for dy in range(3) for dx in range(3))


# ---------------------------------------------------------------------------
# In-kernel helpers
# ---------------------------------------------------------------------------
def _conv3x3(pad_ref, w2d, H, W, C):
    """3x3 stride-1 conv with zero padding supplied by pad_ref's border, no
    bias.  pad_ref: (H+2, W+2, C) f32 scratch; w2d: (9*C, C) bf16 with K
    ordered (dy, dx, cin).  Accumulates 9 tap matmuls (K=C each) directly from
    shifted views -- no im2col buffer, f32 accumulation on the MXU."""
    acc = jnp.zeros((H * W, C), jnp.float32)
    for k, (dy, dx) in enumerate(_TAPS):
        lhs = (pad_ref[dy:dy + H, dx:dx + W, :]
               .reshape(H * W, C)
               .astype(MXU_DTYPE))
        acc = acc + jax.lax.dot_general(
            lhs, w2d[k * C:(k + 1) * C, :],
            dimension_numbers=(((1,), (0,)), ((), ())),
            preferred_element_type=jnp.float32)
    return acc.reshape(H, W, C)


def _instance_norm(h, H, W):
    """InstanceNorm2d(affine=False), two-pass variance, f32 throughout."""
    inv_hw = 1.0 / (H * W)
    mean = jnp.sum(h, axis=(0, 1), keepdims=True) * inv_hw
    centered = h - mean
    var = jnp.sum(centered * centered, axis=(0, 1), keepdims=True) * inv_hw
    return centered * jax.lax.rsqrt(var + EPS)


# ---------------------------------------------------------------------------
# Fused kernel: grid = (N,); the whole ResBlocks stack runs per sample
# ---------------------------------------------------------------------------
def resblocks_kernel(x_ref, w_ref, o_ref, pad_ref):
    _, H, W, C = o_ref.shape
    num_blocks = w_ref.shape[0]

    # Zero ONLY the 1-px border of the padded scratch; the interior is fully
    # overwritten before every conv.  Done per grid step (not hoisted to n==0)
    # so it stays correct when the batch axis is sharded across TensorCores.
    zrow = jnp.zeros((1, W + 2, C), jnp.float32)
    zcol = jnp.zeros((H + 2, 1, C), jnp.float32)
    pad_ref[0:1, :, :] = zrow
    pad_ref[H + 1:H + 2, :, :] = zrow
    pad_ref[:, 0:1, :] = zcol
    pad_ref[:, W + 1:W + 2, :] = zcol

    def block_body(b, x_cur):
        wblk = w_ref[b]                                   # (2, 9*C, C) bf16

        # Conv2dBlock #1: zero-pad -> conv3x3 -> InstanceNorm -> ReLU
        pad_ref[1:H + 1, 1:W + 1, :] = x_cur
        h = jnp.maximum(
            _instance_norm(_conv3x3(pad_ref, wblk[0], H, W, C), H, W), 0.0)

        # Conv2dBlock #2: zero-pad -> conv3x3 -> InstanceNorm (act='none')
        pad_ref[1:H + 1, 1:W + 1, :] = h
        r = _instance_norm(_conv3x3(pad_ref, wblk[1], H, W, C), H, W)

        # Residual stream stays f32 for the whole stack.
        return x_cur + RES_SCALE * r

    x0 = x_ref[0].astype(jnp.float32)                     # (H, W, C)
    x_out = jax.lax.fori_loop(0, num_blocks, block_body, x0, unroll=True)
    o_ref[0] = x_out.astype(o_ref.dtype)                  # single store/sample


# ---------------------------------------------------------------------------
# pallas_call wrapper
# ---------------------------------------------------------------------------
@jax.jit
def res_blocks_forward(x, w_packed):
    """x: (N, H, W, C) NHWC f32; w_packed: (num_blocks, 2, 9*C, C) bf16."""
    N, H, W, C = x.shape
    num_blocks = w_packed.shape[0]
    return pl.pallas_call(
        resblocks_kernel,
        out_shape=jax.ShapeDtypeStruct((N, H, W, C), x.dtype),
        grid=(N,),
        in_specs=[
            pl.BlockSpec((1, H, W, C), lambda n: (n, 0, 0, 0)),
            # All block weights resident in VMEM; constant block index means
            # they are DMA'd from HBM once, not once per sample.
            # TODO(synk): if total weights outgrow VMEM, restore a block grid
            # axis and amortize weight traffic over a batch tile instead.
            pl.BlockSpec((num_blocks, 2, 9 * C, C), lambda n: (0, 0, 0, 0)),
        ],
        out_specs=pl.BlockSpec((1, H, W, C), lambda n: (n, 0, 0, 0)),
        scratch_shapes=[
            pltpu.VMEM((H + 2, W + 2, C), jnp.float32),   # zero-bordered pad
        ],
        compiler_params=pltpu.CompilerParams(
            dimension_semantics=("parallel",),            # megacore over batch
            vmem_limit_bytes=64 * 1024 * 1024),
    )(x, w_packed)


# ---------------------------------------------------------------------------
# Parameters (PyTorch-style init) + packing for the kernel
# ---------------------------------------------------------------------------
def init_params(key, num_blocks, dim):
    fan_in = dim * 3 * 3
    bound = 1.0 / (fan_in ** 0.5)      # PyTorch default conv init bound
    params = []
    for i in range(num_blocks):
        ks = jax.random.split(jax.random.fold_in(key, i), 4)
        w1 = jax.random.uniform(ks[0], (3, 3, dim, dim), jnp.float32, -bound, bound)
        b1 = jax.random.uniform(ks[1], (1, dim), jnp.float32, -bound, bound)
        w2 = jax.random.uniform(ks[2], (3, 3, dim, dim), jnp.float32, -bound, bound)
        b2 = jax.random.uniform(ks[3], (1, dim), jnp.float32, -bound, bound)
        params.append((w1, b1, w2, b2))
    return tuple(params)


def pack_weights(params, dtype=MXU_DTYPE):
    """(num_blocks, 2, 9*C, C) in bf16; biases dropped (cancelled by the
    affine-less InstanceNorm that immediately follows each conv)."""
    blocks = []
    for (w1, _b1, w2, _b2) in params:
        C = w1.shape[-1]
        blocks.append(jnp.stack([w1.reshape(9 * C, C), w2.reshape(9 * C, C)]))
    return jnp.stack(blocks).astype(dtype)


# ---------------------------------------------------------------------------
# Pure-JAX f32 reference (keeps the conv bias) for the correctness check
# ---------------------------------------------------------------------------
def _ref_forward(x, params):
    def conv_in(h, w, b):
        hp = jnp.pad(h, ((0, 0), (1, 1), (1, 1), (0, 0)))
        out = jax.lax.conv_general_dilated(
            hp, w, window_strides=(1, 1), padding="VALID",
            dimension_numbers=("NHWC", "HWIO", "NHWC")) + b[0]
        mean = out.mean(axis=(1, 2), keepdims=True)
        var = ((out - mean) ** 2).mean(axis=(1, 2), keepdims=True)
        return (out - mean) * jax.lax.rsqrt(var + EPS)

    for (w1, b1, w2, b2) in params:
        h = jnp.maximum(conv_in(x, w1, b1), 0.0)
        x = x + RES_SCALE * conv_in(h, w2, b2)
    return x


if __name__ == "__main__":
    key = jax.random.PRNGKey(0)
    num_blocks, dim, N, S = 2, 4, 2, 16   # ResBlocks(2, dim=4, 'in', 'relu', 'zero')

    k_x, k_p = jax.random.split(key)
    x = jax.random.normal(k_x, (N, S, S, dim), jnp.float32)       # NHWC
    params = init_params(k_p, num_blocks, dim)
    w_packed = pack_weights(params)                               # bf16

    out = jax.block_until_ready(res_blocks_forward(x, w_packed))

    ref = _ref_forward(x, params)
    max_err = float(jnp.max(jnp.abs(out - ref)))
    # bf16 MXU operands (weights + conv inputs) vs. the f32 reference.
    assert jnp.allclose(out, ref, atol=3e-2, rtol=3e-2), (
        f"mismatch vs JAX reference: max |err| = {max_err}")

    print("KERNEL_OK")
</pallas_src>

<mosaic_0001>
module attributes {stable_mosaic.version = 11 : i64} {
  func.func @resblocks_kernel(%arg0: i32, %arg1: memref<1x16x16x4xf32, #tpu.memory_space<vmem>>, %arg2: memref<2x2x36x4xbf16, #tpu.memory_space<vmem>>, %arg3: memref<1x16x16x4xf32, #tpu.memory_space<vmem>>, %arg4: memref<18x18x4xf32, #tpu.memory_space<vmem>>) attributes {dimension_semantics = [#tpu.dimension_semantics<parallel>], iteration_bounds = array<i64: 2>, scalar_prefetch = 0 : i64, scratch_operands = 1 : i64, tpu.core_type = #tpu.core_type<tc>, window_params = [{transform_indices = @transform_0, window_bounds = array<i64: 1, 16, 16, 4>}, {pipeline_mode = #tpu.pipeline_mode<synchronous>, transform_indices = @transform_1, window_bounds = array<i64: 2, 2, 36, 4>}, {transform_indices = @transform_2, window_bounds = array<i64: 1, 16, 16, 4>}]} {
    %cst = arith.constant 0.000000e+00 : f32
    %0 = vector.broadcast %cst : f32 to vector<1x18x4xf32>
    %cst_0 = arith.constant 0.000000e+00 : f32
    %1 = vector.broadcast %cst_0 : f32 to vector<18x1x4xf32>
    %c0 = arith.constant 0 : index
    %c0_1 = arith.constant 0 : index
    %c0_2 = arith.constant 0 : index
    %2 = vector.load %arg4[%c0, %c0_1, %c0_2] : memref<18x18x4xf32, #tpu.memory_space<vmem>>, vector<1x18x4xf32>
    tpu.vector_store %arg4[%c0, %c0_1, %c0_2], %0 {strides = array<i32>} : memref<18x18x4xf32, #tpu.memory_space<vmem>>, vector<1x18x4xf32>,
    %c17 = arith.constant 17 : index
    %c0_3 = arith.constant 0 : index
    %c0_4 = arith.constant 0 : index
    %3 = vector.load %arg4[%c17, %c0_3, %c0_4] : memref<18x18x4xf32, #tpu.memory_space<vmem>>, vector<1x18x4xf32>
    tpu.vector_store %arg4[%c17, %c0_3, %c0_4], %0 {strides = array<i32>} : memref<18x18x4xf32, #tpu.memory_space<vmem>>, vector<1x18x4xf32>,
    %c0_5 = arith.constant 0 : index
    %c0_6 = arith.constant 0 : index
    %c0_7 = arith.constant 0 : index
    %4 = vector.load %arg4[%c0_5, %c0_6, %c0_7] : memref<18x18x4xf32, #tpu.memory_space<vmem>>, vector<18x1x4xf32>
    tpu.vector_store %arg4[%c0_5, %c0_6, %c0_7], %1 {strides = array<i32>} : memref<18x18x4xf32, #tpu.memory_space<vmem>>, vector<18x1x4xf32>,
    %c0_8 = arith.constant 0 : index
    %c17_9 = arith.constant 17 : index
    %c0_10 = arith.constant 0 : index
    %5 = vector.load %arg4[%c0_8, %c17_9, %c0_10] : memref<18x18x4xf32, #tpu.memory_space<vmem>>, vector<18x1x4xf32>
    tpu.vector_store %arg4[%c0_8, %c17_9, %c0_10], %1 {strides = array<i32>} : memref<18x18x4xf32, #tpu.memory_space<vmem>>, vector<18x1x4xf32>,
    %c0_11 = arith.constant 0 : index
    %c0_12 = arith.constant 0 : index
    %c0_13 = arith.constant 0 : index
    %c0_14 = arith.constant 0 : index
    %6 = vector.load %arg1[%c0_11, %c0_12, %c0_13, %c0_14] : memref<1x16x16x4xf32, #tpu.memory_space<vmem>>, vector<1x16x16x4xf32>
    %7 = vector.shape_cast %6 : vector<1x16x16x4xf32> to vector<16x16x4xf32>
    %c0_i32 = arith.constant 0 : i32
    %8 = arith.index_cast %c0_i32 : i32 to index
    %c0_15 = arith.constant 0 : index
    %c0_16 = arith.constant 0 : index
    %c0_17 = arith.constant 0 : index
    %9 = vector.load %arg2[%8, %c0_15, %c0_16, %c0_17] : memref<2x2x36x4xbf16, #tpu.memory_space<vmem>>, vector<1x2x36x4xbf16>
    %10 = vector.shape_cast %9 : vector<1x2x36x4xbf16> to vector<2x36x4xbf16>
    %c1 = arith.constant 1 : index
    %c1_18 = arith.constant 1 : index
    %c0_19 = arith.constant 0 : index
    %11 = vector.load %arg4[%c1, %c1_18, %c0_19] : memref<18x18x4xf32, #tpu.memory_space<vmem>>, vector<16x16x4xf32>
    tpu.vector_store %arg4[%c1, %c1_18, %c0_19], %7 {strides = array<i32>} : memref<18x18x4xf32, #tpu.memory_space<vmem>>, vector<16x16x4xf32>,
    %12 = vector.extract_strided_slice %10 {offsets = [0, 0, 0], sizes = [1, 36, 4], strides = [1, 1, 1]} : vector<2x36x4xbf16> to vector<1x36x4xbf16>
    %13 = vector.shape_cast %12 : vector<1x36x4xbf16> to vector<36x4xbf16>
    %cst_20 = arith.constant 0.000000e+00 : f32
    %14 = vector.broadcast %cst_20 : f32 to vector<256x4xf32>
    %c0_21 = arith.constant 0 : index
    %c0_22 = arith.constant 0 : index
    %c0_23 = arith.constant 0 : index
    %15 = vector.load %arg4[%c0_21, %c0_22, %c0_23] : memref<18x18x4xf32, #tpu.memory_space<vmem>>, vector<16x16x4xf32>
    %16 = vector.shape_cast %15 : vector<16x16x4xf32> to vector<256x4xf32>
    %17 = arith.truncf %16 : vector<256x4xf32> to vector<256x4xbf16>
    %18 = vector.extract_strided_slice %13 {offsets = [0, 0], sizes = [4, 4], strides = [1, 1]} : vector<36x4xbf16> to vector<4x4xbf16>
    %cst_24 = arith.constant dense<0.000000e+00> : vector<256x4xf32>
    %19 = tpu.matmul %17, %18, %cst_24 {dimension_numbers = #tpu.dot_dimension_numbers<[1], [0], [0], [1], [0, 0, 1, 1], [], []>} : vector<256x4xbf16>, vector<4x4xbf16>, vector<256x4xf32> -> vector<256x4xf32>
    %20 = arith.addf %14, %19 : vector<256x4xf32>
    %c0_25 = arith.constant 0 : index
    %c1_26 = arith.constant 1 : index
    %c0_27 = arith.constant 0 : index
    %21 = vector.load %arg4[%c0_25, %c1_26, %c0_27] : memref<18x18x4xf32, #tpu.memory_space<vmem>>, vector<16x16x4xf32>
    %22 = vector.shape_cast %21 : vector<16x16x4xf32> to vector<256x4xf32>
    %23 = arith.truncf %22 : vector<256x4xf32> to vector<256x4xbf16>
    %24 = vector.extract_strided_slice %13 {offsets = [4, 0], sizes = [4, 4], strides = [1, 1]} : vector<36x4xbf16> to vector<4x4xbf16>
    %cst_28 = arith.constant dense<0.000000e+00> : vector<256x4xf32>
    %25 = tpu.matmul %23, %24, %cst_28 {dimension_numbers = #tpu.dot_dimension_numbers<[1], [0], [0], [1], [0, 0, 1, 1], [], []>} : vector<256x4xbf16>, vector<4x4xbf16>, vector<256x4xf32> -> vector<256x4xf32>
    %26 = arith.addf %20, %25 : vector<256x4xf32>
    %c0_29 = arith.constant 0 : index
    %c2 = arith.constant 2 : index
    %c0_30 = arith.constant 0 : index
    %27 = vector.load %arg4[%c0_29, %c2, %c0_30] : memref<18x18x4xf32, #tpu.memory_space<vmem>>, vector<16x16x4xf32>
    %28 = vector.shape_cast %27 : vector<16x16x4xf32> to vector<256x4xf32>
    %29 = arith.truncf %28 : vector<256x4xf32> to vector<256x4xbf16>
    %30 = vector.extract_strided_slice %13 {offsets = [8, 0], sizes = [4, 4], strides = [1, 1]} : vector<36x4xbf16> to vector<4x4xbf16>
    %cst_31 = arith.constant dense<0.000000e+00> : vector<256x4xf32>
    %31 = tpu.matmul %29, %30, %cst_31 {dimension_numbers = #tpu.dot_dimension_numbers<[1], [0], [0], [1], [0, 0, 1, 1], [], []>} : vector<256x4xbf16>, vector<4x4xbf16>, vector<256x4xf32> -> vector<256x4xf32>
    %32 = arith.addf %26, %31 : vector<256x4xf32>
    %c1_32 = arith.constant 1 : index
    %c0_33 = arith.constant 0 : index
    %c0_34 = arith.constant 0 : index
    %33 = vector.load %arg4[%c1_32, %c0_33, %c0_34] : memref<18x18x4xf32, #tpu.memory_space<vmem>>, vector<16x16x4xf32>
    %34 = vector.shape_cast %33 : vector<16x16x4xf32> to vector<256x4xf32>
    %35 = arith.truncf %34 : vector<256x4xf32> to vector<256x4xbf16>
    %36 = vector.extract_strided_slice %13 {offsets = [12, 0], sizes = [4, 4], strides = [1, 1]} : vector<36x4xbf16> to vector<4x4xbf16>
    %cst_35 = arith.constant dense<0.000000e+00> : vector<256x4xf32>
    %37 = tpu.matmul %35, %36, %cst_35 {dimension_numbers = #tpu.dot_dimension_numbers<[1], [0], [0], [1], [0, 0, 1, 1], [], []>} : vector<256x4xbf16>, vector<4x4xbf16>, vector<256x4xf32> -> vector<256x4xf32>
    %38 = arith.addf %32, %37 : vector<256x4xf32>
    %c1_36 = arith.constant 1 : index
    %c1_37 = arith.constant 1 : index
    %c0_38 = arith.constant 0 : index
    %39 = vector.load %arg4[%c1_36, %c1_37, %c0_38] : memref<18x18x4xf32, #tpu.memory_space<vmem>>, vector<16x16x4xf32>
    %40 = vector.shape_cast %39 : vector<16x16x4xf32> to vector<256x4xf32>
    %41 = arith.truncf %40 : vector<256x4xf32> to vector<256x4xbf16>
    %42 = vector.extract_strided_slice %13 {offsets = [16, 0], sizes = [4, 4], strides = [1, 1]} : vector<36x4xbf16> to vector<4x4xbf16>
    %cst_39 = arith.constant dense<0.000000e+00> : vector<256x4xf32>
    %43 = tpu.matmul %41, %42, %cst_39 {dimension_numbers = #tpu.dot_dimension_numbers<[1], [0], [0], [1], [0, 0, 1, 1], [], []>} : vector<256x4xbf16>, vector<4x4xbf16>, vector<256x4xf32> -> vector<256x4xf32>
    %44 = arith.addf %38, %43 : vector<256x4xf32>
    %c1_40 = arith.constant 1 : index
    %c2_41 = arith.constant 2 : index
    %c0_42 = arith.constant 0 : index
    %45 = vector.load %arg4[%c1_40, %c2_41, %c0_42] : memref<18x18x4xf32, #tpu.memory_space<vmem>>, vector<16x16x4xf32>
    %46 = vector.shape_cast %45 : vector<16x16x4xf32> to vector<256x4xf32>
    %47 = arith.truncf %46 : vector<256x4xf32> to vector<256x4xbf16>
    %48 = vector.extract_strided_slice %13 {offsets = [20, 0], sizes = [4, 4], strides = [1, 1]} : vector<36x4xbf16> to vector<4x4xbf16>
    %cst_43 = arith.constant dense<0.000000e+00> : vector<256x4xf32>
    %49 = tpu.matmul %47, %48, %cst_43 {dimension_numbers = #tpu.dot_dimension_numbers<[1], [0], [0], [1], [0, 0, 1, 1], [], []>} : vector<256x4xbf16>, vector<4x4xbf16>, vector<256x4xf32> -> vector<256x4xf32>
    %50 = arith.addf %44, %49 : vector<256x4xf32>
    %c2_44 = arith.constant 2 : index
    %c0_45 = arith.constant 0 : index
    %c0_46 = arith.constant 0 : index
    %51 = vector.load %arg4[%c2_44, %c0_45, %c0_46] : memref<18x18x4xf32, #tpu.memory_space<vmem>>, vector<16x16x4xf32>
    %52 = vector.shape_cast %51 : vector<16x16x4xf32> to vector<256x4xf32>
    %53 = arith.truncf %52 : vector<256x4xf32> to vector<256x4xbf16>
    %54 = vector.extract_strided_slice %13 {offsets = [24, 0], sizes = [4, 4], strides = [1, 1]} : vector<36x4xbf16> to vector<4x4xbf16>
    %cst_47 = arith.constant dense<0.000000e+00> : vector<256x4xf32>
    %55 = tpu.matmul %53, %54, %cst_47 {dimension_numbers = #tpu.dot_dimension_numbers<[1], [0], [0], [1], [0, 0, 1, 1], [], []>} : vector<256x4xbf16>, vector<4x4xbf16>, vector<256x4xf32> -> vector<256x4xf32>
    %56 = arith.addf %50, %55 : vector<256x4xf32>
    %c2_48 = arith.constant 2 : index
    %c1_49 = arith.constant 1 : index
    %c0_50 = arith.constant 0 : index
    %57 = vector.load %arg4[%c2_48, %c1_49, %c0_50] : memref<18x18x4xf32, #tpu.memory_space<vmem>>, vector<16x16x4xf32>
    %58 = vector.shape_cast %57 : vector<16x16x4xf32> to vector<256x4xf32>
    %59 = arith.truncf %58 : vector<256x4xf32> to vector<256x4xbf16>
    %60 = vector.extract_strided_slice %13 {offsets = [28, 0], sizes = [4, 4], strides = [1, 1]} : vector<36x4xbf16> to vector<4x4xbf16>
    %cst_51 = arith.constant dense<0.000000e+00> : vector<256x4xf32>
    %61 = tpu.matmul %59, %60, %cst_51 {dimension_numbers = #tpu.dot_dimension_numbers<[1], [0], [0], [1], [0, 0, 1, 1], [], []>} : vector<256x4xbf16>, vector<4x4xbf16>, vector<256x4xf32> -> vector<256x4xf32>
    %62 = arith.addf %56, %61 : vector<256x4xf32>
    %c2_52 = arith.constant 2 : index
    %c2_53 = arith.constant 2 : index
    %c0_54 = arith.constant 0 : index
    %63 = vector.load %arg4[%c2_52, %c2_53, %c0_54] : memref<18x18x4xf32, #tpu.memory_space<vmem>>, vector<16x16x4xf32>
    %64 = vector.shape_cast %63 : vector<16x16x4xf32> to vector<256x4xf32>
    %65 = arith.truncf %64 : vector<256x4xf32> to vector<256x4xbf16>
    %66 = vector.extract_strided_slice %13 {offsets = [32, 0], sizes = [4, 4], strides = [1, 1]} : vector<36x4xbf16> to vector<4x4xbf16>
    %cst_55 = arith.constant dense<0.000000e+00> : vector<256x4xf32>
    %67 = tpu.matmul %65, %66, %cst_55 {dimension_numbers = #tpu.dot_dimension_numbers<[1], [0], [0], [1], [0, 0, 1, 1], [], []>} : vector<256x4xbf16>, vector<4x4xbf16>, vector<256x4xf32> -> vector<256x4xf32>
    %68 = arith.addf %62, %67 : vector<256x4xf32>
    %69 = vector.shape_cast %68 : vector<256x4xf32> to vector<16x16x4xf32>
    %cst_56 = arith.constant dense<0.000000e+00> : vector<4xf32>
    %70 = vector.multi_reduction <add>, %69, %cst_56 [0, 1] : vector<16x16x4xf32> to vector<4xf32>
    %71 = vector.shape_cast %70 : vector<4xf32> to vector<1x1x4xf32>
    %cst_57 = arith.constant 3.906250e-03 : f32
    %72 = vector.broadcast %cst_57 : f32 to vector<1x1x4xf32>
    %73 = arith.mulf %71, %72 : vector<1x1x4xf32>
    %74 = vector.broadcast %73 : vector<1x1x4xf32> to vector<16x16x4xf32>
    %75 = arith.subf %69, %74 : vector<16x16x4xf32>
    %76 = arith.mulf %75, %75 : vector<16x16x4xf32>
    %cst_58 = arith.constant dense<0.000000e+00> : vector<4xf32>
    %77 = vector.multi_reduction <add>, %76, %cst_58 [0, 1] : vector<16x16x4xf32> to vector<4xf32>
    %78 = vector.shape_cast %77 : vector<4xf32> to vector<1x1x4xf32>
    %cst_59 = arith.constant 3.906250e-03 : f32
    %79 = vector.broadcast %cst_59 : f32 to vector<1x1x4xf32>
    %80 = arith.mulf %78, %79 : vector<1x1x4xf32>
    %cst_60 = arith.constant 9.99999974E-6 : f32
    %81 = vector.broadcast %cst_60 : f32 to vector<1x1x4xf32>
    %82 = arith.addf %80, %81 : vector<1x1x4xf32>
    %83 = math.rsqrt %82 : vector<1x1x4xf32>
    %84 = vector.broadcast %83 : vector<1x1x4xf32> to vector<16x16x4xf32>
    %85 = arith.mulf %75, %84 : vector<16x16x4xf32>
    %cst_61 = arith.constant 0.000000e+00 : f32
    %86 = vector.broadcast %cst_61 : f32 to vector<16x16x4xf32>
    %87 = arith.maximumf %85, %86 : vector<16x16x4xf32>
    %c1_62 = arith.constant 1 : index
    %c1_63 = arith.constant 1 : index
    %c0_64 = arith.constant 0 : index
    %88 = vector.load %arg4[%c1_62, %c1_63, %c0_64] : memref<18x18x4xf32, #tpu.memory_space<vmem>>, vector<16x16x4xf32>
    tpu.vector_store %arg4[%c1_62, %c1_63, %c0_64], %87 {strides = array<i32>} : memref<18x18x4xf32, #tpu.memory_space<vmem>>, vector<16x16x4xf32>,
    %89 = vector.extract_strided_slice %10 {offsets = [1, 0, 0], sizes = [1, 36, 4], strides = [1, 1, 1]} : vector<2x36x4xbf16> to vector<1x36x4xbf16>
    %90 = vector.shape_cast %89 : vector<1x36x4xbf16> to vector<36x4xbf16>
    %cst_65 = arith.constant 0.000000e+00 : f32
    %91 = vector.broadcast %cst_65 : f32 to vector<256x4xf32>
    %c0_66 = arith.constant 0 : index
    %c0_67 = arith.constant 0 : index
    %c0_68 = arith.constant 0 : index
    %92 = vector.load %arg4[%c0_66, %c0_67, %c0_68] : memref<18x18x4xf32, #tpu.memory_space<vmem>>, vector<16x16x4xf32>
    %93 = vector.shape_cast %92 : vector<16x16x4xf32> to vector<256x4xf32>
    %94 = arith.truncf %93 : vector<256x4xf32> to vector<256x4xbf16>
    %95 = vector.extract_strided_slice %90 {offsets = [0, 0], sizes = [4, 4], strides = [1, 1]} : vector<36x4xbf16> to vector<4x4xbf16>
    %cst_69 = arith.constant dense<0.000000e+00> : vector<256x4xf32>
    %96 = tpu.matmul %94, %95, %cst_69 {dimension_numbers = #tpu.dot_dimension_numbers<[1], [0], [0], [1], [0, 0, 1, 1], [], []>} : vector<256x4xbf16>, vector<4x4xbf16>, vector<256x4xf32> -> vector<256x4xf32>
    %97 = arith.addf %91, %96 : vector<256x4xf32>
    %c0_70 = arith.constant 0 : index
    %c1_71 = arith.constant 1 : index
    %c0_72 = arith.constant 0 : index
    %98 = vector.load %arg4[%c0_70, %c1_71, %c0_72] : memref<18x18x4xf32, #tpu.memory_space<vmem>>, vector<16x16x4xf32>
    %99 = vector.shape_cast %98 : vector<16x16x4xf32> to vector<256x4xf32>
    %100 = arith.truncf %99 : vector<256x4xf32> to vector<256x4xbf16>
    %101 = vector.extract_strided_slice %90 {offsets = [4, 0], sizes = [4, 4], strides = [1, 1]} : vector<36x4xbf16> to vector<4x4xbf16>
    %cst_73 = arith.constant dense<0.000000e+00> : vector<256x4xf32>
    %102 = tpu.matmul %100, %101, %cst_73 {dimension_numbers = #tpu.dot_dimension_numbers<[1], [0], [0], [1], [0, 0, 1, 1], [], []>} : vector<256x4xbf16>, vector<4x4xbf16>, vector<256x4xf32> -> vector<256x4xf32>
    %103 = arith.addf %97, %102 : vector<256x4xf32>
    %c0_74 = arith.constant 0 : index
    %c2_75 = arith.constant 2 : index
    %c0_76 = arith.constant 0 : index
    %104 = vector.load %arg4[%c0_74, %c2_75, %c0_76] : memref<18x18x4xf32, #tpu.memory_space<vmem>>, vector<16x16x4xf32>
    %105 = vector.shape_cast %104 : vector<16x16x4xf32> to vector<256x4xf32>
    %106 = arith.truncf %105 : vector<256x4xf32> to vector<256x4xbf16>
    %107 = vector.extract_strided_slice %90 {offsets = [8, 0], sizes = [4, 4], strides = [1, 1]} : vector<36x4xbf16> to vector<4x4xbf16>
    %cst_77 = arith.constant dense<0.000000e+00> : vector<256x4xf32>
    %108 = tpu.matmul %106, %107, %cst_77 {dimension_numbers = #tpu.dot_dimension_numbers<[1], [0], [0], [1], [0, 0, 1, 1], [], []>} : vector<256x4xbf16>, vector<4x4xbf16>, vector<256x4xf32> -> vector<256x4xf32>
    %109 = arith.addf %103, %108 : vector<256x4xf32>
    %c1_78 = arith.constant 1 : index
    %c0_79 = arith.constant 0 : index
    %c0_80 = arith.constant 0 : index
    %110 = vector.load %arg4[%c1_78, %c0_79, %c0_80] : memref<18x18x4xf32, #tpu.memory_space<vmem>>, vector<16x16x4xf32>
    %111 = vector.shape_cast %110 : vector<16x16x4xf32> to vector<256x4xf32>
    %112 = arith.truncf %111 : vector<256x4xf32> to vector<256x4xbf16>
    %113 = vector.extract_strided_slice %90 {offsets = [12, 0], sizes = [4, 4], strides = [1, 1]} : vector<36x4xbf16> to vector<4x4xbf16>
    %cst_81 = arith.constant dense<0.000000e+00> : vector<256x4xf32>
    %114 = tpu.matmul %112, %113, %cst_81 {dimension_numbers = #tpu.dot_dimension_numbers<[1], [0], [0], [1], [0, 0, 1, 1], [], []>} : vector<256x4xbf16>, vector<4x4xbf16>, vector<256x4xf32> -> vector<256x4xf32>
    %115 = arith.addf %109, %114 : vector<256x4xf32>
    %c1_82 = arith.constant 1 : index
    %c1_83 = arith.constant 1 : index
    %c0_84 = arith.constant 0 : index
    %116 = vector.load %arg4[%c1_82, %c1_83, %c0_84] : memref<18x18x4xf32, #tpu.memory_space<vmem>>, vector<16x16x4xf32>
    %117 = vector.shape_cast %116 : vector<16x16x4xf32> to vector<256x4xf32>
    %118 = arith.truncf %117 : vector<256x4xf32> to vector<256x4xbf16>
    %119 = vector.extract_strided_slice %90 {offsets = [16, 0], sizes = [4, 4], strides = [1, 1]} : vector<36x4xbf16> to vector<4x4xbf16>
    %cst_85 = arith.constant dense<0.000000e+00> : vector<256x4xf32>
    %120 = tpu.matmul %118, %119, %cst_85 {dimension_numbers = #tpu.dot_dimension_numbers<[1], [0], [0], [1], [0, 0, 1, 1], [], []>} : vector<256x4xbf16>, vector<4x4xbf16>, vector<256x4xf32> -> vector<256x4xf32>
    %121 = arith.addf %115, %120 : vector<256x4xf32>
    %c1_86 = arith.constant 1 : index
    %c2_87 = arith.constant 2 : index
    %c0_88 = arith.constant 0 : index
    %122 = vector.load %arg4[%c1_86, %c2_87, %c0_88] : memref<18x18x4xf32, #tpu.memory_space<vmem>>, vector<16x16x4xf32>
    %123 = vector.shape_cast %122 : vector<16x16x4xf32> to vector<256x4xf32>
    %124 = arith.truncf %123 : vector<256x4xf32> to vector<256x4xbf16>
    %125 = vector.extract_strided_slice %90 {offsets = [20, 0], sizes = [4, 4], strides = [1, 1]} : vector<36x4xbf16> to vector<4x4xbf16>
    %cst_89 = arith.constant dense<0.000000e+00> : vector<256x4xf32>
    %126 = tpu.matmul %124, %125, %cst_89 {dimension_numbers = #tpu.dot_dimension_numbers<[1], [0], [0], [1], [0, 0, 1, 1], [], []>} : vector<256x4xbf16>, vector<4x4xbf16>, vector<256x4xf32> -> vector<256x4xf32>
    %127 = arith.addf %121, %126 : vector<256x4xf32>
    %c2_90 = arith.constant 2 : index
    %c0_91 = arith.constant 0 : index
    %c0_92 = arith.constant 0 : index
    %128 = vector.load %arg4[%c2_90, %c0_91, %c0_92] : memref<18x18x4xf32, #tpu.memory_space<vmem>>, vector<16x16x4xf32>
    %129 = vector.shape_cast %128 : vector<16x16x4xf32> to vector<256x4xf32>
    %130 = arith.truncf %129 : vector<256x4xf32> to vector<256x4xbf16>
    %131 = vector.extract_strided_slice %90 {offsets = [24, 0], sizes = [4, 4], strides = [1, 1]} : vector<36x4xbf16> to vector<4x4xbf16>
    %cst_93 = arith.constant dense<0.000000e+00> : vector<256x4xf32>
    %132 = tpu.matmul %130, %131, %cst_93 {dimension_numbers = #tpu.dot_dimension_numbers<[1], [0], [0], [1], [0, 0, 1, 1], [], []>} : vector<256x4xbf16>, vector<4x4xbf16>, vector<256x4xf32> -> vector<256x4xf32>
    %133 = arith.addf %127, %132 : vector<256x4xf32>
    %c2_94 = arith.constant 2 : index
    %c1_95 = arith.constant 1 : index
    %c0_96 = arith.constant 0 : index
    %134 = vector.load %arg4[%c2_94, %c1_95, %c0_96] : memref<18x18x4xf32, #tpu.memory_space<vmem>>, vector<16x16x4xf32>
    %135 = vector.shape_cast %134 : vector<16x16x4xf32> to vector<256x4xf32>
    %136 = arith.truncf %135 : vector<256x4xf32> to vector<256x4xbf16>
    %137 = vector.extract_strided_slice %90 {offsets = [28, 0], sizes = [4, 4], strides = [1, 1]} : vector<36x4xbf16> to vector<4x4xbf16>
    %cst_97 = arith.constant dense<0.000000e+00> : vector<256x4xf32>
    %138 = tpu.matmul %136, %137, %cst_97 {dimension_numbers = #tpu.dot_dimension_numbers<[1], [0], [0], [1], [0, 0, 1, 1], [], []>} : vector<256x4xbf16>, vector<4x4xbf16>, vector<256x4xf32> -> vector<256x4xf32>
    %139 = arith.addf %133, %138 : vector<256x4xf32>
    %c2_98 = arith.constant 2 : index
    %c2_99 = arith.constant 2 : index
    %c0_100 = arith.constant 0 : index
    %140 = vector.load %arg4[%c2_98, %c2_99, %c0_100] : memref<18x18x4xf32, #tpu.memory_space<vmem>>, vector<16x16x4xf32>
    %141 = vector.shape_cast %140 : vector<16x16x4xf32> to vector<256x4xf32>
    %142 = arith.truncf %141 : vector<256x4xf32> to vector<256x4xbf16>
    %143 = vector.extract_strided_slice %90 {offsets = [32, 0], sizes = [4, 4], strides = [1, 1]} : vector<36x4xbf16> to vector<4x4xbf16>
    %cst_101 = arith.constant dense<0.000000e+00> : vector<256x4xf32>
    %144 = tpu.matmul %142, %143, %cst_101 {dimension_numbers = #tpu.dot_dimension_numbers<[1], [0], [0], [1], [0, 0, 1, 1], [], []>} : vector<256x4xbf16>, vector<4x4xbf16>, vector<256x4xf32> -> vector<256x4xf32>
    %145 = arith.addf %139, %144 : vector<256x4xf32>
    %146 = vector.shape_cast %145 : vector<256x4xf32> to vector<16x16x4xf32>
    %cst_102 = arith.constant dense<0.000000e+00> : vector<4xf32>
    %147 = vector.multi_reduction <add>, %146, %cst_102 [0, 1] : vector<16x16x4xf32> to vector<4xf32>
    %148 = vector.shape_cast %147 : vector<4xf32> to vector<1x1x4xf32>
    %cst_103 = arith.constant 3.906250e-03 : f32
    %149 = vector.broadcast %cst_103 : f32 to vector<1x1x4xf32>
    %150 = arith.mulf %148, %149 : vector<1x1x4xf32>
    %151 = vector.broadcast %150 : vector<1x1x4xf32> to vector<16x16x4xf32>
    %152 = arith.subf %146, %151 : vector<16x16x4xf32>
    %153 = arith.mulf %152, %152 : vector<16x16x4xf32>
    %cst_104 = arith.constant dense<0.000000e+00> : vector<4xf32>
    %154 = vector.multi_reduction <add>, %153, %cst_104 [0, 1] : vector<16x16x4xf32> to vector<4xf32>
    %155 = vector.shape_cast %154 : vector<4xf32> to vector<1x1x4xf32>
    %cst_105 = arith.constant 3.906250e-03 : f32
    %156 = vector.broadcast %cst_105 : f32 to vector<1x1x4xf32>
    %157 = arith.mulf %155, %156 : vector<1x1x4xf32>
    %cst_106 = arith.constant 9.99999974E-6 : f32
    %158 = vector.broadcast %cst_106 : f32 to vector<1x1x4xf32>
    %159 = arith.addf %157, %158 : vector<1x1x4xf32>
    %160 = math.rsqrt %159 : vector<1x1x4xf32>
    %161 = vector.broadcast %160 : vector<1x1x4xf32> to vector<16x16x4xf32>
    %162 = arith.mulf %152, %161 : vector<16x16x4xf32>
    %cst_107 = arith.constant 1.000000e-01 : f32
    %163 = vector.broadcast %cst_107 : f32 to vector<16x16x4xf32>
    %164 = arith.mulf %163, %162 : vector<16x16x4xf32>
    %165 = arith.addf %7, %164 : vector<16x16x4xf32>
    %c1_i32 = arith.constant 1 : i32
    %166 = arith.index_cast %c1_i32 : i32 to index
    %c0_108 = arith.constant 0 : index
    %c0_109 = arith.constant 0 : index
    %c0_110 = arith.constant 0 : index
    %167 = vector.load %arg2[%166, %c0_108, %c0_109, %c0_110] : memref<2x2x36x4xbf16, #tpu.memory_space<vmem>>, vector<1x2x36x4xbf16>
    %168 = vector.shape_cast %167 : vector<1x2x36x4xbf16> to vector<2x36x4xbf16>
    %c1_111 = arith.constant 1 : index
    %c1_112 = arith.constant 1 : index
    %c0_113 = arith.constant 0 : index
    %169 = vector.load %arg4[%c1_111, %c1_112, %c0_113] : memref<18x18x4xf32, #tpu.memory_space<vmem>>, vector<16x16x4xf32>
    tpu.vector_store %arg4[%c1_111, %c1_112, %c0_113], %165 {strides = array<i32>} : memref<18x18x4xf32, #tpu.memory_space<vmem>>, vector<16x16x4xf32>,
    %170 = vector.extract_strided_slice %168 {offsets = [0, 0, 0], sizes = [1, 36, 4], strides = [1, 1, 1]} : vector<2x36x4xbf16> to vector<1x36x4xbf16>
    %171 = vector.shape_cast %170 : vector<1x36x4xbf16> to vector<36x4xbf16>
    %cst_114 = arith.constant 0.000000e+00 : f32
    %172 = vector.broadcast %cst_114 : f32 to vector<256x4xf32>
    %c0_115 = arith.constant 0 : index
    %c0_116 = arith.constant 0 : index
    %c0_117 = arith.constant 0 : index
    %173 = vector.load %arg4[%c0_115, %c0_116, %c0_117] : memref<18x18x4xf32, #tpu.memory_space<vmem>>, vector<16x16x4xf32>
    %174 = vector.shape_cast %173 : vector<16x16x4xf32> to vector<256x4xf32>
    %175 = arith.truncf %174 : vector<256x4xf32> to vector<256x4xbf16>
    %176 = vector.extract_strided_slice %171 {offsets = [0, 0], sizes = [4, 4], strides = [1, 1]} : vector<36x4xbf16> to vector<4x4xbf16>
    %cst_118 = arith.constant dense<0.000000e+00> : vector<256x4xf32>
    %177 = tpu.matmul %175, %176, %cst_118 {dimension_numbers = #tpu.dot_dimension_numbers<[1], [0], [0], [1], [0, 0, 1, 1], [], []>} : vector<256x4xbf16>, vector<4x4xbf16>, vector<256x4xf32> -> vector<256x4xf32>
    %178 = arith.addf %172, %177 : vector<256x4xf32>
    %c0_119 = arith.constant 0 : index
    %c1_120 = arith.constant 1 : index
    %c0_121 = arith.constant 0 : index
    %179 = vector.load %arg4[%c0_119, %c1_120, %c0_121] : memref<18x18x4xf32, #tpu.memory_space<vmem>>, vector<16x16x4xf32>
    %180 = vector.shape_cast %179 : vector<16x16x4xf32> to vector<256x4xf32>
    %181 = arith.truncf %180 : vector<256x4xf32> to vector<256x4xbf16>
    %182 = vector.extract_strided_slice %171 {offsets = [4, 0], sizes = [4, 4], strides = [1, 1]} : vector<36x4xbf16> to vector<4x4xbf16>
    %cst_122 = arith.constant dense<0.000000e+00> : vector<256x4xf32>
    %183 = tpu.matmul %181, %182, %cst_122 {dimension_numbers = #tpu.dot_dimension_numbers<[1], [0], [0], [1], [0, 0, 1, 1], [], []>} : vector<256x4xbf16>, vector<4x4xbf16>, vector<256x4xf32> -> vector<256x4xf32>
    %184 = arith.addf %178, %183 : vector<256x4xf32>
    %c0_123 = arith.constant 0 : index
    %c2_124 = arith.constant 2 : index
    %c0_125 = arith.constant 0 : index
    %185 = vector.load %arg4[%c0_123, %c2_124, %c0_125] : memref<18x18x4xf32, #tpu.memory_space<vmem>>, vector<16x16x4xf32>
    %186 = vector.shape_cast %185 : vector<16x16x4xf32> to vector<256x4xf32>
    %187 = arith.truncf %186 : vector<256x4xf32> to vector<256x4xbf16>
    %188 = vector.extract_strided_slice %171 {offsets = [8, 0], sizes = [4, 4], strides = [1, 1]} : vector<36x4xbf16> to vector<4x4xbf16>
    %cst_126 = arith.constant dense<0.000000e+00> : vector<256x4xf32>
    %189 = tpu.matmul %187, %188, %cst_126 {dimension_numbers = #tpu.dot_dimension_numbers<[1], [0], [0], [1], [0, 0, 1, 1], [], []>} : vector<256x4xbf16>, vector<4x4xbf16>, vector<256x4xf32> -> vector<256x4xf32>
    %190 = arith.addf %184, %189 : vector<256x4xf32>
    %c1_127 = arith.constant 1 : index
    %c0_128 = arith.constant 0 : index
    %c0_129 = arith.constant 0 : index
    %191 = vector.load %arg4[%c1_127, %c0_128, %c0_129] : memref<18x18x4xf32, #tpu.memory_space<vmem>>, vector<16x16x4xf32>
    %192 = vector.shape_cast %191 : vector<16x16x4xf32> to vector<256x4xf32>
    %193 = arith.truncf %192 : vector<256x4xf32> to vector<256x4xbf16>
    %194 = vector.extract_strided_slice %171 {offsets = [12, 0], sizes = [4, 4], strides = [1, 1]} : vector<36x4xbf16> to vector<4x4xbf16>
    %cst_130 = arith.constant dense<0.000000e+00> : vector<256x4xf32>
    %195 = tpu.matmul %193, %194, %cst_130 {dimension_numbers = #tpu.dot_dimension_numbers<[1], [0], [0], [1], [0, 0, 1, 1], [], []>} : vector<256x4xbf16>, vector<4x4xbf16>, vector<256x4xf32> -> vector<256x4xf32>
    %196 = arith.addf %190, %195 : vector<256x4xf32>
    %c1_131 = arith.constant 1 : index
    %c1_132 = arith.constant 1 : index
    %c0_133 = arith.constant 0 : index
    %197 = vector.load %arg4[%c1_131, %c1_132, %c0_133] : memref<18x18x4xf32, #tpu.memory_space<vmem>>, vector<16x16x4xf32>
    %198 = vector.shape_cast %197 : vector<16x16x4xf32> to vector<256x4xf32>
    %199 = arith.truncf %198 : vector<256x4xf32> to vector<256x4xbf16>
    %200 = vector.extract_strided_slice %171 {offsets = [16, 0], sizes = [4, 4], strides = [1, 1]} : vector<36x4xbf16> to vector<4x4xbf16>
    %cst_134 = arith.constant dense<0.000000e+00> : vector<256x4xf32>
    %201 = tpu.matmul %199, %200, %cst_134 {dimension_numbers = #tpu.dot_dimension_numbers<[1], [0], [0], [1], [0, 0, 1, 1], [], []>} : vector<256x4xbf16>, vector<4x4xbf16>, vector<256x4xf32> -> vector<256x4xf32>
    %202 = arith.addf %196, %201 : vector<256x4xf32>
    %c1_135 = arith.constant 1 : index
    %c2_136 = arith.constant 2 : index
    %c0_137 = arith.constant 0 : index
    %203 = vector.load %arg4[%c1_135, %c2_136, %c0_137] : memref<18x18x4xf32, #tpu.memory_space<vmem>>, vector<16x16x4xf32>
    %204 = vector.shape_cast %203 : vector<16x16x4xf32> to vector<256x4xf32>
    %205 = arith.truncf %204 : vector<256x4xf32> to vector<256x4xbf16>
    %206 = vector.extract_strided_slice %171 {offsets = [20, 0], sizes = [4, 4], strides = [1, 1]} : vector<36x4xbf16> to vector<4x4xbf16>
    %cst_138 = arith.constant dense<0.000000e+00> : vector<256x4xf32>
    %207 = tpu.matmul %205, %206, %cst_138 {dimension_numbers = #tpu.dot_dimension_numbers<[1], [0], [0], [1], [0, 0, 1, 1], [], []>} : vector<256x4xbf16>, vector<4x4xbf16>, vector<256x4xf32> -> vector<256x4xf32>
    %208 = arith.addf %202, %207 : vector<256x4xf32>
    %c2_139 = arith.constant 2 : index
    %c0_140 = arith.constant 0 : index
    %c0_141 = arith.constant 0 : index
    %209 = vector.load %arg4[%c2_139, %c0_140, %c0_141] : memref<18x18x4xf32, #tpu.memory_space<vmem>>, vector<16x16x4xf32>
    %210 = vector.shape_cast %209 : vector<16x16x4xf32> to vector<256x4xf32>
    %211 = arith.truncf %210 : vector<256x4xf32> to vector<256x4xbf16>
    %212 = vector.extract_strided_slice %171 {offsets = [24, 0], sizes = [4, 4], strides = [1, 1]} : vector<36x4xbf16> to vector<4x4xbf16>
    %cst_142 = arith.constant dense<0.000000e+00> : vector<256x4xf32>
    %213 = tpu.matmul %211, %212, %cst_142 {dimension_numbers = #tpu.dot_dimension_numbers<[1], [0], [0], [1], [0, 0, 1, 1], [], []>} : vector<256x4xbf16>, vector<4x4xbf16>, vector<256x4xf32> -> vector<256x4xf32>
    %214 = arith.addf %208, %213 : vector<256x4xf32>
    %c2_143 = arith.constant 2 : index
    %c1_144 = arith.constant 1 : index
    %c0_145 = arith.constant 0 : index
    %215 = vector.load %arg4[%c2_143, %c1_144, %c0_145] : memref<18x18x4xf32, #tpu.memory_space<vmem>>, vector<16x16x4xf32>
    %216 = vector.shape_cast %215 : vector<16x16x4xf32> to vector<256x4xf32>
    %217 = arith.truncf %216 : vector<256x4xf32> to vector<256x4xbf16>
    %218 = vector.extract_strided_slice %171 {offsets = [28, 0], sizes = [4, 4], strides = [1, 1]} : vector<36x4xbf16> to vector<4x4xbf16>
    %cst_146 = arith.constant dense<0.000000e+00> : vector<256x4xf32>
    %219 = tpu.matmul %217, %218, %cst_146 {dimension_numbers = #tpu.dot_dimension_numbers<[1], [0], [0], [1], [0, 0, 1, 1], [], []>} : vector<256x4xbf16>, vector<4x4xbf16>, vector<256x4xf32> -> vector<256x4xf32>
    %220 = arith.addf %214, %219 : vector<256x4xf32>
    %c2_147 = arith.constant 2 : index
    %c2_148 = arith.constant 2 : index
    %c0_149 = arith.constant 0 : index
    %221 = vector.load %arg4[%c2_147, %c2_148, %c0_149] : memref<18x18x4xf32, #tpu.memory_space<vmem>>, vector<16x16x4xf32>
    %222 = vector.shape_cast %221 : vector<16x16x4xf32> to vector<256x4xf32>
    %223 = arith.truncf %222 : vector<256x4xf32> to vector<256x4xbf16>
    %224 = vector.extract_strided_slice %171 {offsets = [32, 0], sizes = [4, 4], strides = [1, 1]} : vector<36x4xbf16> to vector<4x4xbf16>
    %cst_150 = arith.constant dense<0.000000e+00> : vector<256x4xf32>
    %225 = tpu.matmul %223, %224, %cst_150 {dimension_numbers = #tpu.dot_dimension_numbers<[1], [0], [0], [1], [0, 0, 1, 1], [], []>} : vector<256x4xbf16>, vector<4x4xbf16>, vector<256x4xf32> -> vector<256x4xf32>
    %226 = arith.addf %220, %225 : vector<256x4xf32>
    %227 = vector.shape_cast %226 : vector<256x4xf32> to vector<16x16x4xf32>
    %cst_151 = arith.constant dense<0.000000e+00> : vector<4xf32>
    %228 = vector.multi_reduction <add>, %227, %cst_151 [0, 1] : vector<16x16x4xf32> to vector<4xf32>
    %229 = vector.shape_cast %228 : vector<4xf32> to vector<1x1x4xf32>
    %cst_152 = arith.constant 3.906250e-03 : f32
    %230 = vector.broadcast %cst_152 : f32 to vector<1x1x4xf32>
    %231 = arith.mulf %229, %230 : vector<1x1x4xf32>
    %232 = vector.broadcast %231 : vector<1x1x4xf32> to vector<16x16x4xf32>
    %233 = arith.subf %227, %232 : vector<16x16x4xf32>
    %234 = arith.mulf %233, %233 : vector<16x16x4xf32>
    %cst_153 = arith.constant dense<0.000000e+00> : vector<4xf32>
    %235 = vector.multi_reduction <add>, %234, %cst_153 [0, 1] : vector<16x16x4xf32> to vector<4xf32>
    %236 = vector.shape_cast %235 : vector<4xf32> to vector<1x1x4xf32>
    %cst_154 = arith.constant 3.906250e-03 : f32
    %237 = vector.broadcast %cst_154 : f32 to vector<1x1x4xf32>
    %238 = arith.mulf %236, %237 : vector<1x1x4xf32>
    %cst_155 = arith.constant 9.99999974E-6 : f32
    %239 = vector.broadcast %cst_155 : f32 to vector<1x1x4xf32>
    %240 = arith.addf %238, %239 : vector<1x1x4xf32>
    %241 = math.rsqrt %240 : vector<1x1x4xf32>
    %242 = vector.broadcast %241 : vector<1x1x4xf32> to vector<16x16x4xf32>
    %243 = arith.mulf %233, %242 : vector<16x16x4xf32>
    %cst_156 = arith.constant 0.000000e+00 : f32
    %244 = vector.broadcast %cst_156 : f32 to vector<16x16x4xf32>
    %245 = arith.maximumf %243, %244 : vector<16x16x4xf32>
    %c1_157 = arith.constant 1 : index
    %c1_158 = arith.constant 1 : index
    %c0_159 = arith.constant 0 : index
    %246 = vector.load %arg4[%c1_157, %c1_158, %c0_159] : memref<18x18x4xf32, #tpu.memory_space<vmem>>, vector<16x16x4xf32>
    tpu.vector_store %arg4[%c1_157, %c1_158, %c0_159], %245 {strides = array<i32>} : memref<18x18x4xf32, #tpu.memory_space<vmem>>, vector<16x16x4xf32>,
    %247 = vector.extract_strided_slice %168 {offsets = [1, 0, 0], sizes = [1, 36, 4], strides = [1, 1, 1]} : vector<2x36x4xbf16> to vector<1x36x4xbf16>
    %248 = vector.shape_cast %247 : vector<1x36x4xbf16> to vector<36x4xbf16>
    %cst_160 = arith.constant 0.000000e+00 : f32
    %249 = vector.broadcast %cst_160 : f32 to vector<256x4xf32>
    %c0_161 = arith.constant 0 : index
    %c0_162 = arith.constant 0 : index
    %c0_163 = arith.constant 0 : index
    %250 = vector.load %arg4[%c0_161, %c0_162, %c0_163] : memref<18x18x4xf32, #tpu.memory_space<vmem>>, vector<16x16x4xf32>
    %251 = vector.shape_cast %250 : vector<16x16x4xf32> to vector<256x4xf32>
    %252 = arith.truncf %251 : vector<256x4xf32> to vector<256x4xbf16>
    %253 = vector.extract_strided_slice %248 {offsets = [0, 0], sizes = [4, 4], strides = [1, 1]} : vector<36x4xbf16> to vector<4x4xbf16>
    %cst_164 = arith.constant dense<0.000000e+00> : vector<256x4xf32>
    %254 = tpu.matmul %252, %253, %cst_164 {dimension_numbers = #tpu.dot_dimension_numbers<[1], [0], [0], [1], [0, 0, 1, 1], [], []>} : vector<256x4xbf16>, vector<4x4xbf16>, vector<256x4xf32> -> vector<256x4xf32>
    %255 = arith.addf %249, %254 : vector<256x4xf32>
    %c0_165 = arith.constant 0 : index
    %c1_166 = arith.constant 1 : index
    %c0_167 = arith.constant 0 : index
    %256 = vector.load %arg4[%c0_165, %c1_166, %c0_167] : memref<18x18x4xf32, #tpu.memory_space<vmem>>, vector<16x16x4xf32>
    %257 = vector.shape_cast %256 : vector<16x16x4xf32> to vector<256x4xf32>
    %258 = arith.truncf %257 : vector<256x4xf32> to vector<256x4xbf16>
    %259 = vector.extract_strided_slice %248 {offsets = [4, 0], sizes = [4, 4], strides = [1, 1]} : vector<36x4xbf16> to vector<4x4xbf16>
    %cst_168 = arith.constant dense<0.000000e+00> : vector<256x4xf32>
    %260 = tpu.matmul %258, %259, %cst_168 {dimension_numbers = #tpu.dot_dimension_numbers<[1], [0], [0], [1], [0, 0, 1, 1], [], []>} : vector<256x4xbf16>, vector<4x4xbf16>, vector<256x4xf32> -> vector<256x4xf32>
    %261 = arith.addf %255, %260 : vector<256x4xf32>
    %c0_169 = arith.constant 0 : index
    %c2_170 = arith.constant 2 : index
    %c0_171 = arith.constant 0 : index
    %262 = vector.load %arg4[%c0_169, %c2_170, %c0_171] : memref<18x18x4xf32, #tpu.memory_space<vmem>>, vector<16x16x4xf32>
    %263 = vector.shape_cast %262 : vector<16x16x4xf32> to vector<256x4xf32>
    %264 = arith.truncf %263 : vector<256x4xf32> to vector<256x4xbf16>
    %265 = vector.extract_strided_slice %248 {offsets = [8, 0], sizes = [4, 4], strides = [1, 1]} : vector<36x4xbf16> to vector<4x4xbf16>
    %cst_172 = arith.constant dense<0.000000e+00> : vector<256x4xf32>
    %266 = tpu.matmul %264, %265, %cst_172 {dimension_numbers = #tpu.dot_dimension_numbers<[1], [0], [0], [1], [0, 0, 1, 1], [], []>} : vector<256x4xbf16>, vector<4x4xbf16>, vector<256x4xf32> -> vector<256x4xf32>
    %267 = arith.addf %261, %266 : vector<256x4xf32>
    %c1_173 = arith.constant 1 : index
    %c0_174 = arith.constant 0 : index
    %c0_175 = arith.constant 0 : index
    %268 = vector.load %arg4[%c1_173, %c0_174, %c0_175] : memref<18x18x4xf32, #tpu.memory_space<vmem>>, vector<16x16x4xf32>
    %269 = vector.shape_cast %268 : vector<16x16x4xf32> to vector<256x4xf32>
    %270 = arith.truncf %269 : vector<256x4xf32> to vector<256x4xbf16>
    %271 = vector.extract_strided_slice %248 {offsets = [12, 0], sizes = [4, 4], strides = [1, 1]} : vector<36x4xbf16> to vector<4x4xbf16>
    %cst_176 = arith.constant dense<0.000000e+00> : vector<256x4xf32>
    %272 = tpu.matmul %270, %271, %cst_176 {dimension_numbers = #tpu.dot_dimension_numbers<[1], [0], [0], [1], [0, 0, 1, 1], [], []>} : vector<256x4xbf16>, vector<4x4xbf16>, vector<256x4xf32> -> vector<256x4xf32>
    %273 = arith.addf %267, %272 : vector<256x4xf32>
    %c1_177 = arith.constant 1 : index
    %c1_178 = arith.constant 1 : index
    %c0_179 = arith.constant 0 : index
    %274 = vector.load %arg4[%c1_177, %c1_178, %c0_179] : memref<18x18x4xf32, #tpu.memory_space<vmem>>, vector<16x16x4xf32>
    %275 = vector.shape_cast %274 : vector<16x16x4xf32> to vector<256x4xf32>
    %276 = arith.truncf %275 : vector<256x4xf32> to vector<256x4xbf16>
    %277 = vector.extract_strided_slice %248 {offsets = [16, 0], sizes = [4, 4], strides = [1, 1]} : vector<36x4xbf16> to vector<4x4xbf16>
    %cst_180 = arith.constant dense<0.000000e+00> : vector<256x4xf32>
    %278 = tpu.matmul %276, %277, %cst_180 {dimension_numbers = #tpu.dot_dimension_numbers<[1], [0], [0], [1], [0, 0, 1, 1], [], []>} : vector<256x4xbf16>, vector<4x4xbf16>, vector<256x4xf32> -> vector<256x4xf32>
    %279 = arith.addf %273, %278 : vector<256x4xf32>
    %c1_181 = arith.constant 1 : index
    %c2_182 = arith.constant 2 : index
    %c0_183 = arith.constant 0 : index
    %280 = vector.load %arg4[%c1_181, %c2_182, %c0_183] : memref<18x18x4xf32, #tpu.memory_space<vmem>>, vector<16x16x4xf32>
    %281 = vector.shape_cast %280 : vector<16x16x4xf32> to vector<256x4xf32>
    %282 = arith.truncf %281 : vector<256x4xf32> to vector<256x4xbf16>
    %283 = vector.extract_strided_slice %248 {offsets = [20, 0], sizes = [4, 4], strides = [1, 1]} : vector<36x4xbf16> to vector<4x4xbf16>
    %cst_184 = arith.constant dense<0.000000e+00> : vector<256x4xf32>
    %284 = tpu.matmul %282, %283, %cst_184 {dimension_numbers = #tpu.dot_dimension_numbers<[1], [0], [0], [1], [0, 0, 1, 1], [], []>} : vector<256x4xbf16>, vector<4x4xbf16>, vector<256x4xf32> -> vector<256x4xf32>
    %285 = arith.addf %279, %284 : vector<256x4xf32>
    %c2_185 = arith.constant 2 : index
    %c0_186 = arith.constant 0 : index
    %c0_187 = arith.constant 0 : index
    %286 = vector.load %arg4[%c2_185, %c0_186, %c0_187] : memref<18x18x4xf32, #tpu.memory_space<vmem>>, vector<16x16x4xf32>
    %287 = vector.shape_cast %286 : vector<16x16x4xf32> to vector<256x4xf32>
    %288 = arith.truncf %287 : vector<256x4xf32> to vector<256x4xbf16>
    %289 = vector.extract_strided_slice %248 {offsets = [24, 0], sizes = [4, 4], strides = [1, 1]} : vector<36x4xbf16> to vector<4x4xbf16>
    %cst_188 = arith.constant dense<0.000000e+00> : vector<256x4xf32>
    %290 = tpu.matmul %288, %289, %cst_188 {dimension_numbers = #tpu.dot_dimension_numbers<[1], [0], [0], [1], [0, 0, 1, 1], [], []>} : vector<256x4xbf16>, vector<4x4xbf16>, vector<256x4xf32> -> vector<256x4xf32>
    %291 = arith.addf %285, %290 : vector<256x4xf32>
    %c2_189 = arith.constant 2 : index
    %c1_190 = arith.constant 1 : index
    %c0_191 = arith.constant 0 : index
    %292 = vector.load %arg4[%c2_189, %c1_190, %c0_191] : memref<18x18x4xf32, #tpu.memory_space<vmem>>, vector<16x16x4xf32>
    %293 = vector.shape_cast %292 : vector<16x16x4xf32> to vector<256x4xf32>
    %294 = arith.truncf %293 : vector<256x4xf32> to vector<256x4xbf16>
    %295 = vector.extract_strided_slice %248 {offsets = [28, 0], sizes = [4, 4], strides = [1, 1]} : vector<36x4xbf16> to vector<4x4xbf16>
    %cst_192 = arith.constant dense<0.000000e+00> : vector<256x4xf32>
    %296 = tpu.matmul %294, %295, %cst_192 {dimension_numbers = #tpu.dot_dimension_numbers<[1], [0], [0], [1], [0, 0, 1, 1], [], []>} : vector<256x4xbf16>, vector<4x4xbf16>, vector<256x4xf32> -> vector<256x4xf32>
    %297 = arith.addf %291, %296 : vector<256x4xf32>
    %c2_193 = arith.constant 2 : index
    %c2_194 = arith.constant 2 : index
    %c0_195 = arith.constant 0 : index
    %298 = vector.load %arg4[%c2_193, %c2_194, %c0_195] : memref<18x18x4xf32, #tpu.memory_space<vmem>>, vector<16x16x4xf32>
    %299 = vector.shape_cast %298 : vector<16x16x4xf32> to vector<256x4xf32>
    %300 = arith.truncf %299 : vector<256x4xf32> to vector<256x4xbf16>
    %301 = vector.extract_strided_slice %248 {offsets = [32, 0], sizes = [4, 4], strides = [1, 1]} : vector<36x4xbf16> to vector<4x4xbf16>
    %cst_196 = arith.constant dense<0.000000e+00> : vector<256x4xf32>
    %302 = tpu.matmul %300, %301, %cst_196 {dimension_numbers = #tpu.dot_dimension_numbers<[1], [0], [0], [1], [0, 0, 1, 1], [], []>} : vector<256x4xbf16>, vector<4x4xbf16>, vector<256x4xf32> -> vector<256x4xf32>
    %303 = arith.addf %297, %302 : vector<256x4xf32>
    %304 = vector.shape_cast %303 : vector<256x4xf32> to vector<16x16x4xf32>
    %cst_197 = arith.constant dense<0.000000e+00> : vector<4xf32>
    %305 = vector.multi_reduction <add>, %304, %cst_197 [0, 1] : vector<16x16x4xf32> to vector<4xf32>
    %306 = vector.shape_cast %305 : vector<4xf32> to vector<1x1x4xf32>
    %cst_198 = arith.constant 3.906250e-03 : f32
    %307 = vector.broadcast %cst_198 : f32 to vector<1x1x4xf32>
    %308 = arith.mulf %306, %307 : vector<1x1x4xf32>
    %309 = vector.broadcast %308 : vector<1x1x4xf32> to vector<16x16x4xf32>
    %310 = arith.subf %304, %309 : vector<16x16x4xf32>
    %311 = arith.mulf %310, %310 : vector<16x16x4xf32>
    %cst_199 = arith.constant dense<0.000000e+00> : vector<4xf32>
    %312 = vector.multi_reduction <add>, %311, %cst_199 [0, 1] : vector<16x16x4xf32> to vector<4xf32>
    %313 = vector.shape_cast %312 : vector<4xf32> to vector<1x1x4xf32>
    %cst_200 = arith.constant 3.906250e-03 : f32
    %314 = vector.broadcast %cst_200 : f32 to vector<1x1x4xf32>
    %315 = arith.mulf %313, %314 : vector<1x1x4xf32>
    %cst_201 = arith.constant 9.99999974E-6 : f32
    %316 = vector.broadcast %cst_201 : f32 to vector<1x1x4xf32>
    %317 = arith.addf %315, %316 : vector<1x1x4xf32>
    %318 = math.rsqrt %317 : vector<1x1x4xf32>
    %319 = vector.broadcast %318 : vector<1x1x4xf32> to vector<16x16x4xf32>
    %320 = arith.mulf %310, %319 : vector<16x16x4xf32>
    %cst_202 = arith.constant 1.000000e-01 : f32
    %321 = vector.broadcast %cst_202 : f32 to vector<16x16x4xf32>
    %322 = arith.mulf %321, %320 : vector<16x16x4xf32>
    %323 = arith.addf %165, %322 : vector<16x16x4xf32>
    %c2_i32 = arith.constant 2 : i32
    %c0_203 = arith.constant 0 : index
    %c0_204 = arith.constant 0 : index
    %c0_205 = arith.constant 0 : index
    %c0_206 = arith.constant 0 : index
    %324 = vector.load %arg3[%c0_203, %c0_204, %c0_205, %c0_206] : memref<1x16x16x4xf32, #tpu.memory_space<vmem>>, vector<1x16x16x4xf32>
    %325 = vector.shape_cast %324 : vector<1x16x16x4xf32> to vector<16x16x4xf32>
    %326 = vector.shape_cast %323 : vector<16x16x4xf32> to vector<1x16x16x4xf32>
    tpu.vector_store %arg3[%c0_203, %c0_204, %c0_205, %c0_206], %326 {strides = array<i32>} : memref<1x16x16x4xf32, #tpu.memory_space<vmem>>, vector<1x16x16x4xf32>,
    return
  }
  func.func @transform_0(%arg0: i32) -> (i32, i32, i32, i32) {
    %c0_i32 = arith.constant 0 : i32
    %c0_i32_0 = arith.constant 0 : i32
    %c0_i32_1 = arith.constant 0 : i32
    %c0_i32_2 = arith.constant 0 : i32
    return %arg0, %c0_i32, %c0_i32_0, %c0_i32_1 : i32, i32, i32, i32
  }
  func.func @transform_1(%arg0: i32) -> (i32, i32, i32, i32) {
    %c0_i32 = arith.constant 0 : i32
    %c0_i32_0 = arith.constant 0 : i32
    %c0_i32_1 = arith.constant 0 : i32
    %c0_i32_2 = arith.constant 0 : i32
    %c0_i32_3 = arith.constant 0 : i32
    return %c0_i32, %c0_i32_0, %c0_i32_1, %c0_i32_2 : i32, i32, i32, i32
  }
  func.func @transform_2(%arg0: i32) -> (i32, i32, i32, i32) {
    %c0_i32 = arith.constant 0 : i32
    %c0_i32_0 = arith.constant 0 : i32
    %c0_i32_1 = arith.constant 0 : i32
    %c0_i32_2 = arith.constant 0 : i32
    return %arg0, %c0_i32, %c0_i32_0, %c0_i32_1 : i32, i32, i32, i32
  }
}

</mosaic_0001>

<llo_original>
// kernel: res_blocks_forward.1
$region0: #{res_blocks_forward.1}
  #allocation0 [shape = 'u32[]', space=smem, size = 0x4, offset = 0x4, fixed_abs, tag = 'smem constant byte address 0x4 - core index']
  #allocation1 [shape = 'u32[72,128]{1,0:T(1,128)}', space=vmem, size = 0x9000, scoped, tag = 'internal scratch']
  #allocation2 [shape = 'f32[18,18,4]{2,1,0:T(8,128)}', space=vmem, size = 0x36000, scoped, tag = 'scratch operand']
  %s0 = inlined_call_operand.vmem [shape: f32[2,16,16,4], index: 0, kind: input, shape index: {}]
  %s1 = inlined_call_operand.vmem [shape: bf16[2,2,36,4], index: 1, kind: input, shape index: {}]
  %s2 = inlined_call_operand.vmem [shape: f32[2,16,16,4], index: 2, kind: output, shape index: {}]
  %s3 = sld [smem:[#allocation0]]
  $region41: #{res_blocks_forward.1} parent=0
    _
  %s5 = ssub.s32 1, %s3
  %s6 = scalar_select 0, %s5, %s3
  loop: start=0, step=1, limit=4
  $region2: #{res_blocks_forward.1} parent=0 // loop_pre_header
    _
  $region3: #{res_blocks_forward.1} parent=0 // loop_header
    %s8 = sphi 0, %s12
    %p9 = scmp.ge.s32.totalorder %s8, 4
    %s18 = sphi 0, %s20
    %s21 = sphi 0, %s18
    %s22 = sphi 0, %s21
    %s38 = sphi 0, %s22
    %s42 = sphi 0, %s42
    %s44 = sphi 0, %s42
    %s45 = sphi 0, %s44
    %s59 = sphi 0, %s45
    %s65 = sphi 0, %s67
    %s68 = sphi 0, %s65
    %s69 = sphi 0, %s68
    %s85 = sphi 0, %s69
  $region4: #{res_blocks_forward.1} parent=0 // loop_header_branch
    %11 = sbr.rel (%p9) target = $region8
  $region5: #{res_blocks_forward.1} parent=0 // loop_body
    %s13 = ssub.s32 %s8, 1
    %s14 = ssub.s32 %s8, 2
    %s15 = sadd.s32 %s8, 1
    %s16 = ssub.s32 %s8, %s15
    %p17 = scmp.eq.s32.totalorder %s16, 0
    %s19 = sadd.s32 %s18, 1
    %s20 = scalar_select %p17, %s18, %s19
    %p23 = pneg %p17
    %p24 = scmp.eq.s32.totalorder %s8, 1
    %p25 = por %p23, %p24
    %p26 = scmp.ne.s32.totalorder %s18, %s21
    %p27 = scmp.eq.s32.totalorder %s8, 0
    %p28 = por %p26, %p27
    %p29 = scmp.ne.s32.totalorder %s18, %s21
    %p30 = scmp.eq.s32.totalorder %s13, 1
    %p31 = por %p29, %p30
    %p32 = scmp.ne.s32.totalorder %s21, %s22
    %p33 = scmp.eq.s32.totalorder %s13, 0
    %p34 = por %p32, %p33
    %p35 = scmp.ne.s32.totalorder %s21, %s22
    %p36 = scmp.eq.s32.totalorder %s14, 1
    %p37 = por %p35, %p36
    %p39 = scmp.ne.s32.totalorder %s22, %s38
    %p40 = scmp.eq.s32.totalorder %s14, 0
    %p41 = por %p39, %p40
    %s43 = sadd.s32 %s42, 1
    %p46 = scmp.eq.s32.totalorder %s8, 1
    %p47 = scmp.ne.s32.totalorder %s42, %s44
    %p48 = scmp.eq.s32.totalorder %s8, 0
    %p49 = por %p47, %p48
    %p50 = scmp.ne.s32.totalorder %s42, %s44
    %p51 = scmp.eq.s32.totalorder %s13, 1
    %p52 = por %p50, %p51
    %p53 = scmp.ne.s32.totalorder %s44, %s45
    %p54 = scmp.eq.s32.totalorder %s13, 0
    %p55 = por %p53, %p54
    %p56 = scmp.ne.s32.totalorder %s44, %s45
    %p57 = scmp.eq.s32.totalorder %s14, 1
    %p58 = por %p56, %p57
    %p60 = scmp.ne.s32.totalorder %s45, %s59
    %p61 = scmp.eq.s32.totalorder %s14, 0
    %p62 = por %p60, %p61
    %s63 = ssub.s32 %s8, %s15
    %p64 = scmp.eq.s32.totalorder %s63, 0
    %s66 = sadd.s32 %s65, 1
    %s67 = scalar_select %p64, %s65, %s66
    %p70 = pneg %p64
    %p71 = scmp.eq.s32.totalorder %s8, 1
    %p72 = por %p70, %p71
    %p73 = scmp.ne.s32.totalorder %s65, %s68
    %p74 = scmp.eq.s32.totalorder %s8, 0
    %p75 = por %p73, %p74
    %p76 = scmp.ne.s32.totalorder %s65, %s68
    %p77 = scmp.eq.s32.totalorder %s13, 1
    %p78 = por %p76, %p77
    %p79 = scmp.ne.s32.totalorder %s68, %s69
    %p80 = scmp.eq.s32.totalorder %s13, 0
    %p81 = por %p79, %p80
    %p82 = scmp.ne.s32.totalorder %s68, %s69
    %p83 = scmp.eq.s32.totalorder %s14, 1
    %p84 = por %p82, %p83
    %p86 = scmp.ne.s32.totalorder %s69, %s85
    %p87 = scmp.eq.s32.totalorder %s14, 0
    %p88 = por %p86, %p87
    %p89 = scmp.le.s32.totalorder 1, %s8
    %p90 = scmp.lt.s32.totalorder %s8, 3
    %p91 = pnand %p89, %p90
    %p92 = pneg %p91
    // Predicated region
    $region9: #{res_blocks_forward.1} parent=5 // pred_check
      _
    $region10: #{res_blocks_forward.1} parent=5 // pred_check_branch
      %94 = sbr.rel (%p91) target = $region12
    $region11: #{res_blocks_forward.1} parent=5 // pred_region
      %s95 = ssub.s32 %s8, 1
      // Predicated region
      $region13: #{res_blocks_forward.1} parent=11 // pred_check
        %p96 = pneg %p55
      $region14: #{res_blocks_forward.1} parent=11 // pred_check_branch
        %98 = sbr.rel (%p96) target = $region16
      $region15: #{res_blocks_forward.1} parent=11 // pred_region
        _
      $region16: #{res_blocks_forward.1} parent=11 // pred_fallthru
        _
    $region12: #{res_blocks_forward.1} parent=5 // pred_fallthru
      _
    %p99 = scmp.lt.s32.totalorder %s8, 2
    // Predicated region
    $region17: #{res_blocks_forward.1} parent=5 // pred_check
      %p100 = pneg %p99
    $region18: #{res_blocks_forward.1} parent=5 // pred_check_branch
      %102 = sbr.rel (%p100) target = $region20
    $region19: #{res_blocks_forward.1} parent=5 // pred_region
      // Predicated region
      $region21: #{res_blocks_forward.1} parent=19 // pred_check
        %p103 = pneg %p28
      $region22: #{res_blocks_forward.1} parent=19 // pred_check_branch
        %105 = sbr.rel (%p103) target = $region24
      $region23: #{res_blocks_forward.1} parent=19 // pred_region
        %p106 = scmp.lt.s32.totalorder %s8, 1
        %s107 = scalar_select %p106, %s8, 1
        %s108 = smul.addr %s107, 32
        %s109 = smul.addr %s108, 8
        %s110 = scalar_lea.vmem %s0, %s109
      $region24: #{res_blocks_forward.1} parent=19 // pred_fallthru
        _
    $region20: #{res_blocks_forward.1} parent=5 // pred_fallthru
      _
    %p111 = scmp.le.s32.totalorder 1, %s8
    %p112 = scmp.lt.s32.totalorder %s8, 3
    %p113 = pnand %p111, %p112
    %p114 = pneg %p113
    // Predicated region
    $region25: #{res_blocks_forward.1} parent=5 // pred_check
      _
    $region26: #{res_blocks_forward.1} parent=5 // pred_check_branch
      %116 = sbr.rel (%p113) target = $region28
    $region27: #{res_blocks_forward.1} parent=5 // pred_region
      %s117 = ssub.s32 %s8, 1
      %p118 = scmp.lt.s32.totalorder %s13, 1
      %s119 = scalar_select %p118, %s13, 1
      %s120 = smul.addr %s119, 32
      %s121 = smul.addr %s120, 8
      %s122 = scalar_lea.vmem %s0, %s121
      %p123 = pneg %p34
      %p124 = pneg %p31
      %p125 = pneg %p55
      %p126 = pneg %p52
      %p127 = pneg %p81
      %p128 = pneg %p78
      %p129 = scmp.lt.s32.totalorder %s13, 1
      %s130 = scalar_select %p129, %s13, 1
      %s131 = smul.addr %s130, 32
      %s132 = smul.addr %s131, 8
      %s133 = scalar_lea.vmem %s2, %s132
      %p134 = scmp.lt.s32.totalorder %s13, 1
      %s135 = scalar_select %p134, %s13, 1
      %s136 = smul.addr %s135, 32
      %s137 = smul.addr %s136, 8
      %s138 = scalar_lea.vmem %s0, %s137
      %p139 = scmp.lt.s32.totalorder %s13, 1
      %s140 = scalar_select %p139, %s13, 1
      %s141 = smul.addr %s140, 32
      %s142 = smul.addr %s141, 8
      %s143 = scalar_lea.vmem %s2, %s142
      %vm145 = vcmask 31744
      %146 = vst.msk [vmem:[#allocation2] sm:$0xff] %vm145, 0.0
      %147 = vst.msk [vmem:[#allocation2 + $0x8] sm:$0xff] %vm145, 0.0
      %vm148 = vcmask 25600
      %149 = vst.msk [vmem:[#allocation2 + $0x10] sm:$0x3] %vm148, 0.0
      %s150 = scalar_lea.vmem [#allocation2], 408
      %151 = vst.msk [vmem:[%s150] sm:$0xff] %vm145, 0.0
      %152 = vst.msk [vmem:[%s150 + $0x8] sm:$0xff] %vm145, 0.0
      %153 = vst.msk [vmem:[%s150 + $0x10] sm:$0x3] %vm148, 0.0
      %vm154 = vcmask 24576
      %155 = vst.msk [vmem:[#allocation2] sm:$0x1] %vm154, 0.0
      %156 = vst.msk [vmem:[#allocation2 + $0x18] sm:$0x1] %vm154, 0.0
      %157 = vst.msk [vmem:[#allocation2 + $0x30] sm:$0x1] %vm154, 0.0
      %158 = vst.msk [vmem:[#allocation2 + $0x48] sm:$0x1] %vm154, 0.0
      %159 = vst.msk [vmem:[#allocation2 + $0x60] sm:$0x1] %vm154, 0.0
      %160 = vst.msk [vmem:[#allocation2 + $0x78] sm:$0x1] %vm154, 0.0
      %161 = vst.msk [vmem:[#allocation2 + $0x90] sm:$0x1] %vm154, 0.0
      %162 = vst.msk [vmem:[#allocation2 + $0xa8] sm:$0x1] %vm154, 0.0
      %163 = vst.msk [vmem:[#allocation2 + $0xc0] sm:$0x1] %vm154, 0.0
      %164 = vst.msk [vmem:[#allocation2 + $0xd8] sm:$0x1] %vm154, 0.0
      %165 = vst.msk [vmem:[#allocation2 + $0xf0] sm:$0x1] %vm154, 0.0
      %166 = vst.msk [vmem:[#allocation2 + $0x108] sm:$0x1] %vm154, 0.0
      %167 = vst.msk [vmem:[#allocation2 + $0x120] sm:$0x1] %vm154, 0.0
      %168 = vst.msk [vmem:[#allocation2 + $0x138] sm:$0x1] %vm154, 0.0
      %169 = vst.msk [vmem:[#allocation2 + $0x150] sm:$0x1] %vm154, 0.0
      %170 = vst.msk [vmem:[#allocation2 + $0x168] sm:$0x1] %vm154, 0.0
      %171 = vst.msk [vmem:[#allocation2 + $0x180] sm:$0x1] %vm154, 0.0
      %172 = vst.msk [vmem:[#allocation2 + $0x198] sm:$0x1] %vm154, 0.0
      %173 = vst.msk [vmem:[#allocation2 + $0x11] sm:$0x1] %vm154, 0.0
      %174 = vst.msk [vmem:[#allocation2 + $0x29] sm:$0x1] %vm154, 0.0
      %175 = vst.msk [vmem:[#allocation2 + $0x41] sm:$0x1] %vm154, 0.0
      %176 = vst.msk [vmem:[#allocation2 + $0x59] sm:$0x1] %vm154, 0.0
      %177 = vst.msk [vmem:[#allocation2 + $0x71] sm:$0x1] %vm154, 0.0
      %178 = vst.msk [vmem:[#allocation2 + $0x89] sm:$0x1] %vm154, 0.0
      %179 = vst.msk [vmem:[#allocation2 + $0xa1] sm:$0x1] %vm154, 0.0
      %180 = vst.msk [vmem:[#allocation2 + $0xb9] sm:$0x1] %vm154, 0.0
      %181 = vst.msk [vmem:[#allocation2 + $0xd1] sm:$0x1] %vm154, 0.0
      %182 = vst.msk [vmem:[#allocation2 + $0xe9] sm:$0x1] %vm154, 0.0
      %183 = vst.msk [vmem:[#allocation2 + $0x101] sm:$0x1] %vm154, 0.0
      %184 = vst.msk [vmem:[#allocation2 + $0x119] sm:$0x1] %vm154, 0.0
      %185 = vst.msk [vmem:[#allocation2 + $0x131] sm:$0x1] %vm154, 0.0
      %186 = vst.msk [vmem:[#allocation2 + $0x149] sm:$0x1] %vm154, 0.0
      %187 = vst.msk [vmem:[#allocation2 + $0x161] sm:$0x1] %vm154, 0.0
      %188 = vst.msk [vmem:[#allocation2 + $0x179] sm:$0x1] %vm154, 0.0
      %189 = vst.msk [vmem:[#allocation2 + $0x191] sm:$0x1] %vm154, 0.0
      %190 = vst.msk [vmem:[#allocation2 + $0x1a9] sm:$0x1] %vm154, 0.0
      %v191 = vld [vmem:[%s138] sm:$0xff]
      %v192 = vld [vmem:[%s138 + $0x8] sm:$0xff]
      %v193 = vld [vmem:[%s138 + $0x10] sm:$0xff]
      %v194 = vld [vmem:[%s138 + $0x18] sm:$0xff]
      %v195 = vld [vmem:[%s138 + $0x20] sm:$0xff]
      %v196 = vld [vmem:[%s138 + $0x28] sm:$0xff]
      %v197 = vld [vmem:[%s138 + $0x30] sm:$0xff]
      %v198 = vld [vmem:[%s138 + $0x38] sm:$0xff]
      %v199 = vld [vmem:[%s138 + $0x40] sm:$0xff]
      %v200 = vld [vmem:[%s138 + $0x48] sm:$0xff]
      %v201 = vld [vmem:[%s138 + $0x50] sm:$0xff]
      %v202 = vld [vmem:[%s138 + $0x58] sm:$0xff]
      %v203 = vld [vmem:[%s138 + $0x60] sm:$0xff]
      %v204 = vld [vmem:[%s138 + $0x68] sm:$0xff]
      %v205 = vld [vmem:[%s138 + $0x70] sm:$0xff]
      %v206 = vld [vmem:[%s138 + $0x78] sm:$0xff]
      %v207 = vld [vmem:[%s138 + $0x80] sm:$0xff]
      %v208 = vld [vmem:[%s138 + $0x88] sm:$0xff]
      %v209 = vld [vmem:[%s138 + $0x90] sm:$0xff]
      %v210 = vld [vmem:[%s138 + $0x98] sm:$0xff]
      %v211 = vld [vmem:[%s138 + $0xa0] sm:$0xff]
      %v212 = vld [vmem:[%s138 + $0xa8] sm:$0xff]
      %v213 = vld [vmem:[%s138 + $0xb0] sm:$0xff]
      %v214 = vld [vmem:[%s138 + $0xb8] sm:$0xff]
      %v215 = vld [vmem:[%s138 + $0xc0] sm:$0xff]
      %v216 = vld [vmem:[%s138 + $0xc8] sm:$0xff]
      %v217 = vld [vmem:[%s138 + $0xd0] sm:$0xff]
      %v218 = vld [vmem:[%s138 + $0xd8] sm:$0xff]
      %v219 = vld [vmem:[%s138 + $0xe0] sm:$0xff]
      %v220 = vld [vmem:[%s138 + $0xe8] sm:$0xff]
      %v221 = vld [vmem:[%s138 + $0xf0] sm:$0xff]
      %v222 = vld [vmem:[%s138 + $0xf8] sm:$0xff]
      %v223 = vld [vmem:[%s1] sm:$0xf]
      %v224 = vld [vmem:[%s1 + $0x4] sm:$0xf]
      %v225 = vld [vmem:[%s1 + $0x8] sm:$0xf]
      %v226 = vld [vmem:[%s1 + $0xc] sm:$0xf]
      %v227 = vld [vmem:[%s1 + $0x10] sm:$0x3]
      %v228 = vld [vmem:[%s1 + $0x14] sm:$0xf]
      %v229 = vld [vmem:[%s1 + $0x18] sm:$0xf]
      %v230 = vld [vmem:[%s1 + $0x1c] sm:$0xf]
      %v231 = vld [vmem:[%s1 + $0x20] sm:$0xf]
      %v232 = vld [vmem:[%s1 + $0x24] sm:$0x3]
      %s233 = scalar_lea.vmem [#allocation2], 24
      %234 = vst.msk [vmem:[%s233 + $0x1] sm:$0xff] %vm145, %v191
      %235 = vst.msk [vmem:[%s233 + $0x9] sm:$0xff] %vm145, %v192
      %236 = vst.msk [vmem:[%s233 + $0x19] sm:$0xff] %vm145, %v193
      %237 = vst.msk [vmem:[%s233 + $0x21] sm:$0xff] %vm145, %v194
      %238 = vst.msk [vmem:[%s233 + $0x31] sm:$0xff] %vm145, %v195
      %239 = vst.msk [vmem:[%s233 + $0x39] sm:$0xff] %vm145, %v196
      %240 = vst.msk [vmem:[%s233 + $0x49] sm:$0xff] %vm145, %v197
      %241 = vst.msk [vmem:[%s233 + $0x51] sm:$0xff] %vm145, %v198
      %242 = vst.msk [vmem:[%s233 + $0x61] sm:$0xff] %vm145, %v199
      %243 = vst.msk [vmem:[%s233 + $0x69] sm:$0xff] %vm145, %v200
      %244 = vst.msk [vmem:[%s233 + $0x79] sm:$0xff] %vm145, %v201
      %245 = vst.msk [vmem:[%s233 + $0x81] sm:$0xff] %vm145, %v202
      %246 = vst.msk [vmem:[%s233 + $0x91] sm:$0xff] %vm145, %v203
      %247 = vst.msk [vmem:[%s233 + $0x99] sm:$0xff] %vm145, %v204
      %248 = vst.msk [vmem:[%s233 + $0xa9] sm:$0xff] %vm145, %v205
      %249 = vst.msk [vmem:[%s233 + $0xb1] sm:$0xff] %vm145, %v206
      %250 = vst.msk [vmem:[%s233 + $0xc1] sm:$0xff] %vm145, %v207
      %251 = vst.msk [vmem:[%s233 + $0xc9] sm:$0xff] %vm145, %v208
      %252 = vst.msk [vmem:[%s233 + $0xd9] sm:$0xff] %vm145, %v209
      %253 = vst.msk [vmem:[%s233 + $0xe1] sm:$0xff] %vm145, %v210
      %254 = vst.msk [vmem:[%s233 + $0xf1] sm:$0xff] %vm145, %v211
      %255 = vst.msk [vmem:[%s233 + $0xf9] sm:$0xff] %vm145, %v212
      %256 = vst.msk [vmem:[%s233 + $0x109] sm:$0xff] %vm145, %v213
      %257 = vst.msk [vmem:[%s233 + $0x111] sm:$0xff] %vm145, %v214
      %258 = vst.msk [vmem:[%s233 + $0x121] sm:$0xff] %vm145, %v215
      %259 = vst.msk [vmem:[%s233 + $0x129] sm:$0xff] %vm145, %v216
      %260 = vst.msk [vmem:[%s233 + $0x139] sm:$0xff] %vm145, %v217
      %261 = vst.msk [vmem:[%s233 + $0x141] sm:$0xff] %vm145, %v218
      %262 = vst.msk [vmem:[%s233 + $0x151] sm:$0xff] %vm145, %v219
      %263 = vst.msk [vmem:[%s233 + $0x159] sm:$0xff] %vm145, %v220
      %264 = vst.msk [vmem:[%s233 + $0x169] sm:$0xff] %vm145, %v221
      %265 = vst.msk [vmem:[%s233 + $0x171] sm:$0xff] %vm145, %v222
      %v266 = vld [vmem:[#allocation2] sm:$0xff]
      %v267 = vld [vmem:[#allocation2 + $0x8] sm:$0xff]
      %v268 = vld [vmem:[#allocation2 + $0x18] sm:$0xff]
      %v269 = vld [vmem:[#allocation2 + $0x20] sm:$0xff]
      %v270 = vld [vmem:[#allocation2 + $0x30] sm:$0xff]
      %v271 = vld [vmem:[#allocation2 + $0x38] sm:$0xff]
      %v272 = vld [vmem:[#allocation2 + $0x48] sm:$0xff]
      %v273 = vld [vmem:[#allocation2 + $0x50] sm:$0xff]
      %v274 = vld [vmem:[#allocation2 + $0x60] sm:$0xff]
      %v275 = vld [vmem:[#allocation2 + $0x68] sm:$0xff]
      %v276 = vld [vmem:[#allocation2 + $0x78] sm:$0xff]
      %v277 = vld [vmem:[#allocation2 + $0x80] sm:$0xff]
      %v278 = vld [vmem:[#allocation2 + $0x90] sm:$0xff]
      %v279 = vld [vmem:[#allocation2 + $0x98] sm:$0xff]
      %v280 = vld [vmem:[#allocation2 + $0xa8] sm:$0xff]
      %v281 = vld [vmem:[#allocation2 + $0xb0] sm:$0xff]
      %v282 = vld [vmem:[#allocation2 + $0xc0] sm:$0xff]
      %v283 = vld [vmem:[#allocation2 + $0xc8] sm:$0xff]
      %v284 = vld [vmem:[#allocation2 + $0xd8] sm:$0xff]
      %v285 = vld [vmem:[#allocation2 + $0xe0] sm:$0xff]
      %v286 = vld [vmem:[#allocation2 + $0xf0] sm:$0xff]
      %v287 = vld [vmem:[#allocation2 + $0xf8] sm:$0xff]
      %v288 = vld [vmem:[#allocation2 + $0x108] sm:$0xff]
      %v289 = vld [vmem:[#allocation2 + $0x110] sm:$0xff]
      %v290 = vld [vmem:[#allocation2 + $0x120] sm:$0xff]
      %v291 = vld [vmem:[#allocation2 + $0x128] sm:$0xff]
      %v292 = vld [vmem:[#allocation2 + $0x138] sm:$0xff]
      %v293 = vld [vmem:[#allocation2 + $0x140] sm:$0xff]
      %v294 = vld [vmem:[#allocation2 + $0x150] sm:$0xff]
      %v295 = vld [vmem:[#allocation2 + $0x158] sm:$0xff]
      %v296 = vld [vmem:[#allocation2 + $0x168] sm:$0xff]
      %v297 = vld [vmem:[#allocation2 + $0x170] sm:$0xff]
      %v298 = vpack.c.bf16 %v267, %v266
      %v299 = vpack.c.bf16 %v269, %v268
      %v300 = vpack.c.bf16 %v271, %v270
      %v301 = vpack.c.bf16 %v273, %v272
      %v302 = vpack.c.bf16 %v275, %v274
      %v303 = vpack.c.bf16 %v277, %v276
      %v304 = vpack.c.bf16 %v279, %v278
      %v305 = vpack.c.bf16 %v281, %v280
      %v306 = vpack.c.bf16 %v283, %v282
      %v307 = vpack.c.bf16 %v285, %v284
      %v308 = vpack.c.bf16 %v287, %v286
      %v309 = vpack.c.bf16 %v289, %v288
      %v310 = vpack.c.bf16 %v291, %v290
      %v311 = vpack.c.bf16 %v293, %v292
      %v312 = vpack.c.bf16 %v295, %v294
      %v313 = vpack.c.bf16 %v297, %v296
      %v314 = vld [vmem:[#allocation2 + $0x1] sm:$0xff]
      %v315 = vld [vmem:[#allocation2 + $0x9] sm:$0xff]
      %v316 = vld [vmem:[#allocation2 + $0x19] sm:$0xff]
      %v317 = vld [vmem:[#allocation2 + $0x21] sm:$0xff]
      %v318 = vld [vmem:[#allocation2 + $0x31] sm:$0xff]
      %v319 = vld [vmem:[#allocation2 + $0x39] sm:$0xff]
      %v320 = vld [vmem:[#allocation2 + $0x49] sm:$0xff]
      %v321 = vld [vmem:[#allocation2 + $0x51] sm:$0xff]
      %v322 = vld [vmem:[#allocation2 + $0x61] sm:$0xff]
      %v323 = vld [vmem:[#allocation2 + $0x69] sm:$0xff]
      %v324 = vld [vmem:[#allocation2 + $0x79] sm:$0xff]
      %v325 = vld [vmem:[#allocation2 + $0x81] sm:$0xff]
      %v326 = vld [vmem:[#allocation2 + $0x91] sm:$0xff]
      %v327 = vld [vmem:[#allocation2 + $0x99] sm:$0xff]
      %v328 = vld [vmem:[#allocation2 + $0xa9] sm:$0xff]
      %v329 = vld [vmem:[#allocation2 + $0xb1] sm:$0xff]
      %v330 = vld [vmem:[#allocation2 + $0xc1] sm:$0xff]
      %v331 = vld [vmem:[#allocation2 + $0xc9] sm:$0xff]
      %v332 = vld [vmem:[#allocation2 + $0xd9] sm:$0xff]
      %v333 = vld [vmem:[#allocation2 + $0xe1] sm:$0xff]
      %v334 = vld [vmem:[#allocation2 + $0xf1] sm:$0xff]
      %v335 = vld [vmem:[#allocation2 + $0xf9] sm:$0xff]
      %v336 = vld [vmem:[#allocation2 + $0x109] sm:$0xff]
      %v337 = vld [vmem:[#allocation2 + $0x111] sm:$0xff]
      %v338 = vld [vmem:[#allocation2 + $0x121] sm:$0xff]
      %v339 = vld [vmem:[#allocation2 + $0x129] sm:$0xff]
      %v340 = vld [vmem:[#allocation2 + $0x139] sm:$0xff]
      %v341 = vld [vmem:[#allocation2 + $0x141] sm:$0xff]
      %v342 = vld [vmem:[#allocation2 + $0x151] sm:$0xff]
      %v343 = vld [vmem:[#allocation2 + $0x159] sm:$0xff]
      %v344 = vld [vmem:[#allocation2 + $0x169] sm:$0xff]
      %v345 = vld [vmem:[#allocation2 + $0x171] sm:$0xff]
      %v346 = vpack.c.bf16 %v315, %v314
      %v347 = vpack.c.bf16 %v317, %v316
      %v348 = vpack.c.bf16 %v319, %v318
      %v349 = vpack.c.bf16 %v321, %v320
      %v350 = vpack.c.bf16 %v323, %v322
      %v351 = vpack.c.bf16 %v325, %v324
      %v352 = vpack.c.bf16 %v327, %v326
      %v353 = vpack.c.bf16 %v329, %v328
      %v354 = vpack.c.bf16 %v331, %v330
      %v355 = vpack.c.bf16 %v333, %v332
      %v356 = vpack.c.bf16 %v335, %v334
      %v357 = vpack.c.bf16 %v337, %v336
      %v358 = vpack.c.bf16 %v339, %v338
      %v359 = vpack.c.bf16 %v341, %v340
      %v360 = vpack.c.bf16 %v343, %v342
      %v361 = vpack.c.bf16 %v345, %v344
      %v363 = vunpack.c.l.b16 %v223
      %v364 = vpack.c.b16 %v363, %v363
      %v365 = vrot.slane %v364, 2
      %v367 = vsel %vm145, %v346, 0
      %v370 = vsel %vm145, %v347, 0
      %v373 = vsel %vm145, %v348, 0
      %v376 = vsel %vm145, %v349, 0
      %v379 = vsel %vm145, %v350, 0
      %v382 = vsel %vm145, %v351, 0
      %v385 = vsel %vm145, %v352, 0
      %v388 = vsel %vm145, %v353, 0
      %v391 = vsel %vm145, %v354, 0
      %v394 = vsel %vm145, %v355, 0
      %v397 = vsel %vm145, %v356, 0
      %v400 = vsel %vm145, %v357, 0
      %v403 = vsel %vm145, %v358, 0
      %v406 = vsel %vm145, %v359, 0
      %v409 = vsel %vm145, %v360, 0
      %v412 = vsel %vm145, %v361, 0
      %vm414 = vcmask 1041408
      %v416 = vsel %vm414, %v365, 0
      %418 = vmatpush.bf16.msra.mxu0 0
      %419 = vmatpush.bf16.msra.mxu0 0
      %420 = vmatpush.bf16.msra.mxu0 0
      %421 = vmatpush.bf16.msra.mxu0 0
      %422 = vmatpush.bf16.msra.mxu0 0
      %423 = vmatpush.bf16.msra.mxu0 0
      %424 = vmatpush.bf16.msra.mxu0 0
      %425 = vmatpush.bf16.msra.mxu0 %v416
      %426 = vmatmul.bf16.gmra.mxu0 %v367
      %v427 = vpop.f32.mrf.mxu0
      %v428 = vadd.f32 0.0, %v427
      %v429 = vpop.f32.mrf.mxu0
      %v430 = vadd.f32 0.0, %v429
      %431 = vmatmul.bf16.gmra.mxu0 %v370
      %v432 = vpop.f32.mrf.mxu0
      %v433 = vadd.f32 0.0, %v432
      %v434 = vpop.f32.mrf.mxu0
      %v435 = vadd.f32 0.0, %v434
      %436 = vmatmul.bf16.gmra.mxu0 %v373
      %v437 = vpop.f32.mrf.mxu0
      %v438 = vadd.f32 0.0, %v437
      %v439 = vpop.f32.mrf.mxu0
      %v440 = vadd.f32 0.0, %v439
      %441 = vmatmul.bf16.gmra.mxu0 %v376
      %v442 = vpop.f32.mrf.mxu0
      %v443 = vadd.f32 0.0, %v442
      %v444 = vpop.f32.mrf.mxu0
      %v445 = vadd.f32 0.0, %v444
      %446 = vmatmul.bf16.gmra.mxu0 %v379
      %v447 = vpop.f32.mrf.mxu0
      %v448 = vadd.f32 0.0, %v447
      %v449 = vpop.f32.mrf.mxu0
      %v450 = vadd.f32 0.0, %v449
      %451 = vmatmul.bf16.gmra.mxu0 %v382
      %v452 = vpop.f32.mrf.mxu0
      %v453 = vadd.f32 0.0, %v452
      %v454 = vpop.f32.mrf.mxu0
      %v455 = vadd.f32 0.0, %v454
      %456 = vmatmul.bf16.gmra.mxu0 %v385
      %v457 = vpop.f32.mrf.mxu0
      %v458 = vadd.f32 0.0, %v457
      %v459 = vpop.f32.mrf.mxu0
      %v460 = vadd.f32 0.0, %v459
      %461 = vmatmul.bf16.gmra.mxu0 %v388
      %v462 = vpop.f32.mrf.mxu0
      %v463 = vadd.f32 0.0, %v462
      %v464 = vpop.f32.mrf.mxu0
      %v465 = vadd.f32 0.0, %v464
      %466 = vmatmul.bf16.gmra.mxu0 %v391
      %v467 = vpop.f32.mrf.mxu0
      %v468 = vadd.f32 0.0, %v467
      %v469 = vpop.f32.mrf.mxu0
      %v470 = vadd.f32 0.0, %v469
      %471 = vmatmul.bf16.gmra.mxu0 %v394
      %v472 = vpop.f32.mrf.mxu0
      %v473 = vadd.f32 0.0, %v472
      %v474 = vpop.f32.mrf.mxu0
      %v475 = vadd.f32 0.0, %v474
      %476 = vmatmul.bf16.gmra.mxu0 %v397
      %v477 = vpop.f32.mrf.mxu0
      %v478 = vadd.f32 0.0, %v477
      %v479 = vpop.f32.mrf.mxu0
      %v480 = vadd.f32 0.0, %v479
      %481 = vmatmul.bf16.gmra.mxu0 %v400
      %v482 = vpop.f32.mrf.mxu0
      %v483 = vadd.f32 0.0, %v482
      %v484 = vpop.f32.mrf.mxu0
      %v485 = vadd.f32 0.0, %v484
      %486 = vmatmul.bf16.gmra.mxu0 %v403
      %v487 = vpop.f32.mrf.mxu0
      %v488 = vadd.f32 0.0, %v487
      %v489 = vpop.f32.mrf.mxu0
      %v490 = vadd.f32 0.0, %v489
      %491 = vmatmul.bf16.gmra.mxu0 %v406
      %v492 = vpop.f32.mrf.mxu0
      %v493 = vadd.f32 0.0, %v492
      %v494 = vpop.f32.mrf.mxu0
      %v495 = vadd.f32 0.0, %v494
      %496 = vmatmul.bf16.gmra.mxu0 %v409
      %v497 = vpop.f32.mrf.mxu0
      %v498 = vadd.f32 0.0, %v497
      %v499 = vpop.f32.mrf.mxu0
      %v500 = vadd.f32 0.0, %v499
      %501 = vmatmul.bf16.gmra.mxu0 %v412
      %v502 = vpop.f32.mrf.mxu0
      %v503 = vadd.f32 0.0, %v502
      %v504 = vpop.f32.mrf.mxu0
      %v505 = vadd.f32 0.0, %v504
      %506 = vdwg.mxu0
      %v508 = vsel %vm145, %v298, 0
      %v511 = vsel %vm145, %v299, 0
      %v514 = vsel %vm145, %v300, 0
      %v517 = vsel %vm145, %v301, 0
      %v520 = vsel %vm145, %v302, 0
      %v523 = vsel %vm145, %v303, 0
      %v526 = vsel %vm145, %v304, 0
      %v529 = vsel %vm145, %v305, 0
      %v532 = vsel %vm145, %v306, 0
      %v535 = vsel %vm145, %v307, 0
      %v538 = vsel %vm145, %v308, 0
      %v541 = vsel %vm145, %v309, 0
      %v544 = vsel %vm145, %v310, 0
      %v547 = vsel %vm145, %v311, 0
      %v550 = vsel %vm145, %v312, 0
      %v553 = vsel %vm145, %v313, 0
      %v556 = vsel %vm414, %v223, 0
      %558 = vmatpush.bf16.msra.mxu0 0
      %559 = vmatpush.bf16.msra.mxu0 0
      %560 = vmatpush.bf16.msra.mxu0 0
      %561 = vmatpush.bf16.msra.mxu0 0
      %562 = vmatpush.bf16.msra.mxu0 0
      %563 = vmatpush.bf16.msra.mxu0 0
      %564 = vmatpush.bf16.msra.mxu0 0
      %565 = vmatpush.bf16.msra.mxu0 %v556
      %566 = vmatmul.bf16.gmra.mxu0 %v508
      %v567 = vpop.f32.mrf.mxu0
      %v568 = vadd.f32 %v428, %v567
      %v569 = vpop.f32.mrf.mxu0
      %v570 = vadd.f32 %v430, %v569
      %571 = vmatmul.bf16.gmra.mxu0 %v511
      %v572 = vpop.f32.mrf.mxu0
      %v573 = vadd.f32 %v433, %v572
      %v574 = vpop.f32.mrf.mxu0
      %v575 = vadd.f32 %v435, %v574
      %576 = vmatmul.bf16.gmra.mxu0 %v514
      %v577 = vpop.f32.mrf.mxu0
      %v578 = vadd.f32 %v438, %v577
      %v579 = vpop.f32.mrf.mxu0
      %v580 = vadd.f32 %v440, %v579
      %581 = vmatmul.bf16.gmra.mxu0 %v517
      %v582 = vpop.f32.mrf.mxu0
      %v583 = vadd.f32 %v443, %v582
      %v584 = vpop.f32.mrf.mxu0
      %v585 = vadd.f32 %v445, %v584
      %586 = vmatmul.bf16.gmra.mxu0 %v520
      %v587 = vpop.f32.mrf.mxu0
      %v588 = vadd.f32 %v448, %v587
      %v589 = vpop.f32.mrf.mxu0
      %v590 = vadd.f32 %v450, %v589
      %591 = vmatmul.bf16.gmra.mxu0 %v523
      %v592 = vpop.f32.mrf.mxu0
      %v593 = vadd.f32 %v453, %v592
      %v594 = vpop.f32.mrf.mxu0
      %v595 = vadd.f32 %v455, %v594
      %596 = vmatmul.bf16.gmra.mxu0 %v526
      %v597 = vpop.f32.mrf.mxu0
      %v598 = vadd.f32 %v458, %v597
      %v599 = vpop.f32.mrf.mxu0
      %v600 = vadd.f32 %v460, %v599
      %601 = vmatmul.bf16.gmra.mxu0 %v529
      %v602 = vpop.f32.mrf.mxu0
      %v603 = vadd.f32 %v463, %v602
      %v604 = vpop.f32.mrf.mxu0
      %v605 = vadd.f32 %v465, %v604
      %606 = vmatmul.bf16.gmra.mxu0 %v532
      %v607 = vpop.f32.mrf.mxu0
      %v608 = vadd.f32 %v468, %v607
      %v609 = vpop.f32.mrf.mxu0
      %v610 = vadd.f32 %v470, %v609
      %611 = vmatmul.bf16.gmra.mxu0 %v535
      %v612 = vpop.f32.mrf.mxu0
      %v613 = vadd.f32 %v473, %v612
      %v614 = vpop.f32.mrf.mxu0
      %v615 = vadd.f32 %v475, %v614
      %616 = vmatmul.bf16.gmra.mxu0 %v538
      %v617 = vpop.f32.mrf.mxu0
      %v618 = vadd.f32 %v478, %v617
      %v619 = vpop.f32.mrf.mxu0
      %v620 = vadd.f32 %v480, %v619
      %621 = vmatmul.bf16.gmra.mxu0 %v541
      %v622 = vpop.f32.mrf.mxu0
      %v623 = vadd.f32 %v483, %v622
      %v624 = vpop.f32.mrf.mxu0
      %v625 = vadd.f32 %v485, %v624
      %626 = vmatmul.bf16.gmra.mxu0 %v544
      %v627 = vpop.f32.mrf.mxu0
      %v628 = vadd.f32 %v488, %v627
      %v629 = vpop.f32.mrf.mxu0
      %v630 = vadd.f32 %v490, %v629
      %631 = vmatmul.bf16.gmra.mxu0 %v547
      %v632 = vpop.f32.mrf.mxu0
      %v633 = vadd.f32 %v493, %v632
      %v634 = vpop.f32.mrf.mxu0
      %v635 = vadd.f32 %v495, %v634
      %636 = vmatmul.bf16.gmra.mxu0 %v550
      %v637 = vpop.f32.mrf.mxu0
      %v638 = vadd.f32 %v498, %v637
      %v639 = vpop.f32.mrf.mxu0
      %v640 = vadd.f32 %v500, %v639
      %641 = vmatmul.bf16.gmra.mxu0 %v553
      %v642 = vpop.f32.mrf.mxu0
      %v643 = vadd.f32 %v503, %v642
      %v644 = vpop.f32.mrf.mxu0
      %v645 = vadd.f32 %v505, %v644
      %646 = vdwg.mxu0
      %v647 = vld [vmem:[#allocation2 + $0x2] sm:$0xff]
      %v648 = vld [vmem:[#allocation2 + $0xa] sm:$0xff]
      %v649 = vld [vmem:[#allocation2 + $0x1a] sm:$0xff]
      %v650 = vld [vmem:[#allocation2 + $0x22] sm:$0xff]
      %v651 = vld [vmem:[#allocation2 + $0x32] sm:$0xff]
      %v652 = vld [vmem:[#allocation2 + $0x3a] sm:$0xff]
      %v653 = vld [vmem:[#allocation2 + $0x4a] sm:$0xff]
      %v654 = vld [vmem:[#allocation2 + $0x52] sm:$0xff]
      %v655 = vld [vmem:[#allocation2 + $0x62] sm:$0xff]
      %v656 = vld [vmem:[#allocation2 + $0x6a] sm:$0xff]
      %v657 = vld [vmem:[#allocation2 + $0x7a] sm:$0xff]
      %v658 = vld [vmem:[#allocation2 + $0x82] sm:$0xff]
      %v659 = vld [vmem:[#allocation2 + $0x92] sm:$0xff]
      %v660 = vld [vmem:[#allocation2 + $0x9a] sm:$0xff]
      %v661 = vld [vmem:[#allocation2 + $0xaa] sm:$0xff]
      %v662 = vld [vmem:[#allocation2 + $0xb2] sm:$0xff]
      %v663 = vld [vmem:[#allocation2 + $0xc2] sm:$0xff]
      %v664 = vld [vmem:[#allocation2 + $0xca] sm:$0xff]
      %v665 = vld [vmem:[#allocation2 + $0xda] sm:$0xff]
      %v666 = vld [vmem:[#allocation2 + $0xe2] sm:$0xff]
      %v667 = vld [vmem:[#allocation2 + $0xf2] sm:$0xff]
      %v668 = vld [vmem:[#allocation2 + $0xfa] sm:$0xff]
      %v669 = vld [vmem:[#allocation2 + $0x10a] sm:$0xff]
      %v670 = vld [vmem:[#allocation2 + $0x112] sm:$0xff]
      %v671 = vld [vmem:[#allocation2 + $0x122] sm:$0xff]
      %v672 = vld [vmem:[#allocation2 + $0x12a] sm:$0xff]
      %v673 = vld [vmem:[#allocation2 + $0x13a] sm:$0xff]
      %v674 = vld [vmem:[#allocation2 + $0x142] sm:$0xff]
      %v675 = vld [vmem:[#allocation2 + $0x152] sm:$0xff]
      %v676 = vld [vmem:[#allocation2 + $0x15a] sm:$0xff]
      %v677 = vld [vmem:[#allocation2 + $0x16a] sm:$0xff]
      %v678 = vld [vmem:[#allocation2 + $0x172] sm:$0xff]
      %v679 = vpack.c.bf16 %v648, %v647
      %v680 = vpack.c.bf16 %v650, %v649
      %v681 = vpack.c.bf16 %v652, %v651
      %v682 = vpack.c.bf16 %v654, %v653
      %v683 = vpack.c.bf16 %v656, %v655
      %v684 = vpack.c.bf16 %v658, %v657
      %v685 = vpack.c.bf16 %v660, %v659
      %v686 = vpack.c.bf16 %v662, %v661
      %v687 = vpack.c.bf16 %v664, %v663
      %v688 = vpack.c.bf16 %v666, %v665
      %v689 = vpack.c.bf16 %v668, %v667
      %v690 = vpack.c.bf16 %v670, %v669
      %v691 = vpack.c.bf16 %v672, %v671
      %v692 = vpack.c.bf16 %v674, %v673
      %v693 = vpack.c.bf16 %v676, %v675
      %v694 = vpack.c.bf16 %v678, %v677
      %v696 = vsel %vm145, %v679, 0
      %v699 = vsel %vm145, %v680, 0
      %v702 = vsel %vm145, %v681, 0
      %v705 = vsel %vm145, %v682, 0
      %v708 = vsel %vm145, %v683, 0
      %v711 = vsel %vm145, %v684, 0
      %v714 = vsel %vm145, %v685, 0
      %v717 = vsel %vm145, %v686, 0
      %v720 = vsel %vm145, %v687, 0
      %v723 = vsel %vm145, %v688, 0
      %v726 = vsel %vm145, %v689, 0
      %v729 = vsel %vm145, %v690, 0
      %v732 = vsel %vm145, %v691, 0
      %v735 = vsel %vm145, %v692, 0
      %v738 = vsel %vm145, %v693, 0
      %v741 = vsel %vm145, %v694, 0
      %v744 = vsel %vm414, %v224, 0
      %746 = vmatpush.bf16.msra.mxu0 0
      %747 = vmatpush.bf16.msra.mxu0 0
      %748 = vmatpush.bf16.msra.mxu0 0
      %749 = vmatpush.bf16.msra.mxu0 0
      %750 = vmatpush.bf16.msra.mxu0 0
      %751 = vmatpush.bf16.msra.mxu0 0
      %752 = vmatpush.bf16.msra.mxu0 0
      %753 = vmatpush.bf16.msra.mxu0 %v744
      %754 = vmatmul.bf16.gmra.mxu0 %v696
      %v755 = vpop.f32.mrf.mxu0
      %v756 = vadd.f32 0.0, %v755
      %v757 = vpop.f32.mrf.mxu0
      %v758 = vadd.f32 0.0, %v757
      %759 = vmatmul.bf16.gmra.mxu0 %v699
      %v760 = vpop.f32.mrf.mxu0
      %v761 = vadd.f32 0.0, %v760
      %v762 = vpop.f32.mrf.mxu0
      %v763 = vadd.f32 0.0, %v762
      %764 = vmatmul.bf16.gmra.mxu0 %v702
      %v765 = vpop.f32.mrf.mxu0
      %v766 = vadd.f32 0.0, %v765
      %v767 = vpop.f32.mrf.mxu0
      %v768 = vadd.f32 0.0, %v767
      %769 = vmatmul.bf16.gmra.mxu0 %v705
      %v770 = vpop.f32.mrf.mxu0
      %v771 = vadd.f32 0.0, %v770
      %v772 = vpop.f32.mrf.mxu0
      %v773 = vadd.f32 0.0, %v772
      %774 = vmatmul.bf16.gmra.mxu0 %v708
      %v775 = vpop.f32.mrf.mxu0
      %v776 = vadd.f32 0.0, %v775
      %v777 = vpop.f32.mrf.mxu0
      %v778 = vadd.f32 0.0, %v777
      %779 = vmatmul.bf16.gmra.mxu0 %v711
      %v780 = vpop.f32.mrf.mxu0
      %v781 = vadd.f32 0.0, %v780
      %v782 = vpop.f32.mrf.mxu0
      %v783 = vadd.f32 0.0, %v782
      %784 = vmatmul.bf16.gmra.mxu0 %v714
      %v785 = vpop.f32.mrf.mxu0
      %v786 = vadd.f32 0.0, %v785
      %v787 = vpop.f32.mrf.mxu0
      %v788 = vadd.f32 0.0, %v787
      %789 = vmatmul.bf16.gmra.mxu0 %v717
      %v790 = vpop.f32.mrf.mxu0
      %v791 = vadd.f32 0.0, %v790
      %v792 = vpop.f32.mrf.mxu0
      %v793 = vadd.f32 0.0, %v792
      %794 = vmatmul.bf16.gmra.mxu0 %v720
      %v795 = vpop.f32.mrf.mxu0
      %v796 = vadd.f32 0.0, %v795
      %v797 = vpop.f32.mrf.mxu0
      %v798 = vadd.f32 0.0, %v797
      %799 = vmatmul.bf16.gmra.mxu0 %v723
      %v800 = vpop.f32.mrf.mxu0
      %v801 = vadd.f32 0.0, %v800
      %v802 = vpop.f32.mrf.mxu0
      %v803 = vadd.f32 0.0, %v802
      %804 = vmatmul.bf16.gmra.mxu0 %v726
      %v805 = vpop.f32.mrf.mxu0
      %v806 = vadd.f32 0.0, %v805
      %v807 = vpop.f32.mrf.mxu0
      %v808 = vadd.f32 0.0, %v807
      %809 = vmatmul.bf16.gmra.mxu0 %v729
      %v810 = vpop.f32.mrf.mxu0
      %v811 = vadd.f32 0.0, %v810
      %v812 = vpop.f32.mrf.mxu0
      %v813 = vadd.f32 0.0, %v812
      %814 = vmatmul.bf16.gmra.mxu0 %v732
      %v815 = vpop.f32.mrf.mxu0
      %v816 = vadd.f32 0.0, %v815
      %v817 = vpop.f32.mrf.mxu0
      %v818 = vadd.f32 0.0, %v817
      %819 = vmatmul.bf16.gmra.mxu0 %v735
      %v820 = vpop.f32.mrf.mxu0
      %v821 = vadd.f32 0.0, %v820
      %v822 = vpop.f32.mrf.mxu0
      %v823 = vadd.f32 0.0, %v822
      %824 = vmatmul.bf16.gmra.mxu0 %v738
      %v825 = vpop.f32.mrf.mxu0
      %v826 = vadd.f32 0.0, %v825
      %v827 = vpop.f32.mrf.mxu0
      %v828 = vadd.f32 0.0, %v827
      %829 = vmatmul.bf16.gmra.mxu0 %v741
      %v830 = vpop.f32.mrf.mxu0
      %v831 = vadd.f32 0.0, %v830
      %v832 = vpop.f32.mrf.mxu0
      %v833 = vadd.f32 0.0, %v832
      %834 = vdwg.mxu0
      %v835 = vadd.f32 %v568, %v756
      %v836 = vadd.f32 %v570, %v758
      %v837 = vadd.f32 %v573, %v761
      %v838 = vadd.f32 %v575, %v763
      %v839 = vadd.f32 %v578, %v766
      %v840 = vadd.f32 %v580, %v768
      %v841 = vadd.f32 %v583, %v771
      %v842 = vadd.f32 %v585, %v773
      %v843 = vadd.f32 %v588, %v776
      %v844 = vadd.f32 %v590, %v778
      %v845 = vadd.f32 %v593, %v781
      %v846 = vadd.f32 %v595, %v783
      %v847 = vadd.f32 %v598, %v786
      %v848 = vadd.f32 %v600, %v788
      %v849 = vadd.f32 %v603, %v791
      %v850 = vadd.f32 %v605, %v793
      %v851 = vadd.f32 %v608, %v796
      %v852 = vadd.f32 %v610, %v798
      %v853 = vadd.f32 %v613, %v801
      %v854 = vadd.f32 %v615, %v803
      %v855 = vadd.f32 %v618, %v806
      %v856 = vadd.f32 %v620, %v808
      %v857 = vadd.f32 %v623, %v811
      %v858 = vadd.f32 %v625, %v813
      %v859 = vadd.f32 %v628, %v816
      %v860 = vadd.f32 %v630, %v818
      %v861 = vadd.f32 %v633, %v821
      %v862 = vadd.f32 %v635, %v823
      %v863 = vadd.f32 %v638, %v826
      %v864 = vadd.f32 %v640, %v828
      %v865 = vadd.f32 %v643, %v831
      %v866 = vadd.f32 %v645, %v833
      %v867 = vld [vmem:[%s233] sm:$0xff]
      %v868 = vld [vmem:[%s233 + $0x8] sm:$0xff]
      %v869 = vld [vmem:[%s233 + $0x18] sm:$0xff]
      %v870 = vld [vmem:[%s233 + $0x20] sm:$0xff]
      %v871 = vld [vmem:[%s233 + $0x30] sm:$0xff]
      %v872 = vld [vmem:[%s233 + $0x38] sm:$0xff]
      %v873 = vld [vmem:[%s233 + $0x48] sm:$0xff]
      %v874 = vld [vmem:[%s233 + $0x50] sm:$0xff]
      %v875 = vld [vmem:[%s233 + $0x60] sm:$0xff]
      %v876 = vld [vmem:[%s233 + $0x68] sm:$0xff]
      %v877 = vld [vmem:[%s233 + $0x78] sm:$0xff]
      %v878 = vld [vmem:[%s233 + $0x80] sm:$0xff]
      %v879 = vld [vmem:[%s233 + $0x90] sm:$0xff]
      %v880 = vld [vmem:[%s233 + $0x98] sm:$0xff]
      %v881 = vld [vmem:[%s233 + $0xa8] sm:$0xff]
      %v882 = vld [vmem:[%s233 + $0xb0] sm:$0xff]
      %v883 = vld [vmem:[%s233 + $0xc0] sm:$0xff]
      %v884 = vld [vmem:[%s233 + $0xc8] sm:$0xff]
      %v885 = vld [vmem:[%s233 + $0xd8] sm:$0xff]
      %v886 = vld [vmem:[%s233 + $0xe0] sm:$0xff]
      %v887 = vld [vmem:[%s233 + $0xf0] sm:$0xff]
      %v888 = vld [vmem:[%s233 + $0xf8] sm:$0xff]
      %v889 = vld [vmem:[%s233 + $0x108] sm:$0xff]
      %v890 = vld [vmem:[%s233 + $0x110] sm:$0xff]
      %v891 = vld [vmem:[%s233 + $0x120] sm:$0xff]
      %v892 = vld [vmem:[%s233 + $0x128] sm:$0xff]
      %v893 = vld [vmem:[%s233 + $0x138] sm:$0xff]
      %v894 = vld [vmem:[%s233 + $0x140] sm:$0xff]
      %v895 = vld [vmem:[%s233 + $0x150] sm:$0xff]
      %v896 = vld [vmem:[%s233 + $0x158] sm:$0xff]
      %v897 = vld [vmem:[%s233 + $0x168] sm:$0xff]
      %v898 = vld [vmem:[%s233 + $0x170] sm:$0xff]
      %v899 = vpack.c.bf16 %v868, %v867
      %v900 = vpack.c.bf16 %v870, %v869
      %v901 = vpack.c.bf16 %v872, %v871
      %v902 = vpack.c.bf16 %v874, %v873
      %v903 = vpack.c.bf16 %v876, %v875
      %v904 = vpack.c.bf16 %v878, %v877
      %v905 = vpack.c.bf16 %v880, %v879
      %v906 = vpack.c.bf16 %v882, %v881
      %v907 = vpack.c.bf16 %v884, %v883
      %v908 = vpack.c.bf16 %v886, %v885
      %v909 = vpack.c.bf16 %v888, %v887
      %v910 = vpack.c.bf16 %v890, %v889
      %v911 = vpack.c.bf16 %v892, %v891
      %v912 = vpack.c.bf16 %v894, %v893
      %v913 = vpack.c.bf16 %v896, %v895
      %v914 = vpack.c.bf16 %v898, %v897
      %v916 = vunpack.c.l.b16 %v224
      %v917 = vpack.c.b16 %v916, %v916
      %v918 = vrot.slane %v917, 2
      %v920 = vsel %vm145, %v899, 0
      %v923 = vsel %vm145, %v900, 0
      %v926 = vsel %vm145, %v901, 0
      %v929 = vsel %vm145, %v902, 0
      %v932 = vsel %vm145, %v903, 0
      %v935 = vsel %vm145, %v904, 0
      %v938 = vsel %vm145, %v905, 0
      %v941 = vsel %vm145, %v906, 0
      %v944 = vsel %vm145, %v907, 0
      %v947 = vsel %vm145, %v908, 0
      %v950 = vsel %vm145, %v909, 0
      %v953 = vsel %vm145, %v910, 0
      %v956 = vsel %vm145, %v911, 0
      %v959 = vsel %vm145, %v912, 0
      %v962 = vsel %vm145, %v913, 0
      %v965 = vsel %vm145, %v914, 0
      %v968 = vsel %vm414, %v918, 0
      %970 = vmatpush.bf16.msra.mxu0 0
      %971 = vmatpush.bf16.msra.mxu0 0
      %972 = vmatpush.bf16.msra.mxu0 0
      %973 = vmatpush.bf16.msra.mxu0 0
      %974 = vmatpush.bf16.msra.mxu0 0
      %975 = vmatpush.bf16.msra.mxu0 0
      %976 = vmatpush.bf16.msra.mxu0 0
      %977 = vmatpush.bf16.msra.mxu0 %v968
      %978 = vmatmul.bf16.gmra.mxu0 %v920
      %v979 = vpop.f32.mrf.mxu0
      %v980 = vadd.f32 0.0, %v979
      %v981 = vpop.f32.mrf.mxu0
      %v982 = vadd.f32 0.0, %v981
      %983 = vmatmul.bf16.gmra.mxu0 %v923
      %v984 = vpop.f32.mrf.mxu0
      %v985 = vadd.f32 0.0, %v984
      %v986 = vpop.f32.mrf.mxu0
      %v987 = vadd.f32 0.0, %v986
      %988 = vmatmul.bf16.gmra.mxu0 %v926
      %v989 = vpop.f32.mrf.mxu0
      %v990 = vadd.f32 0.0, %v989
      %v991 = vpop.f32.mrf.mxu0
      %v992 = vadd.f32 0.0, %v991
      %993 = vmatmul.bf16.gmra.mxu0 %v929
      %v994 = vpop.f32.mrf.mxu0
      %v995 = vadd.f32 0.0, %v994
      %v996 = vpop.f32.mrf.mxu0
      %v997 = vadd.f32 0.0, %v996
      %998 = vmatmul.bf16.gmra.mxu0 %v932
      %v999 = vpop.f32.mrf.mxu0
      %v1000 = vadd.f32 0.0, %v999
      %v1001 = vpop.f32.mrf.mxu0
      %v1002 = vadd.f32 0.0, %v1001
      %1003 = vmatmul.bf16.gmra.mxu0 %v935
      %v1004 = vpop.f32.mrf.mxu0
      %v1005 = vadd.f32 0.0, %v1004
      %v1006 = vpop.f32.mrf.mxu0
      %v1007 = vadd.f32 0.0, %v1006
      %1008 = vmatmul.bf16.gmra.mxu0 %v938
      %v1009 = vpop.f32.mrf.mxu0
      %v1010 = vadd.f32 0.0, %v1009
      %v1011 = vpop.f32.mrf.mxu0
      %v1012 = vadd.f32 0.0, %v1011
      %1013 = vmatmul.bf16.gmra.mxu0 %v941
      %v1014 = vpop.f32.mrf.mxu0
      %v1015 = vadd.f32 0.0, %v1014
      %v1016 = vpop.f32.mrf.mxu0
      %v1017 = vadd.f32 0.0, %v1016
      %1018 = vmatmul.bf16.gmra.mxu0 %v944
      %v1019 = vpop.f32.mrf.mxu0
      %v1020 = vadd.f32 0.0, %v1019
      %v1021 = vpop.f32.mrf.mxu0
      %v1022 = vadd.f32 0.0, %v1021
      %1023 = vmatmul.bf16.gmra.mxu0 %v947
      %v1024 = vpop.f32.mrf.mxu0
      %v1025 = vadd.f32 0.0, %v1024
      %v1026 = vpop.f32.mrf.mxu0
      %v1027 = vadd.f32 0.0, %v1026
      %1028 = vmatmul.bf16.gmra.mxu0 %v950
      %v1029 = vpop.f32.mrf.mxu0
      %v1030 = vadd.f32 0.0, %v1029
      %v1031 = vpop.f32.mrf.mxu0
      %v1032 = vadd.f32 0.0, %v1031
      %1033 = vmatmul.bf16.gmra.mxu0 %v953
      %v1034 = vpop.f32.mrf.mxu0
      %v1035 = vadd.f32 0.0, %v1034
      %v1036 = vpop.f32.mrf.mxu0
      %v1037 = vadd.f32 0.0, %v1036
      %1038 = vmatmul.bf16.gmra.mxu0 %v956
      %v1039 = vpop.f32.mrf.mxu0
      %v1040 = vadd.f32 0.0, %v1039
      %v1041 = vpop.f32.mrf.mxu0
      %v1042 = vadd.f32 0.0, %v1041
      %1043 = vmatmul.bf16.gmra.mxu0 %v959
      %v1044 = vpop.f32.mrf.mxu0
      %v1045 = vadd.f32 0.0, %v1044
      %v1046 = vpop.f32.mrf.mxu0
      %v1047 = vadd.f32 0.0, %v1046
      %1048 = vmatmul.bf16.gmra.mxu0 %v962
      %v1049 = vpop.f32.mrf.mxu0
      %v1050 = vadd.f32 0.0, %v1049
      %v1051 = vpop.f32.mrf.mxu0
      %v1052 = vadd.f32 0.0, %v1051
      %1053 = vmatmul.bf16.gmra.mxu0 %v965
      %v1054 = vpop.f32.mrf.mxu0
      %v1055 = vadd.f32 0.0, %v1054
      %v1056 = vpop.f32.mrf.mxu0
      %v1057 = vadd.f32 0.0, %v1056
      %1058 = vdwg.mxu0
      %v1059 = vadd.f32 %v835, %v980
      %v1060 = vadd.f32 %v836, %v982
      %v1061 = vadd.f32 %v837, %v985
      %v1062 = vadd.f32 %v838, %v987
      %v1063 = vadd.f32 %v839, %v990
      %v1064 = vadd.f32 %v840, %v992
      %v1065 = vadd.f32 %v841, %v995
      %v1066 = vadd.f32 %v842, %v997
      %v1067 = vadd.f32 %v843, %v1000
      %v1068 = vadd.f32 %v844, %v1002
      %v1069 = vadd.f32 %v845, %v1005
      %v1070 = vadd.f32 %v846, %v1007
      %v1071 = vadd.f32 %v847, %v1010
      %v1072 = vadd.f32 %v848, %v1012
      %v1073 = vadd.f32 %v849, %v1015
      %v1074 = vadd.f32 %v850, %v1017
      %v1075 = vadd.f32 %v851, %v1020
      %v1076 = vadd.f32 %v852, %v1022
      %v1077 = vadd.f32 %v853, %v1025
      %v1078 = vadd.f32 %v854, %v1027
      %v1079 = vadd.f32 %v855, %v1030
      %v1080 = vadd.f32 %v856, %v1032
      %v1081 = vadd.f32 %v857, %v1035
      %v1082 = vadd.f32 %v858, %v1037
      %v1083 = vadd.f32 %v859, %v1040
      %v1084 = vadd.f32 %v860, %v1042
      %v1085 = vadd.f32 %v861, %v1045
      %v1086 = vadd.f32 %v862, %v1047
      %v1087 = vadd.f32 %v863, %v1050
      %v1088 = vadd.f32 %v864, %v1052
      %v1089 = vadd.f32 %v865, %v1055
      %v1090 = vadd.f32 %v866, %v1057
      %v1091 = vld [vmem:[%s233 + $0x1] sm:$0xff]
      %v1092 = vld [vmem:[%s233 + $0x9] sm:$0xff]
      %v1093 = vld [vmem:[%s233 + $0x19] sm:$0xff]
      %v1094 = vld [vmem:[%s233 + $0x21] sm:$0xff]
      %v1095 = vld [vmem:[%s233 + $0x31] sm:$0xff]
      %v1096 = vld [vmem:[%s233 + $0x39] sm:$0xff]
      %v1097 = vld [vmem:[%s233 + $0x49] sm:$0xff]
      %v1098 = vld [vmem:[%s233 + $0x51] sm:$0xff]
      %v1099 = vld [vmem:[%s233 + $0x61] sm:$0xff]
      %v1100 = vld [vmem:[%s233 + $0x69] sm:$0xff]
      %v1101 = vld [vmem:[%s233 + $0x79] sm:$0xff]
      %v1102 = vld [vmem:[%s233 + $0x81] sm:$0xff]
      %v1103 = vld [vmem:[%s233 + $0x91] sm:$0xff]
      %v1104 = vld [vmem:[%s233 + $0x99] sm:$0xff]
      %v1105 = vld [vmem:[%s233 + $0xa9] sm:$0xff]
      %v1106 = vld [vmem:[%s233 + $0xb1] sm:$0xff]
      %v1107 = vld [vmem:[%s233 + $0xc1] sm:$0xff]
      %v1108 = vld [vmem:[%s233 + $0xc9] sm:$0xff]
      %v1109 = vld [vmem:[%s233 + $0xd9] sm:$0xff]
      %v1110 = vld [vmem:[%s233 + $0xe1] sm:$0xff]
      %v1111 = vld [vmem:[%s233 + $0xf1] sm:$0xff]
      %v1112 = vld [vmem:[%s233 + $0xf9] sm:$0xff]
      %v1113 = vld [vmem:[%s233 + $0x109] sm:$0xff]
      %v1114 = vld [vmem:[%s233 + $0x111] sm:$0xff]
      %v1115 = vld [vmem:[%s233 + $0x121] sm:$0xff]
      %v1116 = vld [vmem:[%s233 + $0x129] sm:$0xff]
      %v1117 = vld [vmem:[%s233 + $0x139] sm:$0xff]
      %v1118 = vld [vmem:[%s233 + $0x141] sm:$0xff]
      %v1119 = vld [vmem:[%s233 + $0x151] sm:$0xff]
      %v1120 = vld [vmem:[%s233 + $0x159] sm:$0xff]
      %v1121 = vld [vmem:[%s233 + $0x169] sm:$0xff]
      %v1122 = vld [vmem:[%s233 + $0x171] sm:$0xff]
      %v1123 = vpack.c.bf16 %v1092, %v1091
      %v1124 = vpack.c.bf16 %v1094, %v1093
      %v1125 = vpack.c.bf16 %v1096, %v1095
      %v1126 = vpack.c.bf16 %v1098, %v1097
      %v1127 = vpack.c.bf16 %v1100, %v1099
      %v1128 = vpack.c.bf16 %v1102, %v1101
      %v1129 = vpack.c.bf16 %v1104, %v1103
      %v1130 = vpack.c.bf16 %v1106, %v1105
      %v1131 = vpack.c.bf16 %v1108, %v1107
      %v1132 = vpack.c.bf16 %v1110, %v1109
      %v1133 = vpack.c.bf16 %v1112, %v1111
      %v1134 = vpack.c.bf16 %v1114, %v1113
      %v1135 = vpack.c.bf16 %v1116, %v1115
      %v1136 = vpack.c.bf16 %v1118, %v1117
      %v1137 = vpack.c.bf16 %v1120, %v1119
      %v1138 = vpack.c.bf16 %v1122, %v1121
      %v1140 = vsel %vm145, %v1123, 0
      %v1143 = vsel %vm145, %v1124, 0
      %v1146 = vsel %vm145, %v1125, 0
      %v1149 = vsel %vm145, %v1126, 0
      %v1152 = vsel %vm145, %v1127, 0
      %v1155 = vsel %vm145, %v1128, 0
      %v1158 = vsel %vm145, %v1129, 0
      %v1161 = vsel %vm145, %v1130, 0
      %v1164 = vsel %vm145, %v1131, 0
      %v1167 = vsel %vm145, %v1132, 0
      %v1170 = vsel %vm145, %v1133, 0
      %v1173 = vsel %vm145, %v1134, 0
      %v1176 = vsel %vm145, %v1135, 0
      %v1179 = vsel %vm145, %v1136, 0
      %v1182 = vsel %vm145, %v1137, 0
      %v1185 = vsel %vm145, %v1138, 0
      %v1188 = vsel %vm414, %v225, 0
      %1190 = vmatpush.bf16.msra.mxu0 0
      %1191 = vmatpush.bf16.msra.mxu0 0
      %1192 = vmatpush.bf16.msra.mxu0 0
      %1193 = vmatpush.bf16.msra.mxu0 0
      %1194 = vmatpush.bf16.msra.mxu0 0
      %1195 = vmatpush.bf16.msra.mxu0 0
      %1196 = vmatpush.bf16.msra.mxu0 0
      %1197 = vmatpush.bf16.msra.mxu0 %v1188
      %1198 = vmatmul.bf16.gmra.mxu0 %v1140
      %v1199 = vpop.f32.mrf.mxu0
      %v1200 = vadd.f32 0.0, %v1199
      %v1201 = vpop.f32.mrf.mxu0
      %v1202 = vadd.f32 0.0, %v1201
      %1203 = vmatmul.bf16.gmra.mxu0 %v1143
      %v1204 = vpop.f32.mrf.mxu0
      %v1205 = vadd.f32 0.0, %v1204
      %v1206 = vpop.f32.mrf.mxu0
      %v1207 = vadd.f32 0.0, %v1206
      %1208 = vmatmul.bf16.gmra.mxu0 %v1146
      %v1209 = vpop.f32.mrf.mxu0
      %v1210 = vadd.f32 0.0, %v1209
      %v1211 = vpop.f32.mrf.mxu0
      %v1212 = vadd.f32 0.0, %v1211
      %1213 = vmatmul.bf16.gmra.mxu0 %v1149
      %v1214 = vpop.f32.mrf.mxu0
      %v1215 = vadd.f32 0.0, %v1214
      %v1216 = vpop.f32.mrf.mxu0
      %v1217 = vadd.f32 0.0, %v1216
      %1218 = vmatmul.bf16.gmra.mxu0 %v1152
      %v1219 = vpop.f32.mrf.mxu0
      %v1220 = vadd.f32 0.0, %v1219
      %v1221 = vpop.f32.mrf.mxu0
      %v1222 = vadd.f32 0.0, %v1221
      %1223 = vmatmul.bf16.gmra.mxu0 %v1155
      %v1224 = vpop.f32.mrf.mxu0
      %v1225 = vadd.f32 0.0, %v1224
      %v1226 = vpop.f32.mrf.mxu0
      %v1227 = vadd.f32 0.0, %v1226
      %1228 = vmatmul.bf16.gmra.mxu0 %v1158
      %v1229 = vpop.f32.mrf.mxu0
      %v1230 = vadd.f32 0.0, %v1229
      %v1231 = vpop.f32.mrf.mxu0
      %v1232 = vadd.f32 0.0, %v1231
      %1233 = vmatmul.bf16.gmra.mxu0 %v1161
      %v1234 = vpop.f32.mrf.mxu0
      %v1235 = vadd.f32 0.0, %v1234
      %v1236 = vpop.f32.mrf.mxu0
      %v1237 = vadd.f32 0.0, %v1236
      %1238 = vmatmul.bf16.gmra.mxu0 %v1164
      %v1239 = vpop.f32.mrf.mxu0
      %v1240 = vadd.f32 0.0, %v1239
      %v1241 = vpop.f32.mrf.mxu0
      %v1242 = vadd.f32 0.0, %v1241
      %1243 = vmatmul.bf16.gmra.mxu0 %v1167
      %v1244 = vpop.f32.mrf.mxu0
      %v1245 = vadd.f32 0.0, %v1244
      %v1246 = vpop.f32.mrf.mxu0
      %v1247 = vadd.f32 0.0, %v1246
      %1248 = vmatmul.bf16.gmra.mxu0 %v1170
      %v1249 = vpop.f32.mrf.mxu0
      %v1250 = vadd.f32 0.0, %v1249
      %v1251 = vpop.f32.mrf.mxu0
      %v1252 = vadd.f32 0.0, %v1251
      %1253 = vmatmul.bf16.gmra.mxu0 %v1173
      %v1254 = vpop.f32.mrf.mxu0
      %v1255 = vadd.f32 0.0, %v1254
      %v1256 = vpop.f32.mrf.mxu0
      %v1257 = vadd.f32 0.0, %v1256
      %1258 = vmatmul.bf16.gmra.mxu0 %v1176
      %v1259 = vpop.f32.mrf.mxu0
      %v1260 = vadd.f32 0.0, %v1259
      %v1261 = vpop.f32.mrf.mxu0
      %v1262 = vadd.f32 0.0, %v1261
      %1263 = vmatmul.bf16.gmra.mxu0 %v1179
      %v1264 = vpop.f32.mrf.mxu0
      %v1265 = vadd.f32 0.0, %v1264
      %v1266 = vpop.f32.mrf.mxu0
      %v1267 = vadd.f32 0.0, %v1266
      %1268 = vmatmul.bf16.gmra.mxu0 %v1182
      %v1269 = vpop.f32.mrf.mxu0
      %v1270 = vadd.f32 0.0, %v1269
      %v1271 = vpop.f32.mrf.mxu0
      %v1272 = vadd.f32 0.0, %v1271
      %1273 = vmatmul.bf16.gmra.mxu0 %v1185
      %v1274 = vpop.f32.mrf.mxu0
      %v1275 = vadd.f32 0.0, %v1274
      %v1276 = vpop.f32.mrf.mxu0
      %v1277 = vadd.f32 0.0, %v1276
      %1278 = vdwg.mxu0
      %v1279 = vadd.f32 %v1059, %v1200
      %v1280 = vadd.f32 %v1060, %v1202
      %v1281 = vadd.f32 %v1061, %v1205
      %v1282 = vadd.f32 %v1062, %v1207
      %v1283 = vadd.f32 %v1063, %v1210
      %v1284 = vadd.f32 %v1064, %v1212
      %v1285 = vadd.f32 %v1065, %v1215
      %v1286 = vadd.f32 %v1066, %v1217
      %v1287 = vadd.f32 %v1067, %v1220
      %v1288 = vadd.f32 %v1068, %v1222
      %v1289 = vadd.f32 %v1069, %v1225
      %v1290 = vadd.f32 %v1070, %v1227
      %v1291 = vadd.f32 %v1071, %v1230
      %v1292 = vadd.f32 %v1072, %v1232
      %v1293 = vadd.f32 %v1073, %v1235
      %v1294 = vadd.f32 %v1074, %v1237
      %v1295 = vadd.f32 %v1075, %v1240
      %v1296 = vadd.f32 %v1076, %v1242
      %v1297 = vadd.f32 %v1077, %v1245
      %v1298 = vadd.f32 %v1078, %v1247
      %v1299 = vadd.f32 %v1079, %v1250
      %v1300 = vadd.f32 %v1080, %v1252
      %v1301 = vadd.f32 %v1081, %v1255
      %v1302 = vadd.f32 %v1082, %v1257
      %v1303 = vadd.f32 %v1083, %v1260
      %v1304 = vadd.f32 %v1084, %v1262
      %v1305 = vadd.f32 %v1085, %v1265
      %v1306 = vadd.f32 %v1086, %v1267
      %v1307 = vadd.f32 %v1087, %v1270
      %v1308 = vadd.f32 %v1088, %v1272
      %v1309 = vadd.f32 %v1089, %v1275
      %v1310 = vadd.f32 %v1090, %v1277
      %v1311 = vld [vmem:[%s233 + $0x2] sm:$0xff]
      %v1312 = vld [vmem:[%s233 + $0xa] sm:$0xff]
      %v1313 = vld [vmem:[%s233 + $0x1a] sm:$0xff]
      %v1314 = vld [vmem:[%s233 + $0x22] sm:$0xff]
      %v1315 = vld [vmem:[%s233 + $0x32] sm:$0xff]
      %v1316 = vld [vmem:[%s233 + $0x3a] sm:$0xff]
      %v1317 = vld [vmem:[%s233 + $0x4a] sm:$0xff]
      %v1318 = vld [vmem:[%s233 + $0x52] sm:$0xff]
      %v1319 = vld [vmem:[%s233 + $0x62] sm:$0xff]
      %v1320 = vld [vmem:[%s233 + $0x6a] sm:$0xff]
      %v1321 = vld [vmem:[%s233 + $0x7a] sm:$0xff]
      %v1322 = vld [vmem:[%s233 + $0x82] sm:$0xff]
      %v1323 = vld [vmem:[%s233 + $0x92] sm:$0xff]
      %v1324 = vld [vmem:[%s233 + $0x9a] sm:$0xff]
      %v1325 = vld [vmem:[%s233 + $0xaa] sm:$0xff]
      %v1326 = vld [vmem:[%s233 + $0xb2] sm:$0xff]
      %v1327 = vld [vmem:[%s233 + $0xc2] sm:$0xff]
      %v1328 = vld [vmem:[%s233 + $0xca] sm:$0xff]
      %v1329 = vld [vmem:[%s233 + $0xda] sm:$0xff]
      %v1330 = vld [vmem:[%s233 + $0xe2] sm:$0xff]
      %v1331 = vld [vmem:[%s233 + $0xf2] sm:$0xff]
      %v1332 = vld [vmem:[%s233 + $0xfa] sm:$0xff]
      %v1333 = vld [vmem:[%s233 + $0x10a] sm:$0xff]
      %v1334 = vld [vmem:[%s233 + $0x112] sm:$0xff]
      %v1335 = vld [vmem:[%s233 + $0x122] sm:$0xff]
      %v1336 = vld [vmem:[%s233 + $0x12a] sm:$0xff]
      %v1337 = vld [vmem:[%s233 + $0x13a] sm:$0xff]
      %v1338 = vld [vmem:[%s233 + $0x142] sm:$0xff]
      %v1339 = vld [vmem:[%s233 + $0x152] sm:$0xff]
      %v1340 = vld [vmem:[%s233 + $0x15a] sm:$0xff]
      %v1341 = vld [vmem:[%s233 + $0x16a] sm:$0xff]
      %v1342 = vld [vmem:[%s233 + $0x172] sm:$0xff]
      %v1343 = vpack.c.bf16 %v1312, %v1311
      %v1344 = vpack.c.bf16 %v1314, %v1313
      %v1345 = vpack.c.bf16 %v1316, %v1315
      %v1346 = vpack.c.bf16 %v1318, %v1317
      %v1347 = vpack.c.bf16 %v1320, %v1319
      %v1348 = vpack.c.bf16 %v1322, %v1321
      %v1349 = vpack.c.bf16 %v1324, %v1323
      %v1350 = vpack.c.bf16 %v1326, %v1325
      %v1351 = vpack.c.bf16 %v1328, %v1327
      %v1352 = vpack.c.bf16 %v1330, %v1329
      %v1353 = vpack.c.bf16 %v1332, %v1331
      %v1354 = vpack.c.bf16 %v1334, %v1333
      %v1355 = vpack.c.bf16 %v1336, %v1335
      %v1356 = vpack.c.bf16 %v1338, %v1337
      %v1357 = vpack.c.bf16 %v1340, %v1339
      %v1358 = vpack.c.bf16 %v1342, %v1341
      %v1360 = vunpack.c.l.b16 %v225
      %v1361 = vpack.c.b16 %v1360, %v1360
      %v1362 = vrot.slane %v1361, 2
      %v1364 = vsel %vm145, %v1343, 0
      %v1367 = vsel %vm145, %v1344, 0
      %v1370 = vsel %vm145, %v1345, 0
      %v1373 = vsel %vm145, %v1346, 0
      %v1376 = vsel %vm145, %v1347, 0
      %v1379 = vsel %vm145, %v1348, 0
      %v1382 = vsel %vm145, %v1349, 0
      %v1385 = vsel %vm145, %v1350, 0
      %v1388 = vsel %vm145, %v1351, 0
      %v1391 = vsel %vm145, %v1352, 0
      %v1394 = vsel %vm145, %v1353, 0
      %v1397 = vsel %vm145, %v1354, 0
      %v1400 = vsel %vm145, %v1355, 0
      %v1403 = vsel %vm145, %v1356, 0
      %v1406 = vsel %vm145, %v1357, 0
      %v1409 = vsel %vm145, %v1358, 0
      %v1412 = vsel %vm414, %v1362, 0
      %1414 = vmatpush.bf16.msra.mxu0 0
      %1415 = vmatpush.bf16.msra.mxu0 0
      %1416 = vmatpush.bf16.msra.mxu0 0
      %1417 = vmatpush.bf16.msra.mxu0 0
      %1418 = vmatpush.bf16.msra.mxu0 0
      %1419 = vmatpush.bf16.msra.mxu0 0
      %1420 = vmatpush.bf16.msra.mxu0 0
      %1421 = vmatpush.bf16.msra.mxu0 %v1412
      %1422 = vmatmul.bf16.gmra.mxu0 %v1364
      %v1423 = vpop.f32.mrf.mxu0
      %v1424 = vadd.f32 0.0, %v1423
      %v1425 = vpop.f32.mrf.mxu0
      %v1426 = vadd.f32 0.0, %v1425
      %1427 = vmatmul.bf16.gmra.mxu0 %v1367
      %v1428 = vpop.f32.mrf.mxu0
      %v1429 = vadd.f32 0.0, %v1428
      %v1430 = vpop.f32.mrf.mxu0
      %v1431 = vadd.f32 0.0, %v1430
      %1432 = vmatmul.bf16.gmra.mxu0 %v1370
      %v1433 = vpop.f32.mrf.mxu0
      %v1434 = vadd.f32 0.0, %v1433
      %v1435 = vpop.f32.mrf.mxu0
      %v1436 = vadd.f32 0.0, %v1435
      %1437 = vmatmul.bf16.gmra.mxu0 %v1373
      %v1438 = vpop.f32.mrf.mxu0
      %v1439 = vadd.f32 0.0, %v1438
      %v1440 = vpop.f32.mrf.mxu0
      %v1441 = vadd.f32 0.0, %v1440
      %1442 = vmatmul.bf16.gmra.mxu0 %v1376
      %v1443 = vpop.f32.mrf.mxu0
      %v1444 = vadd.f32 0.0, %v1443
      %v1445 = vpop.f32.mrf.mxu0
      %v1446 = vadd.f32 0.0, %v1445
      %1447 = vmatmul.bf16.gmra.mxu0 %v1379
      %v1448 = vpop.f32.mrf.mxu0
      %v1449 = vadd.f32 0.0, %v1448
      %v1450 = vpop.f32.mrf.mxu0
      %v1451 = vadd.f32 0.0, %v1450
      %1452 = vmatmul.bf16.gmra.mxu0 %v1382
      %v1453 = vpop.f32.mrf.mxu0
      %v1454 = vadd.f32 0.0, %v1453
      %v1455 = vpop.f32.mrf.mxu0
      %v1456 = vadd.f32 0.0, %v1455
      %1457 = vmatmul.bf16.gmra.mxu0 %v1385
      %v1458 = vpop.f32.mrf.mxu0
      %v1459 = vadd.f32 0.0, %v1458
      %v1460 = vpop.f32.mrf.mxu0
      %v1461 = vadd.f32 0.0, %v1460
      %1462 = vmatmul.bf16.gmra.mxu0 %v1388
      %v1463 = vpop.f32.mrf.mxu0
      %v1464 = vadd.f32 0.0, %v1463
      %v1465 = vpop.f32.mrf.mxu0
      %v1466 = vadd.f32 0.0, %v1465
      %1467 = vmatmul.bf16.gmra.mxu0 %v1391
      %v1468 = vpop.f32.mrf.mxu0
      %v1469 = vadd.f32 0.0, %v1468
      %v1470 = vpop.f32.mrf.mxu0
      %v1471 = vadd.f32 0.0, %v1470
      %1472 = vmatmul.bf16.gmra.mxu0 %v1394
      %v1473 = vpop.f32.mrf.mxu0
      %v1474 = vadd.f32 0.0, %v1473
      %v1475 = vpop.f32.mrf.mxu0
      %v1476 = vadd.f32 0.0, %v1475
      %1477 = vmatmul.bf16.gmra.mxu0 %v1397
      %v1478 = vpop.f32.mrf.mxu0
      %v1479 = vadd.f32 0.0, %v1478
      %v1480 = vpop.f32.mrf.mxu0
      %v1481 = vadd.f32 0.0, %v1480
      %1482 = vmatmul.bf16.gmra.mxu0 %v1400
      %v1483 = vpop.f32.mrf.mxu0
      %v1484 = vadd.f32 0.0, %v1483
      %v1485 = vpop.f32.mrf.mxu0
      %v1486 = vadd.f32 0.0, %v1485
      %1487 = vmatmul.bf16.gmra.mxu0 %v1403
      %v1488 = vpop.f32.mrf.mxu0
      %v1489 = vadd.f32 0.0, %v1488
      %v1490 = vpop.f32.mrf.mxu0
      %v1491 = vadd.f32 0.0, %v1490
      %1492 = vmatmul.bf16.gmra.mxu0 %v1406
      %v1493 = vpop.f32.mrf.mxu0
      %v1494 = vadd.f32 0.0, %v1493
      %v1495 = vpop.f32.mrf.mxu0
      %v1496 = vadd.f32 0.0, %v1495
      %1497 = vmatmul.bf16.gmra.mxu0 %v1409
      %v1498 = vpop.f32.mrf.mxu0
      %v1499 = vadd.f32 0.0, %v1498
      %v1500 = vpop.f32.mrf.mxu0
      %v1501 = vadd.f32 0.0, %v1500
      %1502 = vdwg.mxu0
      %v1503 = vadd.f32 %v1279, %v1424
      %v1504 = vadd.f32 %v1280, %v1426
      %v1505 = vadd.f32 %v1281, %v1429
      %v1506 = vadd.f32 %v1282, %v1431
      %v1507 = vadd.f32 %v1283, %v1434
      %v1508 = vadd.f32 %v1284, %v1436
      %v1509 = vadd.f32 %v1285, %v1439
      %v1510 = vadd.f32 %v1286, %v1441
      %v1511 = vadd.f32 %v1287, %v1444
      %v1512 = vadd.f32 %v1288, %v1446
      %v1513 = vadd.f32 %v1289, %v1449
      %v1514 = vadd.f32 %v1290, %v1451
      %v1515 = vadd.f32 %v1291, %v1454
      %v1516 = vadd.f32 %v1292, %v1456
      %v1517 = vadd.f32 %v1293, %v1459
      %v1518 = vadd.f32 %v1294, %v1461
      %v1519 = vadd.f32 %v1295, %v1464
      %v1520 = vadd.f32 %v1296, %v1466
      %v1521 = vadd.f32 %v1297, %v1469
      %v1522 = vadd.f32 %v1298, %v1471
      %v1523 = vadd.f32 %v1299, %v1474
      %v1524 = vadd.f32 %v1300, %v1476
      %v1525 = vadd.f32 %v1301, %v1479
      %v1526 = vadd.f32 %v1302, %v1481
      %v1527 = vadd.f32 %v1303, %v1484
      %v1528 = vadd.f32 %v1304, %v1486
      %v1529 = vadd.f32 %v1305, %v1489
      %v1530 = vadd.f32 %v1306, %v1491
      %v1531 = vadd.f32 %v1307, %v1494
      %v1532 = vadd.f32 %v1308, %v1496
      %v1533 = vadd.f32 %v1309, %v1499
      %v1534 = vadd.f32 %v1310, %v1501
      %s1535 = scalar_lea.vmem [#allocation2], 48
      %v1536 = vld [vmem:[%s1535] sm:$0xff]
      %v1537 = vld [vmem:[%s1535 + $0x8] sm:$0xff]
      %v1538 = vld [vmem:[%s1535 + $0x18] sm:$0xff]
      %v1539 = vld [vmem:[%s1535 + $0x20] sm:$0xff]
      %v1540 = vld [vmem:[%s1535 + $0x30] sm:$0xff]
      %v1541 = vld [vmem:[%s1535 + $0x38] sm:$0xff]
      %v1542 = vld [vmem:[%s1535 + $0x48] sm:$0xff]
      %v1543 = vld [vmem:[%s1535 + $0x50] sm:$0xff]
      %v1544 = vld [vmem:[%s1535 + $0x60] sm:$0xff]
      %v1545 = vld [vmem:[%s1535 + $0x68] sm:$0xff]
      %v1546 = vld [vmem:[%s1535 + $0x78] sm:$0xff]
      %v1547 = vld [vmem:[%s1535 + $0x80] sm:$0xff]
      %v1548 = vld [vmem:[%s1535 + $0x90] sm:$0xff]
      %v1549 = vld [vmem:[%s1535 + $0x98] sm:$0xff]
      %v1550 = vld [vmem:[%s1535 + $0xa8] sm:$0xff]
      %v1551 = vld [vmem:[%s1535 + $0xb0] sm:$0xff]
      %v1552 = vld [vmem:[%s1535 + $0xc0] sm:$0xff]
      %v1553 = vld [vmem:[%s1535 + $0xc8] sm:$0xff]
      %v1554 = vld [vmem:[%s1535 + $0xd8] sm:$0xff]
      %v1555 = vld [vmem:[%s1535 + $0xe0] sm:$0xff]
      %v1556 = vld [vmem:[%s1535 + $0xf0] sm:$0xff]
      %v1557 = vld [vmem:[%s1535 + $0xf8] sm:$0xff]
      %v1558 = vld [vmem:[%s1535 + $0x108] sm:$0xff]
      %v1559 = vld [vmem:[%s1535 + $0x110] sm:$0xff]
      %v1560 = vld [vmem:[%s1535 + $0x120] sm:$0xff]
      %v1561 = vld [vmem:[%s1535 + $0x128] sm:$0xff]
      %v1562 = vld [vmem:[%s1535 + $0x138] sm:$0xff]
      %v1563 = vld [vmem:[%s1535 + $0x140] sm:$0xff]
      %v1564 = vld [vmem:[%s1535 + $0x150] sm:$0xff]
      %v1565 = vld [vmem:[%s1535 + $0x158] sm:$0xff]
      %v1566 = vld [vmem:[%s1535 + $0x168] sm:$0xff]
      %v1567 = vld [vmem:[%s1535 + $0x170] sm:$0xff]
      %v1568 = vpack.c.bf16 %v1537, %v1536
      %v1569 = vpack.c.bf16 %v1539, %v1538
      %v1570 = vpack.c.bf16 %v1541, %v1540
      %v1571 = vpack.c.bf16 %v1543, %v1542
      %v1572 = vpack.c.bf16 %v1545, %v1544
      %v1573 = vpack.c.bf16 %v1547, %v1546
      %v1574 = vpack.c.bf16 %v1549, %v1548
      %v1575 = vpack.c.bf16 %v1551, %v1550
      %v1576 = vpack.c.bf16 %v1553, %v1552
      %v1577 = vpack.c.bf16 %v1555, %v1554
      %v1578 = vpack.c.bf16 %v1557, %v1556
      %v1579 = vpack.c.bf16 %v1559, %v1558
      %v1580 = vpack.c.bf16 %v1561, %v1560
      %v1581 = vpack.c.bf16 %v1563, %v1562
      %v1582 = vpack.c.bf16 %v1565, %v1564
      %v1583 = vpack.c.bf16 %v1567, %v1566
      %v1585 = vsel %vm145, %v1568, 0
      %v1588 = vsel %vm145, %v1569, 0
      %v1591 = vsel %vm145, %v1570, 0
      %v1594 = vsel %vm145, %v1571, 0
      %v1597 = vsel %vm145, %v1572, 0
      %v1600 = vsel %vm145, %v1573, 0
      %v1603 = vsel %vm145, %v1574, 0
      %v1606 = vsel %vm145, %v1575, 0
      %v1609 = vsel %vm145, %v1576, 0
      %v1612 = vsel %vm145, %v1577, 0
      %v1615 = vsel %vm145, %v1578, 0
      %v1618 = vsel %vm145, %v1579, 0
      %v1621 = vsel %vm145, %v1580, 0
      %v1624 = vsel %vm145, %v1581, 0
      %v1627 = vsel %vm145, %v1582, 0
      %v1630 = vsel %vm145, %v1583, 0
      %v1633 = vsel %vm414, %v226, 0
      %1635 = vmatpush.bf16.msra.mxu0 0
      %1636 = vmatpush.bf16.msra.mxu0 0
      %1637 = vmatpush.bf16.msra.mxu0 0
      %1638 = vmatpush.bf16.msra.mxu0 0
      %1639 = vmatpush.bf16.msra.mxu0 0
      %1640 = vmatpush.bf16.msra.mxu0 0
      %1641 = vmatpush.bf16.msra.mxu0 0
      %1642 = vmatpush.bf16.msra.mxu0 %v1633
      %1643 = vmatmul.bf16.gmra.mxu0 %v1585
      %v1644 = vpop.f32.mrf.mxu0
      %v1645 = vadd.f32 0.0, %v1644
      %v1646 = vpop.f32.mrf.mxu0
      %v1647 = vadd.f32 0.0, %v1646
      %1648 = vmatmul.bf16.gmra.mxu0 %v1588
      %v1649 = vpop.f32.mrf.mxu0
      %v1650 = vadd.f32 0.0, %v1649
      %v1651 = vpop.f32.mrf.mxu0
      %v1652 = vadd.f32 0.0, %v1651
      %1653 = vmatmul.bf16.gmra.mxu0 %v1591
      %v1654 = vpop.f32.mrf.mxu0
      %v1655 = vadd.f32 0.0, %v1654
      %v1656 = vpop.f32.mrf.mxu0
      %v1657 = vadd.f32 0.0, %v1656
      %1658 = vmatmul.bf16.gmra.mxu0 %v1594
      %v1659 = vpop.f32.mrf.mxu0
      %v1660 = vadd.f32 0.0, %v1659
      %v1661 = vpop.f32.mrf.mxu0
      %v1662 = vadd.f32 0.0, %v1661
      %1663 = vmatmul.bf16.gmra.mxu0 %v1597
      %v1664 = vpop.f32.mrf.mxu0
      %v1665 = vadd.f32 0.0, %v1664
      %v1666 = vpop.f32.mrf.mxu0
      %v1667 = vadd.f32 0.0, %v1666
      %1668 = vmatmul.bf16.gmra.mxu0 %v1600
      %v1669 = vpop.f32.mrf.mxu0
      %v1670 = vadd.f32 0.0, %v1669
      %v1671 = vpop.f32.mrf.mxu0
      %v1672 = vadd.f32 0.0, %v1671
      %1673 = vmatmul.bf16.gmra.mxu0 %v1603
      %v1674 = vpop.f32.mrf.mxu0
      %v1675 = vadd.f32 0.0, %v1674
      %v1676 = vpop.f32.mrf.mxu0
      %v1677 = vadd.f32 0.0, %v1676
      %1678 = vmatmul.bf16.gmra.mxu0 %v1606
      %v1679 = vpop.f32.mrf.mxu0
      %v1680 = vadd.f32 0.0, %v1679
      %v1681 = vpop.f32.mrf.mxu0
      %v1682 = vadd.f32 0.0, %v1681
      %1683 = vmatmul.bf16.gmra.mxu0 %v1609
      %v1684 = vpop.f32.mrf.mxu0
      %v1685 = vadd.f32 0.0, %v1684
      %v1686 = vpop.f32.mrf.mxu0
      %v1687 = vadd.f32 0.0, %v1686
      %1688 = vmatmul.bf16.gmra.mxu0 %v1612
      %v1689 = vpop.f32.mrf.mxu0
      %v1690 = vadd.f32 0.0, %v1689
      %v1691 = vpop.f32.mrf.mxu0
      %v1692 = vadd.f32 0.0, %v1691
      %1693 = vmatmul.bf16.gmra.mxu0 %v1615
      %v1694 = vpop.f32.mrf.mxu0
      %v1695 = vadd.f32 0.0, %v1694
      %v1696 = vpop.f32.mrf.mxu0
      %v1697 = vadd.f32 0.0, %v1696
      %1698 = vmatmul.bf16.gmra.mxu0 %v1618
      %v1699 = vpop.f32.mrf.mxu0
      %v1700 = vadd.f32 0.0, %v1699
      %v1701 = vpop.f32.mrf.mxu0
      %v1702 = vadd.f32 0.0, %v1701
      %1703 = vmatmul.bf16.gmra.mxu0 %v1621
      %v1704 = vpop.f32.mrf.mxu0
      %v1705 = vadd.f32 0.0, %v1704
      %v1706 = vpop.f32.mrf.mxu0
      %v1707 = vadd.f32 0.0, %v1706
      %1708 = vmatmul.bf16.gmra.mxu0 %v1624
      %v1709 = vpop.f32.mrf.mxu0
      %v1710 = vadd.f32 0.0, %v1709
      %v1711 = vpop.f32.mrf.mxu0
      %v1712 = vadd.f32 0.0, %v1711
      %1713 = vmatmul.bf16.gmra.mxu0 %v1627
      %v1714 = vpop.f32.mrf.mxu0
      %v1715 = vadd.f32 0.0, %v1714
      %v1716 = vpop.f32.mrf.mxu0
      %v1717 = vadd.f32 0.0, %v1716
      %1718 = vmatmul.bf16.gmra.mxu0 %v1630
      %v1719 = vpop.f32.mrf.mxu0
      %v1720 = vadd.f32 0.0, %v1719
      %v1721 = vpop.f32.mrf.mxu0
      %v1722 = vadd.f32 0.0, %v1721
      %1723 = vdwg.mxu0
      %v1724 = vadd.f32 %v1503, %v1645
      %v1725 = vadd.f32 %v1504, %v1647
      %v1726 = vadd.f32 %v1505, %v1650
      %v1727 = vadd.f32 %v1506, %v1652
      %v1728 = vadd.f32 %v1507, %v1655
      %v1729 = vadd.f32 %v1508, %v1657
      %v1730 = vadd.f32 %v1509, %v1660
      %v1731 = vadd.f32 %v1510, %v1662
      %v1732 = vadd.f32 %v1511, %v1665
      %v1733 = vadd.f32 %v1512, %v1667
      %v1734 = vadd.f32 %v1513, %v1670
      %v1735 = vadd.f32 %v1514, %v1672
      %v1736 = vadd.f32 %v1515, %v1675
      %v1737 = vadd.f32 %v1516, %v1677
      %v1738 = vadd.f32 %v1517, %v1680
      %v1739 = vadd.f32 %v1518, %v1682
      %v1740 = vadd.f32 %v1519, %v1685
      %v1741 = vadd.f32 %v1520, %v1687
      %v1742 = vadd.f32 %v1521, %v1690
      %v1743 = vadd.f32 %v1522, %v1692
      %v1744 = vadd.f32 %v1523, %v1695
      %v1745 = vadd.f32 %v1524, %v1697
      %v1746 = vadd.f32 %v1525, %v1700
      %v1747 = vadd.f32 %v1526, %v1702
      %v1748 = vadd.f32 %v1527, %v1705
      %v1749 = vadd.f32 %v1528, %v1707
      %v1750 = vadd.f32 %v1529, %v1710
      %v1751 = vadd.f32 %v1530, %v1712
      %v1752 = vadd.f32 %v1531, %v1715
      %v1753 = vadd.f32 %v1532, %v1717
      %v1754 = vadd.f32 %v1533, %v1720
      %v1755 = vadd.f32 %v1534, %v1722
      %v1756 = vld [vmem:[%s1535 + $0x1] sm:$0xff]
      %v1757 = vld [vmem:[%s1535 + $0x9] sm:$0xff]
      %v1758 = vld [vmem:[%s1535 + $0x19] sm:$0xff]
      %v1759 = vld [vmem:[%s1535 + $0x21] sm:$0xff]
      %v1760 = vld [vmem:[%s1535 + $0x31] sm:$0xff]
      %v1761 = vld [vmem:[%s1535 + $0x39] sm:$0xff]
      %v1762 = vld [vmem:[%s1535 + $0x49] sm:$0xff]
      %v1763 = vld [vmem:[%s1535 + $0x51] sm:$0xff]
      %v1764 = vld [vmem:[%s1535 + $0x61] sm:$0xff]
      %v1765 = vld [vmem:[%s1535 + $0x69] sm:$0xff]
      %v1766 = vld [vmem:[%s1535 + $0x79] sm:$0xff]
      %v1767 = vld [vmem:[%s1535 + $0x81] sm:$0xff]
      %v1768 = vld [vmem:[%s1535 + $0x91] sm:$0xff]
      %v1769 = vld [vmem:[%s1535 + $0x99] sm:$0xff]
      %v1770 = vld [vmem:[%s1535 + $0xa9] sm:$0xff]
      %v1771 = vld [vmem:[%s1535 + $0xb1] sm:$0xff]
      %v1772 = vld [vmem:[%s1535 + $0xc1] sm:$0xff]
      %v1773 = vld [vmem:[%s1535 + $0xc9] sm:$0xff]
      %v1774 = vld [vmem:[%s1535 + $0xd9] sm:$0xff]
      %v1775 = vld [vmem:[%s1535 + $0xe1] sm:$0xff]
      %v1776 = vld [vmem:[%s1535 + $0xf1] sm:$0xff]
      %v1777 = vld [vmem:[%s1535 + $0xf9] sm:$0xff]
      %v1778 = vld [vmem:[%s1535 + $0x109] sm:$0xff]
      %v1779 = vld [vmem:[%s1535 + $0x111] sm:$0xff]
      %v1780 = vld [vmem:[%s1535 + $0x121] sm:$0xff]
      %v1781 = vld [vmem:[%s1535 + $0x129] sm:$0xff]
      %v1782 = vld [vmem:[%s1535 + $0x139] sm:$0xff]
      %v1783 = vld [vmem:[%s1535 + $0x141] sm:$0xff]
      %v1784 = vld [vmem:[%s1535 + $0x151] sm:$0xff]
      %v1785 = vld [vmem:[%s1535 + $0x159] sm:$0xff]
      %v1786 = vld [vmem:[%s1535 + $0x169] sm:$0xff]
      %v1787 = vld [vmem:[%s1535 + $0x171] sm:$0xff]
      %v1788 = vpack.c.bf16 %v1757, %v1756
      %v1789 = vpack.c.bf16 %v1759, %v1758
      %v1790 = vpack.c.bf16 %v1761, %v1760
      %v1791 = vpack.c.bf16 %v1763, %v1762
      %v1792 = vpack.c.bf16 %v1765, %v1764
      %v1793 = vpack.c.bf16 %v1767, %v1766
      %v1794 = vpack.c.bf16 %v1769, %v1768
      %v1795 = vpack.c.bf16 %v1771, %v1770
      %v1796 = vpack.c.bf16 %v1773, %v1772
      %v1797 = vpack.c.bf16 %v1775, %v1774
      %v1798 = vpack.c.bf16 %v1777, %v1776
      %v1799 = vpack.c.bf16 %v1779, %v1778
      %v1800 = vpack.c.bf16 %v1781, %v1780
      %v1801 = vpack.c.bf16 %v1783, %v1782
      %v1802 = vpack.c.bf16 %v1785, %v1784
      %v1803 = vpack.c.bf16 %v1787, %v1786
      %v1805 = vunpack.c.l.b16 %v226
      %v1806 = vpack.c.b16 %v1805, %v1805
      %v1807 = vrot.slane %v1806, 2
      %v1809 = vsel %vm145, %v1788, 0
      %v1812 = vsel %vm145, %v1789, 0
      %v1815 = vsel %vm145, %v1790, 0
      %v1818 = vsel %vm145, %v1791, 0
      %v1821 = vsel %vm145, %v1792, 0
      %v1824 = vsel %vm145, %v1793, 0
      %v1827 = vsel %vm145, %v1794, 0
      %v1830 = vsel %vm145, %v1795, 0
      %v1833 = vsel %vm145, %v1796, 0
      %v1836 = vsel %vm145, %v1797, 0
      %v1839 = vsel %vm145, %v1798, 0
      %v1842 = vsel %vm145, %v1799, 0
      %v1845 = vsel %vm145, %v1800, 0
      %v1848 = vsel %vm145, %v1801, 0
      %v1851 = vsel %vm145, %v1802, 0
      %v1854 = vsel %vm145, %v1803, 0
      %v1857 = vsel %vm414, %v1807, 0
      %1859 = vmatpush.bf16.msra.mxu0 0
      %1860 = vmatpush.bf16.msra.mxu0 0
      %1861 = vmatpush.bf16.msra.mxu0 0
      %1862 = vmatpush.bf16.msra.mxu0 0
      %1863 = vmatpush.bf16.msra.mxu0 0
      %1864 = vmatpush.bf16.msra.mxu0 0
      %1865 = vmatpush.bf16.msra.mxu0 0
      %1866 = vmatpush.bf16.msra.mxu0 %v1857
      %1867 = vmatmul.bf16.gmra.mxu0 %v1809
      %v1868 = vpop.f32.mrf.mxu0
      %v1869 = vadd.f32 0.0, %v1868
      %v1870 = vpop.f32.mrf.mxu0
      %v1871 = vadd.f32 0.0, %v1870
      %1872 = vmatmul.bf16.gmra.mxu0 %v1812
      %v1873 = vpop.f32.mrf.mxu0
      %v1874 = vadd.f32 0.0, %v1873
      %v1875 = vpop.f32.mrf.mxu0
      %v1876 = vadd.f32 0.0, %v1875
      %1877 = vmatmul.bf16.gmra.mxu0 %v1815
      %v1878 = vpop.f32.mrf.mxu0
      %v1879 = vadd.f32 0.0, %v1878
      %v1880 = vpop.f32.mrf.mxu0
      %v1881 = vadd.f32 0.0, %v1880
      %1882 = vmatmul.bf16.gmra.mxu0 %v1818
      %v1883 = vpop.f32.mrf.mxu0
      %v1884 = vadd.f32 0.0, %v1883
      %v1885 = vpop.f32.mrf.mxu0
      %v1886 = vadd.f32 0.0, %v1885
      %1887 = vmatmul.bf16.gmra.mxu0 %v1821
      %v1888 = vpop.f32.mrf.mxu0
      %v1889 = vadd.f32 0.0, %v1888
      %v1890 = vpop.f32.mrf.mxu0
      %v1891 = vadd.f32 0.0, %v1890
      %1892 = vmatmul.bf16.gmra.mxu0 %v1824
      %v1893 = vpop.f32.mrf.mxu0
      %v1894 = vadd.f32 0.0, %v1893
      %v1895 = vpop.f32.mrf.mxu0
      %v1896 = vadd.f32 0.0, %v1895
      %1897 = vmatmul.bf16.gmra.mxu0 %v1827
      %v1898 = vpop.f32.mrf.mxu0
      %v1899 = vadd.f32 0.0, %v1898
      %v1900 = vpop.f32.mrf.mxu0
      %v1901 = vadd.f32 0.0, %v1900
      %1902 = vmatmul.bf16.gmra.mxu0 %v1830
      %v1903 = vpop.f32.mrf.mxu0
      %v1904 = vadd.f32 0.0, %v1903
      %v1905 = vpop.f32.mrf.mxu0
      %v1906 = vadd.f32 0.0, %v1905
      %1907 = vmatmul.bf16.gmra.mxu0 %v1833
      %v1908 = vpop.f32.mrf.mxu0
      %v1909 = vadd.f32 0.0, %v1908
      %v1910 = vpop.f32.mrf.mxu0
      %v1911 = vadd.f32 0.0, %v1910
      %1912 = vmatmul.bf16.gmra.mxu0 %v1836
      %v1913 = vpop.f32.mrf.mxu0
      %v1914 = vadd.f32 0.0, %v1913
      %v1915 = vpop.f32.mrf.mxu0
      %v1916 = vadd.f32 0.0, %v1915
      %1917 = vmatmul.bf16.gmra.mxu0 %v1839
      %v1918 = vpop.f32.mrf.mxu0
      %v1919 = vadd.f32 0.0, %v1918
      %v1920 = vpop.f32.mrf.mxu0
      %v1921 = vadd.f32 0.0, %v1920
      %1922 = vmatmul.bf16.gmra.mxu0 %v1842
      %v1923 = vpop.f32.mrf.mxu0
      %v1924 = vadd.f32 0.0, %v1923
      %v1925 = vpop.f32.mrf.mxu0
      %v1926 = vadd.f32 0.0, %v1925
      %1927 = vmatmul.bf16.gmra.mxu0 %v1845
      %v1928 = vpop.f32.mrf.mxu0
      %v1929 = vadd.f32 0.0, %v1928
      %v1930 = vpop.f32.mrf.mxu0
      %v1931 = vadd.f32 0.0, %v1930
      %1932 = vmatmul.bf16.gmra.mxu0 %v1848
      %v1933 = vpop.f32.mrf.mxu0
      %v1934 = vadd.f32 0.0, %v1933
      %v1935 = vpop.f32.mrf.mxu0
      %v1936 = vadd.f32 0.0, %v1935
      %1937 = vmatmul.bf16.gmra.mxu0 %v1851
      %v1938 = vpop.f32.mrf.mxu0
      %v1939 = vadd.f32 0.0, %v1938
      %v1940 = vpop.f32.mrf.mxu0
      %v1941 = vadd.f32 0.0, %v1940
      %1942 = vmatmul.bf16.gmra.mxu0 %v1854
      %v1943 = vpop.f32.mrf.mxu0
      %v1944 = vadd.f32 0.0, %v1943
      %v1945 = vpop.f32.mrf.mxu0
      %v1946 = vadd.f32 0.0, %v1945
      %1947 = vdwg.mxu0
      %v1948 = vadd.f32 %v1724, %v1869
      %v1949 = vadd.f32 %v1725, %v1871
      %v1950 = vadd.f32 %v1726, %v1874
      %v1951 = vadd.f32 %v1727, %v1876
      %v1952 = vadd.f32 %v1728, %v1879
      %v1953 = vadd.f32 %v1729, %v1881
      %v1954 = vadd.f32 %v1730, %v1884
      %v1955 = vadd.f32 %v1731, %v1886
      %v1956 = vadd.f32 %v1732, %v1889
      %v1957 = vadd.f32 %v1733, %v1891
      %v1958 = vadd.f32 %v1734, %v1894
      %v1959 = vadd.f32 %v1735, %v1896
      %v1960 = vadd.f32 %v1736, %v1899
      %v1961 = vadd.f32 %v1737, %v1901
      %v1962 = vadd.f32 %v1738, %v1904
      %v1963 = vadd.f32 %v1739, %v1906
      %v1964 = vadd.f32 %v1740, %v1909
      %v1965 = vadd.f32 %v1741, %v1911
      %v1966 = vadd.f32 %v1742, %v1914
      %v1967 = vadd.f32 %v1743, %v1916
      %v1968 = vadd.f32 %v1744, %v1919
      %v1969 = vadd.f32 %v1745, %v1921
      %v1970 = vadd.f32 %v1746, %v1924
      %v1971 = vadd.f32 %v1747, %v1926
      %v1972 = vadd.f32 %v1748, %v1929
      %v1973 = vadd.f32 %v1749, %v1931
      %v1974 = vadd.f32 %v1750, %v1934
      %v1975 = vadd.f32 %v1751, %v1936
      %v1976 = vadd.f32 %v1752, %v1939
      %v1977 = vadd.f32 %v1753, %v1941
      %v1978 = vadd.f32 %v1754, %v1944
      %v1979 = vadd.f32 %v1755, %v1946
      %v1980 = vld [vmem:[%s1535 + $0x2] sm:$0xff]
      %v1981 = vld [vmem:[%s1535 + $0xa] sm:$0xff]
      %v1982 = vld [vmem:[%s1535 + $0x1a] sm:$0xff]
      %v1983 = vld [vmem:[%s1535 + $0x22] sm:$0xff]
      %v1984 = vld [vmem:[%s1535 + $0x32] sm:$0xff]
      %v1985 = vld [vmem:[%s1535 + $0x3a] sm:$0xff]
      %v1986 = vld [vmem:[%s1535 + $0x4a] sm:$0xff]
      %v1987 = vld [vmem:[%s1535 + $0x52] sm:$0xff]
      %v1988 = vld [vmem:[%s1535 + $0x62] sm:$0xff]
      %v1989 = vld [vmem:[%s1535 + $0x6a] sm:$0xff]
      %v1990 = vld [vmem:[%s1535 + $0x7a] sm:$0xff]
      %v1991 = vld [vmem:[%s1535 + $0x82] sm:$0xff]
      %v1992 = vld [vmem:[%s1535 + $0x92] sm:$0xff]
      %v1993 = vld [vmem:[%s1535 + $0x9a] sm:$0xff]
      %v1994 = vld [vmem:[%s1535 + $0xaa] sm:$0xff]
      %v1995 = vld [vmem:[%s1535 + $0xb2] sm:$0xff]
      %v1996 = vld [vmem:[%s1535 + $0xc2] sm:$0xff]
      %v1997 = vld [vmem:[%s1535 + $0xca] sm:$0xff]
      %v1998 = vld [vmem:[%s1535 + $0xda] sm:$0xff]
      %v1999 = vld [vmem:[%s1535 + $0xe2] sm:$0xff]
      %v2000 = vld [vmem:[%s1535 + $0xf2] sm:$0xff]
      %v2001 = vld [vmem:[%s1535 + $0xfa] sm:$0xff]
      %v2002 = vld [vmem:[%s1535 + $0x10a] sm:$0xff]
      %v2003 = vld [vmem:[%s1535 + $0x112] sm:$0xff]
      %v2004 = vld [vmem:[%s1535 + $0x122] sm:$0xff]
      %v2005 = vld [vmem:[%s1535 + $0x12a] sm:$0xff]
      %v2006 = vld [vmem:[%s1535 + $0x13a] sm:$0xff]
      %v2007 = vld [vmem:[%s1535 + $0x142] sm:$0xff]
      %v2008 = vld [vmem:[%s1535 + $0x152] sm:$0xff]
      %v2009 = vld [vmem:[%s1535 + $0x15a] sm:$0xff]
      %v2010 = vld [vmem:[%s1535 + $0x16a] sm:$0xff]
      %v2011 = vld [vmem:[%s1535 + $0x172] sm:$0xff]
      %v2012 = vpack.c.bf16 %v1981, %v1980
      %v2013 = vpack.c.bf16 %v1983, %v1982
      %v2014 = vpack.c.bf16 %v1985, %v1984
      %v2015 = vpack.c.bf16 %v1987, %v1986
      %v2016 = vpack.c.bf16 %v1989, %v1988
      %v2017 = vpack.c.bf16 %v1991, %v1990
      %v2018 = vpack.c.bf16 %v1993, %v1992
      %v2019 = vpack.c.bf16 %v1995, %v1994
      %v2020 = vpack.c.bf16 %v1997, %v1996
      %v2021 = vpack.c.bf16 %v1999, %v1998
      %v2022 = vpack.c.bf16 %v2001, %v2000
      %v2023 = vpack.c.bf16 %v2003, %v2002
      %v2024 = vpack.c.bf16 %v2005, %v2004
      %v2025 = vpack.c.bf16 %v2007, %v2006
      %v2026 = vpack.c.bf16 %v2009, %v2008
      %v2027 = vpack.c.bf16 %v2011, %v2010
      %v2029 = vsel %vm145, %v2012, 0
      %v2032 = vsel %vm145, %v2013, 0
      %v2035 = vsel %vm145, %v2014, 0
      %v2038 = vsel %vm145, %v2015, 0
      %v2041 = vsel %vm145, %v2016, 0
      %v2044 = vsel %vm145, %v2017, 0
      %v2047 = vsel %vm145, %v2018, 0
      %v2050 = vsel %vm145, %v2019, 0
      %v2053 = vsel %vm145, %v2020, 0
      %v2056 = vsel %vm145, %v2021, 0
      %v2059 = vsel %vm145, %v2022, 0
      %v2062 = vsel %vm145, %v2023, 0
      %v2065 = vsel %vm145, %v2024, 0
      %v2068 = vsel %vm145, %v2025, 0
      %v2071 = vsel %vm145, %v2026, 0
      %v2074 = vsel %vm145, %v2027, 0
      %v2077 = vsel %vm414, %v227, 0
      %2079 = vmatpush.bf16.msra.mxu0 0
      %2080 = vmatpush.bf16.msra.mxu0 0
      %2081 = vmatpush.bf16.msra.mxu0 0
      %2082 = vmatpush.bf16.msra.mxu0 0
      %2083 = vmatpush.bf16.msra.mxu0 0
      %2084 = vmatpush.bf16.msra.mxu0 0
      %2085 = vmatpush.bf16.msra.mxu0 0
      %2086 = vmatpush.bf16.msra.mxu0 %v2077
      %2087 = vmatmul.bf16.gmra.mxu0 %v2029
      %v2088 = vpop.f32.mrf.mxu0
      %v2089 = vadd.f32 0.0, %v2088
      %v2090 = vpop.f32.mrf.mxu0
      %v2091 = vadd.f32 0.0, %v2090
      %2092 = vmatmul.bf16.gmra.mxu0 %v2032
      %v2093 = vpop.f32.mrf.mxu0
      %v2094 = vadd.f32 0.0, %v2093
      %v2095 = vpop.f32.mrf.mxu0
      %v2096 = vadd.f32 0.0, %v2095
      %2097 = vmatmul.bf16.gmra.mxu0 %v2035
      %v2098 = vpop.f32.mrf.mxu0
      %v2099 = vadd.f32 0.0, %v2098
      %v2100 = vpop.f32.mrf.mxu0
      %v2101 = vadd.f32 0.0, %v2100
      %2102 = vmatmul.bf16.gmra.mxu0 %v2038
      %v2103 = vpop.f32.mrf.mxu0
      %v2104 = vadd.f32 0.0, %v2103
      %v2105 = vpop.f32.mrf.mxu0
      %v2106 = vadd.f32 0.0, %v2105
      %2107 = vmatmul.bf16.gmra.mxu0 %v2041
      %v2108 = vpop.f32.mrf.mxu0
      %v2109 = vadd.f32 0.0, %v2108
      %v2110 = vpop.f32.mrf.mxu0
      %v2111 = vadd.f32 0.0, %v2110
      %2112 = vmatmul.bf16.gmra.mxu0 %v2044
      %v2113 = vpop.f32.mrf.mxu0
      %v2114 = vadd.f32 0.0, %v2113
      %v2115 = vpop.f32.mrf.mxu0
      %v2116 = vadd.f32 0.0, %v2115
      %2117 = vmatmul.bf16.gmra.mxu0 %v2047
      %v2118 = vpop.f32.mrf.mxu0
      %v2119 = vadd.f32 0.0, %v2118
      %v2120 = vpop.f32.mrf.mxu0
      %v2121 = vadd.f32 0.0, %v2120
      %2122 = vmatmul.bf16.gmra.mxu0 %v2050
      %v2123 = vpop.f32.mrf.mxu0
      %v2124 = vadd.f32 0.0, %v2123
      %v2125 = vpop.f32.mrf.mxu0
      %v2126 = vadd.f32 0.0, %v2125
      %2127 = vmatmul.bf16.gmra.mxu0 %v2053
      %v2128 = vpop.f32.mrf.mxu0
      %v2129 = vadd.f32 0.0, %v2128
      %v2130 = vpop.f32.mrf.mxu0
      %v2131 = vadd.f32 0.0, %v2130
      %2132 = vmatmul.bf16.gmra.mxu0 %v2056
      %v2133 = vpop.f32.mrf.mxu0
      %v2134 = vadd.f32 0.0, %v2133
      %v2135 = vpop.f32.mrf.mxu0
      %v2136 = vadd.f32 0.0, %v2135
      %2137 = vmatmul.bf16.gmra.mxu0 %v2059
      %v2138 = vpop.f32.mrf.mxu0
      %v2139 = vadd.f32 0.0, %v2138
      %v2140 = vpop.f32.mrf.mxu0
      %v2141 = vadd.f32 0.0, %v2140
      %2142 = vmatmul.bf16.gmra.mxu0 %v2062
      %v2143 = vpop.f32.mrf.mxu0
      %v2144 = vadd.f32 0.0, %v2143
      %v2145 = vpop.f32.mrf.mxu0
      %v2146 = vadd.f32 0.0, %v2145
      %2147 = vmatmul.bf16.gmra.mxu0 %v2065
      %v2148 = vpop.f32.mrf.mxu0
      %v2149 = vadd.f32 0.0, %v2148
      %v2150 = vpop.f32.mrf.mxu0
      %v2151 = vadd.f32 0.0, %v2150
      %2152 = vmatmul.bf16.gmra.mxu0 %v2068
      %v2153 = vpop.f32.mrf.mxu0
      %v2154 = vadd.f32 0.0, %v2153
      %v2155 = vpop.f32.mrf.mxu0
      %v2156 = vadd.f32 0.0, %v2155
      %2157 = vmatmul.bf16.gmra.mxu0 %v2071
      %v2158 = vpop.f32.mrf.mxu0
      %v2159 = vadd.f32 0.0, %v2158
      %v2160 = vpop.f32.mrf.mxu0
      %v2161 = vadd.f32 0.0, %v2160
      %2162 = vmatmul.bf16.gmra.mxu0 %v2074
      %v2163 = vpop.f32.mrf.mxu0
      %v2164 = vadd.f32 0.0, %v2163
      %v2165 = vpop.f32.mrf.mxu0
      %v2166 = vadd.f32 0.0, %v2165
      %2167 = vdwg.mxu0
      %v2168 = vadd.f32 %v1948, %v2089
      %v2169 = vadd.f32 %v1949, %v2091
      %v2170 = vadd.f32 %v1950, %v2094
      %v2171 = vadd.f32 %v1951, %v2096
      %v2172 = vadd.f32 %v1952, %v2099
      %v2173 = vadd.f32 %v1953, %v2101
      %v2174 = vadd.f32 %v1954, %v2104
      %v2175 = vadd.f32 %v1955, %v2106
      %v2176 = vadd.f32 %v1956, %v2109
      %v2177 = vadd.f32 %v1957, %v2111
      %v2178 = vadd.f32 %v1958, %v2114
      %v2179 = vadd.f32 %v1959, %v2116
      %v2180 = vadd.f32 %v1960, %v2119
      %v2181 = vadd.f32 %v1961, %v2121
      %v2182 = vadd.f32 %v1962, %v2124
      %v2183 = vadd.f32 %v1963, %v2126
      %v2184 = vadd.f32 %v1964, %v2129
      %v2185 = vadd.f32 %v1965, %v2131
      %v2186 = vadd.f32 %v1966, %v2134
      %v2187 = vadd.f32 %v1967, %v2136
      %v2188 = vadd.f32 %v1968, %v2139
      %v2189 = vadd.f32 %v1969, %v2141
      %v2190 = vadd.f32 %v1970, %v2144
      %v2191 = vadd.f32 %v1971, %v2146
      %v2192 = vadd.f32 %v1972, %v2149
      %v2193 = vadd.f32 %v1973, %v2151
      %v2194 = vadd.f32 %v1974, %v2154
      %v2195 = vadd.f32 %v1975, %v2156
      %v2196 = vadd.f32 %v1976, %v2159
      %v2197 = vadd.f32 %v1977, %v2161
      %v2198 = vadd.f32 %v1978, %v2164
      %v2199 = vadd.f32 %v1979, %v2166
      %v2200 = vsel %vm145, %v2168, 0.0
      %v2201 = vsel %vm145, %v2169, 0.0
      %v2202 = vadd.f32 %v2200, %v2201
      %v2203 = vsel %vm145, %v2170, 0.0
      %v2204 = vadd.f32 %v2202, %v2203
      %v2205 = vsel %vm145, %v2171, 0.0
      %v2206 = vadd.f32 %v2204, %v2205
      %v2207 = vsel %vm145, %v2172, 0.0
      %v2208 = vadd.f32 %v2206, %v2207
      %v2209 = vsel %vm145, %v2173, 0.0
      %v2210 = vadd.f32 %v2208, %v2209
      %v2211 = vsel %vm145, %v2174, 0.0
      %v2212 = vadd.f32 %v2210, %v2211
      %v2213 = vsel %vm145, %v2175, 0.0
      %v2214 = vadd.f32 %v2212, %v2213
      %v2215 = vsel %vm145, %v2176, 0.0
      %v2216 = vadd.f32 %v2214, %v2215
      %v2217 = vsel %vm145, %v2177, 0.0
      %v2218 = vadd.f32 %v2216, %v2217
      %v2219 = vsel %vm145, %v2178, 0.0
      %v2220 = vadd.f32 %v2218, %v2219
      %v2221 = vsel %vm145, %v2179, 0.0
      %v2222 = vadd.f32 %v2220, %v2221
      %v2223 = vsel %vm145, %v2180, 0.0
      %v2224 = vadd.f32 %v2222, %v2223
      %v2225 = vsel %vm145, %v2181, 0.0
      %v2226 = vadd.f32 %v2224, %v2225
      %v2227 = vsel %vm145, %v2182, 0.0
      %v2228 = vadd.f32 %v2226, %v2227
      %v2229 = vsel %vm145, %v2183, 0.0
      %v2230 = vadd.f32 %v2228, %v2229
      %v2231 = vsel %vm145, %v2184, 0.0
      %v2232 = vadd.f32 %v2230, %v2231
      %v2233 = vsel %vm145, %v2185, 0.0
      %v2234 = vadd.f32 %v2232, %v2233
      %v2235 = vsel %vm145, %v2186, 0.0
      %v2236 = vadd.f32 %v2234, %v2235
      %v2237 = vsel %vm145, %v2187, 0.0
      %v2238 = vadd.f32 %v2236, %v2237
      %v2239 = vsel %vm145, %v2188, 0.0
      %v2240 = vadd.f32 %v2238, %v2239
      %v2241 = vsel %vm145, %v2189, 0.0
      %v2242 = vadd.f32 %v2240, %v2241
      %v2243 = vsel %vm145, %v2190, 0.0
      %v2244 = vadd.f32 %v2242, %v2243
      %v2245 = vsel %vm145, %v2191, 0.0
      %v2246 = vadd.f32 %v2244, %v2245
      %v2247 = vsel %vm145, %v2192, 0.0
      %v2248 = vadd.f32 %v2246, %v2247
      %v2249 = vsel %vm145, %v2193, 0.0
      %v2250 = vadd.f32 %v2248, %v2249
      %v2251 = vsel %vm145, %v2194, 0.0
      %v2252 = vadd.f32 %v2250, %v2251
      %v2253 = vsel %vm145, %v2195, 0.0
      %v2254 = vadd.f32 %v2252, %v2253
      %v2255 = vsel %vm145, %v2196, 0.0
      %v2256 = vadd.f32 %v2254, %v2255
      %v2257 = vsel %vm145, %v2197, 0.0
      %v2258 = vadd.f32 %v2256, %v2257
      %v2259 = vsel %vm145, %v2198, 0.0
      %v2260 = vadd.f32 %v2258, %v2259
      %v2261 = vsel %vm145, %v2199, 0.0
      %v2262 = vadd.f32 %v2260, %v2261
      %v2263 = vrot.slane %v2262, 4
      %v2264 = vadd.f32 %v2262, %v2263
      %v2265 = vrot.slane %v2264, 2
      %v2266 = vadd.f32 %v2264, %v2265
      %v2267 = vrot.slane %v2266, 1
      %v2268 = vadd.f32 %v2266, %v2267
      %v2269 = vmul.f32 %v2268, 0.00390625
      %v2270 = vsub.f32 %v2168, %v2269
      %v2271 = vsub.f32 %v2169, %v2269
      %v2272 = vsub.f32 %v2170, %v2269
      %v2273 = vsub.f32 %v2171, %v2269
      %v2274 = vsub.f32 %v2172, %v2269
      %v2275 = vsub.f32 %v2173, %v2269
      %v2276 = vsub.f32 %v2174, %v2269
      %v2277 = vsub.f32 %v2175, %v2269
      %v2278 = vsub.f32 %v2176, %v2269
      %v2279 = vsub.f32 %v2177, %v2269
      %v2280 = vsub.f32 %v2178, %v2269
      %v2281 = vsub.f32 %v2179, %v2269
      %v2282 = vsub.f32 %v2180, %v2269
      %v2283 = vsub.f32 %v2181, %v2269
      %v2284 = vsub.f32 %v2182, %v2269
      %v2285 = vsub.f32 %v2183, %v2269
      %v2286 = vsub.f32 %v2184, %v2269
      %v2287 = vsub.f32 %v2185, %v2269
      %v2288 = vsub.f32 %v2186, %v2269
      %v2289 = vsub.f32 %v2187, %v2269
      %v2290 = vsub.f32 %v2188, %v2269
      %v2291 = vsub.f32 %v2189, %v2269
      %v2292 = vsub.f32 %v2190, %v2269
      %v2293 = vsub.f32 %v2191, %v2269
      %v2294 = vsub.f32 %v2192, %v2269
      %v2295 = vsub.f32 %v2193, %v2269
      %v2296 = vsub.f32 %v2194, %v2269
      %v2297 = vsub.f32 %v2195, %v2269
      %v2298 = vsub.f32 %v2196, %v2269
      %v2299 = vsub.f32 %v2197, %v2269
      %v2300 = vsub.f32 %v2198, %v2269
      %v2301 = vsub.f32 %v2199, %v2269
      %v2302 = vmul.f32 %v2270, %v2270
      %v2303 = vmul.f32 %v2271, %v2271
      %v2304 = vmul.f32 %v2272, %v2272
      %v2305 = vmul.f32 %v2273, %v2273
      %v2306 = vmul.f32 %v2274, %v2274
      %v2307 = vmul.f32 %v2275, %v2275
      %v2308 = vmul.f32 %v2276, %v2276
      %v2309 = vmul.f32 %v2277, %v2277
      %v2310 = vmul.f32 %v2278, %v2278
      %v2311 = vmul.f32 %v2279, %v2279
      %v2312 = vmul.f32 %v2280, %v2280
      %v2313 = vmul.f32 %v2281, %v2281
      %v2314 = vmul.f32 %v2282, %v2282
      %v2315 = vmul.f32 %v2283, %v2283
      %v2316 = vmul.f32 %v2284, %v2284
      %v2317 = vmul.f32 %v2285, %v2285
      %v2318 = vmul.f32 %v2286, %v2286
      %v2319 = vmul.f32 %v2287, %v2287
      %v2320 = vmul.f32 %v2288, %v2288
      %v2321 = vmul.f32 %v2289, %v2289
      %v2322 = vmul.f32 %v2290, %v2290
      %v2323 = vmul.f32 %v2291, %v2291
      %v2324 = vmul.f32 %v2292, %v2292
      %v2325 = vmul.f32 %v2293, %v2293
      %v2326 = vmul.f32 %v2294, %v2294
      %v2327 = vmul.f32 %v2295, %v2295
      %v2328 = vmul.f32 %v2296, %v2296
      %v2329 = vmul.f32 %v2297, %v2297
      %v2330 = vmul.f32 %v2298, %v2298
      %v2331 = vmul.f32 %v2299, %v2299
      %v2332 = vmul.f32 %v2300, %v2300
      %v2333 = vmul.f32 %v2301, %v2301
      %v2334 = vsel %vm145, %v2302, 0.0
      %v2335 = vsel %vm145, %v2303, 0.0
      %v2336 = vadd.f32 %v2334, %v2335
      %v2337 = vsel %vm145, %v2304, 0.0
      %v2338 = vadd.f32 %v2336, %v2337
      %v2339 = vsel %vm145, %v2305, 0.0
      %v2340 = vadd.f32 %v2338, %v2339
      %v2341 = vsel %vm145, %v2306, 0.0
      %v2342 = vadd.f32 %v2340, %v2341
      %v2343 = vsel %vm145, %v2307, 0.0
      %v2344 = vadd.f32 %v2342, %v2343
      %v2345 = vsel %vm145, %v2308, 0.0
      %v2346 = vadd.f32 %v2344, %v2345
      %v2347 = vsel %vm145, %v2309, 0.0
      %v2348 = vadd.f32 %v2346, %v2347
      %v2349 = vsel %vm145, %v2310, 0.0
      %v2350 = vadd.f32 %v2348, %v2349
      %v2351 = vsel %vm145, %v2311, 0.0
      %v2352 = vadd.f32 %v2350, %v2351
      %v2353 = vsel %vm145, %v2312, 0.0
      %v2354 = vadd.f32 %v2352, %v2353
      %v2355 = vsel %vm145, %v2313, 0.0
      %v2356 = vadd.f32 %v2354, %v2355
      %v2357 = vsel %vm145, %v2314, 0.0
      %v2358 = vadd.f32 %v2356, %v2357
      %v2359 = vsel %vm145, %v2315, 0.0
      %v2360 = vadd.f32 %v2358, %v2359
      %v2361 = vsel %vm145, %v2316, 0.0
      %v2362 = vadd.f32 %v2360, %v2361
      %v2363 = vsel %vm145, %v2317, 0.0
      %v2364 = vadd.f32 %v2362, %v2363
      %v2365 = vsel %vm145, %v2318, 0.0
      %v2366 = vadd.f32 %v2364, %v2365
      %v2367 = vsel %vm145, %v2319, 0.0
      %v2368 = vadd.f32 %v2366, %v2367
      %v2369 = vsel %vm145, %v2320, 0.0
      %v2370 = vadd.f32 %v2368, %v2369
      %v2371 = vsel %vm145, %v2321, 0.0
      %v2372 = vadd.f32 %v2370, %v2371
      %v2373 = vsel %vm145, %v2322, 0.0
      %v2374 = vadd.f32 %v2372, %v2373
      %v2375 = vsel %vm145, %v2323, 0.0
      %v2376 = vadd.f32 %v2374, %v2375
      %v2377 = vsel %vm145, %v2324, 0.0
      %v2378 = vadd.f32 %v2376, %v2377
      %v2379 = vsel %vm145, %v2325, 0.0
      %v2380 = vadd.f32 %v2378, %v2379
      %v2381 = vsel %vm145, %v2326, 0.0
      %v2382 = vadd.f32 %v2380, %v2381
      %v2383 = vsel %vm145, %v2327, 0.0
      %v2384 = vadd.f32 %v2382, %v2383
      %v2385 = vsel %vm145, %v2328, 0.0
      %v2386 = vadd.f32 %v2384, %v2385
      %v2387 = vsel %vm145, %v2329, 0.0
      %v2388 = vadd.f32 %v2386, %v2387
      %v2389 = vsel %vm145, %v2330, 0.0
      %v2390 = vadd.f32 %v2388, %v2389
      %v2391 = vsel %vm145, %v2331, 0.0
      %v2392 = vadd.f32 %v2390, %v2391
      %v2393 = vsel %vm145, %v2332, 0.0
      %v2394 = vadd.f32 %v2392, %v2393
      %v2395 = vsel %vm145, %v2333, 0.0
      %v2396 = vadd.f32 %v2394, %v2395
      %v2397 = vrot.slane %v2396, 4
      %v2398 = vadd.f32 %v2396, %v2397
      %v2399 = vrot.slane %v2398, 2
      %v2400 = vadd.f32 %v2398, %v2399
      %v2401 = vrot.slane %v2400, 1
      %v2402 = vadd.f32 %v2400, %v2401
      %v2403 = vmul.f32 %v2402, 0.00390625
      %v2404 = vadd.f32 %v2403, 1e-05
      %v2405 = vrsqrt.pop %v2404
      %v2406 = vmul.f32 %v2405, %v2404
      %v2407 = vmul.f32 %v2406, %v2405
      %v2408 = vmul.f32 0.5, %v2407
      %v2409 = vsub.f32 1.5, %v2408
      %v2410 = vmul.f32 %v2405, %v2409
      %vm2411 = vweird.f32 %v2404
      %vm2412 = vweird.f32 %v2405
      %vm2413 = vmor %vm2411, %vm2412
      %v2414 = vsel %vm2413, %v2405, %v2410
      %v2415 = vmul.f32 %v2270, %v2414
      %v2416 = vmul.f32 %v2271, %v2414
      %v2417 = vmul.f32 %v2272, %v2414
      %v2418 = vmul.f32 %v2273, %v2414
      %v2419 = vmul.f32 %v2274, %v2414
      %v2420 = vmul.f32 %v2275, %v2414
      %v2421 = vmul.f32 %v2276, %v2414
      %v2422 = vmul.f32 %v2277, %v2414
      %v2423 = vmul.f32 %v2278, %v2414
      %v2424 = vmul.f32 %v2279, %v2414
      %v2425 = vmul.f32 %v2280, %v2414
      %v2426 = vmul.f32 %v2281, %v2414
      %v2427 = vmul.f32 %v2282, %v2414
      %v2428 = vmul.f32 %v2283, %v2414
      %v2429 = vmul.f32 %v2284, %v2414
      %v2430 = vmul.f32 %v2285, %v2414
      %v2431 = vmul.f32 %v2286, %v2414
      %v2432 = vmul.f32 %v2287, %v2414
      %v2433 = vmul.f32 %v2288, %v2414
      %v2434 = vmul.f32 %v2289, %v2414
      %v2435 = vmul.f32 %v2290, %v2414
      %v2436 = vmul.f32 %v2291, %v2414
      %v2437 = vmul.f32 %v2292, %v2414
      %v2438 = vmul.f32 %v2293, %v2414
      %v2439 = vmul.f32 %v2294, %v2414
      %v2440 = vmul.f32 %v2295, %v2414
      %v2441 = vmul.f32 %v2296, %v2414
      %v2442 = vmul.f32 %v2297, %v2414
      %v2443 = vmul.f32 %v2298, %v2414
      %v2444 = vmul.f32 %v2299, %v2414
      %v2445 = vmul.f32 %v2300, %v2414
      %v2446 = vmul.f32 %v2301, %v2414
      %v2447 = vmax.f32 %v2415, 0.0
      %v2448 = vmax.f32 %v2416, 0.0
      %v2449 = vmax.f32 %v2417, 0.0
      %v2450 = vmax.f32 %v2418, 0.0
      %v2451 = vmax.f32 %v2419, 0.0
      %v2452 = vmax.f32 %v2420, 0.0
      %v2453 = vmax.f32 %v2421, 0.0
      %v2454 = vmax.f32 %v2422, 0.0
      %v2455 = vmax.f32 %v2423, 0.0
      %v2456 = vmax.f32 %v2424, 0.0
      %v2457 = vmax.f32 %v2425, 0.0
      %v2458 = vmax.f32 %v2426, 0.0
      %v2459 = vmax.f32 %v2427, 0.0
      %v2460 = vmax.f32 %v2428, 0.0
      %v2461 = vmax.f32 %v2429, 0.0
      %v2462 = vmax.f32 %v2430, 0.0
      %v2463 = vmax.f32 %v2431, 0.0
      %v2464 = vmax.f32 %v2432, 0.0
      %v2465 = vmax.f32 %v2433, 0.0
      %v2466 = vmax.f32 %v2434, 0.0
      %v2467 = vmax.f32 %v2435, 0.0
      %v2468 = vmax.f32 %v2436, 0.0
      %v2469 = vmax.f32 %v2437, 0.0
      %v2470 = vmax.f32 %v2438, 0.0
      %v2471 = vmax.f32 %v2439, 0.0
      %v2472 = vmax.f32 %v2440, 0.0
      %v2473 = vmax.f32 %v2441, 0.0
      %v2474 = vmax.f32 %v2442, 0.0
      %v2475 = vmax.f32 %v2443, 0.0
      %v2476 = vmax.f32 %v2444, 0.0
      %v2477 = vmax.f32 %v2445, 0.0
      %v2478 = vmax.f32 %v2446, 0.0
      %2479 = vst.msk [vmem:[%s233 + $0x1] sm:$0xff] %vm145, %v2447
      %2480 = vst.msk [vmem:[%s233 + $0x9] sm:$0xff] %vm145, %v2448
      %2481 = vst.msk [vmem:[%s233 + $0x19] sm:$0xff] %vm145, %v2449
      %2482 = vst.msk [vmem:[%s233 + $0x21] sm:$0xff] %vm145, %v2450
      %2483 = vst.msk [vmem:[%s233 + $0x31] sm:$0xff] %vm145, %v2451
      %2484 = vst.msk [vmem:[%s233 + $0x39] sm:$0xff] %vm145, %v2452
      %2485 = vst.msk [vmem:[%s233 + $0x49] sm:$0xff] %vm145, %v2453
      %2486 = vst.msk [vmem:[%s233 + $0x51] sm:$0xff] %vm145, %v2454
      %2487 = vst.msk [vmem:[%s233 + $0x61] sm:$0xff] %vm145, %v2455
      %2488 = vst.msk [vmem:[%s233 + $0x69] sm:$0xff] %vm145, %v2456
      %2489 = vst.msk [vmem:[%s233 + $0x79] sm:$0xff] %vm145, %v2457
      %2490 = vst.msk [vmem:[%s233 + $0x81] sm:$0xff] %vm145, %v2458
      %2491 = vst.msk [vmem:[%s233 + $0x91] sm:$0xff] %vm145, %v2459
      %2492 = vst.msk [vmem:[%s233 + $0x99] sm:$0xff] %vm145, %v2460
      %2493 = vst.msk [vmem:[%s233 + $0xa9] sm:$0xff] %vm145, %v2461
      %2494 = vst.msk [vmem:[%s233 + $0xb1] sm:$0xff] %vm145, %v2462
      %2495 = vst.msk [vmem:[%s233 + $0xc1] sm:$0xff] %vm145, %v2463
      %2496 = vst.msk [vmem:[%s233 + $0xc9] sm:$0xff] %vm145, %v2464
      %2497 = vst.msk [vmem:[%s233 + $0xd9] sm:$0xff] %vm145, %v2465
      %2498 = vst.msk [vmem:[%s233 + $0xe1] sm:$0xff] %vm145, %v2466
      %2499 = vst.msk [vmem:[%s233 + $0xf1] sm:$0xff] %vm145, %v2467
      %2500 = vst.msk [vmem:[%s233 + $0xf9] sm:$0xff] %vm145, %v2468
      %2501 = vst.msk [vmem:[%s233 + $0x109] sm:$0xff] %vm145, %v2469
      %2502 = vst.msk [vmem:[%s233 + $0x111] sm:$0xff] %vm145, %v2470
      %2503 = vst.msk [vmem:[%s233 + $0x121] sm:$0xff] %vm145, %v2471
      %2504 = vst.msk [vmem:[%s233 + $0x129] sm:$0xff] %vm145, %v2472
      %2505 = vst.msk [vmem:[%s233 + $0x139] sm:$0xff] %vm145, %v2473
      %2506 = vst.msk [vmem:[%s233 + $0x141] sm:$0xff] %vm145, %v2474
      %2507 = vst.msk [vmem:[%s233 + $0x151] sm:$0xff] %vm145, %v2475
      %2508 = vst.msk [vmem:[%s233 + $0x159] sm:$0xff] %vm145, %v2476
      %2509 = vst.msk [vmem:[%s233 + $0x169] sm:$0xff] %vm145, %v2477
      %2510 = vst.msk [vmem:[%s233 + $0x171] sm:$0xff] %vm145, %v2478
      %v2511 = vld [vmem:[#allocation2] sm:$0xff]
      %v2512 = vld [vmem:[#allocation2 + $0x8] sm:$0xff]
      %v2513 = vld [vmem:[#allocation2 + $0x18] sm:$0xff]
      %v2514 = vld [vmem:[#allocation2 + $0x20] sm:$0xff]
      %v2515 = vld [vmem:[#allocation2 + $0x30] sm:$0xff]
      %v2516 = vld [vmem:[#allocation2 + $0x38] sm:$0xff]
      %v2517 = vld [vmem:[#allocation2 + $0x48] sm:$0xff]
      %v2518 = vld [vmem:[#allocation2 + $0x50] sm:$0xff]
      %v2519 = vld [vmem:[#allocation2 + $0x60] sm:$0xff]
      %v2520 = vld [vmem:[#allocation2 + $0x68] sm:$0xff]
      %v2521 = vld [vmem:[#allocation2 + $0x78] sm:$0xff]
      %v2522 = vld [vmem:[#allocation2 + $0x80] sm:$0xff]
      %v2523 = vld [vmem:[#allocation2 + $0x90] sm:$0xff]
      %v2524 = vld [vmem:[#allocation2 + $0x98] sm:$0xff]
      %v2525 = vld [vmem:[#allocation2 + $0xa8] sm:$0xff]
      %v2526 = vld [vmem:[#allocation2 + $0xb0] sm:$0xff]
      %v2527 = vld [vmem:[#allocation2 + $0xc0] sm:$0xff]
      %v2528 = vld [vmem:[#allocation2 + $0xc8] sm:$0xff]
      %v2529 = vld [vmem:[#allocation2 + $0xd8] sm:$0xff]
      %v2530 = vld [vmem:[#allocation2 + $0xe0] sm:$0xff]
      %v2531 = vld [vmem:[#allocation2 + $0xf0] sm:$0xff]
      %v2532 = vld [vmem:[#allocation2 + $0xf8] sm:$0xff]
      %v2533 = vld [vmem:[#allocation2 + $0x108] sm:$0xff]
      %v2534 = vld [vmem:[#allocation2 + $0x110] sm:$0xff]
      %v2535 = vld [vmem:[#allocation2 + $0x120] sm:$0xff]
      %v2536 = vld [vmem:[#allocation2 + $0x128] sm:$0xff]
      %v2537 = vld [vmem:[#allocation2 + $0x138] sm:$0xff]
      %v2538 = vld [vmem:[#allocation2 + $0x140] sm:$0xff]
      %v2539 = vld [vmem:[#allocation2 + $0x150] sm:$0xff]
      %v2540 = vld [vmem:[#allocation2 + $0x158] sm:$0xff]
      %v2541 = vld [vmem:[#allocation2 + $0x168] sm:$0xff]
      %v2542 = vld [vmem:[#allocation2 + $0x170] sm:$0xff]
      %v2543 = vpack.c.bf16 %v2512, %v2511
      %v2544 = vpack.c.bf16 %v2514, %v2513
      %v2545 = vpack.c.bf16 %v2516, %v2515
      %v2546 = vpack.c.bf16 %v2518, %v2517
      %v2547 = vpack.c.bf16 %v2520, %v2519
      %v2548 = vpack.c.bf16 %v2522, %v2521
      %v2549 = vpack.c.bf16 %v2524, %v2523
      %v2550 = vpack.c.bf16 %v2526, %v2525
      %v2551 = vpack.c.bf16 %v2528, %v2527
      %v2552 = vpack.c.bf16 %v2530, %v2529
      %v2553 = vpack.c.bf16 %v2532, %v2531
      %v2554 = vpack.c.bf16 %v2534, %v2533
      %v2555 = vpack.c.bf16 %v2536, %v2535
      %v2556 = vpack.c.bf16 %v2538, %v2537
      %v2557 = vpack.c.bf16 %v2540, %v2539
      %v2558 = vpack.c.bf16 %v2542, %v2541
      %v2559 = vld [vmem:[#allocation2 + $0x1] sm:$0xff]
      %v2560 = vld [vmem:[#allocation2 + $0x9] sm:$0xff]
      %v2561 = vld [vmem:[#allocation2 + $0x19] sm:$0xff]
      %v2562 = vld [vmem:[#allocation2 + $0x21] sm:$0xff]
      %v2563 = vld [vmem:[#allocation2 + $0x31] sm:$0xff]
      %v2564 = vld [vmem:[#allocation2 + $0x39] sm:$0xff]
      %v2565 = vld [vmem:[#allocation2 + $0x49] sm:$0xff]
      %v2566 = vld [vmem:[#allocation2 + $0x51] sm:$0xff]
      %v2567 = vld [vmem:[#allocation2 + $0x61] sm:$0xff]
      %v2568 = vld [vmem:[#allocation2 + $0x69] sm:$0xff]
      %v2569 = vld [vmem:[#allocation2 + $0x79] sm:$0xff]
      %v2570 = vld [vmem:[#allocation2 + $0x81] sm:$0xff]
      %v2571 = vld [vmem:[#allocation2 + $0x91] sm:$0xff]
      %v2572 = vld [vmem:[#allocation2 + $0x99] sm:$0xff]
      %v2573 = vld [vmem:[#allocation2 + $0xa9] sm:$0xff]
      %v2574 = vld [vmem:[#allocation2 + $0xb1] sm:$0xff]
      %v2575 = vld [vmem:[#allocation2 + $0xc1] sm:$0xff]
      %v2576 = vld [vmem:[#allocation2 + $0xc9] sm:$0xff]
      %v2577 = vld [vmem:[#allocation2 + $0xd9] sm:$0xff]
      %v2578 = vld [vmem:[#allocation2 + $0xe1] sm:$0xff]
      %v2579 = vld [vmem:[#allocation2 + $0xf1] sm:$0xff]
      %v2580 = vld [vmem:[#allocation2 + $0xf9] sm:$0xff]
      %v2581 = vld [vmem:[#allocation2 + $0x109] sm:$0xff]
      %v2582 = vld [vmem:[#allocation2 + $0x111] sm:$0xff]
      %v2583 = vld [vmem:[#allocation2 + $0x121] sm:$0xff]
      %v2584 = vld [vmem:[#allocation2 + $0x129] sm:$0xff]
      %v2585 = vld [vmem:[#allocation2 + $0x139] sm:$0xff]
      %v2586 = vld [vmem:[#allocation2 + $0x141] sm:$0xff]
      %v2587 = vld [vmem:[#allocation2 + $0x151] sm:$0xff]
      %v2588 = vld [vmem:[#allocation2 + $0x159] sm:$0xff]
      %v2589 = vld [vmem:[#allocation2 + $0x169] sm:$0xff]
      %v2590 = vld [vmem:[#allocation2 + $0x171] sm:$0xff]
      %v2591 = vpack.c.bf16 %v2560, %v2559
      %v2592 = vpack.c.bf16 %v2562, %v2561
      %v2593 = vpack.c.bf16 %v2564, %v2563
      %v2594 = vpack.c.bf16 %v2566, %v2565
      %v2595 = vpack.c.bf16 %v2568, %v2567
      %v2596 = vpack.c.bf16 %v2570, %v2569
      %v2597 = vpack.c.bf16 %v2572, %v2571
      %v2598 = vpack.c.bf16 %v2574, %v2573
      %v2599 = vpack.c.bf16 %v2576, %v2575
      %v2600 = vpack.c.bf16 %v2578, %v2577
      %v2601 = vpack.c.bf16 %v2580, %v2579
      %v2602 = vpack.c.bf16 %v2582, %v2581
      %v2603 = vpack.c.bf16 %v2584, %v2583
      %v2604 = vpack.c.bf16 %v2586, %v2585
      %v2605 = vpack.c.bf16 %v2588, %v2587
      %v2606 = vpack.c.bf16 %v2590, %v2589
      %v2608 = vunpack.c.l.b16 %v228
      %v2609 = vpack.c.b16 %v2608, %v2608
      %v2610 = vrot.slane %v2609, 2
      %v2612 = vsel %vm145, %v2591, 0
      %v2615 = vsel %vm145, %v2592, 0
      %v2618 = vsel %vm145, %v2593, 0
      %v2621 = vsel %vm145, %v2594, 0
      %v2624 = vsel %vm145, %v2595, 0
      %v2627 = vsel %vm145, %v2596, 0
      %v2630 = vsel %vm145, %v2597, 0
      %v2633 = vsel %vm145, %v2598, 0
      %v2636 = vsel %vm145, %v2599, 0
      %v2639 = vsel %vm145, %v2600, 0
      %v2642 = vsel %vm145, %v2601, 0
      %v2645 = vsel %vm145, %v2602, 0
      %v2648 = vsel %vm145, %v2603, 0
      %v2651 = vsel %vm145, %v2604, 0
      %v2654 = vsel %vm145, %v2605, 0
      %v2657 = vsel %vm145, %v2606, 0
      %v2660 = vsel %vm414, %v2610, 0
      %2662 = vmatpush.bf16.msra.mxu0 0
      %2663 = vmatpush.bf16.msra.mxu0 0
      %2664 = vmatpush.bf16.msra.mxu0 0
      %2665 = vmatpush.bf16.msra.mxu0 0
      %2666 = vmatpush.bf16.msra.mxu0 0
      %2667 = vmatpush.bf16.msra.mxu0 0
      %2668 = vmatpush.bf16.msra.mxu0 0
      %2669 = vmatpush.bf16.msra.mxu0 %v2660
      %2670 = vmatmul.bf16.gmra.mxu0 %v2612
      %v2671 = vpop.f32.mrf.mxu0
      %v2672 = vadd.f32 0.0, %v2671
      %v2673 = vpop.f32.mrf.mxu0
      %v2674 = vadd.f32 0.0, %v2673
      %2675 = vmatmul.bf16.gmra.mxu0 %v2615
      %v2676 = vpop.f32.mrf.mxu0
      %v2677 = vadd.f32 0.0, %v2676
      %v2678 = vpop.f32.mrf.mxu0
      %v2679 = vadd.f32 0.0, %v2678
      %2680 = vmatmul.bf16.gmra.mxu0 %v2618
      %v2681 = vpop.f32.mrf.mxu0
      %v2682 = vadd.f32 0.0, %v2681
      %v2683 = vpop.f32.mrf.mxu0
      %v2684 = vadd.f32 0.0, %v2683
      %2685 = vmatmul.bf16.gmra.mxu0 %v2621
      %v2686 = vpop.f32.mrf.mxu0
      %v2687 = vadd.f32 0.0, %v2686
      %v2688 = vpop.f32.mrf.mxu0
      %v2689 = vadd.f32 0.0, %v2688
      %2690 = vmatmul.bf16.gmra.mxu0 %v2624
      %v2691 = vpop.f32.mrf.mxu0
      %v2692 = vadd.f32 0.0, %v2691
      %v2693 = vpop.f32.mrf.mxu0
      %v2694 = vadd.f32 0.0, %v2693
      %2695 = vmatmul.bf16.gmra.mxu0 %v2627
      %v2696 = vpop.f32.mrf.mxu0
      %v2697 = vadd.f32 0.0, %v2696
      %v2698 = vpop.f32.mrf.mxu0
      %v2699 = vadd.f32 0.0, %v2698
      %2700 = vmatmul.bf16.gmra.mxu0 %v2630
      %v2701 = vpop.f32.mrf.mxu0
      %v2702 = vadd.f32 0.0, %v2701
      %v2703 = vpop.f32.mrf.mxu0
      %v2704 = vadd.f32 0.0, %v2703
      %2705 = vmatmul.bf16.gmra.mxu0 %v2633
      %v2706 = vpop.f32.mrf.mxu0
      %v2707 = vadd.f32 0.0, %v2706
      %v2708 = vpop.f32.mrf.mxu0
      %v2709 = vadd.f32 0.0, %v2708
      %2710 = vmatmul.bf16.gmra.mxu0 %v2636
      %v2711 = vpop.f32.mrf.mxu0
      %v2712 = vadd.f32 0.0, %v2711
      %v2713 = vpop.f32.mrf.mxu0
      %v2714 = vadd.f32 0.0, %v2713
      %2715 = vmatmul.bf16.gmra.mxu0 %v2639
      %v2716 = vpop.f32.mrf.mxu0
      %v2717 = vadd.f32 0.0, %v2716
      %v2718 = vpop.f32.mrf.mxu0
      %v2719 = vadd.f32 0.0, %v2718
      %2720 = vmatmul.bf16.gmra.mxu0 %v2642
      %v2721 = vpop.f32.mrf.mxu0
      %v2722 = vadd.f32 0.0, %v2721
      %v2723 = vpop.f32.mrf.mxu0
      %v2724 = vadd.f32 0.0, %v2723
      %2725 = vmatmul.bf16.gmra.mxu0 %v2645
      %v2726 = vpop.f32.mrf.mxu0
      %v2727 = vadd.f32 0.0, %v2726
      %v2728 = vpop.f32.mrf.mxu0
      %v2729 = vadd.f32 0.0, %v2728
      %2730 = vmatmul.bf16.gmra.mxu0 %v2648
      %v2731 = vpop.f32.mrf.mxu0
      %v2732 = vadd.f32 0.0, %v2731
      %v2733 = vpop.f32.mrf.mxu0
      %v2734 = vadd.f32 0.0, %v2733
      %2735 = vmatmul.bf16.gmra.mxu0 %v2651
      %v2736 = vpop.f32.mrf.mxu0
      %v2737 = vadd.f32 0.0, %v2736
      %v2738 = vpop.f32.mrf.mxu0
      %v2739 = vadd.f32 0.0, %v2738
      %2740 = vmatmul.bf16.gmra.mxu0 %v2654
      %v2741 = vpop.f32.mrf.mxu0
      %v2742 = vadd.f32 0.0, %v2741
      %v2743 = vpop.f32.mrf.mxu0
      %v2744 = vadd.f32 0.0, %v2743
      %2745 = vmatmul.bf16.gmra.mxu0 %v2657
      %v2746 = vpop.f32.mrf.mxu0
      %v2747 = vadd.f32 0.0, %v2746
      %v2748 = vpop.f32.mrf.mxu0
      %v2749 = vadd.f32 0.0, %v2748
      %2750 = vdwg.mxu0
      %v2752 = vsel %vm145, %v2543, 0
      %v2755 = vsel %vm145, %v2544, 0
      %v2758 = vsel %vm145, %v2545, 0
      %v2761 = vsel %vm145, %v2546, 0
      %v2764 = vsel %vm145, %v2547, 0
      %v2767 = vsel %vm145, %v2548, 0
      %v2770 = vsel %vm145, %v2549, 0
      %v2773 = vsel %vm145, %v2550, 0
      %v2776 = vsel %vm145, %v2551, 0
      %v2779 = vsel %vm145, %v2552, 0
      %v2782 = vsel %vm145, %v2553, 0
      %v2785 = vsel %vm145, %v2554, 0
      %v2788 = vsel %vm145, %v2555, 0
      %v2791 = vsel %vm145, %v2556, 0
      %v2794 = vsel %vm145, %v2557, 0
      %v2797 = vsel %vm145, %v2558, 0
      %v2800 = vsel %vm414, %v228, 0
      %2802 = vmatpush.bf16.msra.mxu0 0
      %2803 = vmatpush.bf16.msra.mxu0 0
      %2804 = vmatpush.bf16.msra.mxu0 0
      %2805 = vmatpush.bf16.msra.mxu0 0
      %2806 = vmatpush.bf16.msra.mxu0 0
      %2807 = vmatpush.bf16.msra.mxu0 0
      %2808 = vmatpush.bf16.msra.mxu0 0
      %2809 = vmatpush.bf16.msra.mxu0 %v2800
      %2810 = vmatmul.bf16.gmra.mxu0 %v2752
      %v2811 = vpop.f32.mrf.mxu0
      %v2812 = vadd.f32 %v2672, %v2811
      %v2813 = vpop.f32.mrf.mxu0
      %v2814 = vadd.f32 %v2674, %v2813
      %2815 = vmatmul.bf16.gmra.mxu0 %v2755
      %v2816 = vpop.f32.mrf.mxu0
      %v2817 = vadd.f32 %v2677, %v2816
      %v2818 = vpop.f32.mrf.mxu0
      %v2819 = vadd.f32 %v2679, %v2818
      %2820 = vmatmul.bf16.gmra.mxu0 %v2758
      %v2821 = vpop.f32.mrf.mxu0
      %v2822 = vadd.f32 %v2682, %v2821
      %v2823 = vpop.f32.mrf.mxu0
      %v2824 = vadd.f32 %v2684, %v2823
      %2825 = vmatmul.bf16.gmra.mxu0 %v2761
      %v2826 = vpop.f32.mrf.mxu0
      %v2827 = vadd.f32 %v2687, %v2826
      %v2828 = vpop.f32.mrf.mxu0
      %v2829 = vadd.f32 %v2689, %v2828
      %2830 = vmatmul.bf16.gmra.mxu0 %v2764
      %v2831 = vpop.f32.mrf.mxu0
      %v2832 = vadd.f32 %v2692, %v2831
      %v2833 = vpop.f32.mrf.mxu0
      %v2834 = vadd.f32 %v2694, %v2833
      %2835 = vmatmul.bf16.gmra.mxu0 %v2767
      %v2836 = vpop.f32.mrf.mxu0
      %v2837 = vadd.f32 %v2697, %v2836
      %v2838 = vpop.f32.mrf.mxu0
      %v2839 = vadd.f32 %v2699, %v2838
      %2840 = vmatmul.bf16.gmra.mxu0 %v2770
      %v2841 = vpop.f32.mrf.mxu0
      %v2842 = vadd.f32 %v2702, %v2841
      %v2843 = vpop.f32.mrf.mxu0
      %v2844 = vadd.f32 %v2704, %v2843
      %2845 = vmatmul.bf16.gmra.mxu0 %v2773
      %v2846 = vpop.f32.mrf.mxu0
      %v2847 = vadd.f32 %v2707, %v2846
      %v2848 = vpop.f32.mrf.mxu0
      %v2849 = vadd.f32 %v2709, %v2848
      %2850 = vmatmul.bf16.gmra.mxu0 %v2776
      %v2851 = vpop.f32.mrf.mxu0
      %v2852 = vadd.f32 %v2712, %v2851
      %v2853 = vpop.f32.mrf.mxu0
      %v2854 = vadd.f32 %v2714, %v2853
      %2855 = vmatmul.bf16.gmra.mxu0 %v2779
      %v2856 = vpop.f32.mrf.mxu0
      %v2857 = vadd.f32 %v2717, %v2856
      %v2858 = vpop.f32.mrf.mxu0
      %v2859 = vadd.f32 %v2719, %v2858
      %2860 = vmatmul.bf16.gmra.mxu0 %v2782
      %v2861 = vpop.f32.mrf.mxu0
      %v2862 = vadd.f32 %v2722, %v2861
      %v2863 = vpop.f32.mrf.mxu0
      %v2864 = vadd.f32 %v2724, %v2863
      %2865 = vmatmul.bf16.gmra.mxu0 %v2785
      %v2866 = vpop.f32.mrf.mxu0
      %v2867 = vadd.f32 %v2727, %v2866
      %v2868 = vpop.f32.mrf.mxu0
      %v2869 = vadd.f32 %v2729, %v2868
      %2870 = vmatmul.bf16.gmra.mxu0 %v2788
      %v2871 = vpop.f32.mrf.mxu0
      %v2872 = vadd.f32 %v2732, %v2871
      %v2873 = vpop.f32.mrf.mxu0
      %v2874 = vadd.f32 %v2734, %v2873
      %2875 = vmatmul.bf16.gmra.mxu0 %v2791
      %v2876 = vpop.f32.mrf.mxu0
      %v2877 = vadd.f32 %v2737, %v2876
      %v2878 = vpop.f32.mrf.mxu0
      %v2879 = vadd.f32 %v2739, %v2878
      %2880 = vmatmul.bf16.gmra.mxu0 %v2794
      %v2881 = vpop.f32.mrf.mxu0
      %v2882 = vadd.f32 %v2742, %v2881
      %v2883 = vpop.f32.mrf.mxu0
      %v2884 = vadd.f32 %v2744, %v2883
      %2885 = vmatmul.bf16.gmra.mxu0 %v2797
      %v2886 = vpop.f32.mrf.mxu0
      %v2887 = vadd.f32 %v2747, %v2886
      %v2888 = vpop.f32.mrf.mxu0
      %v2889 = vadd.f32 %v2749, %v2888
      %2890 = vdwg.mxu0
      %v2891 = vld [vmem:[#allocation2 + $0x2] sm:$0xff]
      %v2892 = vld [vmem:[#allocation2 + $0xa] sm:$0xff]
      %v2893 = vld [vmem:[#allocation2 + $0x1a] sm:$0xff]
      %v2894 = vld [vmem:[#allocation2 + $0x22] sm:$0xff]
      %v2895 = vld [vmem:[#allocation2 + $0x32] sm:$0xff]
      %v2896 = vld [vmem:[#allocation2 + $0x3a] sm:$0xff]
      %v2897 = vld [vmem:[#allocation2 + $0x4a] sm:$0xff]
      %v2898 = vld [vmem:[#allocation2 + $0x52] sm:$0xff]
      %v2899 = vld [vmem:[#allocation2 + $0x62] sm:$0xff]
      %v2900 = vld [vmem:[#allocation2 + $0x6a] sm:$0xff]
      %v2901 = vld [vmem:[#allocation2 + $0x7a] sm:$0xff]
      %v2902 = vld [vmem:[#allocation2 + $0x82] sm:$0xff]
      %v2903 = vld [vmem:[#allocation2 + $0x92] sm:$0xff]
      %v2904 = vld [vmem:[#allocation2 + $0x9a] sm:$0xff]
      %v2905 = vld [vmem:[#allocation2 + $0xaa] sm:$0xff]
      %v2906 = vld [vmem:[#allocation2 + $0xb2] sm:$0xff]
      %v2907 = vld [vmem:[#allocation2 + $0xc2] sm:$0xff]
      %v2908 = vld [vmem:[#allocation2 + $0xca] sm:$0xff]
      %v2909 = vld [vmem:[#allocation2 + $0xda] sm:$0xff]
      %v2910 = vld [vmem:[#allocation2 + $0xe2] sm:$0xff]
      %v2911 = vld [vmem:[#allocation2 + $0xf2] sm:$0xff]
      %v2912 = vld [vmem:[#allocation2 + $0xfa] sm:$0xff]
      %v2913 = vld [vmem:[#allocation2 + $0x10a] sm:$0xff]
      %v2914 = vld [vmem:[#allocation2 + $0x112] sm:$0xff]
      %v2915 = vld [vmem:[#allocation2 + $0x122] sm:$0xff]
      %v2916 = vld [vmem:[#allocation2 + $0x12a] sm:$0xff]
      %v2917 = vld [vmem:[#allocation2 + $0x13a] sm:$0xff]
      %v2918 = vld [vmem:[#allocation2 + $0x142] sm:$0xff]
      %v2919 = vld [vmem:[#allocation2 + $0x152] sm:$0xff]
      %v2920 = vld [vmem:[#allocation2 + $0x15a] sm:$0xff]
      %v2921 = vld [vmem:[#allocation2 + $0x16a] sm:$0xff]
      %v2922 = vld [vmem:[#allocation2 + $0x172] sm:$0xff]
      %v2923 = vpack.c.bf16 %v2892, %v2891
      %v2924 = vpack.c.bf16 %v2894, %v2893
      %v2925 = vpack.c.bf16 %v2896, %v2895
      %v2926 = vpack.c.bf16 %v2898, %v2897
      %v2927 = vpack.c.bf16 %v2900, %v2899
      %v2928 = vpack.c.bf16 %v2902, %v2901
      %v2929 = vpack.c.bf16 %v2904, %v2903
      %v2930 = vpack.c.bf16 %v2906, %v2905
      %v2931 = vpack.c.bf16 %v2908, %v2907
      %v2932 = vpack.c.bf16 %v2910, %v2909
      %v2933 = vpack.c.bf16 %v2912, %v2911
      %v2934 = vpack.c.bf16 %v2914, %v2913
      %v2935 = vpack.c.bf16 %v2916, %v2915
      %v2936 = vpack.c.bf16 %v2918, %v2917
      %v2937 = vpack.c.bf16 %v2920, %v2919
      %v2938 = vpack.c.bf16 %v2922, %v2921
      %v2940 = vsel %vm145, %v2923, 0
      %v2943 = vsel %vm145, %v2924, 0
      %v2946 = vsel %vm145, %v2925, 0
      %v2949 = vsel %vm145, %v2926, 0
      %v2952 = vsel %vm145, %v2927, 0
      %v2955 = vsel %vm145, %v2928, 0
      %v2958 = vsel %vm145, %v2929, 0
      %v2961 = vsel %vm145, %v2930, 0
      %v2964 = vsel %vm145, %v2931, 0
      %v2967 = vsel %vm145, %v2932, 0
      %v2970 = vsel %vm145, %v2933, 0
      %v2973 = vsel %vm145, %v2934, 0
      %v2976 = vsel %vm145, %v2935, 0
      %v2979 = vsel %vm145, %v2936, 0
      %v2982 = vsel %vm145, %v2937, 0
      %v2985 = vsel %vm145, %v2938, 0
      %v2988 = vsel %vm414, %v229, 0
      %2990 = vmatpush.bf16.msra.mxu0 0
      %2991 = vmatpush.bf16.msra.mxu0 0
      %2992 = vmatpush.bf16.msra.mxu0 0
      %2993 = vmatpush.bf16.msra.mxu0 0
      %2994 = vmatpush.bf16.msra.mxu0 0
      %2995 = vmatpush.bf16.msra.mxu0 0
      %2996 = vmatpush.bf16.msra.mxu0 0
      %2997 = vmatpush.bf16.msra.mxu0 %v2988
      %2998 = vmatmul.bf16.gmra.mxu0 %v2940
      %v2999 = vpop.f32.mrf.mxu0
      %v3000 = vadd.f32 0.0, %v2999
      %v3001 = vpop.f32.mrf.mxu0
      %v3002 = vadd.f32 0.0, %v3001
      %3003 = vmatmul.bf16.gmra.mxu0 %v2943
      %v3004 = vpop.f32.mrf.mxu0
      %v3005 = vadd.f32 0.0, %v3004
      %v3006 = vpop.f32.mrf.mxu0
      %v3007 = vadd.f32 0.0, %v3006
      %3008 = vmatmul.bf16.gmra.mxu0 %v2946
      %v3009 = vpop.f32.mrf.mxu0
      %v3010 = vadd.f32 0.0, %v3009
      %v3011 = vpop.f32.mrf.mxu0
      %v3012 = vadd.f32 0.0, %v3011
      %3013 = vmatmul.bf16.gmra.mxu0 %v2949
      %v3014 = vpop.f32.mrf.mxu0
      %v3015 = vadd.f32 0.0, %v3014
      %v3016 = vpop.f32.mrf.mxu0
      %v3017 = vadd.f32 0.0, %v3016
      %3018 = vmatmul.bf16.gmra.mxu0 %v2952
      %v3019 = vpop.f32.mrf.mxu0
      %v3020 = vadd.f32 0.0, %v3019
      %v3021 = vpop.f32.mrf.mxu0
      %v3022 = vadd.f32 0.0, %v3021
      %3023 = vmatmul.bf16.gmra.mxu0 %v2955
      %v3024 = vpop.f32.mrf.mxu0
      %v3025 = vadd.f32 0.0, %v3024
      %v3026 = vpop.f32.mrf.mxu0
      %v3027 = vadd.f32 0.0, %v3026
      %3028 = vmatmul.bf16.gmra.mxu0 %v2958
      %v3029 = vpop.f32.mrf.mxu0
      %v3030 = vadd.f32 0.0, %v3029
      %v3031 = vpop.f32.mrf.mxu0
      %v3032 = vadd.f32 0.0, %v3031
      %3033 = vmatmul.bf16.gmra.mxu0 %v2961
      %v3034 = vpop.f32.mrf.mxu0
      %v3035 = vadd.f32 0.0, %v3034
      %v3036 = vpop.f32.mrf.mxu0
      %v3037 = vadd.f32 0.0, %v3036
      %3038 = vmatmul.bf16.gmra.mxu0 %v2964
      %v3039 = vpop.f32.mrf.mxu0
      %v3040 = vadd.f32 0.0, %v3039
      %v3041 = vpop.f32.mrf.mxu0
      %v3042 = vadd.f32 0.0, %v3041
      %3043 = vmatmul.bf16.gmra.mxu0 %v2967
      %v3044 = vpop.f32.mrf.mxu0
      %v3045 = vadd.f32 0.0, %v3044
      %v3046 = vpop.f32.mrf.mxu0
      %v3047 = vadd.f32 0.0, %v3046
      %3048 = vmatmul.bf16.gmra.mxu0 %v2970
      %v3049 = vpop.f32.mrf.mxu0
      %v3050 = vadd.f32 0.0, %v3049
      %v3051 = vpop.f32.mrf.mxu0
      %v3052 = vadd.f32 0.0, %v3051
      %3053 = vmatmul.bf16.gmra.mxu0 %v2973
      %v3054 = vpop.f32.mrf.mxu0
      %v3055 = vadd.f32 0.0, %v3054
      %v3056 = vpop.f32.mrf.mxu0
      %v3057 = vadd.f32 0.0, %v3056
      %3058 = vmatmul.bf16.gmra.mxu0 %v2976
      %v3059 = vpop.f32.mrf.mxu0
      %v3060 = vadd.f32 0.0, %v3059
      %v3061 = vpop.f32.mrf.mxu0
      %v3062 = vadd.f32 0.0, %v3061
      %3063 = vmatmul.bf16.gmra.mxu0 %v2979
      %v3064 = vpop.f32.mrf.mxu0
      %v3065 = vadd.f32 0.0, %v3064
      %v3066 = vpop.f32.mrf.mxu0
      %v3067 = vadd.f32 0.0, %v3066
      %3068 = vmatmul.bf16.gmra.mxu0 %v2982
      %v3069 = vpop.f32.mrf.mxu0
      %v3070 = vadd.f32 0.0, %v3069
      %v3071 = vpop.f32.mrf.mxu0
      %v3072 = vadd.f32 0.0, %v3071
      %3073 = vmatmul.bf16.gmra.mxu0 %v2985
      %v3074 = vpop.f32.mrf.mxu0
      %v3075 = vadd.f32 0.0, %v3074
      %v3076 = vpop.f32.mrf.mxu0
      %v3077 = vadd.f32 0.0, %v3076
      %3078 = vdwg.mxu0
      %v3079 = vadd.f32 %v2812, %v3000
      %v3080 = vadd.f32 %v2814, %v3002
      %v3081 = vadd.f32 %v2817, %v3005
      %v3082 = vadd.f32 %v2819, %v3007
      %v3083 = vadd.f32 %v2822, %v3010
      %v3084 = vadd.f32 %v2824, %v3012
      %v3085 = vadd.f32 %v2827, %v3015
      %v3086 = vadd.f32 %v2829, %v3017
      %v3087 = vadd.f32 %v2832, %v3020
      %v3088 = vadd.f32 %v2834, %v3022
      %v3089 = vadd.f32 %v2837, %v3025
      %v3090 = vadd.f32 %v2839, %v3027
      %v3091 = vadd.f32 %v2842, %v3030
      %v3092 = vadd.f32 %v2844, %v3032
      %v3093 = vadd.f32 %v2847, %v3035
      %v3094 = vadd.f32 %v2849, %v3037
      %v3095 = vadd.f32 %v2852, %v3040
      %v3096 = vadd.f32 %v2854, %v3042
      %v3097 = vadd.f32 %v2857, %v3045
      %v3098 = vadd.f32 %v2859, %v3047
      %v3099 = vadd.f32 %v2862, %v3050
      %v3100 = vadd.f32 %v2864, %v3052
      %v3101 = vadd.f32 %v2867, %v3055
      %v3102 = vadd.f32 %v2869, %v3057
      %v3103 = vadd.f32 %v2872, %v3060
      %v3104 = vadd.f32 %v2874, %v3062
      %v3105 = vadd.f32 %v2877, %v3065
      %v3106 = vadd.f32 %v2879, %v3067
      %v3107 = vadd.f32 %v2882, %v3070
      %v3108 = vadd.f32 %v2884, %v3072
      %v3109 = vadd.f32 %v2887, %v3075
      %v3110 = vadd.f32 %v2889, %v3077
      %v3111 = vld [vmem:[%s233] sm:$0xff]
      %v3112 = vld [vmem:[%s233 + $0x8] sm:$0xff]
      %v3113 = vld [vmem:[%s233 + $0x18] sm:$0xff]
      %v3114 = vld [vmem:[%s233 + $0x20] sm:$0xff]
      %v3115 = vld [vmem:[%s233 + $0x30] sm:$0xff]
      %v3116 = vld [vmem:[%s233 + $0x38] sm:$0xff]
      %v3117 = vld [vmem:[%s233 + $0x48] sm:$0xff]
      %v3118 = vld [vmem:[%s233 + $0x50] sm:$0xff]
      %v3119 = vld [vmem:[%s233 + $0x60] sm:$0xff]
      %v3120 = vld [vmem:[%s233 + $0x68] sm:$0xff]
      %v3121 = vld [vmem:[%s233 + $0x78] sm:$0xff]
      %v3122 = vld [vmem:[%s233 + $0x80] sm:$0xff]
      %v3123 = vld [vmem:[%s233 + $0x90] sm:$0xff]
      %v3124 = vld [vmem:[%s233 + $0x98] sm:$0xff]
      %v3125 = vld [vmem:[%s233 + $0xa8] sm:$0xff]
      %v3126 = vld [vmem:[%s233 + $0xb0] sm:$0xff]
      %v3127 = vld [vmem:[%s233 + $0xc0] sm:$0xff]
      %v3128 = vld [vmem:[%s233 + $0xc8] sm:$0xff]
      %v3129 = vld [vmem:[%s233 + $0xd8] sm:$0xff]
      %v3130 = vld [vmem:[%s233 + $0xe0] sm:$0xff]
      %v3131 = vld [vmem:[%s233 + $0xf0] sm:$0xff]
      %v3132 = vld [vmem:[%s233 + $0xf8] sm:$0xff]
      %v3133 = vld [vmem:[%s233 + $0x108] sm:$0xff]
      %v3134 = vld [vmem:[%s233 + $0x110] sm:$0xff]
      %v3135 = vld [vmem:[%s233 + $0x120] sm:$0xff]
      %v3136 = vld [vmem:[%s233 + $0x128] sm:$0xff]
      %v3137 = vld [vmem:[%s233 + $0x138] sm:$0xff]
      %v3138 = vld [vmem:[%s233 + $0x140] sm:$0xff]
      %v3139 = vld [vmem:[%s233 + $0x150] sm:$0xff]
      %v3140 = vld [vmem:[%s233 + $0x158] sm:$0xff]
      %v3141 = vld [vmem:[%s233 + $0x168] sm:$0xff]
      %v3142 = vld [vmem:[%s233 + $0x170] sm:$0xff]
      %v3143 = vpack.c.bf16 %v3112, %v3111
      %v3144 = vpack.c.bf16 %v3114, %v3113
      %v3145 = vpack.c.bf16 %v3116, %v3115
      %v3146 = vpack.c.bf16 %v3118, %v3117
      %v3147 = vpack.c.bf16 %v3120, %v3119
      %v3148 = vpack.c.bf16 %v3122, %v3121
      %v3149 = vpack.c.bf16 %v3124, %v3123
      %v3150 = vpack.c.bf16 %v3126, %v3125
      %v3151 = vpack.c.bf16 %v3128, %v3127
      %v3152 = vpack.c.bf16 %v3130, %v3129
      %v3153 = vpack.c.bf16 %v3132, %v3131
      %v3154 = vpack.c.bf16 %v3134, %v3133
      %v3155 = vpack.c.bf16 %v3136, %v3135
      %v3156 = vpack.c.bf16 %v3138, %v3137
      %v3157 = vpack.c.bf16 %v3140, %v3139
      %v3158 = vpack.c.bf16 %v3142, %v3141
      %v3160 = vunpack.c.l.b16 %v229
      %v3161 = vpack.c.b16 %v3160, %v3160
      %v3162 = vrot.slane %v3161, 2
      %v3164 = vsel %vm145, %v3143, 0
      %v3167 = vsel %vm145, %v3144, 0
      %v3170 = vsel %vm145, %v3145, 0
      %v3173 = vsel %vm145, %v3146, 0
      %v3176 = vsel %vm145, %v3147, 0
      %v3179 = vsel %vm145, %v3148, 0
      %v3182 = vsel %vm145, %v3149, 0
      %v3185 = vsel %vm145, %v3150, 0
      %v3188 = vsel %vm145, %v3151, 0
      %v3191 = vsel %vm145, %v3152, 0
      %v3194 = vsel %vm145, %v3153, 0
      %v3197 = vsel %vm145, %v3154, 0
      %v3200 = vsel %vm145, %v3155, 0
      %v3203 = vsel %vm145, %v3156, 0
      %v3206 = vsel %vm145, %v3157, 0
      %v3209 = vsel %vm145, %v3158, 0
      %v3212 = vsel %vm414, %v3162, 0
      %3214 = vmatpush.bf16.msra.mxu0 0
      %3215 = vmatpush.bf16.msra.mxu0 0
      %3216 = vmatpush.bf16.msra.mxu0 0
      %3217 = vmatpush.bf16.msra.mxu0 0
      %3218 = vmatpush.bf16.msra.mxu0 0
      %3219 = vmatpush.bf16.msra.mxu0 0
      %3220 = vmatpush.bf16.msra.mxu0 0
      %3221 = vmatpush.bf16.msra.mxu0 %v3212
      %3222 = vmatmul.bf16.gmra.mxu0 %v3164
      %v3223 = vpop.f32.mrf.mxu0
      %v3224 = vadd.f32 0.0, %v3223
      %v3225 = vpop.f32.mrf.mxu0
      %v3226 = vadd.f32 0.0, %v3225
      %3227 = vmatmul.bf16.gmra.mxu0 %v3167
      %v3228 = vpop.f32.mrf.mxu0
      %v3229 = vadd.f32 0.0, %v3228
      %v3230 = vpop.f32.mrf.mxu0
      %v3231 = vadd.f32 0.0, %v3230
      %3232 = vmatmul.bf16.gmra.mxu0 %v3170
      %v3233 = vpop.f32.mrf.mxu0
      %v3234 = vadd.f32 0.0, %v3233
      %v3235 = vpop.f32.mrf.mxu0
      %v3236 = vadd.f32 0.0, %v3235
      %3237 = vmatmul.bf16.gmra.mxu0 %v3173
      %v3238 = vpop.f32.mrf.mxu0
      %v3239 = vadd.f32 0.0, %v3238
      %v3240 = vpop.f32.mrf.mxu0
      %v3241 = vadd.f32 0.0, %v3240
      %3242 = vmatmul.bf16.gmra.mxu0 %v3176
      %v3243 = vpop.f32.mrf.mxu0
      %v3244 = vadd.f32 0.0, %v3243
      %v3245 = vpop.f32.mrf.mxu0
      %v3246 = vadd.f32 0.0, %v3245
      %3247 = vmatmul.bf16.gmra.mxu0 %v3179
      %v3248 = vpop.f32.mrf.mxu0
      %v3249 = vadd.f32 0.0, %v3248
      %v3250 = vpop.f32.mrf.mxu0
      %v3251 = vadd.f32 0.0, %v3250
      %3252 = vmatmul.bf16.gmra.mxu0 %v3182
      %v3253 = vpop.f32.mrf.mxu0
      %v3254 = vadd.f32 0.0, %v3253
      %v3255 = vpop.f32.mrf.mxu0
      %v3256 = vadd.f32 0.0, %v3255
      %3257 = vmatmul.bf16.gmra.mxu0 %v3185
      %v3258 = vpop.f32.mrf.mxu0
      %v3259 = vadd.f32 0.0, %v3258
      %v3260 = vpop.f32.mrf.mxu0
      %v3261 = vadd.f32 0.0, %v3260
      %3262 = vmatmul.bf16.gmra.mxu0 %v3188
      %v3263 = vpop.f32.mrf.mxu0
      %v3264 = vadd.f32 0.0, %v3263
      %v3265 = vpop.f32.mrf.mxu0
      %v3266 = vadd.f32 0.0, %v3265
      %3267 = vmatmul.bf16.gmra.mxu0 %v3191
      %v3268 = vpop.f32.mrf.mxu0
      %v3269 = vadd.f32 0.0, %v3268
      %v3270 = vpop.f32.mrf.mxu0
      %v3271 = vadd.f32 0.0, %v3270
      %3272 = vmatmul.bf16.gmra.mxu0 %v3194
      %v3273 = vpop.f32.mrf.mxu0
      %v3274 = vadd.f32 0.0, %v3273
      %v3275 = vpop.f32.mrf.mxu0
      %v3276 = vadd.f32 0.0, %v3275
      %3277 = vmatmul.bf16.gmra.mxu0 %v3197
      %v3278 = vpop.f32.mrf.mxu0
      %v3279 = vadd.f32 0.0, %v3278
      %v3280 = vpop.f32.mrf.mxu0
      %v3281 = vadd.f32 0.0, %v3280
      %3282 = vmatmul.bf16.gmra.mxu0 %v3200
      %v3283 = vpop.f32.mrf.mxu0
      %v3284 = vadd.f32 0.0, %v3283
      %v3285 = vpop.f32.mrf.mxu0
      %v3286 = vadd.f32 0.0, %v3285
      %3287 = vmatmul.bf16.gmra.mxu0 %v3203
      %v3288 = vpop.f32.mrf.mxu0
      %v3289 = vadd.f32 0.0, %v3288
      %v3290 = vpop.f32.mrf.mxu0
      %v3291 = vadd.f32 0.0, %v3290
      %3292 = vmatmul.bf16.gmra.mxu0 %v3206
      %v3293 = vpop.f32.mrf.mxu0
      %v3294 = vadd.f32 0.0, %v3293
      %v3295 = vpop.f32.mrf.mxu0
      %v3296 = vadd.f32 0.0, %v3295
      %3297 = vmatmul.bf16.gmra.mxu0 %v3209
      %v3298 = vpop.f32.mrf.mxu0
      %v3299 = vadd.f32 0.0, %v3298
      %v3300 = vpop.f32.mrf.mxu0
      %v3301 = vadd.f32 0.0, %v3300
      %3302 = vdwg.mxu0
      %v3303 = vadd.f32 %v3079, %v3224
      %v3304 = vadd.f32 %v3080, %v3226
      %v3305 = vadd.f32 %v3081, %v3229
      %v3306 = vadd.f32 %v3082, %v3231
      %v3307 = vadd.f32 %v3083, %v3234
      %v3308 = vadd.f32 %v3084, %v3236
      %v3309 = vadd.f32 %v3085, %v3239
      %v3310 = vadd.f32 %v3086, %v3241
      %v3311 = vadd.f32 %v3087, %v3244
      %v3312 = vadd.f32 %v3088, %v3246
      %v3313 = vadd.f32 %v3089, %v3249
      %v3314 = vadd.f32 %v3090, %v3251
      %v3315 = vadd.f32 %v3091, %v3254
      %v3316 = vadd.f32 %v3092, %v3256
      %v3317 = vadd.f32 %v3093, %v3259
      %v3318 = vadd.f32 %v3094, %v3261
      %v3319 = vadd.f32 %v3095, %v3264
      %v3320 = vadd.f32 %v3096, %v3266
      %v3321 = vadd.f32 %v3097, %v3269
      %v3322 = vadd.f32 %v3098, %v3271
      %v3323 = vadd.f32 %v3099, %v3274
      %v3324 = vadd.f32 %v3100, %v3276
      %v3325 = vadd.f32 %v3101, %v3279
      %v3326 = vadd.f32 %v3102, %v3281
      %v3327 = vadd.f32 %v3103, %v3284
      %v3328 = vadd.f32 %v3104, %v3286
      %v3329 = vadd.f32 %v3105, %v3289
      %v3330 = vadd.f32 %v3106, %v3291
      %v3331 = vadd.f32 %v3107, %v3294
      %v3332 = vadd.f32 %v3108, %v3296
      %v3333 = vadd.f32 %v3109, %v3299
      %v3334 = vadd.f32 %v3110, %v3301
      %v3335 = vld [vmem:[%s233 + $0x1] sm:$0xff]
      %v3336 = vld [vmem:[%s233 + $0x9] sm:$0xff]
      %v3337 = vld [vmem:[%s233 + $0x19] sm:$0xff]
      %v3338 = vld [vmem:[%s233 + $0x21] sm:$0xff]
      %v3339 = vld [vmem:[%s233 + $0x31] sm:$0xff]
      %v3340 = vld [vmem:[%s233 + $0x39] sm:$0xff]
      %v3341 = vld [vmem:[%s233 + $0x49] sm:$0xff]
      %v3342 = vld [vmem:[%s233 + $0x51] sm:$0xff]
      %v3343 = vld [vmem:[%s233 + $0x61] sm:$0xff]
      %v3344 = vld [vmem:[%s233 + $0x69] sm:$0xff]
      %v3345 = vld [vmem:[%s233 + $0x79] sm:$0xff]
      %v3346 = vld [vmem:[%s233 + $0x81] sm:$0xff]
      %v3347 = vld [vmem:[%s233 + $0x91] sm:$0xff]
      %v3348 = vld [vmem:[%s233 + $0x99] sm:$0xff]
      %v3349 = vld [vmem:[%s233 + $0xa9] sm:$0xff]
      %v3350 = vld [vmem:[%s233 + $0xb1] sm:$0xff]
      %v3351 = vld [vmem:[%s233 + $0xc1] sm:$0xff]
      %v3352 = vld [vmem:[%s233 + $0xc9] sm:$0xff]
      %v3353 = vld [vmem:[%s233 + $0xd9] sm:$0xff]
      %v3354 = vld [vmem:[%s233 + $0xe1] sm:$0xff]
      %v3355 = vld [vmem:[%s233 + $0xf1] sm:$0xff]
      %v3356 = vld [vmem:[%s233 + $0xf9] sm:$0xff]
      %v3357 = vld [vmem:[%s233 + $0x109] sm:$0xff]
      %v3358 = vld [vmem:[%s233 + $0x111] sm:$0xff]
      %v3359 = vld [vmem:[%s233 + $0x121] sm:$0xff]
      %v3360 = vld [vmem:[%s233 + $0x129] sm:$0xff]
      %v3361 = vld [vmem:[%s233 + $0x139] sm:$0xff]
      %v3362 = vld [vmem:[%s233 + $0x141] sm:$0xff]
      %v3363 = vld [vmem:[%s233 + $0x151] sm:$0xff]
      %v3364 = vld [vmem:[%s233 + $0x159] sm:$0xff]
      %v3365 = vld [vmem:[%s233 + $0x169] sm:$0xff]
      %v3366 = vld [vmem:[%s233 + $0x171] sm:$0xff]
      %v3367 = vpack.c.bf16 %v3336, %v3335
      %v3368 = vpack.c.bf16 %v3338, %v3337
      %v3369 = vpack.c.bf16 %v3340, %v3339
      %v3370 = vpack.c.bf16 %v3342, %v3341
      %v3371 = vpack.c.bf16 %v3344, %v3343
      %v3372 = vpack.c.bf16 %v3346, %v3345
      %v3373 = vpack.c.bf16 %v3348, %v3347
      %v3374 = vpack.c.bf16 %v3350, %v3349
      %v3375 = vpack.c.bf16 %v3352, %v3351
      %v3376 = vpack.c.bf16 %v3354, %v3353
      %v3377 = vpack.c.bf16 %v3356, %v3355
      %v3378 = vpack.c.bf16 %v3358, %v3357
      %v3379 = vpack.c.bf16 %v3360, %v3359
      %v3380 = vpack.c.bf16 %v3362, %v3361
      %v3381 = vpack.c.bf16 %v3364, %v3363
      %v3382 = vpack.c.bf16 %v3366, %v3365
      %v3384 = vsel %vm145, %v3367, 0
      %v3387 = vsel %vm145, %v3368, 0
      %v3390 = vsel %vm145, %v3369, 0
      %v3393 = vsel %vm145, %v3370, 0
      %v3396 = vsel %vm145, %v3371, 0
      %v3399 = vsel %vm145, %v3372, 0
      %v3402 = vsel %vm145, %v3373, 0
      %v3405 = vsel %vm145, %v3374, 0
      %v3408 = vsel %vm145, %v3375, 0
      %v3411 = vsel %vm145, %v3376, 0
      %v3414 = vsel %vm145, %v3377, 0
      %v3417 = vsel %vm145, %v3378, 0
      %v3420 = vsel %vm145, %v3379, 0
      %v3423 = vsel %vm145, %v3380, 0
      %v3426 = vsel %vm145, %v3381, 0
      %v3429 = vsel %vm145, %v3382, 0
      %v3432 = vsel %vm414, %v230, 0
      %3434 = vmatpush.bf16.msra.mxu0 0
      %3435 = vmatpush.bf16.msra.mxu0 0
      %3436 = vmatpush.bf16.msra.mxu0 0
      %3437 = vmatpush.bf16.msra.mxu0 0
      %3438 = vmatpush.bf16.msra.mxu0 0
      %3439 = vmatpush.bf16.msra.mxu0 0
      %3440 = vmatpush.bf16.msra.mxu0 0
      %3441 = vmatpush.bf16.msra.mxu0 %v3432
      %3442 = vmatmul.bf16.gmra.mxu0 %v3384
      %v3443 = vpop.f32.mrf.mxu0
      %v3444 = vadd.f32 0.0, %v3443
      %v3445 = vpop.f32.mrf.mxu0
      %v3446 = vadd.f32 0.0, %v3445
      %3447 = vmatmul.bf16.gmra.mxu0 %v3387
      %v3448 = vpop.f32.mrf.mxu0
      %v3449 = vadd.f32 0.0, %v3448
      %v3450 = vpop.f32.mrf.mxu0
      %v3451 = vadd.f32 0.0, %v3450
      %3452 = vmatmul.bf16.gmra.mxu0 %v3390
      %v3453 = vpop.f32.mrf.mxu0
      %v3454 = vadd.f32 0.0, %v3453
      %v3455 = vpop.f32.mrf.mxu0
      %v3456 = vadd.f32 0.0, %v3455
      %3457 = vmatmul.bf16.gmra.mxu0 %v3393
      %v3458 = vpop.f32.mrf.mxu0
      %v3459 = vadd.f32 0.0, %v3458
      %v3460 = vpop.f32.mrf.mxu0
      %v3461 = vadd.f32 0.0, %v3460
      %3462 = vmatmul.bf16.gmra.mxu0 %v3396
      %v3463 = vpop.f32.mrf.mxu0
      %v3464 = vadd.f32 0.0, %v3463
      %v3465 = vpop.f32.mrf.mxu0
      %v3466 = vadd.f32 0.0, %v3465
      %3467 = vmatmul.bf16.gmra.mxu0 %v3399
      %v3468 = vpop.f32.mrf.mxu0
      %v3469 = vadd.f32 0.0, %v3468
      %v3470 = vpop.f32.mrf.mxu0
      %v3471 = vadd.f32 0.0, %v3470
      %3472 = vmatmul.bf16.gmra.mxu0 %v3402
      %v3473 = vpop.f32.mrf.mxu0
      %v3474 = vadd.f32 0.0, %v3473
      %v3475 = vpop.f32.mrf.mxu0
      %v3476 = vadd.f32 0.0, %v3475
      %3477 = vmatmul.bf16.gmra.mxu0 %v3405
      %v3478 = vpop.f32.mrf.mxu0
      %v3479 = vadd.f32 0.0, %v3478
      %v3480 = vpop.f32.mrf.mxu0
      %v3481 = vadd.f32 0.0, %v3480
      %3482 = vmatmul.bf16.gmra.mxu0 %v3408
      %v3483 = vpop.f32.mrf.mxu0
      %v3484 = vadd.f32 0.0, %v3483
      %v3485 = vpop.f32.mrf.mxu0
      %v3486 = vadd.f32 0.0, %v3485
      %3487 = vmatmul.bf16.gmra.mxu0 %v3411
      %v3488 = vpop.f32.mrf.mxu0
      %v3489 = vadd.f32 0.0, %v3488
      %v3490 = vpop.f32.mrf.mxu0
      %v3491 = vadd.f32 0.0, %v3490
      %3492 = vmatmul.bf16.gmra.mxu0 %v3414
      %v3493 = vpop.f32.mrf.mxu0
      %v3494 = vadd.f32 0.0, %v3493
      %v3495 = vpop.f32.mrf.mxu0
      %v3496 = vadd.f32 0.0, %v3495
      %3497 = vmatmul.bf16.gmra.mxu0 %v3417
      %v3498 = vpop.f32.mrf.mxu0
      %v3499 = vadd.f32 0.0, %v3498
      %v3500 = vpop.f32.mrf.mxu0
      %v3501 = vadd.f32 0.0, %v3500
      %3502 = vmatmul.bf16.gmra.mxu0 %v3420
      %v3503 = vpop.f32.mrf.mxu0
      %v3504 = vadd.f32 0.0, %v3503
      %v3505 = vpop.f32.mrf.mxu0
      %v3506 = vadd.f32 0.0, %v3505
      %3507 = vmatmul.bf16.gmra.mxu0 %v3423
      %v3508 = vpop.f32.mrf.mxu0
      %v3509 = vadd.f32 0.0, %v3508
      %v3510 = vpop.f32.mrf.mxu0
      %v3511 = vadd.f32 0.0, %v3510
      %3512 = vmatmul.bf16.gmra.mxu0 %v3426
      %v3513 = vpop.f32.mrf.mxu0
      %v3514 = vadd.f32 0.0, %v3513
      %v3515 = vpop.f32.mrf.mxu0
      %v3516 = vadd.f32 0.0, %v3515
      %3517 = vmatmul.bf16.gmra.mxu0 %v3429
      %v3518 = vpop.f32.mrf.mxu0
      %v3519 = vadd.f32 0.0, %v3518
      %v3520 = vpop.f32.mrf.mxu0
      %v3521 = vadd.f32 0.0, %v3520
      %3522 = vdwg.mxu0
      %v3523 = vadd.f32 %v3303, %v3444
      %v3524 = vadd.f32 %v3304, %v3446
      %v3525 = vadd.f32 %v3305, %v3449
      %v3526 = vadd.f32 %v3306, %v3451
      %v3527 = vadd.f32 %v3307, %v3454
      %v3528 = vadd.f32 %v3308, %v3456
      %v3529 = vadd.f32 %v3309, %v3459
      %v3530 = vadd.f32 %v3310, %v3461
      %v3531 = vadd.f32 %v3311, %v3464
      %v3532 = vadd.f32 %v3312, %v3466
      %v3533 = vadd.f32 %v3313, %v3469
      %v3534 = vadd.f32 %v3314, %v3471
      %v3535 = vadd.f32 %v3315, %v3474
      %v3536 = vadd.f32 %v3316, %v3476
      %v3537 = vadd.f32 %v3317, %v3479
      %v3538 = vadd.f32 %v3318, %v3481
      %v3539 = vadd.f32 %v3319, %v3484
      %v3540 = vadd.f32 %v3320, %v3486
      %v3541 = vadd.f32 %v3321, %v3489
      %v3542 = vadd.f32 %v3322, %v3491
      %v3543 = vadd.f32 %v3323, %v3494
      %v3544 = vadd.f32 %v3324, %v3496
      %v3545 = vadd.f32 %v3325, %v3499
      %v3546 = vadd.f32 %v3326, %v3501
      %v3547 = vadd.f32 %v3327, %v3504
      %v3548 = vadd.f32 %v3328, %v3506
      %v3549 = vadd.f32 %v3329, %v3509
      %v3550 = vadd.f32 %v3330, %v3511
      %v3551 = vadd.f32 %v3331, %v3514
      %v3552 = vadd.f32 %v3332, %v3516
      %v3553 = vadd.f32 %v3333, %v3519
      %v3554 = vadd.f32 %v3334, %v3521
      %v3555 = vld [vmem:[%s233 + $0x2] sm:$0xff]
      %v3556 = vld [vmem:[%s233 + $0xa] sm:$0xff]
      %v3557 = vld [vmem:[%s233 + $0x1a] sm:$0xff]
      %v3558 = vld [vmem:[%s233 + $0x22] sm:$0xff]
      %v3559 = vld [vmem:[%s233 + $0x32] sm:$0xff]
      %v3560 = vld [vmem:[%s233 + $0x3a] sm:$0xff]
      %v3561 = vld [vmem:[%s233 + $0x4a] sm:$0xff]
      %v3562 = vld [vmem:[%s233 + $0x52] sm:$0xff]
      %v3563 = vld [vmem:[%s233 + $0x62] sm:$0xff]
      %v3564 = vld [vmem:[%s233 + $0x6a] sm:$0xff]
      %v3565 = vld [vmem:[%s233 + $0x7a] sm:$0xff]
      %v3566 = vld [vmem:[%s233 + $0x82] sm:$0xff]
      %v3567 = vld [vmem:[%s233 + $0x92] sm:$0xff]
      %v3568 = vld [vmem:[%s233 + $0x9a] sm:$0xff]
      %v3569 = vld [vmem:[%s233 + $0xaa] sm:$0xff]
      %v3570 = vld [vmem:[%s233 + $0xb2] sm:$0xff]
      %v3571 = vld [vmem:[%s233 + $0xc2] sm:$0xff]
      %v3572 = vld [vmem:[%s233 + $0xca] sm:$0xff]
      %v3573 = vld [vmem:[%s233 + $0xda] sm:$0xff]
      %v3574 = vld [vmem:[%s233 + $0xe2] sm:$0xff]
      %v3575 = vld [vmem:[%s233 + $0xf2] sm:$0xff]
      %v3576 = vld [vmem:[%s233 + $0xfa] sm:$0xff]
      %v3577 = vld [vmem:[%s233 + $0x10a] sm:$0xff]
      %v3578 = vld [vmem:[%s233 + $0x112] sm:$0xff]
      %v3579 = vld [vmem:[%s233 + $0x122] sm:$0xff]
      %v3580 = vld [vmem:[%s233 + $0x12a] sm:$0xff]
      %v3581 = vld [vmem:[%s233 + $0x13a] sm:$0xff]
      %v3582 = vld [vmem:[%s233 + $0x142] sm:$0xff]
      %v3583 = vld [vmem:[%s233 + $0x152] sm:$0xff]
      %v3584 = vld [vmem:[%s233 + $0x15a] sm:$0xff]
      %v3585 = vld [vmem:[%s233 + $0x16a] sm:$0xff]
      %v3586 = vld [vmem:[%s233 + $0x172] sm:$0xff]
      %v3587 = vpack.c.bf16 %v3556, %v3555
      %v3588 = vpack.c.bf16 %v3558, %v3557
      %v3589 = vpack.c.bf16 %v3560, %v3559
      %v3590 = vpack.c.bf16 %v3562, %v3561
      %v3591 = vpack.c.bf16 %v3564, %v3563
      %v3592 = vpack.c.bf16 %v3566, %v3565
      %v3593 = vpack.c.bf16 %v3568, %v3567
      %v3594 = vpack.c.bf16 %v3570, %v3569
      %v3595 = vpack.c.bf16 %v3572, %v3571
      %v3596 = vpack.c.bf16 %v3574, %v3573
      %v3597 = vpack.c.bf16 %v3576, %v3575
      %v3598 = vpack.c.bf16 %v3578, %v3577
      %v3599 = vpack.c.bf16 %v3580, %v3579
      %v3600 = vpack.c.bf16 %v3582, %v3581
      %v3601 = vpack.c.bf16 %v3584, %v3583
      %v3602 = vpack.c.bf16 %v3586, %v3585
      %v3604 = vunpack.c.l.b16 %v230
      %v3605 = vpack.c.b16 %v3604, %v3604
      %v3606 = vrot.slane %v3605, 2
      %v3608 = vsel %vm145, %v3587, 0
      %v3611 = vsel %vm145, %v3588, 0
      %v3614 = vsel %vm145, %v3589, 0
      %v3617 = vsel %vm145, %v3590, 0
      %v3620 = vsel %vm145, %v3591, 0
      %v3623 = vsel %vm145, %v3592, 0
      %v3626 = vsel %vm145, %v3593, 0
      %v3629 = vsel %vm145, %v3594, 0
      %v3632 = vsel %vm145, %v3595, 0
      %v3635 = vsel %vm145, %v3596, 0
      %v3638 = vsel %vm145, %v3597, 0
      %v3641 = vsel %vm145, %v3598, 0
      %v3644 = vsel %vm145, %v3599, 0
      %v3647 = vsel %vm145, %v3600, 0
      %v3650 = vsel %vm145, %v3601, 0
      %v3653 = vsel %vm145, %v3602, 0
      %v3656 = vsel %vm414, %v3606, 0
      %3658 = vmatpush.bf16.msra.mxu0 0
      %3659 = vmatpush.bf16.msra.mxu0 0
      %3660 = vmatpush.bf16.msra.mxu0 0
      %3661 = vmatpush.bf16.msra.mxu0 0
      %3662 = vmatpush.bf16.msra.mxu0 0
      %3663 = vmatpush.bf16.msra.mxu0 0
      %3664 = vmatpush.bf16.msra.mxu0 0
      %3665 = vmatpush.bf16.msra.mxu0 %v3656
      %3666 = vmatmul.bf16.gmra.mxu0 %v3608
      %v3667 = vpop.f32.mrf.mxu0
      %v3668 = vadd.f32 0.0, %v3667
      %v3669 = vpop.f32.mrf.mxu0
      %v3670 = vadd.f32 0.0, %v3669
      %3671 = vmatmul.bf16.gmra.mxu0 %v3611
      %v3672 = vpop.f32.mrf.mxu0
      %v3673 = vadd.f32 0.0, %v3672
      %v3674 = vpop.f32.mrf.mxu0
      %v3675 = vadd.f32 0.0, %v3674
      %3676 = vmatmul.bf16.gmra.mxu0 %v3614
      %v3677 = vpop.f32.mrf.mxu0
      %v3678 = vadd.f32 0.0, %v3677
      %v3679 = vpop.f32.mrf.mxu0
      %v3680 = vadd.f32 0.0, %v3679
      %3681 = vmatmul.bf16.gmra.mxu0 %v3617
      %v3682 = vpop.f32.mrf.mxu0
      %v3683 = vadd.f32 0.0, %v3682
      %v3684 = vpop.f32.mrf.mxu0
      %v3685 = vadd.f32 0.0, %v3684
      %3686 = vmatmul.bf16.gmra.mxu0 %v3620
      %v3687 = vpop.f32.mrf.mxu0
      %v3688 = vadd.f32 0.0, %v3687
      %v3689 = vpop.f32.mrf.mxu0
      %v3690 = vadd.f32 0.0, %v3689
      %3691 = vmatmul.bf16.gmra.mxu0 %v3623
      %v3692 = vpop.f32.mrf.mxu0
      %v3693 = vadd.f32 0.0, %v3692
      %v3694 = vpop.f32.mrf.mxu0
      %v3695 = vadd.f32 0.0, %v3694
      %3696 = vmatmul.bf16.gmra.mxu0 %v3626
      %v3697 = vpop.f32.mrf.mxu0
      %v3698 = vadd.f32 0.0, %v3697
      %v3699 = vpop.f32.mrf.mxu0
      %v3700 = vadd.f32 0.0, %v3699
      %3701 = vmatmul.bf16.gmra.mxu0 %v3629
      %v3702 = vpop.f32.mrf.mxu0
      %v3703 = vadd.f32 0.0, %v3702
      %v3704 = vpop.f32.mrf.mxu0
      %v3705 = vadd.f32 0.0, %v3704
      %3706 = vmatmul.bf16.gmra.mxu0 %v3632
      %v3707 = vpop.f32.mrf.mxu0
      %v3708 = vadd.f32 0.0, %v3707
      %v3709 = vpop.f32.mrf.mxu0
      %v3710 = vadd.f32 0.0, %v3709
      %3711 = vmatmul.bf16.gmra.mxu0 %v3635
      %v3712 = vpop.f32.mrf.mxu0
      %v3713 = vadd.f32 0.0, %v3712
      %v3714 = vpop.f32.mrf.mxu0
      %v3715 = vadd.f32 0.0, %v3714
      %3716 = vmatmul.bf16.gmra.mxu0 %v3638
      %v3717 = vpop.f32.mrf.mxu0
      %v3718 = vadd.f32 0.0, %v3717
      %v3719 = vpop.f32.mrf.mxu0
      %v3720 = vadd.f32 0.0, %v3719
      %3721 = vmatmul.bf16.gmra.mxu0 %v3641
      %v3722 = vpop.f32.mrf.mxu0
      %v3723 = vadd.f32 0.0, %v3722
      %v3724 = vpop.f32.mrf.mxu0
      %v3725 = vadd.f32 0.0, %v3724
      %3726 = vmatmul.bf16.gmra.mxu0 %v3644
      %v3727 = vpop.f32.mrf.mxu0
      %v3728 = vadd.f32 0.0, %v3727
      %v3729 = vpop.f32.mrf.mxu0
      %v3730 = vadd.f32 0.0, %v3729
      %3731 = vmatmul.bf16.gmra.mxu0 %v3647
      %v3732 = vpop.f32.mrf.mxu0
      %v3733 = vadd.f32 0.0, %v3732
      %v3734 = vpop.f32.mrf.mxu0
      %v3735 = vadd.f32 0.0, %v3734
      %3736 = vmatmul.bf16.gmra.mxu0 %v3650
      %v3737 = vpop.f32.mrf.mxu0
      %v3738 = vadd.f32 0.0, %v3737
      %v3739 = vpop.f32.mrf.mxu0
      %v3740 = vadd.f32 0.0, %v3739
      %3741 = vmatmul.bf16.gmra.mxu0 %v3653
      %v3742 = vpop.f32.mrf.mxu0
      %v3743 = vadd.f32 0.0, %v3742
      %v3744 = vpop.f32.mrf.mxu0
      %v3745 = vadd.f32 0.0, %v3744
      %3746 = vdwg.mxu0
      %v3747 = vadd.f32 %v3523, %v3668
      %v3748 = vadd.f32 %v3524, %v3670
      %v3749 = vadd.f32 %v3525, %v3673
      %v3750 = vadd.f32 %v3526, %v3675
      %v3751 = vadd.f32 %v3527, %v3678
      %v3752 = vadd.f32 %v3528, %v3680
      %v3753 = vadd.f32 %v3529, %v3683
      %v3754 = vadd.f32 %v3530, %v3685
      %v3755 = vadd.f32 %v3531, %v3688
      %v3756 = vadd.f32 %v3532, %v3690
      %v3757 = vadd.f32 %v3533, %v3693
      %v3758 = vadd.f32 %v3534, %v3695
      %v3759 = vadd.f32 %v3535, %v3698
      %v3760 = vadd.f32 %v3536, %v3700
      %v3761 = vadd.f32 %v3537, %v3703
      %v3762 = vadd.f32 %v3538, %v3705
      %v3763 = vadd.f32 %v3539, %v3708
      %v3764 = vadd.f32 %v3540, %v3710
      %v3765 = vadd.f32 %v3541, %v3713
      %v3766 = vadd.f32 %v3542, %v3715
      %v3767 = vadd.f32 %v3543, %v3718
      %v3768 = vadd.f32 %v3544, %v3720
      %v3769 = vadd.f32 %v3545, %v3723
      %v3770 = vadd.f32 %v3546, %v3725
      %v3771 = vadd.f32 %v3547, %v3728
      %v3772 = vadd.f32 %v3548, %v3730
      %v3773 = vadd.f32 %v3549, %v3733
      %v3774 = vadd.f32 %v3550, %v3735
      %v3775 = vadd.f32 %v3551, %v3738
      %v3776 = vadd.f32 %v3552, %v3740
      %v3777 = vadd.f32 %v3553, %v3743
      %v3778 = vadd.f32 %v3554, %v3745
      %v3779 = vld [vmem:[%s1535] sm:$0xff]
      %v3780 = vld [vmem:[%s1535 + $0x8] sm:$0xff]
      %v3781 = vld [vmem:[%s1535 + $0x18] sm:$0xff]
      %v3782 = vld [vmem:[%s1535 + $0x20] sm:$0xff]
      %v3783 = vld [vmem:[%s1535 + $0x30] sm:$0xff]
      %v3784 = vld [vmem:[%s1535 + $0x38] sm:$0xff]
      %v3785 = vld [vmem:[%s1535 + $0x48] sm:$0xff]
      %v3786 = vld [vmem:[%s1535 + $0x50] sm:$0xff]
      %v3787 = vld [vmem:[%s1535 + $0x60] sm:$0xff]
      %v3788 = vld [vmem:[%s1535 + $0x68] sm:$0xff]
      %v3789 = vld [vmem:[%s1535 + $0x78] sm:$0xff]
      %v3790 = vld [vmem:[%s1535 + $0x80] sm:$0xff]
      %v3791 = vld [vmem:[%s1535 + $0x90] sm:$0xff]
      %v3792 = vld [vmem:[%s1535 + $0x98] sm:$0xff]
      %v3793 = vld [vmem:[%s1535 + $0xa8] sm:$0xff]
      %v3794 = vld [vmem:[%s1535 + $0xb0] sm:$0xff]
      %v3795 = vld [vmem:[%s1535 + $0xc0] sm:$0xff]
      %v3796 = vld [vmem:[%s1535 + $0xc8] sm:$0xff]
      %v3797 = vld [vmem:[%s1535 + $0xd8] sm:$0xff]
      %v3798 = vld [vmem:[%s1535 + $0xe0] sm:$0xff]
      %v3799 = vld [vmem:[%s1535 + $0xf0] sm:$0xff]
      %v3800 = vld [vmem:[%s1535 + $0xf8] sm:$0xff]
      %v3801 = vld [vmem:[%s1535 + $0x108] sm:$0xff]
      %v3802 = vld [vmem:[%s1535 + $0x110] sm:$0xff]
      %v3803 = vld [vmem:[%s1535 + $0x120] sm:$0xff]
      %v3804 = vld [vmem:[%s1535 + $0x128] sm:$0xff]
      %v3805 = vld [vmem:[%s1535 + $0x138] sm:$0xff]
      %v3806 = vld [vmem:[%s1535 + $0x140] sm:$0xff]
      %v3807 = vld [vmem:[%s1535 + $0x150] sm:$0xff]
      %v3808 = vld [vmem:[%s1535 + $0x158] sm:$0xff]
      %v3809 = vld [vmem:[%s1535 + $0x168] sm:$0xff]
      %v3810 = vld [vmem:[%s1535 + $0x170] sm:$0xff]
      %v3811 = vpack.c.bf16 %v3780, %v3779
      %v3812 = vpack.c.bf16 %v3782, %v3781
      %v3813 = vpack.c.bf16 %v3784, %v3783
      %v3814 = vpack.c.bf16 %v3786, %v3785
      %v3815 = vpack.c.bf16 %v3788, %v3787
      %v3816 = vpack.c.bf16 %v3790, %v3789
      %v3817 = vpack.c.bf16 %v3792, %v3791
      %v3818 = vpack.c.bf16 %v3794, %v3793
      %v3819 = vpack.c.bf16 %v3796, %v3795
      %v3820 = vpack.c.bf16 %v3798, %v3797
      %v3821 = vpack.c.bf16 %v3800, %v3799
      %v3822 = vpack.c.bf16 %v3802, %v3801
      %v3823 = vpack.c.bf16 %v3804, %v3803
      %v3824 = vpack.c.bf16 %v3806, %v3805
      %v3825 = vpack.c.bf16 %v3808, %v3807
      %v3826 = vpack.c.bf16 %v3810, %v3809
      %v3828 = vsel %vm145, %v3811, 0
      %v3831 = vsel %vm145, %v3812, 0
      %v3834 = vsel %vm145, %v3813, 0
      %v3837 = vsel %vm145, %v3814, 0
      %v3840 = vsel %vm145, %v3815, 0
      %v3843 = vsel %vm145, %v3816, 0
      %v3846 = vsel %vm145, %v3817, 0
      %v3849 = vsel %vm145, %v3818, 0
      %v3852 = vsel %vm145, %v3819, 0
      %v3855 = vsel %vm145, %v3820, 0
      %v3858 = vsel %vm145, %v3821, 0
      %v3861 = vsel %vm145, %v3822, 0
      %v3864 = vsel %vm145, %v3823, 0
      %v3867 = vsel %vm145, %v3824, 0
      %v3870 = vsel %vm145, %v3825, 0
      %v3873 = vsel %vm145, %v3826, 0
      %v3876 = vsel %vm414, %v231, 0
      %3878 = vmatpush.bf16.msra.mxu0 0
      %3879 = vmatpush.bf16.msra.mxu0 0
      %3880 = vmatpush.bf16.msra.mxu0 0
      %3881 = vmatpush.bf16.msra.mxu0 0
      %3882 = vmatpush.bf16.msra.mxu0 0
      %3883 = vmatpush.bf16.msra.mxu0 0
      %3884 = vmatpush.bf16.msra.mxu0 0
      %3885 = vmatpush.bf16.msra.mxu0 %v3876
      %3886 = vmatmul.bf16.gmra.mxu0 %v3828
      %v3887 = vpop.f32.mrf.mxu0
      %v3888 = vadd.f32 0.0, %v3887
      %v3889 = vpop.f32.mrf.mxu0
      %v3890 = vadd.f32 0.0, %v3889
      %3891 = vmatmul.bf16.gmra.mxu0 %v3831
      %v3892 = vpop.f32.mrf.mxu0
      %v3893 = vadd.f32 0.0, %v3892
      %v3894 = vpop.f32.mrf.mxu0
      %v3895 = vadd.f32 0.0, %v3894
      %3896 = vmatmul.bf16.gmra.mxu0 %v3834
      %v3897 = vpop.f32.mrf.mxu0
      %v3898 = vadd.f32 0.0, %v3897
      %v3899 = vpop.f32.mrf.mxu0
      %v3900 = vadd.f32 0.0, %v3899
      %3901 = vmatmul.bf16.gmra.mxu0 %v3837
      %v3902 = vpop.f32.mrf.mxu0
      %v3903 = vadd.f32 0.0, %v3902
      %v3904 = vpop.f32.mrf.mxu0
      %v3905 = vadd.f32 0.0, %v3904
      %3906 = vmatmul.bf16.gmra.mxu0 %v3840
      %v3907 = vpop.f32.mrf.mxu0
      %v3908 = vadd.f32 0.0, %v3907
      %v3909 = vpop.f32.mrf.mxu0
      %v3910 = vadd.f32 0.0, %v3909
      %3911 = vmatmul.bf16.gmra.mxu0 %v3843
      %v3912 = vpop.f32.mrf.mxu0
      %v3913 = vadd.f32 0.0, %v3912
      %v3914 = vpop.f32.mrf.mxu0
      %v3915 = vadd.f32 0.0, %v3914
      %3916 = vmatmul.bf16.gmra.mxu0 %v3846
      %v3917 = vpop.f32.mrf.mxu0
      %v3918 = vadd.f32 0.0, %v3917
      %v3919 = vpop.f32.mrf.mxu0
      %v3920 = vadd.f32 0.0, %v3919
      %3921 = vmatmul.bf16.gmra.mxu0 %v3849
      %v3922 = vpop.f32.mrf.mxu0
      %v3923 = vadd.f32 0.0, %v3922
      %v3924 = vpop.f32.mrf.mxu0
      %v3925 = vadd.f32 0.0, %v3924
      %3926 = vmatmul.bf16.gmra.mxu0 %v3852
      %v3927 = vpop.f32.mrf.mxu0
      %v3928 = vadd.f32 0.0, %v3927
      %v3929 = vpop.f32.mrf.mxu0
      %v3930 = vadd.f32 0.0, %v3929
      %3931 = vmatmul.bf16.gmra.mxu0 %v3855
      %v3932 = vpop.f32.mrf.mxu0
      %v3933 = vadd.f32 0.0, %v3932
      %v3934 = vpop.f32.mrf.mxu0
      %v3935 = vadd.f32 0.0, %v3934
      %3936 = vmatmul.bf16.gmra.mxu0 %v3858
      %v3937 = vpop.f32.mrf.mxu0
      %v3938 = vadd.f32 0.0, %v3937
      %v3939 = vpop.f32.mrf.mxu0
      %v3940 = vadd.f32 0.0, %v3939
      %3941 = vmatmul.bf16.gmra.mxu0 %v3861
      %v3942 = vpop.f32.mrf.mxu0
      %v3943 = vadd.f32 0.0, %v3942
      %v3944 = vpop.f32.mrf.mxu0
      %v3945 = vadd.f32 0.0, %v3944
      %3946 = vmatmul.bf16.gmra.mxu0 %v3864
      %v3947 = vpop.f32.mrf.mxu0
      %v3948 = vadd.f32 0.0, %v3947
      %v3949 = vpop.f32.mrf.mxu0
      %v3950 = vadd.f32 0.0, %v3949
      %3951 = vmatmul.bf16.gmra.mxu0 %v3867
      %v3952 = vpop.f32.mrf.mxu0
      %v3953 = vadd.f32 0.0, %v3952
      %v3954 = vpop.f32.mrf.mxu0
      %v3955 = vadd.f32 0.0, %v3954
      %3956 = vmatmul.bf16.gmra.mxu0 %v3870
      %v3957 = vpop.f32.mrf.mxu0
      %v3958 = vadd.f32 0.0, %v3957
      %v3959 = vpop.f32.mrf.mxu0
      %v3960 = vadd.f32 0.0, %v3959
      %3961 = vmatmul.bf16.gmra.mxu0 %v3873
      %v3962 = vpop.f32.mrf.mxu0
      %v3963 = vadd.f32 0.0, %v3962
      %v3964 = vpop.f32.mrf.mxu0
      %v3965 = vadd.f32 0.0, %v3964
      %3966 = vdwg.mxu0
      %v3967 = vadd.f32 %v3747, %v3888
      %v3968 = vadd.f32 %v3748, %v3890
      %v3969 = vadd.f32 %v3749, %v3893
      %v3970 = vadd.f32 %v3750, %v3895
      %v3971 = vadd.f32 %v3751, %v3898
      %v3972 = vadd.f32 %v3752, %v3900
      %v3973 = vadd.f32 %v3753, %v3903
      %v3974 = vadd.f32 %v3754, %v3905
      %v3975 = vadd.f32 %v3755, %v3908
      %v3976 = vadd.f32 %v3756, %v3910
      %v3977 = vadd.f32 %v3757, %v3913
      %v3978 = vadd.f32 %v3758, %v3915
      %v3979 = vadd.f32 %v3759, %v3918
      %v3980 = vadd.f32 %v3760, %v3920
      %v3981 = vadd.f32 %v3761, %v3923
      %v3982 = vadd.f32 %v3762, %v3925
      %v3983 = vadd.f32 %v3763, %v3928
      %v3984 = vadd.f32 %v3764, %v3930
      %v3985 = vadd.f32 %v3765, %v3933
      %v3986 = vadd.f32 %v3766, %v3935
      %v3987 = vadd.f32 %v3767, %v3938
      %v3988 = vadd.f32 %v3768, %v3940
      %v3989 = vadd.f32 %v3769, %v3943
      %v3990 = vadd.f32 %v3770, %v3945
      %v3991 = vadd.f32 %v3771, %v3948
      %v3992 = vadd.f32 %v3772, %v3950
      %v3993 = vadd.f32 %v3773, %v3953
      %v3994 = vadd.f32 %v3774, %v3955
      %v3995 = vadd.f32 %v3775, %v3958
      %v3996 = vadd.f32 %v3776, %v3960
      %v3997 = vadd.f32 %v3777, %v3963
      %v3998 = vadd.f32 %v3778, %v3965
      %v3999 = vld [vmem:[%s1535 + $0x1] sm:$0xff]
      %v4000 = vld [vmem:[%s1535 + $0x9] sm:$0xff]
      %v4001 = vld [vmem:[%s1535 + $0x19] sm:$0xff]
      %v4002 = vld [vmem:[%s1535 + $0x21] sm:$0xff]
      %v4003 = vld [vmem:[%s1535 + $0x31] sm:$0xff]
      %v4004 = vld [vmem:[%s1535 + $0x39] sm:$0xff]
      %v4005 = vld [vmem:[%s1535 + $0x49] sm:$0xff]
      %v4006 = vld [vmem:[%s1535 + $0x51] sm:$0xff]
      %v4007 = vld [vmem:[%s1535 + $0x61] sm:$0xff]
      %v4008 = vld [vmem:[%s1535 + $0x69] sm:$0xff]
      %v4009 = vld [vmem:[%s1535 + $0x79] sm:$0xff]
      %v4010 = vld [vmem:[%s1535 + $0x81] sm:$0xff]
      %v4011 = vld [vmem:[%s1535 + $0x91] sm:$0xff]
      %v4012 = vld [vmem:[%s1535 + $0x99] sm:$0xff]
      %v4013 = vld [vmem:[%s1535 + $0xa9] sm:$0xff]
      %v4014 = vld [vmem:[%s1535 + $0xb1] sm:$0xff]
      %v4015 = vld [vmem:[%s1535 + $0xc1] sm:$0xff]
      %v4016 = vld [vmem:[%s1535 + $0xc9] sm:$0xff]
      %v4017 = vld [vmem:[%s1535 + $0xd9] sm:$0xff]
      %v4018 = vld [vmem:[%s1535 + $0xe1] sm:$0xff]
      %v4019 = vld [vmem:[%s1535 + $0xf1] sm:$0xff]
      %v4020 = vld [vmem:[%s1535 + $0xf9] sm:$0xff]
      %v4021 = vld [vmem:[%s1535 + $0x109] sm:$0xff]
      %v4022 = vld [vmem:[%s1535 + $0x111] sm:$0xff]
      %v4023 = vld [vmem:[%s1535 + $0x121] sm:$0xff]
      %v4024 = vld [vmem:[%s1535 + $0x129] sm:$0xff]
      %v4025 = vld [vmem:[%s1535 + $0x139] sm:$0xff]
      %v4026 = vld [vmem:[%s1535 + $0x141] sm:$0xff]
      %v4027 = vld [vmem:[%s1535 + $0x151] sm:$0xff]
      %v4028 = vld [vmem:[%s1535 + $0x159] sm:$0xff]
      %v4029 = vld [vmem:[%s1535 + $0x169] sm:$0xff]
      %v4030 = vld [vmem:[%s1535 + $0x171] sm:$0xff]
      %v4031 = vpack.c.bf16 %v4000, %v3999
      %v4032 = vpack.c.bf16 %v4002, %v4001
      %v4033 = vpack.c.bf16 %v4004, %v4003
      %v4034 = vpack.c.bf16 %v4006, %v4005
      %v4035 = vpack.c.bf16 %v4008, %v4007
      %v4036 = vpack.c.bf16 %v4010, %v4009
      %v4037 = vpack.c.bf16 %v4012, %v4011
      %v4038 = vpack.c.bf16 %v4014, %v4013
      %v4039 = vpack.c.bf16 %v4016, %v4015
      %v4040 = vpack.c.bf16 %v4018, %v4017
      %v4041 = vpack.c.bf16 %v4020, %v4019
      %v4042 = vpack.c.bf16 %v4022, %v4021
      %v4043 = vpack.c.bf16 %v4024, %v4023
      %v4044 = vpack.c.bf16 %v4026, %v4025
      %v4045 = vpack.c.bf16 %v4028, %v4027
      %v4046 = vpack.c.bf16 %v4030, %v4029
      %v4048 = vunpack.c.l.b16 %v231
      %v4049 = vpack.c.b16 %v4048, %v4048
      %v4050 = vrot.slane %v4049, 2
      %v4052 = vsel %vm145, %v4031, 0
      %v4055 = vsel %vm145, %v4032, 0
      %v4058 = vsel %vm145, %v4033, 0
      %v4061 = vsel %vm145, %v4034, 0
      %v4064 = vsel %vm145, %v4035, 0
      %v4067 = vsel %vm145, %v4036, 0
      %v4070 = vsel %vm145, %v4037, 0
      %v4073 = vsel %vm145, %v4038, 0
      %v4076 = vsel %vm145, %v4039, 0
      %v4079 = vsel %vm145, %v4040, 0
      %v4082 = vsel %vm145, %v4041, 0
      %v4085 = vsel %vm145, %v4042, 0
      %v4088 = vsel %vm145, %v4043, 0
      %v4091 = vsel %vm145, %v4044, 0
      %v4094 = vsel %vm145, %v4045, 0
      %v4097 = vsel %vm145, %v4046, 0
      %v4100 = vsel %vm414, %v4050, 0
      %4102 = vmatpush.bf16.msra.mxu0 0
      %4103 = vmatpush.bf16.msra.mxu0 0
      %4104 = vmatpush.bf16.msra.mxu0 0
      %4105 = vmatpush.bf16.msra.mxu0 0
      %4106 = vmatpush.bf16.msra.mxu0 0
      %4107 = vmatpush.bf16.msra.mxu0 0
      %4108 = vmatpush.bf16.msra.mxu0 0
      %4109 = vmatpush.bf16.msra.mxu0 %v4100
      %4110 = vmatmul.bf16.gmra.mxu0 %v4052
      %v4111 = vpop.f32.mrf.mxu0
      %v4112 = vadd.f32 0.0, %v4111
      %v4113 = vpop.f32.mrf.mxu0
      %v4114 = vadd.f32 0.0, %v4113
      %4115 = vmatmul.bf16.gmra.mxu0 %v4055
      %v4116 = vpop.f32.mrf.mxu0
      %v4117 = vadd.f32 0.0, %v4116
      %v4118 = vpop.f32.mrf.mxu0
      %v4119 = vadd.f32 0.0, %v4118
      %4120 = vmatmul.bf16.gmra.mxu0 %v4058
      %v4121 = vpop.f32.mrf.mxu0
      %v4122 = vadd.f32 0.0, %v4121
      %v4123 = vpop.f32.mrf.mxu0
      %v4124 = vadd.f32 0.0, %v4123
      %4125 = vmatmul.bf16.gmra.mxu0 %v4061
      %v4126 = vpop.f32.mrf.mxu0
      %v4127 = vadd.f32 0.0, %v4126
      %v4128 = vpop.f32.mrf.mxu0
      %v4129 = vadd.f32 0.0, %v4128
      %4130 = vmatmul.bf16.gmra.mxu0 %v4064
      %v4131 = vpop.f32.mrf.mxu0
      %v4132 = vadd.f32 0.0, %v4131
      %v4133 = vpop.f32.mrf.mxu0
      %v4134 = vadd.f32 0.0, %v4133
      %4135 = vmatmul.bf16.gmra.mxu0 %v4067
      %v4136 = vpop.f32.mrf.mxu0
      %v4137 = vadd.f32 0.0, %v4136
      %v4138 = vpop.f32.mrf.mxu0
      %v4139 = vadd.f32 0.0, %v4138
      %4140 = vmatmul.bf16.gmra.mxu0 %v4070
      %v4141 = vpop.f32.mrf.mxu0
      %v4142 = vadd.f32 0.0, %v4141
      %v4143 = vpop.f32.mrf.mxu0
      %v4144 = vadd.f32 0.0, %v4143
      %4145 = vmatmul.bf16.gmra.mxu0 %v4073
      %v4146 = vpop.f32.mrf.mxu0
      %v4147 = vadd.f32 0.0, %v4146
      %v4148 = vpop.f32.mrf.mxu0
      %v4149 = vadd.f32 0.0, %v4148
      %4150 = vmatmul.bf16.gmra.mxu0 %v4076
      %v4151 = vpop.f32.mrf.mxu0
      %v4152 = vadd.f32 0.0, %v4151
      %v4153 = vpop.f32.mrf.mxu0
      %v4154 = vadd.f32 0.0, %v4153
      %4155 = vmatmul.bf16.gmra.mxu0 %v4079
      %v4156 = vpop.f32.mrf.mxu0
      %v4157 = vadd.f32 0.0, %v4156
      %v4158 = vpop.f32.mrf.mxu0
      %v4159 = vadd.f32 0.0, %v4158
      %4160 = vmatmul.bf16.gmra.mxu0 %v4082
      %v4161 = vpop.f32.mrf.mxu0
      %v4162 = vadd.f32 0.0, %v4161
      %v4163 = vpop.f32.mrf.mxu0
      %v4164 = vadd.f32 0.0, %v4163
      %4165 = vmatmul.bf16.gmra.mxu0 %v4085
      %v4166 = vpop.f32.mrf.mxu0
      %v4167 = vadd.f32 0.0, %v4166
      %v4168 = vpop.f32.mrf.mxu0
      %v4169 = vadd.f32 0.0, %v4168
      %4170 = vmatmul.bf16.gmra.mxu0 %v4088
      %v4171 = vpop.f32.mrf.mxu0
      %v4172 = vadd.f32 0.0, %v4171
      %v4173 = vpop.f32.mrf.mxu0
      %v4174 = vadd.f32 0.0, %v4173
      %4175 = vmatmul.bf16.gmra.mxu0 %v4091
      %v4176 = vpop.f32.mrf.mxu0
      %v4177 = vadd.f32 0.0, %v4176
      %v4178 = vpop.f32.mrf.mxu0
      %v4179 = vadd.f32 0.0, %v4178
      %4180 = vmatmul.bf16.gmra.mxu0 %v4094
      %v4181 = vpop.f32.mrf.mxu0
      %v4182 = vadd.f32 0.0, %v4181
      %v4183 = vpop.f32.mrf.mxu0
      %v4184 = vadd.f32 0.0, %v4183
      %4185 = vmatmul.bf16.gmra.mxu0 %v4097
      %v4186 = vpop.f32.mrf.mxu0
      %v4187 = vadd.f32 0.0, %v4186
      %v4188 = vpop.f32.mrf.mxu0
      %v4189 = vadd.f32 0.0, %v4188
      %4190 = vdwg.mxu0
      %v4191 = vadd.f32 %v3967, %v4112
      %v4192 = vadd.f32 %v3968, %v4114
      %v4193 = vadd.f32 %v3969, %v4117
      %v4194 = vadd.f32 %v3970, %v4119
      %v4195 = vadd.f32 %v3971, %v4122
      %v4196 = vadd.f32 %v3972, %v4124
      %v4197 = vadd.f32 %v3973, %v4127
      %v4198 = vadd.f32 %v3974, %v4129
      %v4199 = vadd.f32 %v3975, %v4132
      %v4200 = vadd.f32 %v3976, %v4134
      %v4201 = vadd.f32 %v3977, %v4137
      %v4202 = vadd.f32 %v3978, %v4139
      %v4203 = vadd.f32 %v3979, %v4142
      %v4204 = vadd.f32 %v3980, %v4144
      %v4205 = vadd.f32 %v3981, %v4147
      %v4206 = vadd.f32 %v3982, %v4149
      %v4207 = vadd.f32 %v3983, %v4152
      %v4208 = vadd.f32 %v3984, %v4154
      %v4209 = vadd.f32 %v3985, %v4157
      %v4210 = vadd.f32 %v3986, %v4159
      %v4211 = vadd.f32 %v3987, %v4162
      %v4212 = vadd.f32 %v3988, %v4164
      %v4213 = vadd.f32 %v3989, %v4167
      %v4214 = vadd.f32 %v3990, %v4169
      %v4215 = vadd.f32 %v3991, %v4172
      %v4216 = vadd.f32 %v3992, %v4174
      %v4217 = vadd.f32 %v3993, %v4177
      %v4218 = vadd.f32 %v3994, %v4179
      %v4219 = vadd.f32 %v3995, %v4182
      %v4220 = vadd.f32 %v3996, %v4184
      %v4221 = vadd.f32 %v3997, %v4187
      %v4222 = vadd.f32 %v3998, %v4189
      %v4223 = vld [vmem:[%s1535 + $0x2] sm:$0xff]
      %v4224 = vld [vmem:[%s1535 + $0xa] sm:$0xff]
      %v4225 = vld [vmem:[%s1535 + $0x1a] sm:$0xff]
      %v4226 = vld [vmem:[%s1535 + $0x22] sm:$0xff]
      %v4227 = vld [vmem:[%s1535 + $0x32] sm:$0xff]
      %v4228 = vld [vmem:[%s1535 + $0x3a] sm:$0xff]
      %v4229 = vld [vmem:[%s1535 + $0x4a] sm:$0xff]
      %v4230 = vld [vmem:[%s1535 + $0x52] sm:$0xff]
      %v4231 = vld [vmem:[%s1535 + $0x62] sm:$0xff]
      %v4232 = vld [vmem:[%s1535 + $0x6a] sm:$0xff]
      %v4233 = vld [vmem:[%s1535 + $0x7a] sm:$0xff]
      %v4234 = vld [vmem:[%s1535 + $0x82] sm:$0xff]
      %v4235 = vld [vmem:[%s1535 + $0x92] sm:$0xff]
      %v4236 = vld [vmem:[%s1535 + $0x9a] sm:$0xff]
      %v4237 = vld [vmem:[%s1535 + $0xaa] sm:$0xff]
      %v4238 = vld [vmem:[%s1535 + $0xb2] sm:$0xff]
      %v4239 = vld [vmem:[%s1535 + $0xc2] sm:$0xff]
      %v4240 = vld [vmem:[%s1535 + $0xca] sm:$0xff]
      %v4241 = vld [vmem:[%s1535 + $0xda] sm:$0xff]
      %v4242 = vld [vmem:[%s1535 + $0xe2] sm:$0xff]
      %v4243 = vld [vmem:[%s1535 + $0xf2] sm:$0xff]
      %v4244 = vld [vmem:[%s1535 + $0xfa] sm:$0xff]
      %v4245 = vld [vmem:[%s1535 + $0x10a] sm:$0xff]
      %v4246 = vld [vmem:[%s1535 + $0x112] sm:$0xff]
      %v4247 = vld [vmem:[%s1535 + $0x122] sm:$0xff]
      %v4248 = vld [vmem:[%s1535 + $0x12a] sm:$0xff]
      %v4249 = vld [vmem:[%s1535 + $0x13a] sm:$0xff]
      %v4250 = vld [vmem:[%s1535 + $0x142] sm:$0xff]
      %v4251 = vld [vmem:[%s1535 + $0x152] sm:$0xff]
      %v4252 = vld [vmem:[%s1535 + $0x15a] sm:$0xff]
      %v4253 = vld [vmem:[%s1535 + $0x16a] sm:$0xff]
      %v4254 = vld [vmem:[%s1535 + $0x172] sm:$0xff]
      %v4255 = vpack.c.bf16 %v4224, %v4223
      %v4256 = vpack.c.bf16 %v4226, %v4225
      %v4257 = vpack.c.bf16 %v4228, %v4227
      %v4258 = vpack.c.bf16 %v4230, %v4229
      %v4259 = vpack.c.bf16 %v4232, %v4231
      %v4260 = vpack.c.bf16 %v4234, %v4233
      %v4261 = vpack.c.bf16 %v4236, %v4235
      %v4262 = vpack.c.bf16 %v4238, %v4237
      %v4263 = vpack.c.bf16 %v4240, %v4239
      %v4264 = vpack.c.bf16 %v4242, %v4241
      %v4265 = vpack.c.bf16 %v4244, %v4243
      %v4266 = vpack.c.bf16 %v4246, %v4245
      %v4267 = vpack.c.bf16 %v4248, %v4247
      %v4268 = vpack.c.bf16 %v4250, %v4249
      %v4269 = vpack.c.bf16 %v4252, %v4251
      %v4270 = vpack.c.bf16 %v4254, %v4253
      %v4272 = vsel %vm145, %v4255, 0
      %v4275 = vsel %vm145, %v4256, 0
      %v4278 = vsel %vm145, %v4257, 0
      %v4281 = vsel %vm145, %v4258, 0
      %v4284 = vsel %vm145, %v4259, 0
      %v4287 = vsel %vm145, %v4260, 0
      %v4290 = vsel %vm145, %v4261, 0
      %v4293 = vsel %vm145, %v4262, 0
      %v4296 = vsel %vm145, %v4263, 0
      %v4299 = vsel %vm145, %v4264, 0
      %v4302 = vsel %vm145, %v4265, 0
      %v4305 = vsel %vm145, %v4266, 0
      %v4308 = vsel %vm145, %v4267, 0
      %v4311 = vsel %vm145, %v4268, 0
      %v4314 = vsel %vm145, %v4269, 0
      %v4317 = vsel %vm145, %v4270, 0
      %v4320 = vsel %vm414, %v232, 0
      %4322 = vmatpush.bf16.msra.mxu0 0
      %4323 = vmatpush.bf16.msra.mxu0 0
      %4324 = vmatpush.bf16.msra.mxu0 0
      %4325 = vmatpush.bf16.msra.mxu0 0
      %4326 = vmatpush.bf16.msra.mxu0 0
      %4327 = vmatpush.bf16.msra.mxu0 0
      %4328 = vmatpush.bf16.msra.mxu0 0
      %4329 = vmatpush.bf16.msra.mxu0 %v4320
      %4330 = vmatmul.bf16.gmra.mxu0 %v4272
      %v4331 = vpop.f32.mrf.mxu0
      %v4332 = vadd.f32 0.0, %v4331
      %v4333 = vpop.f32.mrf.mxu0
      %v4334 = vadd.f32 0.0, %v4333
      %4335 = vmatmul.bf16.gmra.mxu0 %v4275
      %v4336 = vpop.f32.mrf.mxu0
      %v4337 = vadd.f32 0.0, %v4336
      %v4338 = vpop.f32.mrf.mxu0
      %v4339 = vadd.f32 0.0, %v4338
      %4340 = vmatmul.bf16.gmra.mxu0 %v4278
      %v4341 = vpop.f32.mrf.mxu0
      %v4342 = vadd.f32 0.0, %v4341
      %v4343 = vpop.f32.mrf.mxu0
      %v4344 = vadd.f32 0.0, %v4343
      %4345 = vmatmul.bf16.gmra.mxu0 %v4281
      %v4346 = vpop.f32.mrf.mxu0
      %v4347 = vadd.f32 0.0, %v4346
      %v4348 = vpop.f32.mrf.mxu0
      %v4349 = vadd.f32 0.0, %v4348
      %4350 = vmatmul.bf16.gmra.mxu0 %v4284
      %v4351 = vpop.f32.mrf.mxu0
      %v4352 = vadd.f32 0.0, %v4351
      %v4353 = vpop.f32.mrf.mxu0
      %v4354 = vadd.f32 0.0, %v4353
      %4355 = vmatmul.bf16.gmra.mxu0 %v4287
      %v4356 = vpop.f32.mrf.mxu0
      %v4357 = vadd.f32 0.0, %v4356
      %v4358 = vpop.f32.mrf.mxu0
      %v4359 = vadd.f32 0.0, %v4358
      %4360 = vmatmul.bf16.gmra.mxu0 %v4290
      %v4361 = vpop.f32.mrf.mxu0
      %v4362 = vadd.f32 0.0, %v4361
      %v4363 = vpop.f32.mrf.mxu0
      %v4364 = vadd.f32 0.0, %v4363
      %4365 = vmatmul.bf16.gmra.mxu0 %v4293
      %v4366 = vpop.f32.mrf.mxu0
      %v4367 = vadd.f32 0.0, %v4366
      %v4368 = vpop.f32.mrf.mxu0
      %v4369 = vadd.f32 0.0, %v4368
      %4370 = vmatmul.bf16.gmra.mxu0 %v4296
      %v4371 = vpop.f32.mrf.mxu0
      %v4372 = vadd.f32 0.0, %v4371
      %v4373 = vpop.f32.mrf.mxu0
      %v4374 = vadd.f32 0.0, %v4373
      %4375 = vmatmul.bf16.gmra.mxu0 %v4299
      %v4376 = vpop.f32.mrf.mxu0
      %v4377 = vadd.f32 0.0, %v4376
      %v4378 = vpop.f32.mrf.mxu0
      %v4379 = vadd.f32 0.0, %v4378
      %4380 = vmatmul.bf16.gmra.mxu0 %v4302
      %v4381 = vpop.f32.mrf.mxu0
      %v4382 = vadd.f32 0.0, %v4381
      %v4383 = vpop.f32.mrf.mxu0
      %v4384 = vadd.f32 0.0, %v4383
      %4385 = vmatmul.bf16.gmra.mxu0 %v4305
      %v4386 = vpop.f32.mrf.mxu0
      %v4387 = vadd.f32 0.0, %v4386
      %v4388 = vpop.f32.mrf.mxu0
      %v4389 = vadd.f32 0.0, %v4388
      %4390 = vmatmul.bf16.gmra.mxu0 %v4308
      %v4391 = vpop.f32.mrf.mxu0
      %v4392 = vadd.f32 0.0, %v4391
      %v4393 = vpop.f32.mrf.mxu0
      %v4394 = vadd.f32 0.0, %v4393
      %4395 = vmatmul.bf16.gmra.mxu0 %v4311
      %v4396 = vpop.f32.mrf.mxu0
      %v4397 = vadd.f32 0.0, %v4396
      %v4398 = vpop.f32.mrf.mxu0
      %v4399 = vadd.f32 0.0, %v4398
      %4400 = vmatmul.bf16.gmra.mxu0 %v4314
      %v4401 = vpop.f32.mrf.mxu0
      %v4402 = vadd.f32 0.0, %v4401
      %v4403 = vpop.f32.mrf.mxu0
      %v4404 = vadd.f32 0.0, %v4403
      %4405 = vmatmul.bf16.gmra.mxu0 %v4317
      %v4406 = vpop.f32.mrf.mxu0
      %v4407 = vadd.f32 0.0, %v4406
      %v4408 = vpop.f32.mrf.mxu0
      %v4409 = vadd.f32 0.0, %v4408
      %4410 = vdwg.mxu0
      %v4411 = vadd.f32 %v4191, %v4332
      %v4412 = vadd.f32 %v4192, %v4334
      %v4413 = vadd.f32 %v4193, %v4337
      %v4414 = vadd.f32 %v4194, %v4339
      %v4415 = vadd.f32 %v4195, %v4342
      %v4416 = vadd.f32 %v4196, %v4344
      %v4417 = vadd.f32 %v4197, %v4347
      %v4418 = vadd.f32 %v4198, %v4349
      %v4419 = vadd.f32 %v4199, %v4352
      %v4420 = vadd.f32 %v4200, %v4354
      %v4421 = vadd.f32 %v4201, %v4357
      %v4422 = vadd.f32 %v4202, %v4359
      %v4423 = vadd.f32 %v4203, %v4362
      %v4424 = vadd.f32 %v4204, %v4364
      %v4425 = vadd.f32 %v4205, %v4367
      %v4426 = vadd.f32 %v4206, %v4369
      %v4427 = vadd.f32 %v4207, %v4372
      %v4428 = vadd.f32 %v4208, %v4374
      %v4429 = vadd.f32 %v4209, %v4377
      %v4430 = vadd.f32 %v4210, %v4379
      %v4431 = vadd.f32 %v4211, %v4382
      %v4432 = vadd.f32 %v4212, %v4384
      %v4433 = vadd.f32 %v4213, %v4387
      %v4434 = vadd.f32 %v4214, %v4389
      %v4435 = vadd.f32 %v4215, %v4392
      %v4436 = vadd.f32 %v4216, %v4394
      %v4437 = vadd.f32 %v4217, %v4397
      %v4438 = vadd.f32 %v4218, %v4399
      %v4439 = vadd.f32 %v4219, %v4402
      %v4440 = vadd.f32 %v4220, %v4404
      %v4441 = vadd.f32 %v4221, %v4407
      %v4442 = vadd.f32 %v4222, %v4409
      %v4443 = vsel %vm145, %v4411, 0.0
      %v4444 = vsel %vm145, %v4412, 0.0
      %v4445 = vadd.f32 %v4443, %v4444
      %v4446 = vsel %vm145, %v4413, 0.0
      %v4447 = vadd.f32 %v4445, %v4446
      %v4448 = vsel %vm145, %v4414, 0.0
      %v4449 = vadd.f32 %v4447, %v4448
      %v4450 = vsel %vm145, %v4415, 0.0
      %v4451 = vadd.f32 %v4449, %v4450
      %v4452 = vsel %vm145, %v4416, 0.0
      %v4453 = vadd.f32 %v4451, %v4452
      %v4454 = vsel %vm145, %v4417, 0.0
      %v4455 = vadd.f32 %v4453, %v4454
      %v4456 = vsel %vm145, %v4418, 0.0
      %v4457 = vadd.f32 %v4455, %v4456
      %v4458 = vsel %vm145, %v4419, 0.0
      %v4459 = vadd.f32 %v4457, %v4458
      %v4460 = vsel %vm145, %v4420, 0.0
      %v4461 = vadd.f32 %v4459, %v4460
      %v4462 = vsel %vm145, %v4421, 0.0
      %v4463 = vadd.f32 %v4461, %v4462
      %v4464 = vsel %vm145, %v4422, 0.0
      %v4465 = vadd.f32 %v4463, %v4464
      %v4466 = vsel %vm145, %v4423, 0.0
      %v4467 = vadd.f32 %v4465, %v4466
      %v4468 = vsel %vm145, %v4424, 0.0
      %v4469 = vadd.f32 %v4467, %v4468
      %v4470 = vsel %vm145, %v4425, 0.0
      %v4471 = vadd.f32 %v4469, %v4470
      %v4472 = vsel %vm145, %v4426, 0.0
      %v4473 = vadd.f32 %v4471, %v4472
      %v4474 = vsel %vm145, %v4427, 0.0
      %v4475 = vadd.f32 %v4473, %v4474
      %v4476 = vsel %vm145, %v4428, 0.0
      %v4477 = vadd.f32 %v4475, %v4476
      %v4478 = vsel %vm145, %v4429, 0.0
      %v4479 = vadd.f32 %v4477, %v4478
      %v4480 = vsel %vm145, %v4430, 0.0
      %v4481 = vadd.f32 %v4479, %v4480
      %v4482 = vsel %vm145, %v4431, 0.0
      %v4483 = vadd.f32 %v4481, %v4482
      %v4484 = vsel %vm145, %v4432, 0.0
      %v4485 = vadd.f32 %v4483, %v4484
      %v4486 = vsel %vm145, %v4433, 0.0
      %v4487 = vadd.f32 %v4485, %v4486
      %v4488 = vsel %vm145, %v4434, 0.0
      %v4489 = vadd.f32 %v4487, %v4488
      %v4490 = vsel %vm145, %v4435, 0.0
      %v4491 = vadd.f32 %v4489, %v4490
      %v4492 = vsel %vm145, %v4436, 0.0
      %v4493 = vadd.f32 %v4491, %v4492
      %v4494 = vsel %vm145, %v4437, 0.0
      %v4495 = vadd.f32 %v4493, %v4494
      %v4496 = vsel %vm145, %v4438, 0.0
      %v4497 = vadd.f32 %v4495, %v4496
      %v4498 = vsel %vm145, %v4439, 0.0
      %v4499 = vadd.f32 %v4497, %v4498
      %v4500 = vsel %vm145, %v4440, 0.0
      %v4501 = vadd.f32 %v4499, %v4500
      %v4502 = vsel %vm145, %v4441, 0.0
      %v4503 = vadd.f32 %v4501, %v4502
      %v4504 = vsel %vm145, %v4442, 0.0
      %v4505 = vadd.f32 %v4503, %v4504
      %v4506 = vrot.slane %v4505, 4
      %v4507 = vadd.f32 %v4505, %v4506
      %v4508 = vrot.slane %v4507, 2
      %v4509 = vadd.f32 %v4507, %v4508
      %v4510 = vrot.slane %v4509, 1
      %v4511 = vadd.f32 %v4509, %v4510
      %v4512 = vmul.f32 %v4511, 0.00390625
      %v4513 = vsub.f32 %v4411, %v4512
      %v4514 = vsub.f32 %v4412, %v4512
      %v4515 = vsub.f32 %v4413, %v4512
      %v4516 = vsub.f32 %v4414, %v4512
      %v4517 = vsub.f32 %v4415, %v4512
      %v4518 = vsub.f32 %v4416, %v4512
      %v4519 = vsub.f32 %v4417, %v4512
      %v4520 = vsub.f32 %v4418, %v4512
      %v4521 = vsub.f32 %v4419, %v4512
      %v4522 = vsub.f32 %v4420, %v4512
      %v4523 = vsub.f32 %v4421, %v4512
      %v4524 = vsub.f32 %v4422, %v4512
      %v4525 = vsub.f32 %v4423, %v4512
      %v4526 = vsub.f32 %v4424, %v4512
      %v4527 = vsub.f32 %v4425, %v4512
      %v4528 = vsub.f32 %v4426, %v4512
      %v4529 = vsub.f32 %v4427, %v4512
      %v4530 = vsub.f32 %v4428, %v4512
      %v4531 = vsub.f32 %v4429, %v4512
      %v4532 = vsub.f32 %v4430, %v4512
      %v4533 = vsub.f32 %v4431, %v4512
      %v4534 = vsub.f32 %v4432, %v4512
      %v4535 = vsub.f32 %v4433, %v4512
      %v4536 = vsub.f32 %v4434, %v4512
      %v4537 = vsub.f32 %v4435, %v4512
      %v4538 = vsub.f32 %v4436, %v4512
      %v4539 = vsub.f32 %v4437, %v4512
      %v4540 = vsub.f32 %v4438, %v4512
      %v4541 = vsub.f32 %v4439, %v4512
      %v4542 = vsub.f32 %v4440, %v4512
      %v4543 = vsub.f32 %v4441, %v4512
      %v4544 = vsub.f32 %v4442, %v4512
      %v4545 = vmul.f32 %v4513, %v4513
      %v4546 = vmul.f32 %v4514, %v4514
      %v4547 = vmul.f32 %v4515, %v4515
      %v4548 = vmul.f32 %v4516, %v4516
      %v4549 = vmul.f32 %v4517, %v4517
      %v4550 = vmul.f32 %v4518, %v4518
      %v4551 = vmul.f32 %v4519, %v4519
      %v4552 = vmul.f32 %v4520, %v4520
      %v4553 = vmul.f32 %v4521, %v4521
      %v4554 = vmul.f32 %v4522, %v4522
      %v4555 = vmul.f32 %v4523, %v4523
      %v4556 = vmul.f32 %v4524, %v4524
      %v4557 = vmul.f32 %v4525, %v4525
      %v4558 = vmul.f32 %v4526, %v4526
      %v4559 = vmul.f32 %v4527, %v4527
      %v4560 = vmul.f32 %v4528, %v4528
      %v4561 = vmul.f32 %v4529, %v4529
      %v4562 = vmul.f32 %v4530, %v4530
      %v4563 = vmul.f32 %v4531, %v4531
      %v4564 = vmul.f32 %v4532, %v4532
      %v4565 = vmul.f32 %v4533, %v4533
      %v4566 = vmul.f32 %v4534, %v4534
      %v4567 = vmul.f32 %v4535, %v4535
      %v4568 = vmul.f32 %v4536, %v4536
      %v4569 = vmul.f32 %v4537, %v4537
      %v4570 = vmul.f32 %v4538, %v4538
      %v4571 = vmul.f32 %v4539, %v4539
      %v4572 = vmul.f32 %v4540, %v4540
      %v4573 = vmul.f32 %v4541, %v4541
      %v4574 = vmul.f32 %v4542, %v4542
      %v4575 = vmul.f32 %v4543, %v4543
      %v4576 = vmul.f32 %v4544, %v4544
      %v4577 = vsel %vm145, %v4545, 0.0
      %v4578 = vsel %vm145, %v4546, 0.0
      %v4579 = vadd.f32 %v4577, %v4578
      %v4580 = vsel %vm145, %v4547, 0.0
      %v4581 = vadd.f32 %v4579, %v4580
      %v4582 = vsel %vm145, %v4548, 0.0
      %v4583 = vadd.f32 %v4581, %v4582
      %v4584 = vsel %vm145, %v4549, 0.0
      %v4585 = vadd.f32 %v4583, %v4584
      %v4586 = vsel %vm145, %v4550, 0.0
      %v4587 = vadd.f32 %v4585, %v4586
      %v4588 = vsel %vm145, %v4551, 0.0
      %v4589 = vadd.f32 %v4587, %v4588
      %v4590 = vsel %vm145, %v4552, 0.0
      %v4591 = vadd.f32 %v4589, %v4590
      %v4592 = vsel %vm145, %v4553, 0.0
      %v4593 = vadd.f32 %v4591, %v4592
      %v4594 = vsel %vm145, %v4554, 0.0
      %v4595 = vadd.f32 %v4593, %v4594
      %v4596 = vsel %vm145, %v4555, 0.0
      %v4597 = vadd.f32 %v4595, %v4596
      %v4598 = vsel %vm145, %v4556, 0.0
      %v4599 = vadd.f32 %v4597, %v4598
      %v4600 = vsel %vm145, %v4557, 0.0
      %v4601 = vadd.f32 %v4599, %v4600
      %v4602 = vsel %vm145, %v4558, 0.0
      %v4603 = vadd.f32 %v4601, %v4602
      %v4604 = vsel %vm145, %v4559, 0.0
      %v4605 = vadd.f32 %v4603, %v4604
      %v4606 = vsel %vm145, %v4560, 0.0
      %v4607 = vadd.f32 %v4605, %v4606
      %v4608 = vsel %vm145, %v4561, 0.0
      %v4609 = vadd.f32 %v4607, %v4608
      %v4610 = vsel %vm145, %v4562, 0.0
      %v4611 = vadd.f32 %v4609, %v4610
      %v4612 = vsel %vm145, %v4563, 0.0
      %v4613 = vadd.f32 %v4611, %v4612
      %v4614 = vsel %vm145, %v4564, 0.0
      %v4615 = vadd.f32 %v4613, %v4614
      %v4616 = vsel %vm145, %v4565, 0.0
      %v4617 = vadd.f32 %v4615, %v4616
      %v4618 = vsel %vm145, %v4566, 0.0
      %v4619 = vadd.f32 %v4617, %v4618
      %v4620 = vsel %vm145, %v4567, 0.0
      %v4621 = vadd.f32 %v4619, %v4620
      %v4622 = vsel %vm145, %v4568, 0.0
      %v4623 = vadd.f32 %v4621, %v4622
      %v4624 = vsel %vm145, %v4569, 0.0
      %v4625 = vadd.f32 %v4623, %v4624
      %v4626 = vsel %vm145, %v4570, 0.0
      %v4627 = vadd.f32 %v4625, %v4626
      %v4628 = vsel %vm145, %v4571, 0.0
      %v4629 = vadd.f32 %v4627, %v4628
      %v4630 = vsel %vm145, %v4572, 0.0
      %v4631 = vadd.f32 %v4629, %v4630
      %v4632 = vsel %vm145, %v4573, 0.0
      %v4633 = vadd.f32 %v4631, %v4632
      %v4634 = vsel %vm145, %v4574, 0.0
      %v4635 = vadd.f32 %v4633, %v4634
      %v4636 = vsel %vm145, %v4575, 0.0
      %v4637 = vadd.f32 %v4635, %v4636
      %v4638 = vsel %vm145, %v4576, 0.0
      %v4639 = vadd.f32 %v4637, %v4638
      %v4640 = vrot.slane %v4639, 4
      %v4641 = vadd.f32 %v4639, %v4640
      %v4642 = vrot.slane %v4641, 2
      %v4643 = vadd.f32 %v4641, %v4642
      %v4644 = vrot.slane %v4643, 1
      %v4645 = vadd.f32 %v4643, %v4644
      %v4646 = vmul.f32 %v4645, 0.00390625
      %v4647 = vadd.f32 %v4646, 1e-05
      %v4648 = vrsqrt.pop %v4647
      %v4649 = vmul.f32 %v4648, %v4647
      %v4650 = vmul.f32 %v4649, %v4648
      %v4651 = vmul.f32 0.5, %v4650
      %v4652 = vsub.f32 1.5, %v4651
      %v4653 = vmul.f32 %v4648, %v4652
      %vm4654 = vweird.f32 %v4647
      %vm4655 = vweird.f32 %v4648
      %vm4656 = vmor %vm4654, %vm4655
      %v4657 = vsel %vm4656, %v4648, %v4653
      %v4658 = vmul.f32 %v4513, %v4657
      %v4659 = vmul.f32 %v4514, %v4657
      %v4660 = vmul.f32 %v4515, %v4657
      %v4661 = vmul.f32 %v4516, %v4657
      %v4662 = vmul.f32 %v4517, %v4657
      %v4663 = vmul.f32 %v4518, %v4657
      %v4664 = vmul.f32 %v4519, %v4657
      %v4665 = vmul.f32 %v4520, %v4657
      %v4666 = vmul.f32 %v4521, %v4657
      %v4667 = vmul.f32 %v4522, %v4657
      %v4668 = vmul.f32 %v4523, %v4657
      %v4669 = vmul.f32 %v4524, %v4657
      %v4670 = vmul.f32 %v4525, %v4657
      %v4671 = vmul.f32 %v4526, %v4657
      %v4672 = vmul.f32 %v4527, %v4657
      %v4673 = vmul.f32 %v4528, %v4657
      %v4674 = vmul.f32 %v4529, %v4657
      %v4675 = vmul.f32 %v4530, %v4657
      %v4676 = vmul.f32 %v4531, %v4657
      %v4677 = vmul.f32 %v4532, %v4657
      %v4678 = vmul.f32 %v4533, %v4657
      %v4679 = vmul.f32 %v4534, %v4657
      %v4680 = vmul.f32 %v4535, %v4657
      %v4681 = vmul.f32 %v4536, %v4657
      %v4682 = vmul.f32 %v4537, %v4657
      %v4683 = vmul.f32 %v4538, %v4657
      %v4684 = vmul.f32 %v4539, %v4657
      %v4685 = vmul.f32 %v4540, %v4657
      %v4686 = vmul.f32 %v4541, %v4657
      %v4687 = vmul.f32 %v4542, %v4657
      %v4688 = vmul.f32 %v4543, %v4657
      %v4689 = vmul.f32 %v4544, %v4657
      %v4690 = vmul.f32 %v4658, 0.1
      %v4691 = vmul.f32 %v4659, 0.1
      %v4692 = vmul.f32 %v4660, 0.1
      %v4693 = vmul.f32 %v4661, 0.1
      %v4694 = vmul.f32 %v4662, 0.1
      %v4695 = vmul.f32 %v4663, 0.1
      %v4696 = vmul.f32 %v4664, 0.1
      %v4697 = vmul.f32 %v4665, 0.1
      %v4698 = vmul.f32 %v4666, 0.1
      %v4699 = vmul.f32 %v4667, 0.1
      %v4700 = vmul.f32 %v4668, 0.1
      %v4701 = vmul.f32 %v4669, 0.1
      %v4702 = vmul.f32 %v4670, 0.1
      %v4703 = vmul.f32 %v4671, 0.1
      %v4704 = vmul.f32 %v4672, 0.1
      %v4705 = vmul.f32 %v4673, 0.1
      %v4706 = vmul.f32 %v4674, 0.1
      %v4707 = vmul.f32 %v4675, 0.1
      %v4708 = vmul.f32 %v4676, 0.1
      %v4709 = vmul.f32 %v4677, 0.1
      %v4710 = vmul.f32 %v4678, 0.1
      %v4711 = vmul.f32 %v4679, 0.1
      %v4712 = vmul.f32 %v4680, 0.1
      %v4713 = vmul.f32 %v4681, 0.1
      %v4714 = vmul.f32 %v4682, 0.1
      %v4715 = vmul.f32 %v4683, 0.1
      %v4716 = vmul.f32 %v4684, 0.1
      %v4717 = vmul.f32 %v4685, 0.1
      %v4718 = vmul.f32 %v4686, 0.1
      %v4719 = vmul.f32 %v4687, 0.1
      %v4720 = vmul.f32 %v4688, 0.1
      %v4721 = vmul.f32 %v4689, 0.1
      %v4722 = vadd.f32 %v191, %v4690
      %v4723 = vadd.f32 %v192, %v4691
      %v4724 = vadd.f32 %v193, %v4692
      %v4725 = vadd.f32 %v194, %v4693
      %v4726 = vadd.f32 %v195, %v4694
      %v4727 = vadd.f32 %v196, %v4695
      %v4728 = vadd.f32 %v197, %v4696
      %v4729 = vadd.f32 %v198, %v4697
      %v4730 = vadd.f32 %v199, %v4698
      %v4731 = vadd.f32 %v200, %v4699
      %v4732 = vadd.f32 %v201, %v4700
      %v4733 = vadd.f32 %v202, %v4701
      %v4734 = vadd.f32 %v203, %v4702
      %v4735 = vadd.f32 %v204, %v4703
      %v4736 = vadd.f32 %v205, %v4704
      %v4737 = vadd.f32 %v206, %v4705
      %v4738 = vadd.f32 %v207, %v4706
      %v4739 = vadd.f32 %v208, %v4707
      %v4740 = vadd.f32 %v209, %v4708
      %v4741 = vadd.f32 %v210, %v4709
      %v4742 = vadd.f32 %v211, %v4710
      %v4743 = vadd.f32 %v212, %v4711
      %v4744 = vadd.f32 %v213, %v4712
      %v4745 = vadd.f32 %v214, %v4713
      %v4746 = vadd.f32 %v215, %v4714
      %v4747 = vadd.f32 %v216, %v4715
      %v4748 = vadd.f32 %v217, %v4716
      %v4749 = vadd.f32 %v218, %v4717
      %v4750 = vadd.f32 %v219, %v4718
      %v4751 = vadd.f32 %v220, %v4719
      %v4752 = vadd.f32 %v221, %v4720
      %v4753 = vadd.f32 %v222, %v4721
      %s4754 = scalar_lea.vmem %s1, 40
      %v4755 = vld [vmem:[%s4754] sm:$0xf]
      %v4756 = vld [vmem:[%s4754 + $0x4] sm:$0xf]
      %v4757 = vld [vmem:[%s4754 + $0x8] sm:$0xf]
      %v4758 = vld [vmem:[%s4754 + $0xc] sm:$0xf]
      %v4759 = vld [vmem:[%s4754 + $0x10] sm:$0x3]
      %v4760 = vld [vmem:[%s4754 + $0x14] sm:$0xf]
      %v4761 = vld [vmem:[%s4754 + $0x18] sm:$0xf]
      %v4762 = vld [vmem:[%s4754 + $0x1c] sm:$0xf]
      %v4763 = vld [vmem:[%s4754 + $0x20] sm:$0xf]
      %v4764 = vld [vmem:[%s4754 + $0x24] sm:$0x3]
      %4765 = vst.msk [vmem:[%s233 + $0x1] sm:$0xff] %vm145, %v4722
      %4766 = vst.msk [vmem:[%s233 + $0x9] sm:$0xff] %vm145, %v4723
      %4767 = vst.msk [vmem:[%s233 + $0x19] sm:$0xff] %vm145, %v4724
      %4768 = vst.msk [vmem:[%s233 + $0x21] sm:$0xff] %vm145, %v4725
      %4769 = vst.msk [vmem:[%s233 + $0x31] sm:$0xff] %vm145, %v4726
      %4770 = vst.msk [vmem:[%s233 + $0x39] sm:$0xff] %vm145, %v4727
      %4771 = vst.msk [vmem:[%s233 + $0x49] sm:$0xff] %vm145, %v4728
      %4772 = vst.msk [vmem:[%s233 + $0x51] sm:$0xff] %vm145, %v4729
      %4773 = vst.msk [vmem:[%s233 + $0x61] sm:$0xff] %vm145, %v4730
      %4774 = vst.msk [vmem:[%s233 + $0x69] sm:$0xff] %vm145, %v4731
      %4775 = vst.msk [vmem:[%s233 + $0x79] sm:$0xff] %vm145, %v4732
      %4776 = vst.msk [vmem:[%s233 + $0x81] sm:$0xff] %vm145, %v4733
      %4777 = vst.msk [vmem:[%s233 + $0x91] sm:$0xff] %vm145, %v4734
      %4778 = vst.msk [vmem:[%s233 + $0x99] sm:$0xff] %vm145, %v4735
      %4779 = vst.msk [vmem:[%s233 + $0xa9] sm:$0xff] %vm145, %v4736
      %4780 = vst.msk [vmem:[%s233 + $0xb1] sm:$0xff] %vm145, %v4737
      %4781 = vst.msk [vmem:[%s233 + $0xc1] sm:$0xff] %vm145, %v4738
      %4782 = vst.msk [vmem:[%s233 + $0xc9] sm:$0xff] %vm145, %v4739
      %4783 = vst.msk [vmem:[%s233 + $0xd9] sm:$0xff] %vm145, %v4740
      %4784 = vst.msk [vmem:[%s233 + $0xe1] sm:$0xff] %vm145, %v4741
      %4785 = vst.msk [vmem:[%s233 + $0xf1] sm:$0xff] %vm145, %v4742
      %4786 = vst.msk [vmem:[%s233 + $0xf9] sm:$0xff] %vm145, %v4743
      %4787 = vst.msk [vmem:[%s233 + $0x109] sm:$0xff] %vm145, %v4744
      %4788 = vst.msk [vmem:[%s233 + $0x111] sm:$0xff] %vm145, %v4745
      %4789 = vst.msk [vmem:[%s233 + $0x121] sm:$0xff] %vm145, %v4746
      %4790 = vst.msk [vmem:[%s233 + $0x129] sm:$0xff] %vm145, %v4747
      %4791 = vst.msk [vmem:[%s233 + $0x139] sm:$0xff] %vm145, %v4748
      %4792 = vst.msk [vmem:[%s233 + $0x141] sm:$0xff] %vm145, %v4749
      %4793 = vst.msk [vmem:[%s233 + $0x151] sm:$0xff] %vm145, %v4750
      %4794 = vst.msk [vmem:[%s233 + $0x159] sm:$0xff] %vm145, %v4751
      %4795 = vst.msk [vmem:[%s233 + $0x169] sm:$0xff] %vm145, %v4752
      %4796 = vst.msk [vmem:[%s233 + $0x171] sm:$0xff] %vm145, %v4753
      %v4797 = vld [vmem:[#allocation2] sm:$0xff]
      %v4798 = vld [vmem:[#allocation2 + $0x8] sm:$0xff]
      %v4799 = vld [vmem:[#allocation2 + $0x18] sm:$0xff]
      %v4800 = vld [vmem:[#allocation2 + $0x20] sm:$0xff]
      %v4801 = vld [vmem:[#allocation2 + $0x30] sm:$0xff]
      %v4802 = vld [vmem:[#allocation2 + $0x38] sm:$0xff]
      %v4803 = vld [vmem:[#allocation2 + $0x48] sm:$0xff]
      %v4804 = vld [vmem:[#allocation2 + $0x50] sm:$0xff]
      %v4805 = vld [vmem:[#allocation2 + $0x60] sm:$0xff]
      %v4806 = vld [vmem:[#allocation2 + $0x68] sm:$0xff]
      %v4807 = vld [vmem:[#allocation2 + $0x78] sm:$0xff]
      %v4808 = vld [vmem:[#allocation2 + $0x80] sm:$0xff]
      %v4809 = vld [vmem:[#allocation2 + $0x90] sm:$0xff]
      %v4810 = vld [vmem:[#allocation2 + $0x98] sm:$0xff]
      %v4811 = vld [vmem:[#allocation2 + $0xa8] sm:$0xff]
      %v4812 = vld [vmem:[#allocation2 + $0xb0] sm:$0xff]
      %v4813 = vld [vmem:[#allocation2 + $0xc0] sm:$0xff]
      %v4814 = vld [vmem:[#allocation2 + $0xc8] sm:$0xff]
      %v4815 = vld [vmem:[#allocation2 + $0xd8] sm:$0xff]
      %v4816 = vld [vmem:[#allocation2 + $0xe0] sm:$0xff]
      %v4817 = vld [vmem:[#allocation2 + $0xf0] sm:$0xff]
      %v4818 = vld [vmem:[#allocation2 + $0xf8] sm:$0xff]
      %v4819 = vld [vmem:[#allocation2 + $0x108] sm:$0xff]
      %v4820 = vld [vmem:[#allocation2 + $0x110] sm:$0xff]
      %v4821 = vld [vmem:[#allocation2 + $0x120] sm:$0xff]
      %v4822 = vld [vmem:[#allocation2 + $0x128] sm:$0xff]
      %v4823 = vld [vmem:[#allocation2 + $0x138] sm:$0xff]
      %v4824 = vld [vmem:[#allocation2 + $0x140] sm:$0xff]
      %v4825 = vld [vmem:[#allocation2 + $0x150] sm:$0xff]
      %v4826 = vld [vmem:[#allocation2 + $0x158] sm:$0xff]
      %v4827 = vld [vmem:[#allocation2 + $0x168] sm:$0xff]
      %v4828 = vld [vmem:[#allocation2 + $0x170] sm:$0xff]
      %v4829 = vpack.c.bf16 %v4798, %v4797
      %v4830 = vpack.c.bf16 %v4800, %v4799
      %v4831 = vpack.c.bf16 %v4802, %v4801
      %v4832 = vpack.c.bf16 %v4804, %v4803
      %v4833 = vpack.c.bf16 %v4806, %v4805
      %v4834 = vpack.c.bf16 %v4808, %v4807
      %v4835 = vpack.c.bf16 %v4810, %v4809
      %v4836 = vpack.c.bf16 %v4812, %v4811
      %v4837 = vpack.c.bf16 %v4814, %v4813
      %v4838 = vpack.c.bf16 %v4816, %v4815
      %v4839 = vpack.c.bf16 %v4818, %v4817
      %v4840 = vpack.c.bf16 %v4820, %v4819
      %v4841 = vpack.c.bf16 %v4822, %v4821
      %v4842 = vpack.c.bf16 %v4824, %v4823
      %v4843 = vpack.c.bf16 %v4826, %v4825
      %v4844 = vpack.c.bf16 %v4828, %v4827
      %v4845 = vld [vmem:[#allocation2 + $0x1] sm:$0xff]
      %v4846 = vld [vmem:[#allocation2 + $0x9] sm:$0xff]
      %v4847 = vld [vmem:[#allocation2 + $0x19] sm:$0xff]
      %v4848 = vld [vmem:[#allocation2 + $0x21] sm:$0xff]
      %v4849 = vld [vmem:[#allocation2 + $0x31] sm:$0xff]
      %v4850 = vld [vmem:[#allocation2 + $0x39] sm:$0xff]
      %v4851 = vld [vmem:[#allocation2 + $0x49] sm:$0xff]
      %v4852 = vld [vmem:[#allocation2 + $0x51] sm:$0xff]
      %v4853 = vld [vmem:[#allocation2 + $0x61] sm:$0xff]
      %v4854 = vld [vmem:[#allocation2 + $0x69] sm:$0xff]
      %v4855 = vld [vmem:[#allocation2 + $0x79] sm:$0xff]
      %v4856 = vld [vmem:[#allocation2 + $0x81] sm:$0xff]
      %v4857 = vld [vmem:[#allocation2 + $0x91] sm:$0xff]
      %v4858 = vld [vmem:[#allocation2 + $0x99] sm:$0xff]
      %v4859 = vld [vmem:[#allocation2 + $0xa9] sm:$0xff]
      %v4860 = vld [vmem:[#allocation2 + $0xb1] sm:$0xff]
      %v4861 = vld [vmem:[#allocation2 + $0xc1] sm:$0xff]
      %v4862 = vld [vmem:[#allocation2 + $0xc9] sm:$0xff]
      %v4863 = vld [vmem:[#allocation2 + $0xd9] sm:$0xff]
      %v4864 = vld [vmem:[#allocation2 + $0xe1] sm:$0xff]
      %v4865 = vld [vmem:[#allocation2 + $0xf1] sm:$0xff]
      %v4866 = vld [vmem:[#allocation2 + $0xf9] sm:$0xff]
      %v4867 = vld [vmem:[#allocation2 + $0x109] sm:$0xff]
      %v4868 = vld [vmem:[#allocation2 + $0x111] sm:$0xff]
      %v4869 = vld [vmem:[#allocation2 + $0x121] sm:$0xff]
      %v4870 = vld [vmem:[#allocation2 + $0x129] sm:$0xff]
      %v4871 = vld [vmem:[#allocation2 + $0x139] sm:$0xff]
      %v4872 = vld [vmem:[#allocation2 + $0x141] sm:$0xff]
      %v4873 = vld [vmem:[#allocation2 + $0x151] sm:$0xff]
      %v4874 = vld [vmem:[#allocation2 + $0x159] sm:$0xff]
      %v4875 = vld [vmem:[#allocation2 + $0x169] sm:$0xff]
      %v4876 = vld [vmem:[#allocation2 + $0x171] sm:$0xff]
      %v4877 = vpack.c.bf16 %v4846, %v4845
      %v4878 = vpack.c.bf16 %v4848, %v4847
      %v4879 = vpack.c.bf16 %v4850, %v4849
      %v4880 = vpack.c.bf16 %v4852, %v4851
      %v4881 = vpack.c.bf16 %v4854, %v4853
      %v4882 = vpack.c.bf16 %v4856, %v4855
      %v4883 = vpack.c.bf16 %v4858, %v4857
      %v4884 = vpack.c.bf16 %v4860, %v4859
      %v4885 = vpack.c.bf16 %v4862, %v4861
      %v4886 = vpack.c.bf16 %v4864, %v4863
      %v4887 = vpack.c.bf16 %v4866, %v4865
      %v4888 = vpack.c.bf16 %v4868, %v4867
      %v4889 = vpack.c.bf16 %v4870, %v4869
      %v4890 = vpack.c.bf16 %v4872, %v4871
      %v4891 = vpack.c.bf16 %v4874, %v4873
      %v4892 = vpack.c.bf16 %v4876, %v4875
      %v4894 = vunpack.c.l.b16 %v4755
      %v4895 = vpack.c.b16 %v4894, %v4894
      %v4896 = vrot.slane %v4895, 2
      %v4898 = vsel %vm145, %v4877, 0
      %v4901 = vsel %vm145, %v4878, 0
      %v4904 = vsel %vm145, %v4879, 0
      %v4907 = vsel %vm145, %v4880, 0
      %v4910 = vsel %vm145, %v4881, 0
      %v4913 = vsel %vm145, %v4882, 0
      %v4916 = vsel %vm145, %v4883, 0
      %v4919 = vsel %vm145, %v4884, 0
      %v4922 = vsel %vm145, %v4885, 0
      %v4925 = vsel %vm145, %v4886, 0
      %v4928 = vsel %vm145, %v4887, 0
      %v4931 = vsel %vm145, %v4888, 0
      %v4934 = vsel %vm145, %v4889, 0
      %v4937 = vsel %vm145, %v4890, 0
      %v4940 = vsel %vm145, %v4891, 0
      %v4943 = vsel %vm145, %v4892, 0
      %v4946 = vsel %vm414, %v4896, 0
      %4948 = vmatpush.bf16.msra.mxu0 0
      %4949 = vmatpush.bf16.msra.mxu0 0
      %4950 = vmatpush.bf16.msra.mxu0 0
      %4951 = vmatpush.bf16.msra.mxu0 0
      %4952 = vmatpush.bf16.msra.mxu0 0
      %4953 = vmatpush.bf16.msra.mxu0 0
      %4954 = vmatpush.bf16.msra.mxu0 0
      %4955 = vmatpush.bf16.msra.mxu0 %v4946
      %4956 = vmatmul.bf16.gmra.mxu0 %v4898
      %v4957 = vpop.f32.mrf.mxu0
      %v4958 = vadd.f32 0.0, %v4957
      %v4959 = vpop.f32.mrf.mxu0
      %v4960 = vadd.f32 0.0, %v4959
      %4961 = vmatmul.bf16.gmra.mxu0 %v4901
      %v4962 = vpop.f32.mrf.mxu0
      %v4963 = vadd.f32 0.0, %v4962
      %v4964 = vpop.f32.mrf.mxu0
      %v4965 = vadd.f32 0.0, %v4964
      %4966 = vmatmul.bf16.gmra.mxu0 %v4904
      %v4967 = vpop.f32.mrf.mxu0
      %v4968 = vadd.f32 0.0, %v4967
      %v4969 = vpop.f32.mrf.mxu0
      %v4970 = vadd.f32 0.0, %v4969
      %4971 = vmatmul.bf16.gmra.mxu0 %v4907
      %v4972 = vpop.f32.mrf.mxu0
      %v4973 = vadd.f32 0.0, %v4972
      %v4974 = vpop.f32.mrf.mxu0
      %v4975 = vadd.f32 0.0, %v4974
      %4976 = vmatmul.bf16.gmra.mxu0 %v4910
      %v4977 = vpop.f32.mrf.mxu0
      %v4978 = vadd.f32 0.0, %v4977
      %v4979 = vpop.f32.mrf.mxu0
      %v4980 = vadd.f32 0.0, %v4979
      %4981 = vmatmul.bf16.gmra.mxu0 %v4913
      %v4982 = vpop.f32.mrf.mxu0
      %v4983 = vadd.f32 0.0, %v4982
      %v4984 = vpop.f32.mrf.mxu0
      %v4985 = vadd.f32 0.0, %v4984
      %4986 = vmatmul.bf16.gmra.mxu0 %v4916
      %v4987 = vpop.f32.mrf.mxu0
      %v4988 = vadd.f32 0.0, %v4987
      %v4989 = vpop.f32.mrf.mxu0
      %v4990 = vadd.f32 0.0, %v4989
      %4991 = vmatmul.bf16.gmra.mxu0 %v4919
      %v4992 = vpop.f32.mrf.mxu0
      %v4993 = vadd.f32 0.0, %v4992
      %v4994 = vpop.f32.mrf.mxu0
      %v4995 = vadd.f32 0.0, %v4994
      %4996 = vmatmul.bf16.gmra.mxu0 %v4922
      %v4997 = vpop.f32.mrf.mxu0
      %v4998 = vadd.f32 0.0, %v4997
      %v4999 = vpop.f32.mrf.mxu0
      %v5000 = vadd.f32 0.0, %v4999
      %5001 = vmatmul.bf16.gmra.mxu0 %v4925
      %v5002 = vpop.f32.mrf.mxu0
      %v5003 = vadd.f32 0.0, %v5002
      %v5004 = vpop.f32.mrf.mxu0
      %v5005 = vadd.f32 0.0, %v5004
      %5006 = vmatmul.bf16.gmra.mxu0 %v4928
      %v5007 = vpop.f32.mrf.mxu0
      %v5008 = vadd.f32 0.0, %v5007
      %v5009 = vpop.f32.mrf.mxu0
      %v5010 = vadd.f32 0.0, %v5009
      %5011 = vmatmul.bf16.gmra.mxu0 %v4931
      %v5012 = vpop.f32.mrf.mxu0
      %v5013 = vadd.f32 0.0, %v5012
      %v5014 = vpop.f32.mrf.mxu0
      %v5015 = vadd.f32 0.0, %v5014
      %5016 = vmatmul.bf16.gmra.mxu0 %v4934
      %v5017 = vpop.f32.mrf.mxu0
      %v5018 = vadd.f32 0.0, %v5017
      %v5019 = vpop.f32.mrf.mxu0
      %v5020 = vadd.f32 0.0, %v5019
      %5021 = vmatmul.bf16.gmra.mxu0 %v4937
      %v5022 = vpop.f32.mrf.mxu0
      %v5023 = vadd.f32 0.0, %v5022
      %v5024 = vpop.f32.mrf.mxu0
      %v5025 = vadd.f32 0.0, %v5024
      %5026 = vmatmul.bf16.gmra.mxu0 %v4940
      %v5027 = vpop.f32.mrf.mxu0
      %v5028 = vadd.f32 0.0, %v5027
      %v5029 = vpop.f32.mrf.mxu0
      %v5030 = vadd.f32 0.0, %v5029
      %5031 = vmatmul.bf16.gmra.mxu0 %v4943
      %v5032 = vpop.f32.mrf.mxu0
      %v5033 = vadd.f32 0.0, %v5032
      %v5034 = vpop.f32.mrf.mxu0
      %v5035 = vadd.f32 0.0, %v5034
      %5036 = vdwg.mxu0
      %v5038 = vsel %vm145, %v4829, 0
      %v5041 = vsel %vm145, %v4830, 0
      %v5044 = vsel %vm145, %v4831, 0
      %v5047 = vsel %vm145, %v4832, 0
      %v5050 = vsel %vm145, %v4833, 0
      %v5053 = vsel %vm145, %v4834, 0
      %v5056 = vsel %vm145, %v4835, 0
      %v5059 = vsel %vm145, %v4836, 0
      %v5062 = vsel %vm145, %v4837, 0
      %v5065 = vsel %vm145, %v4838, 0
      %v5068 = vsel %vm145, %v4839, 0
      %v5071 = vsel %vm145, %v4840, 0
      %v5074 = vsel %vm145, %v4841, 0
      %v5077 = vsel %vm145, %v4842, 0
      %v5080 = vsel %vm145, %v4843, 0
      %v5083 = vsel %vm145, %v4844, 0
      %v5086 = vsel %vm414, %v4755, 0
      %5088 = vmatpush.bf16.msra.mxu0 0
      %5089 = vmatpush.bf16.msra.mxu0 0
      %5090 = vmatpush.bf16.msra.mxu0 0
      %5091 = vmatpush.bf16.msra.mxu0 0
      %5092 = vmatpush.bf16.msra.mxu0 0
      %5093 = vmatpush.bf16.msra.mxu0 0
      %5094 = vmatpush.bf16.msra.mxu0 0
      %5095 = vmatpush.bf16.msra.mxu0 %v5086
      %5096 = vmatmul.bf16.gmra.mxu0 %v5038
      %v5097 = vpop.f32.mrf.mxu0
      %v5098 = vadd.f32 %v4958, %v5097
      %v5099 = vpop.f32.mrf.mxu0
      %v5100 = vadd.f32 %v4960, %v5099
      %5101 = vmatmul.bf16.gmra.mxu0 %v5041
      %v5102 = vpop.f32.mrf.mxu0
      %v5103 = vadd.f32 %v4963, %v5102
      %v5104 = vpop.f32.mrf.mxu0
      %v5105 = vadd.f32 %v4965, %v5104
      %5106 = vmatmul.bf16.gmra.mxu0 %v5044
      %v5107 = vpop.f32.mrf.mxu0
      %v5108 = vadd.f32 %v4968, %v5107
      %v5109 = vpop.f32.mrf.mxu0
      %v5110 = vadd.f32 %v4970, %v5109
      %5111 = vmatmul.bf16.gmra.mxu0 %v5047
      %v5112 = vpop.f32.mrf.mxu0
      %v5113 = vadd.f32 %v4973, %v5112
      %v5114 = vpop.f32.mrf.mxu0
      %v5115 = vadd.f32 %v4975, %v5114
      %5116 = vmatmul.bf16.gmra.mxu0 %v5050
      %v5117 = vpop.f32.mrf.mxu0
      %v5118 = vadd.f32 %v4978, %v5117
      %v5119 = vpop.f32.mrf.mxu0
      %v5120 = vadd.f32 %v4980, %v5119
      %5121 = vmatmul.bf16.gmra.mxu0 %v5053
      %v5122 = vpop.f32.mrf.mxu0
      %v5123 = vadd.f32 %v4983, %v5122
      %v5124 = vpop.f32.mrf.mxu0
      %v5125 = vadd.f32 %v4985, %v5124
      %5126 = vmatmul.bf16.gmra.mxu0 %v5056
      %v5127 = vpop.f32.mrf.mxu0
      %v5128 = vadd.f32 %v4988, %v5127
      %v5129 = vpop.f32.mrf.mxu0
      %v5130 = vadd.f32 %v4990, %v5129
      %5131 = vmatmul.bf16.gmra.mxu0 %v5059
      %v5132 = vpop.f32.mrf.mxu0
      %v5133 = vadd.f32 %v4993, %v5132
      %v5134 = vpop.f32.mrf.mxu0
      %v5135 = vadd.f32 %v4995, %v5134
      %5136 = vmatmul.bf16.gmra.mxu0 %v5062
      %v5137 = vpop.f32.mrf.mxu0
      %v5138 = vadd.f32 %v4998, %v5137
      %v5139 = vpop.f32.mrf.mxu0
      %v5140 = vadd.f32 %v5000, %v5139
      %5141 = vmatmul.bf16.gmra.mxu0 %v5065
      %v5142 = vpop.f32.mrf.mxu0
      %v5143 = vadd.f32 %v5003, %v5142
      %v5144 = vpop.f32.mrf.mxu0
      %v5145 = vadd.f32 %v5005, %v5144
      %5146 = vmatmul.bf16.gmra.mxu0 %v5068
      %v5147 = vpop.f32.mrf.mxu0
      %v5148 = vadd.f32 %v5008, %v5147
      %v5149 = vpop.f32.mrf.mxu0
      %v5150 = vadd.f32 %v5010, %v5149
      %5151 = vmatmul.bf16.gmra.mxu0 %v5071
      %v5152 = vpop.f32.mrf.mxu0
      %v5153 = vadd.f32 %v5013, %v5152
      %v5154 = vpop.f32.mrf.mxu0
      %v5155 = vadd.f32 %v5015, %v5154
      %5156 = vmatmul.bf16.gmra.mxu0 %v5074
      %v5157 = vpop.f32.mrf.mxu0
      %v5158 = vadd.f32 %v5018, %v5157
      %v5159 = vpop.f32.mrf.mxu0
      %v5160 = vadd.f32 %v5020, %v5159
      %5161 = vmatmul.bf16.gmra.mxu0 %v5077
      %v5162 = vpop.f32.mrf.mxu0
      %v5163 = vadd.f32 %v5023, %v5162
      %v5164 = vpop.f32.mrf.mxu0
      %v5165 = vadd.f32 %v5025, %v5164
      %5166 = vmatmul.bf16.gmra.mxu0 %v5080
      %v5167 = vpop.f32.mrf.mxu0
      %v5168 = vadd.f32 %v5028, %v5167
      %v5169 = vpop.f32.mrf.mxu0
      %v5170 = vadd.f32 %v5030, %v5169
      %5171 = vmatmul.bf16.gmra.mxu0 %v5083
      %v5172 = vpop.f32.mrf.mxu0
      %v5173 = vadd.f32 %v5033, %v5172
      %v5174 = vpop.f32.mrf.mxu0
      %v5175 = vadd.f32 %v5035, %v5174
      %5176 = vdwg.mxu0
      %v5177 = vld [vmem:[#allocation2 + $0x2] sm:$0xff]
      %v5178 = vld [vmem:[#allocation2 + $0xa] sm:$0xff]
      %v5179 = vld [vmem:[#allocation2 + $0x1a] sm:$0xff]
      %v5180 = vld [vmem:[#allocation2 + $0x22] sm:$0xff]
      %v5181 = vld [vmem:[#allocation2 + $0x32] sm:$0xff]
      %v5182 = vld [vmem:[#allocation2 + $0x3a] sm:$0xff]
      %v5183 = vld [vmem:[#allocation2 + $0x4a] sm:$0xff]
      %v5184 = vld [vmem:[#allocation2 + $0x52] sm:$0xff]
      %v5185 = vld [vmem:[#allocation2 + $0x62] sm:$0xff]
      %v5186 = vld [vmem:[#allocation2 + $0x6a] sm:$0xff]
      %v5187 = vld [vmem:[#allocation2 + $0x7a] sm:$0xff]
      %v5188 = vld [vmem:[#allocation2 + $0x82] sm:$0xff]
      %v5189 = vld [vmem:[#allocation2 + $0x92] sm:$0xff]
      %v5190 = vld [vmem:[#allocation2 + $0x9a] sm:$0xff]
      %v5191 = vld [vmem:[#allocation2 + $0xaa] sm:$0xff]
      %v5192 = vld [vmem:[#allocation2 + $0xb2] sm:$0xff]
      %v5193 = vld [vmem:[#allocation2 + $0xc2] sm:$0xff]
      %v5194 = vld [vmem:[#allocation2 + $0xca] sm:$0xff]
      %v5195 = vld [vmem:[#allocation2 + $0xda] sm:$0xff]
      %v5196 = vld [vmem:[#allocation2 + $0xe2] sm:$0xff]
      %v5197 = vld [vmem:[#allocation2 + $0xf2] sm:$0xff]
      %v5198 = vld [vmem:[#allocation2 + $0xfa] sm:$0xff]
      %v5199 = vld [vmem:[#allocation2 + $0x10a] sm:$0xff]
      %v5200 = vld [vmem:[#allocation2 + $0x112] sm:$0xff]
      %v5201 = vld [vmem:[#allocation2 + $0x122] sm:$0xff]
      %v5202 = vld [vmem:[#allocation2 + $0x12a] sm:$0xff]
      %v5203 = vld [vmem:[#allocation2 + $0x13a] sm:$0xff]
      %v5204 = vld [vmem:[#allocation2 + $0x142] sm:$0xff]
      %v5205 = vld [vmem:[#allocation2 + $0x152] sm:$0xff]
      %v5206 = vld [vmem:[#allocation2 + $0x15a] sm:$0xff]
      %v5207 = vld [vmem:[#allocation2 + $0x16a] sm:$0xff]
      %v5208 = vld [vmem:[#allocation2 + $0x172] sm:$0xff]
      %v5209 = vpack.c.bf16 %v5178, %v5177
      %v5210 = vpack.c.bf16 %v5180, %v5179
      %v5211 = vpack.c.bf16 %v5182, %v5181
      %v5212 = vpack.c.bf16 %v5184, %v5183
      %v5213 = vpack.c.bf16 %v5186, %v5185
      %v5214 = vpack.c.bf16 %v5188, %v5187
      %v5215 = vpack.c.bf16 %v5190, %v5189
      %v5216 = vpack.c.bf16 %v5192, %v5191
      %v5217 = vpack.c.bf16 %v5194, %v5193
      %v5218 = vpack.c.bf16 %v5196, %v5195
      %v5219 = vpack.c.bf16 %v5198, %v5197
      %v5220 = vpack.c.bf16 %v5200, %v5199
      %v5221 = vpack.c.bf16 %v5202, %v5201
      %v5222 = vpack.c.bf16 %v5204, %v5203
      %v5223 = vpack.c.bf16 %v5206, %v5205
      %v5224 = vpack.c.bf16 %v5208, %v5207
      %v5226 = vsel %vm145, %v5209, 0
      %v5229 = vsel %vm145, %v5210, 0
      %v5232 = vsel %vm145, %v5211, 0
      %v5235 = vsel %vm145, %v5212, 0
      %v5238 = vsel %vm145, %v5213, 0
      %v5241 = vsel %vm145, %v5214, 0
      %v5244 = vsel %vm145, %v5215, 0
      %v5247 = vsel %vm145, %v5216, 0
      %v5250 = vsel %vm145, %v5217, 0
      %v5253 = vsel %vm145, %v5218, 0
      %v5256 = vsel %vm145, %v5219, 0
      %v5259 = vsel %vm145, %v5220, 0
      %v5262 = vsel %vm145, %v5221, 0
      %v5265 = vsel %vm145, %v5222, 0
      %v5268 = vsel %vm145, %v5223, 0
      %v5271 = vsel %vm145, %v5224, 0
      %v5274 = vsel %vm414, %v4756, 0
      %5276 = vmatpush.bf16.msra.mxu0 0
      %5277 = vmatpush.bf16.msra.mxu0 0
      %5278 = vmatpush.bf16.msra.mxu0 0
      %5279 = vmatpush.bf16.msra.mxu0 0
      %5280 = vmatpush.bf16.msra.mxu0 0
      %5281 = vmatpush.bf16.msra.mxu0 0
      %5282 = vmatpush.bf16.msra.mxu0 0
      %5283 = vmatpush.bf16.msra.mxu0 %v5274
      %5284 = vmatmul.bf16.gmra.mxu0 %v5226
      %v5285 = vpop.f32.mrf.mxu0
      %v5286 = vadd.f32 0.0, %v5285
      %v5287 = vpop.f32.mrf.mxu0
      %v5288 = vadd.f32 0.0, %v5287
      %5289 = vmatmul.bf16.gmra.mxu0 %v5229
      %v5290 = vpop.f32.mrf.mxu0
      %v5291 = vadd.f32 0.0, %v5290
      %v5292 = vpop.f32.mrf.mxu0
      %v5293 = vadd.f32 0.0, %v5292
      %5294 = vmatmul.bf16.gmra.mxu0 %v5232
      %v5295 = vpop.f32.mrf.mxu0
      %v5296 = vadd.f32 0.0, %v5295
      %v5297 = vpop.f32.mrf.mxu0
      %v5298 = vadd.f32 0.0, %v5297
      %5299 = vmatmul.bf16.gmra.mxu0 %v5235
      %v5300 = vpop.f32.mrf.mxu0
      %v5301 = vadd.f32 0.0, %v5300
      %v5302 = vpop.f32.mrf.mxu0
      %v5303 = vadd.f32 0.0, %v5302
      %5304 = vmatmul.bf16.gmra.mxu0 %v5238
      %v5305 = vpop.f32.mrf.mxu0
      %v5306 = vadd.f32 0.0, %v5305
      %v5307 = vpop.f32.mrf.mxu0
      %v5308 = vadd.f32 0.0, %v5307
      %5309 = vmatmul.bf16.gmra.mxu0 %v5241
      %v5310 = vpop.f32.mrf.mxu0
      %v5311 = vadd.f32 0.0, %v5310
      %v5312 = vpop.f32.mrf.mxu0
      %v5313 = vadd.f32 0.0, %v5312
      %5314 = vmatmul.bf16.gmra.mxu0 %v5244
      %v5315 = vpop.f32.mrf.mxu0
      %v5316 = vadd.f32 0.0, %v5315
      %v5317 = vpop.f32.mrf.mxu0
      %v5318 = vadd.f32 0.0, %v5317
      %5319 = vmatmul.bf16.gmra.mxu0 %v5247
      %v5320 = vpop.f32.mrf.mxu0
      %v5321 = vadd.f32 0.0, %v5320
      %v5322 = vpop.f32.mrf.mxu0
      %v5323 = vadd.f32 0.0, %v5322
      %5324 = vmatmul.bf16.gmra.mxu0 %v5250
      %v5325 = vpop.f32.mrf.mxu0
      %v5326 = vadd.f32 0.0, %v5325
      %v5327 = vpop.f32.mrf.mxu0
      %v5328 = vadd.f32 0.0, %v5327
      %5329 = vmatmul.bf16.gmra.mxu0 %v5253
      %v5330 = vpop.f32.mrf.mxu0
      %v5331 = vadd.f32 0.0, %v5330
      %v5332 = vpop.f32.mrf.mxu0
      %v5333 = vadd.f32 0.0, %v5332
      %5334 = vmatmul.bf16.gmra.mxu0 %v5256
      %v5335 = vpop.f32.mrf.mxu0
      %v5336 = vadd.f32 0.0, %v5335
      %v5337 = vpop.f32.mrf.mxu0
      %v5338 = vadd.f32 0.0, %v5337
      %5339 = vmatmul.bf16.gmra.mxu0 %v5259
      %v5340 = vpop.f32.mrf.mxu0
      %v5341 = vadd.f32 0.0, %v5340
      %v5342 = vpop.f32.mrf.mxu0
      %v5343 = vadd.f32 0.0, %v5342
      %5344 = vmatmul.bf16.gmra.mxu0 %v5262
      %v5345 = vpop.f32.mrf.mxu0
      %v5346 = vadd.f32 0.0, %v5345
      %v5347 = vpop.f32.mrf.mxu0
      %v5348 = vadd.f32 0.0, %v5347
      %5349 = vmatmul.bf16.gmra.mxu0 %v5265
      %v5350 = vpop.f32.mrf.mxu0
      %v5351 = vadd.f32 0.0, %v5350
      %v5352 = vpop.f32.mrf.mxu0
      %v5353 = vadd.f32 0.0, %v5352
      %5354 = vmatmul.bf16.gmra.mxu0 %v5268
      %v5355 = vpop.f32.mrf.mxu0
      %v5356 = vadd.f32 0.0, %v5355
      %v5357 = vpop.f32.mrf.mxu0
      %v5358 = vadd.f32 0.0, %v5357
      %5359 = vmatmul.bf16.gmra.mxu0 %v5271
      %v5360 = vpop.f32.mrf.mxu0
      %v5361 = vadd.f32 0.0, %v5360
      %v5362 = vpop.f32.mrf.mxu0
      %v5363 = vadd.f32 0.0, %v5362
      %5364 = vdwg.mxu0
      %v5365 = vadd.f32 %v5098, %v5286
      %v5366 = vadd.f32 %v5100, %v5288
      %v5367 = vadd.f32 %v5103, %v5291
      %v5368 = vadd.f32 %v5105, %v5293
      %v5369 = vadd.f32 %v5108, %v5296
      %v5370 = vadd.f32 %v5110, %v5298
      %v5371 = vadd.f32 %v5113, %v5301
      %v5372 = vadd.f32 %v5115, %v5303
      %v5373 = vadd.f32 %v5118, %v5306
      %v5374 = vadd.f32 %v5120, %v5308
      %v5375 = vadd.f32 %v5123, %v5311
      %v5376 = vadd.f32 %v5125, %v5313
      %v5377 = vadd.f32 %v5128, %v5316
      %v5378 = vadd.f32 %v5130, %v5318
      %v5379 = vadd.f32 %v5133, %v5321
      %v5380 = vadd.f32 %v5135, %v5323
      %v5381 = vadd.f32 %v5138, %v5326
      %v5382 = vadd.f32 %v5140, %v5328
      %v5383 = vadd.f32 %v5143, %v5331
      %v5384 = vadd.f32 %v5145, %v5333
      %v5385 = vadd.f32 %v5148, %v5336
      %v5386 = vadd.f32 %v5150, %v5338
      %v5387 = vadd.f32 %v5153, %v5341
      %v5388 = vadd.f32 %v5155, %v5343
      %v5389 = vadd.f32 %v5158, %v5346
      %v5390 = vadd.f32 %v5160, %v5348
      %v5391 = vadd.f32 %v5163, %v5351
      %v5392 = vadd.f32 %v5165, %v5353
      %v5393 = vadd.f32 %v5168, %v5356
      %v5394 = vadd.f32 %v5170, %v5358
      %v5395 = vadd.f32 %v5173, %v5361
      %v5396 = vadd.f32 %v5175, %v5363
      %v5397 = vld [vmem:[%s233] sm:$0xff]
      %v5398 = vld [vmem:[%s233 + $0x8] sm:$0xff]
      %v5399 = vld [vmem:[%s233 + $0x18] sm:$0xff]
      %v5400 = vld [vmem:[%s233 + $0x20] sm:$0xff]
      %v5401 = vld [vmem:[%s233 + $0x30] sm:$0xff]
      %v5402 = vld [vmem:[%s233 + $0x38] sm:$0xff]
      %v5403 = vld [vmem:[%s233 + $0x48] sm:$0xff]
      %v5404 = vld [vmem:[%s233 + $0x50] sm:$0xff]
      %v5405 = vld [vmem:[%s233 + $0x60] sm:$0xff]
      %v5406 = vld [vmem:[%s233 + $0x68] sm:$0xff]
      %v5407 = vld [vmem:[%s233 + $0x78] sm:$0xff]
      %v5408 = vld [vmem:[%s233 + $0x80] sm:$0xff]
      %v5409 = vld [vmem:[%s233 + $0x90] sm:$0xff]
      %v5410 = vld [vmem:[%s233 + $0x98] sm:$0xff]
      %v5411 = vld [vmem:[%s233 + $0xa8] sm:$0xff]
      %v5412 = vld [vmem:[%s233 + $0xb0] sm:$0xff]
      %v5413 = vld [vmem:[%s233 + $0xc0] sm:$0xff]
      %v5414 = vld [vmem:[%s233 + $0xc8] sm:$0xff]
      %v5415 = vld [vmem:[%s233 + $0xd8] sm:$0xff]
      %v5416 = vld [vmem:[%s233 + $0xe0] sm:$0xff]
      %v5417 = vld [vmem:[%s233 + $0xf0] sm:$0xff]
      %v5418 = vld [vmem:[%s233 + $0xf8] sm:$0xff]
      %v5419 = vld [vmem:[%s233 + $0x108] sm:$0xff]
      %v5420 = vld [vmem:[%s233 + $0x110] sm:$0xff]
      %v5421 = vld [vmem:[%s233 + $0x120] sm:$0xff]
      %v5422 = vld [vmem:[%s233 + $0x128] sm:$0xff]
      %v5423 = vld [vmem:[%s233 + $0x138] sm:$0xff]
      %v5424 = vld [vmem:[%s233 + $0x140] sm:$0xff]
      %v5425 = vld [vmem:[%s233 + $0x150] sm:$0xff]
      %v5426 = vld [vmem:[%s233 + $0x158] sm:$0xff]
      %v5427 = vld [vmem:[%s233 + $0x168] sm:$0xff]
      %v5428 = vld [vmem:[%s233 + $0x170] sm:$0xff]
      %v5429 = vpack.c.bf16 %v5398, %v5397
      %v5430 = vpack.c.bf16 %v5400, %v5399
      %v5431 = vpack.c.bf16 %v5402, %v5401
      %v5432 = vpack.c.bf16 %v5404, %v5403
      %v5433 = vpack.c.bf16 %v5406, %v5405
      %v5434 = vpack.c.bf16 %v5408, %v5407
      %v5435 = vpack.c.bf16 %v5410, %v5409
      %v5436 = vpack.c.bf16 %v5412, %v5411
      %v5437 = vpack.c.bf16 %v5414, %v5413
      %v5438 = vpack.c.bf16 %v5416, %v5415
      %v5439 = vpack.c.bf16 %v5418, %v5417
      %v5440 = vpack.c.bf16 %v5420, %v5419
      %v5441 = vpack.c.bf16 %v5422, %v5421
      %v5442 = vpack.c.bf16 %v5424, %v5423
      %v5443 = vpack.c.bf16 %v5426, %v5425
      %v5444 = vpack.c.bf16 %v5428, %v5427
      %v5446 = vunpack.c.l.b16 %v4756
      %v5447 = vpack.c.b16 %v5446, %v5446
      %v5448 = vrot.slane %v5447, 2
      %v5450 = vsel %vm145, %v5429, 0
      %v5453 = vsel %vm145, %v5430, 0
      %v5456 = vsel %vm145, %v5431, 0
      %v5459 = vsel %vm145, %v5432, 0
      %v5462 = vsel %vm145, %v5433, 0
      %v5465 = vsel %vm145, %v5434, 0
      %v5468 = vsel %vm145, %v5435, 0
      %v5471 = vsel %vm145, %v5436, 0
      %v5474 = vsel %vm145, %v5437, 0
      %v5477 = vsel %vm145, %v5438, 0
      %v5480 = vsel %vm145, %v5439, 0
      %v5483 = vsel %vm145, %v5440, 0
      %v5486 = vsel %vm145, %v5441, 0
      %v5489 = vsel %vm145, %v5442, 0
      %v5492 = vsel %vm145, %v5443, 0
      %v5495 = vsel %vm145, %v5444, 0
      %v5498 = vsel %vm414, %v5448, 0
      %5500 = vmatpush.bf16.msra.mxu0 0
      %5501 = vmatpush.bf16.msra.mxu0 0
      %5502 = vmatpush.bf16.msra.mxu0 0
      %5503 = vmatpush.bf16.msra.mxu0 0
      %5504 = vmatpush.bf16.msra.mxu0 0
      %5505 = vmatpush.bf16.msra.mxu0 0
      %5506 = vmatpush.bf16.msra.mxu0 0
      %5507 = vmatpush.bf16.msra.mxu0 %v5498
      %5508 = vmatmul.bf16.gmra.mxu0 %v5450
      %v5509 = vpop.f32.mrf.mxu0
      %v5510 = vadd.f32 0.0, %v5509
      %v5511 = vpop.f32.mrf.mxu0
      %v5512 = vadd.f32 0.0, %v5511
      %5513 = vmatmul.bf16.gmra.mxu0 %v5453
      %v5514 = vpop.f32.mrf.mxu0
      %v5515 = vadd.f32 0.0, %v5514
      %v5516 = vpop.f32.mrf.mxu0
      %v5517 = vadd.f32 0.0, %v5516
      %5518 = vmatmul.bf16.gmra.mxu0 %v5456
      %v5519 = vpop.f32.mrf.mxu0
      %v5520 = vadd.f32 0.0, %v5519
      %v5521 = vpop.f32.mrf.mxu0
      %v5522 = vadd.f32 0.0, %v5521
      %5523 = vmatmul.bf16.gmra.mxu0 %v5459
      %v5524 = vpop.f32.mrf.mxu0
      %v5525 = vadd.f32 0.0, %v5524
      %v5526 = vpop.f32.mrf.mxu0
      %v5527 = vadd.f32 0.0, %v5526
      %5528 = vmatmul.bf16.gmra.mxu0 %v5462
      %v5529 = vpop.f32.mrf.mxu0
      %v5530 = vadd.f32 0.0, %v5529
      %v5531 = vpop.f32.mrf.mxu0
      %v5532 = vadd.f32 0.0, %v5531
      %5533 = vmatmul.bf16.gmra.mxu0 %v5465
      %v5534 = vpop.f32.mrf.mxu0
      %v5535 = vadd.f32 0.0, %v5534
      %v5536 = vpop.f32.mrf.mxu0
      %v5537 = vadd.f32 0.0, %v5536
      %5538 = vmatmul.bf16.gmra.mxu0 %v5468
      %v5539 = vpop.f32.mrf.mxu0
      %v5540 = vadd.f32 0.0, %v5539
      %v5541 = vpop.f32.mrf.mxu0
      %v5542 = vadd.f32 0.0, %v5541
      %5543 = vmatmul.bf16.gmra.mxu0 %v5471
      %v5544 = vpop.f32.mrf.mxu0
      %v5545 = vadd.f32 0.0, %v5544
      %v5546 = vpop.f32.mrf.mxu0
      %v5547 = vadd.f32 0.0, %v5546
      %5548 = vmatmul.bf16.gmra.mxu0 %v5474
      %v5549 = vpop.f32.mrf.mxu0
      %v5550 = vadd.f32 0.0, %v5549
      %v5551 = vpop.f32.mrf.mxu0
      %v5552 = vadd.f32 0.0, %v5551
      %5553 = vmatmul.bf16.gmra.mxu0 %v5477
      %v5554 = vpop.f32.mrf.mxu0
      %v5555 = vadd.f32 0.0, %v5554
      %v5556 = vpop.f32.mrf.mxu0
      %v5557 = vadd.f32 0.0, %v5556
      %5558 = vmatmul.bf16.gmra.mxu0 %v5480
      %v5559 = vpop.f32.mrf.mxu0
      %v5560 = vadd.f32 0.0, %v5559
      %v5561 = vpop.f32.mrf.mxu0
      %v5562 = vadd.f32 0.0, %v5561
      %5563 = vmatmul.bf16.gmra.mxu0 %v5483
      %v5564 = vpop.f32.mrf.mxu0
      %v5565 = vadd.f32 0.0, %v5564
      %v5566 = vpop.f32.mrf.mxu0
      %v5567 = vadd.f32 0.0, %v5566
      %5568 = vmatmul.bf16.gmra.mxu0 %v5486
      %v5569 = vpop.f32.mrf.mxu0
      %v5570 = vadd.f32 0.0, %v5569
      %v5571 = vpop.f32.mrf.mxu0
      %v5572 = vadd.f32 0.0, %v5571
      %5573 = vmatmul.bf16.gmra.mxu0 %v5489
      %v5574 = vpop.f32.mrf.mxu0
      %v5575 = vadd.f32 0.0, %v5574
      %v5576 = vpop.f32.mrf.mxu0
      %v5577 = vadd.f32 0.0, %v5576
      %5578 = vmatmul.bf16.gmra.mxu0 %v5492
      %v5579 = vpop.f32.mrf.mxu0
      %v5580 = vadd.f32 0.0, %v5579
      %v5581 = vpop.f32.mrf.mxu0
      %v5582 = vadd.f32 0.0, %v5581
      %5583 = vmatmul.bf16.gmra.mxu0 %v5495
      %v5584 = vpop.f32.mrf.mxu0
      %v5585 = vadd.f32 0.0, %v5584
      %v5586 = vpop.f32.mrf.mxu0
      %v5587 = vadd.f32 0.0, %v5586
      %5588 = vdwg.mxu0
      %v5589 = vadd.f32 %v5365, %v5510
      %v5590 = vadd.f32 %v5366, %v5512
      %v5591 = vadd.f32 %v5367, %v5515
      %v5592 = vadd.f32 %v5368, %v5517
      %v5593 = vadd.f32 %v5369, %v5520
      %v5594 = vadd.f32 %v5370, %v5522
      %v5595 = vadd.f32 %v5371, %v5525
      %v5596 = vadd.f32 %v5372, %v5527
      %v5597 = vadd.f32 %v5373, %v5530
      %v5598 = vadd.f32 %v5374, %v5532
      %v5599 = vadd.f32 %v5375, %v5535
      %v5600 = vadd.f32 %v5376, %v5537
      %v5601 = vadd.f32 %v5377, %v5540
      %v5602 = vadd.f32 %v5378, %v5542
      %v5603 = vadd.f32 %v5379, %v5545
      %v5604 = vadd.f32 %v5380, %v5547
      %v5605 = vadd.f32 %v5381, %v5550
      %v5606 = vadd.f32 %v5382, %v5552
      %v5607 = vadd.f32 %v5383, %v5555
      %v5608 = vadd.f32 %v5384, %v5557
      %v5609 = vadd.f32 %v5385, %v5560
      %v5610 = vadd.f32 %v5386, %v5562
      %v5611 = vadd.f32 %v5387, %v5565
      %v5612 = vadd.f32 %v5388, %v5567
      %v5613 = vadd.f32 %v5389, %v5570
      %v5614 = vadd.f32 %v5390, %v5572
      %v5615 = vadd.f32 %v5391, %v5575
      %v5616 = vadd.f32 %v5392, %v5577
      %v5617 = vadd.f32 %v5393, %v5580
      %v5618 = vadd.f32 %v5394, %v5582
      %v5619 = vadd.f32 %v5395, %v5585
      %v5620 = vadd.f32 %v5396, %v5587
      %v5621 = vld [vmem:[%s233 + $0x1] sm:$0xff]
      %v5622 = vld [vmem:[%s233 + $0x9] sm:$0xff]
      %v5623 = vld [vmem:[%s233 + $0x19] sm:$0xff]
      %v5624 = vld [vmem:[%s233 + $0x21] sm:$0xff]
      %v5625 = vld [vmem:[%s233 + $0x31] sm:$0xff]
      %v5626 = vld [vmem:[%s233 + $0x39] sm:$0xff]
      %v5627 = vld [vmem:[%s233 + $0x49] sm:$0xff]
      %v5628 = vld [vmem:[%s233 + $0x51] sm:$0xff]
      %v5629 = vld [vmem:[%s233 + $0x61] sm:$0xff]
      %v5630 = vld [vmem:[%s233 + $0x69] sm:$0xff]
      %v5631 = vld [vmem:[%s233 + $0x79] sm:$0xff]
      %v5632 = vld [vmem:[%s233 + $0x81] sm:$0xff]
      %v5633 = vld [vmem:[%s233 + $0x91] sm:$0xff]
      %v5634 = vld [vmem:[%s233 + $0x99] sm:$0xff]
      %v5635 = vld [vmem:[%s233 + $0xa9] sm:$0xff]
      %v5636 = vld [vmem:[%s233 + $0xb1] sm:$0xff]
      %v5637 = vld [vmem:[%s233 + $0xc1] sm:$0xff]
      %v5638 = vld [vmem:[%s233 + $0xc9] sm:$0xff]
      %v5639 = vld [vmem:[%s233 + $0xd9] sm:$0xff]
      %v5640 = vld [vmem:[%s233 + $0xe1] sm:$0xff]
      %v5641 = vld [vmem:[%s233 + $0xf1] sm:$0xff]
      %v5642 = vld [vmem:[%s233 + $0xf9] sm:$0xff]
      %v5643 = vld [vmem:[%s233 + $0x109] sm:$0xff]
      %v5644 = vld [vmem:[%s233 + $0x111] sm:$0xff]
      %v5645 = vld [vmem:[%s233 + $0x121] sm:$0xff]
      %v5646 = vld [vmem:[%s233 + $0x129] sm:$0xff]
      %v5647 = vld [vmem:[%s233 + $0x139] sm:$0xff]
      %v5648 = vld [vmem:[%s233 + $0x141] sm:$0xff]
      %v5649 = vld [vmem:[%s233 + $0x151] sm:$0xff]
      %v5650 = vld [vmem:[%s233 + $0x159] sm:$0xff]
      %v5651 = vld [vmem:[%s233 + $0x169] sm:$0xff]
      %v5652 = vld [vmem:[%s233 + $0x171] sm:$0xff]
      %v5653 = vpack.c.bf16 %v5622, %v5621
      %v5654 = vpack.c.bf16 %v5624, %v5623
      %v5655 = vpack.c.bf16 %v5626, %v5625
      %v5656 = vpack.c.bf16 %v5628, %v5627
      %v5657 = vpack.c.bf16 %v5630, %v5629
      %v5658 = vpack.c.bf16 %v5632, %v5631
      %v5659 = vpack.c.bf16 %v5634, %v5633
      %v5660 = vpack.c.bf16 %v5636, %v5635
      %v5661 = vpack.c.bf16 %v5638, %v5637
      %v5662 = vpack.c.bf16 %v5640, %v5639
      %v5663 = vpack.c.bf16 %v5642, %v5641
      %v5664 = vpack.c.bf16 %v5644, %v5643
      %v5665 = vpack.c.bf16 %v5646, %v5645
      %v5666 = vpack.c.bf16 %v5648, %v5647
      %v5667 = vpack.c.bf16 %v5650, %v5649
      %v5668 = vpack.c.bf16 %v5652, %v5651
      %v5670 = vsel %vm145, %v5653, 0
      %v5673 = vsel %vm145, %v5654, 0
      %v5676 = vsel %vm145, %v5655, 0
      %v5679 = vsel %vm145, %v5656, 0
      %v5682 = vsel %vm145, %v5657, 0
      %v5685 = vsel %vm145, %v5658, 0
      %v5688 = vsel %vm145, %v5659, 0
      %v5691 = vsel %vm145, %v5660, 0
      %v5694 = vsel %vm145, %v5661, 0
      %v5697 = vsel %vm145, %v5662, 0
      %v5700 = vsel %vm145, %v5663, 0
      %v5703 = vsel %vm145, %v5664, 0
      %v5706 = vsel %vm145, %v5665, 0
      %v5709 = vsel %vm145, %v5666, 0
      %v5712 = vsel %vm145, %v5667, 0
      %v5715 = vsel %vm145, %v5668, 0
      %v5718 = vsel %vm414, %v4757, 0
      %5720 = vmatpush.bf16.msra.mxu0 0
      %5721 = vmatpush.bf16.msra.mxu0 0
      %5722 = vmatpush.bf16.msra.mxu0 0
      %5723 = vmatpush.bf16.msra.mxu0 0
      %5724 = vmatpush.bf16.msra.mxu0 0
      %5725 = vmatpush.bf16.msra.mxu0 0
      %5726 = vmatpush.bf16.msra.mxu0 0
      %5727 = vmatpush.bf16.msra.mxu0 %v5718
      %5728 = vmatmul.bf16.gmra.mxu0 %v5670
      %v5729 = vpop.f32.mrf.mxu0
      %v5730 = vadd.f32 0.0, %v5729
      %v5731 = vpop.f32.mrf.mxu0
      %v5732 = vadd.f32 0.0, %v5731
      %5733 = vmatmul.bf16.gmra.mxu0 %v5673
      %v5734 = vpop.f32.mrf.mxu0
      %v5735 = vadd.f32 0.0, %v5734
      %v5736 = vpop.f32.mrf.mxu0
      %v5737 = vadd.f32 0.0, %v5736
      %5738 = vmatmul.bf16.gmra.mxu0 %v5676
      %v5739 = vpop.f32.mrf.mxu0
      %v5740 = vadd.f32 0.0, %v5739
      %v5741 = vpop.f32.mrf.mxu0
      %v5742 = vadd.f32 0.0, %v5741
      %5743 = vmatmul.bf16.gmra.mxu0 %v5679
      %v5744 = vpop.f32.mrf.mxu0
      %v5745 = vadd.f32 0.0, %v5744
      %v5746 = vpop.f32.mrf.mxu0
      %v5747 = vadd.f32 0.0, %v5746
      %5748 = vmatmul.bf16.gmra.mxu0 %v5682
      %v5749 = vpop.f32.mrf.mxu0
      %v5750 = vadd.f32 0.0, %v5749
      %v5751 = vpop.f32.mrf.mxu0
      %v5752 = vadd.f32 0.0, %v5751
      %5753 = vmatmul.bf16.gmra.mxu0 %v5685
      %v5754 = vpop.f32.mrf.mxu0
      %v5755 = vadd.f32 0.0, %v5754
      %v5756 = vpop.f32.mrf.mxu0
      %v5757 = vadd.f32 0.0, %v5756
      %5758 = vmatmul.bf16.gmra.mxu0 %v5688
      %v5759 = vpop.f32.mrf.mxu0
      %v5760 = vadd.f32 0.0, %v5759
      %v5761 = vpop.f32.mrf.mxu0
      %v5762 = vadd.f32 0.0, %v5761
      %5763 = vmatmul.bf16.gmra.mxu0 %v5691
      %v5764 = vpop.f32.mrf.mxu0
      %v5765 = vadd.f32 0.0, %v5764
      %v5766 = vpop.f32.mrf.mxu0
      %v5767 = vadd.f32 0.0, %v5766
      %5768 = vmatmul.bf16.gmra.mxu0 %v5694
      %v5769 = vpop.f32.mrf.mxu0
      %v5770 = vadd.f32 0.0, %v5769
      %v5771 = vpop.f32.mrf.mxu0
      %v5772 = vadd.f32 0.0, %v5771
      %5773 = vmatmul.bf16.gmra.mxu0 %v5697
      %v5774 = vpop.f32.mrf.mxu0
      %v5775 = vadd.f32 0.0, %v5774
      %v5776 = vpop.f32.mrf.mxu0
      %v5777 = vadd.f32 0.0, %v5776
      %5778 = vmatmul.bf16.gmra.mxu0 %v5700
      %v5779 = vpop.f32.mrf.mxu0
      %v5780 = vadd.f32 0.0, %v5779
      %v5781 = vpop.f32.mrf.mxu0
      %v5782 = vadd.f32 0.0, %v5781
      %5783 = vmatmul.bf16.gmra.mxu0 %v5703
      %v5784 = vpop.f32.mrf.mxu0
      %v5785 = vadd.f32 0.0, %v5784
      %v5786 = vpop.f32.mrf.mxu0
      %v5787 = vadd.f32 0.0, %v5786
      %5788 = vmatmul.bf16.gmra.mxu0 %v5706
      %v5789 = vpop.f32.mrf.mxu0
      %v5790 = vadd.f32 0.0, %v5789
      %v5791 = vpop.f32.mrf.mxu0
      %v5792 = vadd.f32 0.0, %v5791
      %5793 = vmatmul.bf16.gmra.mxu0 %v5709
      %v5794 = vpop.f32.mrf.mxu0
      %v5795 = vadd.f32 0.0, %v5794
      %v5796 = vpop.f32.mrf.mxu0
      %v5797 = vadd.f32 0.0, %v5796
      %5798 = vmatmul.bf16.gmra.mxu0 %v5712
      %v5799 = vpop.f32.mrf.mxu0
      %v5800 = vadd.f32 0.0, %v5799
      %v5801 = vpop.f32.mrf.mxu0
      %v5802 = vadd.f32 0.0, %v5801
      %5803 = vmatmul.bf16.gmra.mxu0 %v5715
      %v5804 = vpop.f32.mrf.mxu0
      %v5805 = vadd.f32 0.0, %v5804
      %v5806 = vpop.f32.mrf.mxu0
      %v5807 = vadd.f32 0.0, %v5806
      %5808 = vdwg.mxu0
      %v5809 = vadd.f32 %v5589, %v5730
      %v5810 = vadd.f32 %v5590, %v5732
      %v5811 = vadd.f32 %v5591, %v5735
      %v5812 = vadd.f32 %v5592, %v5737
      %v5813 = vadd.f32 %v5593, %v5740
      %v5814 = vadd.f32 %v5594, %v5742
      %v5815 = vadd.f32 %v5595, %v5745
      %v5816 = vadd.f32 %v5596, %v5747
      %v5817 = vadd.f32 %v5597, %v5750
      %v5818 = vadd.f32 %v5598, %v5752
      %v5819 = vadd.f32 %v5599, %v5755
      %v5820 = vadd.f32 %v5600, %v5757
      %v5821 = vadd.f32 %v5601, %v5760
      %v5822 = vadd.f32 %v5602, %v5762
      %v5823 = vadd.f32 %v5603, %v5765
      %v5824 = vadd.f32 %v5604, %v5767
      %v5825 = vadd.f32 %v5605, %v5770
      %v5826 = vadd.f32 %v5606, %v5772
      %v5827 = vadd.f32 %v5607, %v5775
      %v5828 = vadd.f32 %v5608, %v5777
      %v5829 = vadd.f32 %v5609, %v5780
      %v5830 = vadd.f32 %v5610, %v5782
      %v5831 = vadd.f32 %v5611, %v5785
      %v5832 = vadd.f32 %v5612, %v5787
      %v5833 = vadd.f32 %v5613, %v5790
      %v5834 = vadd.f32 %v5614, %v5792
      %v5835 = vadd.f32 %v5615, %v5795
      %v5836 = vadd.f32 %v5616, %v5797
      %v5837 = vadd.f32 %v5617, %v5800
      %v5838 = vadd.f32 %v5618, %v5802
      %v5839 = vadd.f32 %v5619, %v5805
      %v5840 = vadd.f32 %v5620, %v5807
      %v5841 = vld [vmem:[%s233 + $0x2] sm:$0xff]
      %v5842 = vld [vmem:[%s233 + $0xa] sm:$0xff]
      %v5843 = vld [vmem:[%s233 + $0x1a] sm:$0xff]
      %v5844 = vld [vmem:[%s233 + $0x22] sm:$0xff]
      %v5845 = vld [vmem:[%s233 + $0x32] sm:$0xff]
      %v5846 = vld [vmem:[%s233 + $0x3a] sm:$0xff]
      %v5847 = vld [vmem:[%s233 + $0x4a] sm:$0xff]
      %v5848 = vld [vmem:[%s233 + $0x52] sm:$0xff]
      %v5849 = vld [vmem:[%s233 + $0x62] sm:$0xff]
      %v5850 = vld [vmem:[%s233 + $0x6a] sm:$0xff]
      %v5851 = vld [vmem:[%s233 + $0x7a] sm:$0xff]
      %v5852 = vld [vmem:[%s233 + $0x82] sm:$0xff]
      %v5853 = vld [vmem:[%s233 + $0x92] sm:$0xff]
      %v5854 = vld [vmem:[%s233 + $0x9a] sm:$0xff]
      %v5855 = vld [vmem:[%s233 + $0xaa] sm:$0xff]
      %v5856 = vld [vmem:[%s233 + $0xb2] sm:$0xff]
      %v5857 = vld [vmem:[%s233 + $0xc2] sm:$0xff]
      %v5858 = vld [vmem:[%s233 + $0xca] sm:$0xff]
      %v5859 = vld [vmem:[%s233 + $0xda] sm:$0xff]
      %v5860 = vld [vmem:[%s233 + $0xe2] sm:$0xff]
      %v5861 = vld [vmem:[%s233 + $0xf2] sm:$0xff]
      %v5862 = vld [vmem:[%s233 + $0xfa] sm:$0xff]
      %v5863 = vld [vmem:[%s233 + $0x10a] sm:$0xff]
      %v5864 = vld [vmem:[%s233 + $0x112] sm:$0xff]
      %v5865 = vld [vmem:[%s233 + $0x122] sm:$0xff]
      %v5866 = vld [vmem:[%s233 + $0x12a] sm:$0xff]
      %v5867 = vld [vmem:[%s233 + $0x13a] sm:$0xff]
      %v5868 = vld [vmem:[%s233 + $0x142] sm:$0xff]
      %v5869 = vld [vmem:[%s233 + $0x152] sm:$0xff]
      %v5870 = vld [vmem:[%s233 + $0x15a] sm:$0xff]
      %v5871 = vld [vmem:[%s233 + $0x16a] sm:$0xff]
      %v5872 = vld [vmem:[%s233 + $0x172] sm:$0xff]
      %v5873 = vpack.c.bf16 %v5842, %v5841
      %v5874 = vpack.c.bf16 %v5844, %v5843
      %v5875 = vpack.c.bf16 %v5846, %v5845
      %v5876 = vpack.c.bf16 %v5848, %v5847
      %v5877 = vpack.c.bf16 %v5850, %v5849
      %v5878 = vpack.c.bf16 %v5852, %v5851
      %v5879 = vpack.c.bf16 %v5854, %v5853
      %v5880 = vpack.c.bf16 %v5856, %v5855
      %v5881 = vpack.c.bf16 %v5858, %v5857
      %v5882 = vpack.c.bf16 %v5860, %v5859
      %v5883 = vpack.c.bf16 %v5862, %v5861
      %v5884 = vpack.c.bf16 %v5864, %v5863
      %v5885 = vpack.c.bf16 %v5866, %v5865
      %v5886 = vpack.c.bf16 %v5868, %v5867
      %v5887 = vpack.c.bf16 %v5870, %v5869
      %v5888 = vpack.c.bf16 %v5872, %v5871
      %v5890 = vunpack.c.l.b16 %v4757
      %v5891 = vpack.c.b16 %v5890, %v5890
      %v5892 = vrot.slane %v5891, 2
      %v5894 = vsel %vm145, %v5873, 0
      %v5897 = vsel %vm145, %v5874, 0
      %v5900 = vsel %vm145, %v5875, 0
      %v5903 = vsel %vm145, %v5876, 0
      %v5906 = vsel %vm145, %v5877, 0
      %v5909 = vsel %vm145, %v5878, 0
      %v5912 = vsel %vm145, %v5879, 0
      %v5915 = vsel %vm145, %v5880, 0
      %v5918 = vsel %vm145, %v5881, 0
      %v5921 = vsel %vm145, %v5882, 0
      %v5924 = vsel %vm145, %v5883, 0
      %v5927 = vsel %vm145, %v5884, 0
      %v5930 = vsel %vm145, %v5885, 0
      %v5933 = vsel %vm145, %v5886, 0
      %v5936 = vsel %vm145, %v5887, 0
      %v5939 = vsel %vm145, %v5888, 0
      %v5942 = vsel %vm414, %v5892, 0
      %5944 = vmatpush.bf16.msra.mxu0 0
      %5945 = vmatpush.bf16.msra.mxu0 0
      %5946 = vmatpush.bf16.msra.mxu0 0
      %5947 = vmatpush.bf16.msra.mxu0 0
      %5948 = vmatpush.bf16.msra.mxu0 0
      %5949 = vmatpush.bf16.msra.mxu0 0
      %5950 = vmatpush.bf16.msra.mxu0 0
      %5951 = vmatpush.bf16.msra.mxu0 %v5942
      %5952 = vmatmul.bf16.gmra.mxu0 %v5894
      %v5953 = vpop.f32.mrf.mxu0
      %v5954 = vadd.f32 0.0, %v5953
      %v5955 = vpop.f32.mrf.mxu0
      %v5956 = vadd.f32 0.0, %v5955
      %5957 = vmatmul.bf16.gmra.mxu0 %v5897
      %v5958 = vpop.f32.mrf.mxu0
      %v5959 = vadd.f32 0.0, %v5958
      %v5960 = vpop.f32.mrf.mxu0
      %v5961 = vadd.f32 0.0, %v5960
      %5962 = vmatmul.bf16.gmra.mxu0 %v5900
      %v5963 = vpop.f32.mrf.mxu0
      %v5964 = vadd.f32 0.0, %v5963
      %v5965 = vpop.f32.mrf.mxu0
      %v5966 = vadd.f32 0.0, %v5965
      %5967 = vmatmul.bf16.gmra.mxu0 %v5903
      %v5968 = vpop.f32.mrf.mxu0
      %v5969 = vadd.f32 0.0, %v5968
      %v5970 = vpop.f32.mrf.mxu0
      %v5971 = vadd.f32 0.0, %v5970
      %5972 = vmatmul.bf16.gmra.mxu0 %v5906
      %v5973 = vpop.f32.mrf.mxu0
      %v5974 = vadd.f32 0.0, %v5973
      %v5975 = vpop.f32.mrf.mxu0
      %v5976 = vadd.f32 0.0, %v5975
      %5977 = vmatmul.bf16.gmra.mxu0 %v5909
      %v5978 = vpop.f32.mrf.mxu0
      %v5979 = vadd.f32 0.0, %v5978
      %v5980 = vpop.f32.mrf.mxu0
      %v5981 = vadd.f32 0.0, %v5980
      %5982 = vmatmul.bf16.gmra.mxu0 %v5912
      %v5983 = vpop.f32.mrf.mxu0
      %v5984 = vadd.f32 0.0, %v5983
      %v5985 = vpop.f32.mrf.mxu0
      %v5986 = vadd.f32 0.0, %v5985
      %5987 = vmatmul.bf16.gmra.mxu0 %v5915
      %v5988 = vpop.f32.mrf.mxu0
      %v5989 = vadd.f32 0.0, %v5988
      %v5990 = vpop.f32.mrf.mxu0
      %v5991 = vadd.f32 0.0, %v5990
      %5992 = vmatmul.bf16.gmra.mxu0 %v5918
      %v5993 = vpop.f32.mrf.mxu0
      %v5994 = vadd.f32 0.0, %v5993
      %v5995 = vpop.f32.mrf.mxu0
      %v5996 = vadd.f32 0.0, %v5995
      %5997 = vmatmul.bf16.gmra.mxu0 %v5921
      %v5998 = vpop.f32.mrf.mxu0
      %v5999 = vadd.f32 0.0, %v5998
      %v6000 = vpop.f32.mrf.mxu0
      %v6001 = vadd.f32 0.0, %v6000
      %6002 = vmatmul.bf16.gmra.mxu0 %v5924
      %v6003 = vpop.f32.mrf.mxu0
      %v6004 = vadd.f32 0.0, %v6003
      %v6005 = vpop.f32.mrf.mxu0
      %v6006 = vadd.f32 0.0, %v6005
      %6007 = vmatmul.bf16.gmra.mxu0 %v5927
      %v6008 = vpop.f32.mrf.mxu0
      %v6009 = vadd.f32 0.0, %v6008
      %v6010 = vpop.f32.mrf.mxu0
      %v6011 = vadd.f32 0.0, %v6010
      %6012 = vmatmul.bf16.gmra.mxu0 %v5930
      %v6013 = vpop.f32.mrf.mxu0
      %v6014 = vadd.f32 0.0, %v6013
      %v6015 = vpop.f32.mrf.mxu0
      %v6016 = vadd.f32 0.0, %v6015
      %6017 = vmatmul.bf16.gmra.mxu0 %v5933
      %v6018 = vpop.f32.mrf.mxu0
      %v6019 = vadd.f32 0.0, %v6018
      %v6020 = vpop.f32.mrf.mxu0
      %v6021 = vadd.f32 0.0, %v6020
      %6022 = vmatmul.bf16.gmra.mxu0 %v5936
      %v6023 = vpop.f32.mrf.mxu0
      %v6024 = vadd.f32 0.0, %v6023
      %v6025 = vpop.f32.mrf.mxu0
      %v6026 = vadd.f32 0.0, %v6025
      %6027 = vmatmul.bf16.gmra.mxu0 %v5939
      %v6028 = vpop.f32.mrf.mxu0
      %v6029 = vadd.f32 0.0, %v6028
      %v6030 = vpop.f32.mrf.mxu0
      %v6031 = vadd.f32 0.0, %v6030
      %6032 = vdwg.mxu0
      %v6033 = vadd.f32 %v5809, %v5954
      %v6034 = vadd.f32 %v5810, %v5956
      %v6035 = vadd.f32 %v5811, %v5959
      %v6036 = vadd.f32 %v5812, %v5961
      %v6037 = vadd.f32 %v5813, %v5964
      %v6038 = vadd.f32 %v5814, %v5966
      %v6039 = vadd.f32 %v5815, %v5969
      %v6040 = vadd.f32 %v5816, %v5971
      %v6041 = vadd.f32 %v5817, %v5974
      %v6042 = vadd.f32 %v5818, %v5976
      %v6043 = vadd.f32 %v5819, %v5979
      %v6044 = vadd.f32 %v5820, %v5981
      %v6045 = vadd.f32 %v5821, %v5984
      %v6046 = vadd.f32 %v5822, %v5986
      %v6047 = vadd.f32 %v5823, %v5989
      %v6048 = vadd.f32 %v5824, %v5991
      %v6049 = vadd.f32 %v5825, %v5994
      %v6050 = vadd.f32 %v5826, %v5996
      %v6051 = vadd.f32 %v5827, %v5999
      %v6052 = vadd.f32 %v5828, %v6001
      %v6053 = vadd.f32 %v5829, %v6004
      %v6054 = vadd.f32 %v5830, %v6006
      %v6055 = vadd.f32 %v5831, %v6009
      %v6056 = vadd.f32 %v5832, %v6011
      %v6057 = vadd.f32 %v5833, %v6014
      %v6058 = vadd.f32 %v5834, %v6016
      %v6059 = vadd.f32 %v5835, %v6019
      %v6060 = vadd.f32 %v5836, %v6021
      %v6061 = vadd.f32 %v5837, %v6024
      %v6062 = vadd.f32 %v5838, %v6026
      %v6063 = vadd.f32 %v5839, %v6029
      %v6064 = vadd.f32 %v5840, %v6031
      %v6065 = vld [vmem:[%s1535] sm:$0xff]
      %v6066 = vld [vmem:[%s1535 + $0x8] sm:$0xff]
      %v6067 = vld [vmem:[%s1535 + $0x18] sm:$0xff]
      %v6068 = vld [vmem:[%s1535 + $0x20] sm:$0xff]
      %v6069 = vld [vmem:[%s1535 + $0x30] sm:$0xff]
      %v6070 = vld [vmem:[%s1535 + $0x38] sm:$0xff]
      %v6071 = vld [vmem:[%s1535 + $0x48] sm:$0xff]
      %v6072 = vld [vmem:[%s1535 + $0x50] sm:$0xff]
      %v6073 = vld [vmem:[%s1535 + $0x60] sm:$0xff]
      %v6074 = vld [vmem:[%s1535 + $0x68] sm:$0xff]
      %v6075 = vld [vmem:[%s1535 + $0x78] sm:$0xff]
      %v6076 = vld [vmem:[%s1535 + $0x80] sm:$0xff]
      %v6077 = vld [vmem:[%s1535 + $0x90] sm:$0xff]
      %v6078 = vld [vmem:[%s1535 + $0x98] sm:$0xff]
      %v6079 = vld [vmem:[%s1535 + $0xa8] sm:$0xff]
      %v6080 = vld [vmem:[%s1535 + $0xb0] sm:$0xff]
      %v6081 = vld [vmem:[%s1535 + $0xc0] sm:$0xff]
      %v6082 = vld [vmem:[%s1535 + $0xc8] sm:$0xff]
      %v6083 = vld [vmem:[%s1535 + $0xd8] sm:$0xff]
      %v6084 = vld [vmem:[%s1535 + $0xe0] sm:$0xff]
      %v6085 = vld [vmem:[%s1535 + $0xf0] sm:$0xff]
      %v6086 = vld [vmem:[%s1535 + $0xf8] sm:$0xff]
      %v6087 = vld [vmem:[%s1535 + $0x108] sm:$0xff]
      %v6088 = vld [vmem:[%s1535 + $0x110] sm:$0xff]
      %v6089 = vld [vmem:[%s1535 + $0x120] sm:$0xff]
      %v6090 = vld [vmem:[%s1535 + $0x128] sm:$0xff]
      %v6091 = vld [vmem:[%s1535 + $0x138] sm:$0xff]
      %v6092 = vld [vmem:[%s1535 + $0x140] sm:$0xff]
      %v6093 = vld [vmem:[%s1535 + $0x150] sm:$0xff]
      %v6094 = vld [vmem:[%s1535 + $0x158] sm:$0xff]
      %v6095 = vld [vmem:[%s1535 + $0x168] sm:$0xff]
      %v6096 = vld [vmem:[%s1535 + $0x170] sm:$0xff]
      %v6097 = vpack.c.bf16 %v6066, %v6065
      %v6098 = vpack.c.bf16 %v6068, %v6067
      %v6099 = vpack.c.bf16 %v6070, %v6069
      %v6100 = vpack.c.bf16 %v6072, %v6071
      %v6101 = vpack.c.bf16 %v6074, %v6073
      %v6102 = vpack.c.bf16 %v6076, %v6075
      %v6103 = vpack.c.bf16 %v6078, %v6077
      %v6104 = vpack.c.bf16 %v6080, %v6079
      %v6105 = vpack.c.bf16 %v6082, %v6081
      %v6106 = vpack.c.bf16 %v6084, %v6083
      %v6107 = vpack.c.bf16 %v6086, %v6085
      %v6108 = vpack.c.bf16 %v6088, %v6087
      %v6109 = vpack.c.bf16 %v6090, %v6089
      %v6110 = vpack.c.bf16 %v6092, %v6091
      %v6111 = vpack.c.bf16 %v6094, %v6093
      %v6112 = vpack.c.bf16 %v6096, %v6095
      %v6114 = vsel %vm145, %v6097, 0
      %v6117 = vsel %vm145, %v6098, 0
      %v6120 = vsel %vm145, %v6099, 0
      %v6123 = vsel %vm145, %v6100, 0
      %v6126 = vsel %vm145, %v6101, 0
      %v6129 = vsel %vm145, %v6102, 0
      %v6132 = vsel %vm145, %v6103, 0
      %v6135 = vsel %vm145, %v6104, 0
      %v6138 = vsel %vm145, %v6105, 0
      %v6141 = vsel %vm145, %v6106, 0
      %v6144 = vsel %vm145, %v6107, 0
      %v6147 = vsel %vm145, %v6108, 0
      %v6150 = vsel %vm145, %v6109, 0
      %v6153 = vsel %vm145, %v6110, 0
      %v6156 = vsel %vm145, %v6111, 0
      %v6159 = vsel %vm145, %v6112, 0
      %v6162 = vsel %vm414, %v4758, 0
      %6164 = vmatpush.bf16.msra.mxu0 0
      %6165 = vmatpush.bf16.msra.mxu0 0
      %6166 = vmatpush.bf16.msra.mxu0 0
      %6167 = vmatpush.bf16.msra.mxu0 0
      %6168 = vmatpush.bf16.msra.mxu0 0
      %6169 = vmatpush.bf16.msra.mxu0 0
      %6170 = vmatpush.bf16.msra.mxu0 0
      %6171 = vmatpush.bf16.msra.mxu0 %v6162
      %6172 = vmatmul.bf16.gmra.mxu0 %v6114
      %v6173 = vpop.f32.mrf.mxu0
      %v6174 = vadd.f32 0.0, %v6173
      %v6175 = vpop.f32.mrf.mxu0
      %v6176 = vadd.f32 0.0, %v6175
      %6177 = vmatmul.bf16.gmra.mxu0 %v6117
      %v6178 = vpop.f32.mrf.mxu0
      %v6179 = vadd.f32 0.0, %v6178
      %v6180 = vpop.f32.mrf.mxu0
      %v6181 = vadd.f32 0.0, %v6180
      %6182 = vmatmul.bf16.gmra.mxu0 %v6120
      %v6183 = vpop.f32.mrf.mxu0
      %v6184 = vadd.f32 0.0, %v6183
      %v6185 = vpop.f32.mrf.mxu0
      %v6186 = vadd.f32 0.0, %v6185
      %6187 = vmatmul.bf16.gmra.mxu0 %v6123
      %v6188 = vpop.f32.mrf.mxu0
      %v6189 = vadd.f32 0.0, %v6188
      %v6190 = vpop.f32.mrf.mxu0
      %v6191 = vadd.f32 0.0, %v6190
      %6192 = vmatmul.bf16.gmra.mxu0 %v6126
      %v6193 = vpop.f32.mrf.mxu0
      %v6194 = vadd.f32 0.0, %v6193
      %v6195 = vpop.f32.mrf.mxu0
      %v6196 = vadd.f32 0.0, %v6195
      %6197 = vmatmul.bf16.gmra.mxu0 %v6129
      %v6198 = vpop.f32.mrf.mxu0
      %v6199 = vadd.f32 0.0, %v6198
      %v6200 = vpop.f32.mrf.mxu0
      %v6201 = vadd.f32 0.0, %v6200
      %6202 = vmatmul.bf16.gmra.mxu0 %v6132
      %v6203 = vpop.f32.mrf.mxu0
      %v6204 = vadd.f32 0.0, %v6203
      %v6205 = vpop.f32.mrf.mxu0
      %v6206 = vadd.f32 0.0, %v6205
      %6207 = vmatmul.bf16.gmra.mxu0 %v6135
      %v6208 = vpop.f32.mrf.mxu0
      %v6209 = vadd.f32 0.0, %v6208
      %v6210 = vpop.f32.mrf.mxu0
      %v6211 = vadd.f32 0.0, %v6210
      %6212 = vmatmul.bf16.gmra.mxu0 %v6138
      %v6213 = vpop.f32.mrf.mxu0
      %v6214 = vadd.f32 0.0, %v6213
      %v6215 = vpop.f32.mrf.mxu0
      %v6216 = vadd.f32 0.0, %v6215
      %6217 = vmatmul.bf16.gmra.mxu0 %v6141
      %v6218 = vpop.f32.mrf.mxu0
      %v6219 = vadd.f32 0.0, %v6218
      %v6220 = vpop.f32.mrf.mxu0
      %v6221 = vadd.f32 0.0, %v6220
      %6222 = vmatmul.bf16.gmra.mxu0 %v6144
      %v6223 = vpop.f32.mrf.mxu0
      %v6224 = vadd.f32 0.0, %v6223
      %v6225 = vpop.f32.mrf.mxu0
      %v6226 = vadd.f32 0.0, %v6225
      %6227 = vmatmul.bf16.gmra.mxu0 %v6147
      %v6228 = vpop.f32.mrf.mxu0
      %v6229 = vadd.f32 0.0, %v6228
      %v6230 = vpop.f32.mrf.mxu0
      %v6231 = vadd.f32 0.0, %v6230
      %6232 = vmatmul.bf16.gmra.mxu0 %v6150
      %v6233 = vpop.f32.mrf.mxu0
      %v6234 = vadd.f32 0.0, %v6233
      %v6235 = vpop.f32.mrf.mxu0
      %v6236 = vadd.f32 0.0, %v6235
      %6237 = vmatmul.bf16.gmra.mxu0 %v6153
      %v6238 = vpop.f32.mrf.mxu0
      %v6239 = vadd.f32 0.0, %v6238
      %v6240 = vpop.f32.mrf.mxu0
      %v6241 = vadd.f32 0.0, %v6240
      %6242 = vmatmul.bf16.gmra.mxu0 %v6156
      %v6243 = vpop.f32.mrf.mxu0
      %v6244 = vadd.f32 0.0, %v6243
      %v6245 = vpop.f32.mrf.mxu0
      %v6246 = vadd.f32 0.0, %v6245
      %6247 = vmatmul.bf16.gmra.mxu0 %v6159
      %v6248 = vpop.f32.mrf.mxu0
      %v6249 = vadd.f32 0.0, %v6248
      %v6250 = vpop.f32.mrf.mxu0
      %v6251 = vadd.f32 0.0, %v6250
      %6252 = vdwg.mxu0
      %v6253 = vadd.f32 %v6033, %v6174
      %v6254 = vadd.f32 %v6034, %v6176
      %v6255 = vadd.f32 %v6035, %v6179
      %v6256 = vadd.f32 %v6036, %v6181
      %v6257 = vadd.f32 %v6037, %v6184
      %v6258 = vadd.f32 %v6038, %v6186
      %v6259 = vadd.f32 %v6039, %v6189
      %v6260 = vadd.f32 %v6040, %v6191
      %v6261 = vadd.f32 %v6041, %v6194
      %v6262 = vadd.f32 %v6042, %v6196
      %v6263 = vadd.f32 %v6043, %v6199
      %v6264 = vadd.f32 %v6044, %v6201
      %v6265 = vadd.f32 %v6045, %v6204
      %v6266 = vadd.f32 %v6046, %v6206
      %v6267 = vadd.f32 %v6047, %v6209
      %v6268 = vadd.f32 %v6048, %v6211
      %v6269 = vadd.f32 %v6049, %v6214
      %v6270 = vadd.f32 %v6050, %v6216
      %v6271 = vadd.f32 %v6051, %v6219
      %v6272 = vadd.f32 %v6052, %v6221
      %v6273 = vadd.f32 %v6053, %v6224
      %v6274 = vadd.f32 %v6054, %v6226
      %v6275 = vadd.f32 %v6055, %v6229
      %v6276 = vadd.f32 %v6056, %v6231
      %v6277 = vadd.f32 %v6057, %v6234
      %v6278 = vadd.f32 %v6058, %v6236
      %v6279 = vadd.f32 %v6059, %v6239
      %v6280 = vadd.f32 %v6060, %v6241
      %v6281 = vadd.f32 %v6061, %v6244
      %v6282 = vadd.f32 %v6062, %v6246
      %v6283 = vadd.f32 %v6063, %v6249
      %v6284 = vadd.f32 %v6064, %v6251
      %v6285 = vld [vmem:[%s1535 + $0x1] sm:$0xff]
      %v6286 = vld [vmem:[%s1535 + $0x9] sm:$0xff]
      %v6287 = vld [vmem:[%s1535 + $0x19] sm:$0xff]
      %v6288 = vld [vmem:[%s1535 + $0x21] sm:$0xff]
      %v6289 = vld [vmem:[%s1535 + $0x31] sm:$0xff]
      %v6290 = vld [vmem:[%s1535 + $0x39] sm:$0xff]
      %v6291 = vld [vmem:[%s1535 + $0x49] sm:$0xff]
      %v6292 = vld [vmem:[%s1535 + $0x51] sm:$0xff]
      %v6293 = vld [vmem:[%s1535 + $0x61] sm:$0xff]
      %v6294 = vld [vmem:[%s1535 + $0x69] sm:$0xff]
      %v6295 = vld [vmem:[%s1535 + $0x79] sm:$0xff]
      %v6296 = vld [vmem:[%s1535 + $0x81] sm:$0xff]
      %v6297 = vld [vmem:[%s1535 + $0x91] sm:$0xff]
      %v6298 = vld [vmem:[%s1535 + $0x99] sm:$0xff]
      %v6299 = vld [vmem:[%s1535 + $0xa9] sm:$0xff]
      %v6300 = vld [vmem:[%s1535 + $0xb1] sm:$0xff]
      %v6301 = vld [vmem:[%s1535 + $0xc1] sm:$0xff]
      %v6302 = vld [vmem:[%s1535 + $0xc9] sm:$0xff]
      %v6303 = vld [vmem:[%s1535 + $0xd9] sm:$0xff]
      %v6304 = vld [vmem:[%s1535 + $0xe1] sm:$0xff]
      %v6305 = vld [vmem:[%s1535 + $0xf1] sm:$0xff]
      %v6306 = vld [vmem:[%s1535 + $0xf9] sm:$0xff]
      %v6307 = vld [vmem:[%s1535 + $0x109] sm:$0xff]
      %v6308 = vld [vmem:[%s1535 + $0x111] sm:$0xff]
      %v6309 = vld [vmem:[%s1535 + $0x121] sm:$0xff]
      %v6310 = vld [vmem:[%s1535 + $0x129] sm:$0xff]
      %v6311 = vld [vmem:[%s1535 + $0x139] sm:$0xff]
      %v6312 = vld [vmem:[%s1535 + $0x141] sm:$0xff]
      %v6313 = vld [vmem:[%s1535 + $0x151] sm:$0xff]
      %v6314 = vld [vmem:[%s1535 + $0x159] sm:$0xff]
      %v6315 = vld [vmem:[%s1535 + $0x169] sm:$0xff]
      %v6316 = vld [vmem:[%s1535 + $0x171] sm:$0xff]
      %v6317 = vpack.c.bf16 %v6286, %v6285
      %v6318 = vpack.c.bf16 %v6288, %v6287
      %v6319 = vpack.c.bf16 %v6290, %v6289
      %v6320 = vpack.c.bf16 %v6292, %v6291
      %v6321 = vpack.c.bf16 %v6294, %v6293
      %v6322 = vpack.c.bf16 %v6296, %v6295
      %v6323 = vpack.c.bf16 %v6298, %v6297
      %v6324 = vpack.c.bf16 %v6300, %v6299
      %v6325 = vpack.c.bf16 %v6302, %v6301
      %v6326 = vpack.c.bf16 %v6304, %v6303
      %v6327 = vpack.c.bf16 %v6306, %v6305
      %v6328 = vpack.c.bf16 %v6308, %v6307
      %v6329 = vpack.c.bf16 %v6310, %v6309
      %v6330 = vpack.c.bf16 %v6312, %v6311
      %v6331 = vpack.c.bf16 %v6314, %v6313
      %v6332 = vpack.c.bf16 %v6316, %v6315
      %v6334 = vunpack.c.l.b16 %v4758
      %v6335 = vpack.c.b16 %v6334, %v6334
      %v6336 = vrot.slane %v6335, 2
      %v6338 = vsel %vm145, %v6317, 0
      %v6341 = vsel %vm145, %v6318, 0
      %v6344 = vsel %vm145, %v6319, 0
      %v6347 = vsel %vm145, %v6320, 0
      %v6350 = vsel %vm145, %v6321, 0
      %v6353 = vsel %vm145, %v6322, 0
      %v6356 = vsel %vm145, %v6323, 0
      %v6359 = vsel %vm145, %v6324, 0
      %v6362 = vsel %vm145, %v6325, 0
      %v6365 = vsel %vm145, %v6326, 0
      %v6368 = vsel %vm145, %v6327, 0
      %v6371 = vsel %vm145, %v6328, 0
      %v6374 = vsel %vm145, %v6329, 0
      %v6377 = vsel %vm145, %v6330, 0
      %v6380 = vsel %vm145, %v6331, 0
      %v6383 = vsel %vm145, %v6332, 0
      %v6386 = vsel %vm414, %v6336, 0
      %6388 = vmatpush.bf16.msra.mxu0 0
      %6389 = vmatpush.bf16.msra.mxu0 0
      %6390 = vmatpush.bf16.msra.mxu0 0
      %6391 = vmatpush.bf16.msra.mxu0 0
      %6392 = vmatpush.bf16.msra.mxu0 0
      %6393 = vmatpush.bf16.msra.mxu0 0
      %6394 = vmatpush.bf16.msra.mxu0 0
      %6395 = vmatpush.bf16.msra.mxu0 %v6386
      %6396 = vmatmul.bf16.gmra.mxu0 %v6338
      %v6397 = vpop.f32.mrf.mxu0
      %v6398 = vadd.f32 0.0, %v6397
      %v6399 = vpop.f32.mrf.mxu0
      %v6400 = vadd.f32 0.0, %v6399
      %6401 = vmatmul.bf16.gmra.mxu0 %v6341
      %v6402 = vpop.f32.mrf.mxu0
      %v6403 = vadd.f32 0.0, %v6402
      %v6404 = vpop.f32.mrf.mxu0
      %v6405 = vadd.f32 0.0, %v6404
      %6406 = vmatmul.bf16.gmra.mxu0 %v6344
      %v6407 = vpop.f32.mrf.mxu0
      %v6408 = vadd.f32 0.0, %v6407
      %v6409 = vpop.f32.mrf.mxu0
      %v6410 = vadd.f32 0.0, %v6409
      %6411 = vmatmul.bf16.gmra.mxu0 %v6347
      %v6412 = vpop.f32.mrf.mxu0
      %v6413 = vadd.f32 0.0, %v6412
      %v6414 = vpop.f32.mrf.mxu0
      %v6415 = vadd.f32 0.0, %v6414
      %6416 = vmatmul.bf16.gmra.mxu0 %v6350
      %v6417 = vpop.f32.mrf.mxu0
      %v6418 = vadd.f32 0.0, %v6417
      %v6419 = vpop.f32.mrf.mxu0
      %v6420 = vadd.f32 0.0, %v6419
      %6421 = vmatmul.bf16.gmra.mxu0 %v6353
      %v6422 = vpop.f32.mrf.mxu0
      %v6423 = vadd.f32 0.0, %v6422
      %v6424 = vpop.f32.mrf.mxu0
      %v6425 = vadd.f32 0.0, %v6424
      %6426 = vmatmul.bf16.gmra.mxu0 %v6356
      %v6427 = vpop.f32.mrf.mxu0
      %v6428 = vadd.f32 0.0, %v6427
      %v6429 = vpop.f32.mrf.mxu0
      %v6430 = vadd.f32 0.0, %v6429
      %6431 = vmatmul.bf16.gmra.mxu0 %v6359
      %v6432 = vpop.f32.mrf.mxu0
      %v6433 = vadd.f32 0.0, %v6432
      %v6434 = vpop.f32.mrf.mxu0
      %v6435 = vadd.f32 0.0, %v6434
      %6436 = vmatmul.bf16.gmra.mxu0 %v6362
      %v6437 = vpop.f32.mrf.mxu0
      %v6438 = vadd.f32 0.0, %v6437
      %v6439 = vpop.f32.mrf.mxu0
      %v6440 = vadd.f32 0.0, %v6439
      %6441 = vmatmul.bf16.gmra.mxu0 %v6365
      %v6442 = vpop.f32.mrf.mxu0
      %v6443 = vadd.f32 0.0, %v6442
      %v6444 = vpop.f32.mrf.mxu0
      %v6445 = vadd.f32 0.0, %v6444
      %6446 = vmatmul.bf16.gmra.mxu0 %v6368
      %v6447 = vpop.f32.mrf.mxu0
      %v6448 = vadd.f32 0.0, %v6447
      %v6449 = vpop.f32.mrf.mxu0
      %v6450 = vadd.f32 0.0, %v6449
      %6451 = vmatmul.bf16.gmra.mxu0 %v6371
      %v6452 = vpop.f32.mrf.mxu0
      %v6453 = vadd.f32 0.0, %v6452
      %v6454 = vpop.f32.mrf.mxu0
      %v6455 = vadd.f32 0.0, %v6454
      %6456 = vmatmul.bf16.gmra.mxu0 %v6374
      %v6457 = vpop.f32.mrf.mxu0
      %v6458 = vadd.f32 0.0, %v6457
      %v6459 = vpop.f32.mrf.mxu0
      %v6460 = vadd.f32 0.0, %v6459
      %6461 = vmatmul.bf16.gmra.mxu0 %v6377
      %v6462 = vpop.f32.mrf.mxu0
      %v6463 = vadd.f32 0.0, %v6462
      %v6464 = vpop.f32.mrf.mxu0
      %v6465 = vadd.f32 0.0, %v6464
      %6466 = vmatmul.bf16.gmra.mxu0 %v6380
      %v6467 = vpop.f32.mrf.mxu0
      %v6468 = vadd.f32 0.0, %v6467
      %v6469 = vpop.f32.mrf.mxu0
      %v6470 = vadd.f32 0.0, %v6469
      %6471 = vmatmul.bf16.gmra.mxu0 %v6383
      %v6472 = vpop.f32.mrf.mxu0
      %v6473 = vadd.f32 0.0, %v6472
      %v6474 = vpop.f32.mrf.mxu0
      %v6475 = vadd.f32 0.0, %v6474
      %6476 = vdwg.mxu0
      %v6477 = vadd.f32 %v6253, %v6398
      %v6478 = vadd.f32 %v6254, %v6400
      %v6479 = vadd.f32 %v6255, %v6403
      %v6480 = vadd.f32 %v6256, %v6405
      %v6481 = vadd.f32 %v6257, %v6408
      %v6482 = vadd.f32 %v6258, %v6410
      %v6483 = vadd.f32 %v6259, %v6413
      %v6484 = vadd.f32 %v6260, %v6415
      %v6485 = vadd.f32 %v6261, %v6418
      %v6486 = vadd.f32 %v6262, %v6420
      %v6487 = vadd.f32 %v6263, %v6423
      %v6488 = vadd.f32 %v6264, %v6425
      %v6489 = vadd.f32 %v6265, %v6428
      %v6490 = vadd.f32 %v6266, %v6430
      %v6491 = vadd.f32 %v6267, %v6433
      %v6492 = vadd.f32 %v6268, %v6435
      %v6493 = vadd.f32 %v6269, %v6438
      %v6494 = vadd.f32 %v6270, %v6440
      %v6495 = vadd.f32 %v6271, %v6443
      %v6496 = vadd.f32 %v6272, %v6445
      %v6497 = vadd.f32 %v6273, %v6448
      %v6498 = vadd.f32 %v6274, %v6450
      %v6499 = vadd.f32 %v6275, %v6453
      %v6500 = vadd.f32 %v6276, %v6455
      %v6501 = vadd.f32 %v6277, %v6458
      %v6502 = vadd.f32 %v6278, %v6460
      %v6503 = vadd.f32 %v6279, %v6463
      %v6504 = vadd.f32 %v6280, %v6465
      %v6505 = vadd.f32 %v6281, %v6468
      %v6506 = vadd.f32 %v6282, %v6470
      %v6507 = vadd.f32 %v6283, %v6473
      %v6508 = vadd.f32 %v6284, %v6475
      %v6509 = vld [vmem:[%s1535 + $0x2] sm:$0xff]
      %v6510 = vld [vmem:[%s1535 + $0xa] sm:$0xff]
      %v6511 = vld [vmem:[%s1535 + $0x1a] sm:$0xff]
      %v6512 = vld [vmem:[%s1535 + $0x22] sm:$0xff]
      %v6513 = vld [vmem:[%s1535 + $0x32] sm:$0xff]
      %v6514 = vld [vmem:[%s1535 + $0x3a] sm:$0xff]
      %v6515 = vld [vmem:[%s1535 + $0x4a] sm:$0xff]
      %v6516 = vld [vmem:[%s1535 + $0x52] sm:$0xff]
      %v6517 = vld [vmem:[%s1535 + $0x62] sm:$0xff]
      %v6518 = vld [vmem:[%s1535 + $0x6a] sm:$0xff]
      %v6519 = vld [vmem:[%s1535 + $0x7a] sm:$0xff]
      %v6520 = vld [vmem:[%s1535 + $0x82] sm:$0xff]
      %v6521 = vld [vmem:[%s1535 + $0x92] sm:$0xff]
      %v6522 = vld [vmem:[%s1535 + $0x9a] sm:$0xff]
      %v6523 = vld [vmem:[%s1535 + $0xaa] sm:$0xff]
      %v6524 = vld [vmem:[%s1535 + $0xb2] sm:$0xff]
      %v6525 = vld [vmem:[%s1535 + $0xc2] sm:$0xff]
      %v6526 = vld [vmem:[%s1535 + $0xca] sm:$0xff]
      %v6527 = vld [vmem:[%s1535 + $0xda] sm:$0xff]
      %v6528 = vld [vmem:[%s1535 + $0xe2] sm:$0xff]
      %v6529 = vld [vmem:[%s1535 + $0xf2] sm:$0xff]
      %v6530 = vld [vmem:[%s1535 + $0xfa] sm:$0xff]
      %v6531 = vld [vmem:[%s1535 + $0x10a] sm:$0xff]
      %v6532 = vld [vmem:[%s1535 + $0x112] sm:$0xff]
      %v6533 = vld [vmem:[%s1535 + $0x122] sm:$0xff]
      %v6534 = vld [vmem:[%s1535 + $0x12a] sm:$0xff]
      %v6535 = vld [vmem:[%s1535 + $0x13a] sm:$0xff]
      %v6536 = vld [vmem:[%s1535 + $0x142] sm:$0xff]
      %v6537 = vld [vmem:[%s1535 + $0x152] sm:$0xff]
      %v6538 = vld [vmem:[%s1535 + $0x15a] sm:$0xff]
      %v6539 = vld [vmem:[%s1535 + $0x16a] sm:$0xff]
      %v6540 = vld [vmem:[%s1535 + $0x172] sm:$0xff]
      %v6541 = vpack.c.bf16 %v6510, %v6509
      %v6542 = vpack.c.bf16 %v6512, %v6511
      %v6543 = vpack.c.bf16 %v6514, %v6513
      %v6544 = vpack.c.bf16 %v6516, %v6515
      %v6545 = vpack.c.bf16 %v6518, %v6517
      %v6546 = vpack.c.bf16 %v6520, %v6519
      %v6547 = vpack.c.bf16 %v6522, %v6521
      %v6548 = vpack.c.bf16 %v6524, %v6523
      %v6549 = vpack.c.bf16 %v6526, %v6525
      %v6550 = vpack.c.bf16 %v6528, %v6527
      %v6551 = vpack.c.bf16 %v6530, %v6529
      %v6552 = vpack.c.bf16 %v6532, %v6531
      %v6553 = vpack.c.bf16 %v6534, %v6533
      %v6554 = vpack.c.bf16 %v6536, %v6535
      %v6555 = vpack.c.bf16 %v6538, %v6537
      %v6556 = vpack.c.bf16 %v6540, %v6539
      %v6558 = vsel %vm145, %v6541, 0
      %v6561 = vsel %vm145, %v6542, 0
      %v6564 = vsel %vm145, %v6543, 0
      %v6567 = vsel %vm145, %v6544, 0
      %v6570 = vsel %vm145, %v6545, 0
      %v6573 = vsel %vm145, %v6546, 0
      %v6576 = vsel %vm145, %v6547, 0
      %v6579 = vsel %vm145, %v6548, 0
      %v6582 = vsel %vm145, %v6549, 0
      %v6585 = vsel %vm145, %v6550, 0
      %v6588 = vsel %vm145, %v6551, 0
      %v6591 = vsel %vm145, %v6552, 0
      %v6594 = vsel %vm145, %v6553, 0
      %v6597 = vsel %vm145, %v6554, 0
      %v6600 = vsel %vm145, %v6555, 0
      %v6603 = vsel %vm145, %v6556, 0
      %v6606 = vsel %vm414, %v4759, 0
      %6608 = vmatpush.bf16.msra.mxu0 0
      %6609 = vmatpush.bf16.msra.mxu0 0
      %6610 = vmatpush.bf16.msra.mxu0 0
      %6611 = vmatpush.bf16.msra.mxu0 0
      %6612 = vmatpush.bf16.msra.mxu0 0
      %6613 = vmatpush.bf16.msra.mxu0 0
      %6614 = vmatpush.bf16.msra.mxu0 0
      %6615 = vmatpush.bf16.msra.mxu0 %v6606
      %6616 = vmatmul.bf16.gmra.mxu0 %v6558
      %v6617 = vpop.f32.mrf.mxu0
      %v6618 = vadd.f32 0.0, %v6617
      %v6619 = vpop.f32.mrf.mxu0
      %v6620 = vadd.f32 0.0, %v6619
      %6621 = vmatmul.bf16.gmra.mxu0 %v6561
      %v6622 = vpop.f32.mrf.mxu0
      %v6623 = vadd.f32 0.0, %v6622
      %v6624 = vpop.f32.mrf.mxu0
      %v6625 = vadd.f32 0.0, %v6624
      %6626 = vmatmul.bf16.gmra.mxu0 %v6564
      %v6627 = vpop.f32.mrf.mxu0
      %v6628 = vadd.f32 0.0, %v6627
      %v6629 = vpop.f32.mrf.mxu0
      %v6630 = vadd.f32 0.0, %v6629
      %6631 = vmatmul.bf16.gmra.mxu0 %v6567
      %v6632 = vpop.f32.mrf.mxu0
      %v6633 = vadd.f32 0.0, %v6632
      %v6634 = vpop.f32.mrf.mxu0
      %v6635 = vadd.f32 0.0, %v6634
      %6636 = vmatmul.bf16.gmra.mxu0 %v6570
      %v6637 = vpop.f32.mrf.mxu0
      %v6638 = vadd.f32 0.0, %v6637
      %v6639 = vpop.f32.mrf.mxu0
      %v6640 = vadd.f32 0.0, %v6639
      %6641 = vmatmul.bf16.gmra.mxu0 %v6573
      %v6642 = vpop.f32.mrf.mxu0
      %v6643 = vadd.f32 0.0, %v6642
      %v6644 = vpop.f32.mrf.mxu0
      %v6645 = vadd.f32 0.0, %v6644
      %6646 = vmatmul.bf16.gmra.mxu0 %v6576
      %v6647 = vpop.f32.mrf.mxu0
      %v6648 = vadd.f32 0.0, %v6647
      %v6649 = vpop.f32.mrf.mxu0
      %v6650 = vadd.f32 0.0, %v6649
      %6651 = vmatmul.bf16.gmra.mxu0 %v6579
      %v6652 = vpop.f32.mrf.mxu0
      %v6653 = vadd.f32 0.0, %v6652
      %v6654 = vpop.f32.mrf.mxu0
      %v6655 = vadd.f32 0.0, %v6654
      %6656 = vmatmul.bf16.gmra.mxu0 %v6582
      %v6657 = vpop.f32.mrf.mxu0
      %v6658 = vadd.f32 0.0, %v6657
      %v6659 = vpop.f32.mrf.mxu0
      %v6660 = vadd.f32 0.0, %v6659
      %6661 = vmatmul.bf16.gmra.mxu0 %v6585
      %v6662 = vpop.f32.mrf.mxu0
      %v6663 = vadd.f32 0.0, %v6662
      %v6664 = vpop.f32.mrf.mxu0
      %v6665 = vadd.f32 0.0, %v6664
      %6666 = vmatmul.bf16.gmra.mxu0 %v6588
      %v6667 = vpop.f32.mrf.mxu0
      %v6668 = vadd.f32 0.0, %v6667
      %v6669 = vpop.f32.mrf.mxu0
      %v6670 = vadd.f32 0.0, %v6669
      %6671 = vmatmul.bf16.gmra.mxu0 %v6591
      %v6672 = vpop.f32.mrf.mxu0
      %v6673 = vadd.f32 0.0, %v6672
      %v6674 = vpop.f32.mrf.mxu0
      %v6675 = vadd.f32 0.0, %v6674
      %6676 = vmatmul.bf16.gmra.mxu0 %v6594
      %v6677 = vpop.f32.mrf.mxu0
      %v6678 = vadd.f32 0.0, %v6677
      %v6679 = vpop.f32.mrf.mxu0
      %v6680 = vadd.f32 0.0, %v6679
      %6681 = vmatmul.bf16.gmra.mxu0 %v6597
      %v6682 = vpop.f32.mrf.mxu0
      %v6683 = vadd.f32 0.0, %v6682
      %v6684 = vpop.f32.mrf.mxu0
      %v6685 = vadd.f32 0.0, %v6684
      %6686 = vmatmul.bf16.gmra.mxu0 %v6600
      %v6687 = vpop.f32.mrf.mxu0
      %v6688 = vadd.f32 0.0, %v6687
      %v6689 = vpop.f32.mrf.mxu0
      %v6690 = vadd.f32 0.0, %v6689
      %6691 = vmatmul.bf16.gmra.mxu0 %v6603
      %v6692 = vpop.f32.mrf.mxu0
      %v6693 = vadd.f32 0.0, %v6692
      %v6694 = vpop.f32.mrf.mxu0
      %v6695 = vadd.f32 0.0, %v6694
      %6696 = vdwg.mxu0
      %v6697 = vadd.f32 %v6477, %v6618
      %v6698 = vadd.f32 %v6478, %v6620
      %v6699 = vadd.f32 %v6479, %v6623
      %v6700 = vadd.f32 %v6480, %v6625
      %v6701 = vadd.f32 %v6481, %v6628
      %v6702 = vadd.f32 %v6482, %v6630
      %v6703 = vadd.f32 %v6483, %v6633
      %v6704 = vadd.f32 %v6484, %v6635
      %v6705 = vadd.f32 %v6485, %v6638
      %v6706 = vadd.f32 %v6486, %v6640
      %v6707 = vadd.f32 %v6487, %v6643
      %v6708 = vadd.f32 %v6488, %v6645
      %v6709 = vadd.f32 %v6489, %v6648
      %v6710 = vadd.f32 %v6490, %v6650
      %v6711 = vadd.f32 %v6491, %v6653
      %v6712 = vadd.f32 %v6492, %v6655
      %v6713 = vadd.f32 %v6493, %v6658
      %v6714 = vadd.f32 %v6494, %v6660
      %v6715 = vadd.f32 %v6495, %v6663
      %v6716 = vadd.f32 %v6496, %v6665
      %v6717 = vadd.f32 %v6497, %v6668
      %v6718 = vadd.f32 %v6498, %v6670
      %v6719 = vadd.f32 %v6499, %v6673
      %v6720 = vadd.f32 %v6500, %v6675
      %v6721 = vadd.f32 %v6501, %v6678
      %v6722 = vadd.f32 %v6502, %v6680
      %v6723 = vadd.f32 %v6503, %v6683
      %v6724 = vadd.f32 %v6504, %v6685
      %v6725 = vadd.f32 %v6505, %v6688
      %v6726 = vadd.f32 %v6506, %v6690
      %v6727 = vadd.f32 %v6507, %v6693
      %v6728 = vadd.f32 %v6508, %v6695
      %v6729 = vsel %vm145, %v6697, 0.0
      %v6730 = vsel %vm145, %v6698, 0.0
      %v6731 = vadd.f32 %v6729, %v6730
      %v6732 = vsel %vm145, %v6699, 0.0
      %v6733 = vadd.f32 %v6731, %v6732
      %v6734 = vsel %vm145, %v6700, 0.0
      %v6735 = vadd.f32 %v6733, %v6734
      %v6736 = vsel %vm145, %v6701, 0.0
      %v6737 = vadd.f32 %v6735, %v6736
      %v6738 = vsel %vm145, %v6702, 0.0
      %v6739 = vadd.f32 %v6737, %v6738
      %v6740 = vsel %vm145, %v6703, 0.0
      %v6741 = vadd.f32 %v6739, %v6740
      %v6742 = vsel %vm145, %v6704, 0.0
      %v6743 = vadd.f32 %v6741, %v6742
      %v6744 = vsel %vm145, %v6705, 0.0
      %v6745 = vadd.f32 %v6743, %v6744
      %v6746 = vsel %vm145, %v6706, 0.0
      %v6747 = vadd.f32 %v6745, %v6746
      %v6748 = vsel %vm145, %v6707, 0.0
      %v6749 = vadd.f32 %v6747, %v6748
      %v6750 = vsel %vm145, %v6708, 0.0
      %v6751 = vadd.f32 %v6749, %v6750
      %v6752 = vsel %vm145, %v6709, 0.0
      %v6753 = vadd.f32 %v6751, %v6752
      %v6754 = vsel %vm145, %v6710, 0.0
      %v6755 = vadd.f32 %v6753, %v6754
      %v6756 = vsel %vm145, %v6711, 0.0
      %v6757 = vadd.f32 %v6755, %v6756
      %v6758 = vsel %vm145, %v6712, 0.0
      %v6759 = vadd.f32 %v6757, %v6758
      %v6760 = vsel %vm145, %v6713, 0.0
      %v6761 = vadd.f32 %v6759, %v6760
      %v6762 = vsel %vm145, %v6714, 0.0
      %v6763 = vadd.f32 %v6761, %v6762
      %v6764 = vsel %vm145, %v6715, 0.0
      %v6765 = vadd.f32 %v6763, %v6764
      %v6766 = vsel %vm145, %v6716, 0.0
      %v6767 = vadd.f32 %v6765, %v6766
      %v6768 = vsel %vm145, %v6717, 0.0
      %v6769 = vadd.f32 %v6767, %v6768
      %v6770 = vsel %vm145, %v6718, 0.0
      %v6771 = vadd.f32 %v6769, %v6770
      %v6772 = vsel %vm145, %v6719, 0.0
      %v6773 = vadd.f32 %v6771, %v6772
      %v6774 = vsel %vm145, %v6720, 0.0
      %v6775 = vadd.f32 %v6773, %v6774
      %v6776 = vsel %vm145, %v6721, 0.0
      %v6777 = vadd.f32 %v6775, %v6776
      %v6778 = vsel %vm145, %v6722, 0.0
      %v6779 = vadd.f32 %v6777, %v6778
      %v6780 = vsel %vm145, %v6723, 0.0
      %v6781 = vadd.f32 %v6779, %v6780
      %v6782 = vsel %vm145, %v6724, 0.0
      %v6783 = vadd.f32 %v6781, %v6782
      %v6784 = vsel %vm145, %v6725, 0.0
      %v6785 = vadd.f32 %v6783, %v6784
      %v6786 = vsel %vm145, %v6726, 0.0
      %v6787 = vadd.f32 %v6785, %v6786
      %v6788 = vsel %vm145, %v6727, 0.0
      %v6789 = vadd.f32 %v6787, %v6788
      %v6790 = vsel %vm145, %v6728, 0.0
      %v6791 = vadd.f32 %v6789, %v6790
      %v6792 = vrot.slane %v6791, 4
      %v6793 = vadd.f32 %v6791, %v6792
      %v6794 = vrot.slane %v6793, 2
      %v6795 = vadd.f32 %v6793, %v6794
      %v6796 = vrot.slane %v6795, 1
      %v6797 = vadd.f32 %v6795, %v6796
      %v6798 = vmul.f32 %v6797, 0.00390625
      %v6799 = vsub.f32 %v6697, %v6798
      %v6800 = vsub.f32 %v6698, %v6798
      %v6801 = vsub.f32 %v6699, %v6798
      %v6802 = vsub.f32 %v6700, %v6798
      %v6803 = vsub.f32 %v6701, %v6798
      %v6804 = vsub.f32 %v6702, %v6798
      %v6805 = vsub.f32 %v6703, %v6798
      %v6806 = vsub.f32 %v6704, %v6798
      %v6807 = vsub.f32 %v6705, %v6798
      %v6808 = vsub.f32 %v6706, %v6798
      %v6809 = vsub.f32 %v6707, %v6798
      %v6810 = vsub.f32 %v6708, %v6798
      %v6811 = vsub.f32 %v6709, %v6798
      %v6812 = vsub.f32 %v6710, %v6798
      %v6813 = vsub.f32 %v6711, %v6798
      %v6814 = vsub.f32 %v6712, %v6798
      %v6815 = vsub.f32 %v6713, %v6798
      %v6816 = vsub.f32 %v6714, %v6798
      %v6817 = vsub.f32 %v6715, %v6798
      %v6818 = vsub.f32 %v6716, %v6798
      %v6819 = vsub.f32 %v6717, %v6798
      %v6820 = vsub.f32 %v6718, %v6798
      %v6821 = vsub.f32 %v6719, %v6798
      %v6822 = vsub.f32 %v6720, %v6798
      %v6823 = vsub.f32 %v6721, %v6798
      %v6824 = vsub.f32 %v6722, %v6798
      %v6825 = vsub.f32 %v6723, %v6798
      %v6826 = vsub.f32 %v6724, %v6798
      %v6827 = vsub.f32 %v6725, %v6798
      %v6828 = vsub.f32 %v6726, %v6798
      %v6829 = vsub.f32 %v6727, %v6798
      %v6830 = vsub.f32 %v6728, %v6798
      %v6831 = vmul.f32 %v6799, %v6799
      %v6832 = vmul.f32 %v6800, %v6800
      %v6833 = vmul.f32 %v6801, %v6801
      %v6834 = vmul.f32 %v6802, %v6802
      %v6835 = vmul.f32 %v6803, %v6803
      %v6836 = vmul.f32 %v6804, %v6804
      %v6837 = vmul.f32 %v6805, %v6805
      %v6838 = vmul.f32 %v6806, %v6806
      %v6839 = vmul.f32 %v6807, %v6807
      %v6840 = vmul.f32 %v6808, %v6808
      %v6841 = vmul.f32 %v6809, %v6809
      %v6842 = vmul.f32 %v6810, %v6810
      %v6843 = vmul.f32 %v6811, %v6811
      %v6844 = vmul.f32 %v6812, %v6812
      %v6845 = vmul.f32 %v6813, %v6813
      %v6846 = vmul.f32 %v6814, %v6814
      %v6847 = vmul.f32 %v6815, %v6815
      %v6848 = vmul.f32 %v6816, %v6816
      %v6849 = vmul.f32 %v6817, %v6817
      %v6850 = vmul.f32 %v6818, %v6818
      %v6851 = vmul.f32 %v6819, %v6819
      %v6852 = vmul.f32 %v6820, %v6820
      %v6853 = vmul.f32 %v6821, %v6821
      %v6854 = vmul.f32 %v6822, %v6822
      %v6855 = vmul.f32 %v6823, %v6823
      %v6856 = vmul.f32 %v6824, %v6824
      %v6857 = vmul.f32 %v6825, %v6825
      %v6858 = vmul.f32 %v6826, %v6826
      %v6859 = vmul.f32 %v6827, %v6827
      %v6860 = vmul.f32 %v6828, %v6828
      %v6861 = vmul.f32 %v6829, %v6829
      %v6862 = vmul.f32 %v6830, %v6830
      %v6863 = vsel %vm145, %v6831, 0.0
      %v6864 = vsel %vm145, %v6832, 0.0
      %v6865 = vadd.f32 %v6863, %v6864
      %v6866 = vsel %vm145, %v6833, 0.0
      %v6867 = vadd.f32 %v6865, %v6866
      %v6868 = vsel %vm145, %v6834, 0.0
      %v6869 = vadd.f32 %v6867, %v6868
      %v6870 = vsel %vm145, %v6835, 0.0
      %v6871 = vadd.f32 %v6869, %v6870
      %v6872 = vsel %vm145, %v6836, 0.0
      %v6873 = vadd.f32 %v6871, %v6872
      %v6874 = vsel %vm145, %v6837, 0.0
      %v6875 = vadd.f32 %v6873, %v6874
      %v6876 = vsel %vm145, %v6838, 0.0
      %v6877 = vadd.f32 %v6875, %v6876
      %v6878 = vsel %vm145, %v6839, 0.0
      %v6879 = vadd.f32 %v6877, %v6878
      %v6880 = vsel %vm145, %v6840, 0.0
      %v6881 = vadd.f32 %v6879, %v6880
      %v6882 = vsel %vm145, %v6841, 0.0
      %v6883 = vadd.f32 %v6881, %v6882
      %v6884 = vsel %vm145, %v6842, 0.0
      %v6885 = vadd.f32 %v6883, %v6884
      %v6886 = vsel %vm145, %v6843, 0.0
      %v6887 = vadd.f32 %v6885, %v6886
      %v6888 = vsel %vm145, %v6844, 0.0
      %v6889 = vadd.f32 %v6887, %v6888
      %v6890 = vsel %vm145, %v6845, 0.0
      %v6891 = vadd.f32 %v6889, %v6890
      %v6892 = vsel %vm145, %v6846, 0.0
      %v6893 = vadd.f32 %v6891, %v6892
      %v6894 = vsel %vm145, %v6847, 0.0
      %v6895 = vadd.f32 %v6893, %v6894
      %v6896 = vsel %vm145, %v6848, 0.0
      %v6897 = vadd.f32 %v6895, %v6896
      %v6898 = vsel %vm145, %v6849, 0.0
      %v6899 = vadd.f32 %v6897, %v6898
      %v6900 = vsel %vm145, %v6850, 0.0
      %v6901 = vadd.f32 %v6899, %v6900
      %v6902 = vsel %vm145, %v6851, 0.0
      %v6903 = vadd.f32 %v6901, %v6902
      %v6904 = vsel %vm145, %v6852, 0.0
      %v6905 = vadd.f32 %v6903, %v6904
      %v6906 = vsel %vm145, %v6853, 0.0
      %v6907 = vadd.f32 %v6905, %v6906
      %v6908 = vsel %vm145, %v6854, 0.0
      %v6909 = vadd.f32 %v6907, %v6908
      %v6910 = vsel %vm145, %v6855, 0.0
      %v6911 = vadd.f32 %v6909, %v6910
      %v6912 = vsel %vm145, %v6856, 0.0
      %v6913 = vadd.f32 %v6911, %v6912
      %v6914 = vsel %vm145, %v6857, 0.0
      %v6915 = vadd.f32 %v6913, %v6914
      %v6916 = vsel %vm145, %v6858, 0.0
      %v6917 = vadd.f32 %v6915, %v6916
      %v6918 = vsel %vm145, %v6859, 0.0
      %v6919 = vadd.f32 %v6917, %v6918
      %v6920 = vsel %vm145, %v6860, 0.0
      %v6921 = vadd.f32 %v6919, %v6920
      %v6922 = vsel %vm145, %v6861, 0.0
      %v6923 = vadd.f32 %v6921, %v6922
      %v6924 = vsel %vm145, %v6862, 0.0
      %v6925 = vadd.f32 %v6923, %v6924
      %v6926 = vrot.slane %v6925, 4
      %v6927 = vadd.f32 %v6925, %v6926
      %v6928 = vrot.slane %v6927, 2
      %v6929 = vadd.f32 %v6927, %v6928
      %v6930 = vrot.slane %v6929, 1
      %v6931 = vadd.f32 %v6929, %v6930
      %v6932 = vmul.f32 %v6931, 0.00390625
      %v6933 = vadd.f32 %v6932, 1e-05
      %v6934 = vrsqrt.pop %v6933
      %v6935 = vmul.f32 %v6934, %v6933
      %v6936 = vmul.f32 %v6935, %v6934
      %v6937 = vmul.f32 0.5, %v6936
      %v6938 = vsub.f32 1.5, %v6937
      %v6939 = vmul.f32 %v6934, %v6938
      %vm6940 = vweird.f32 %v6933
      %vm6941 = vweird.f32 %v6934
      %vm6942 = vmor %vm6940, %vm6941
      %v6943 = vsel %vm6942, %v6934, %v6939
      %v6944 = vmul.f32 %v6799, %v6943
      %v6945 = vmul.f32 %v6800, %v6943
      %v6946 = vmul.f32 %v6801, %v6943
      %v6947 = vmul.f32 %v6802, %v6943
      %v6948 = vmul.f32 %v6803, %v6943
      %v6949 = vmul.f32 %v6804, %v6943
      %v6950 = vmul.f32 %v6805, %v6943
      %v6951 = vmul.f32 %v6806, %v6943
      %v6952 = vmul.f32 %v6807, %v6943
      %v6953 = vmul.f32 %v6808, %v6943
      %v6954 = vmul.f32 %v6809, %v6943
      %v6955 = vmul.f32 %v6810, %v6943
      %v6956 = vmul.f32 %v6811, %v6943
      %v6957 = vmul.f32 %v6812, %v6943
      %v6958 = vmul.f32 %v6813, %v6943
      %v6959 = vmul.f32 %v6814, %v6943
      %v6960 = vmul.f32 %v6815, %v6943
      %v6961 = vmul.f32 %v6816, %v6943
      %v6962 = vmul.f32 %v6817, %v6943
      %v6963 = vmul.f32 %v6818, %v6943
      %v6964 = vmul.f32 %v6819, %v6943
      %v6965 = vmul.f32 %v6820, %v6943
      %v6966 = vmul.f32 %v6821, %v6943
      %v6967 = vmul.f32 %v6822, %v6943
      %v6968 = vmul.f32 %v6823, %v6943
      %v6969 = vmul.f32 %v6824, %v6943
      %v6970 = vmul.f32 %v6825, %v6943
      %v6971 = vmul.f32 %v6826, %v6943
      %v6972 = vmul.f32 %v6827, %v6943
      %v6973 = vmul.f32 %v6828, %v6943
      %v6974 = vmul.f32 %v6829, %v6943
      %v6975 = vmul.f32 %v6830, %v6943
      %v6976 = vmax.f32 %v6944, 0.0
      %v6977 = vmax.f32 %v6945, 0.0
      %v6978 = vmax.f32 %v6946, 0.0
      %v6979 = vmax.f32 %v6947, 0.0
      %v6980 = vmax.f32 %v6948, 0.0
      %v6981 = vmax.f32 %v6949, 0.0
      %v6982 = vmax.f32 %v6950, 0.0
      %v6983 = vmax.f32 %v6951, 0.0
      %v6984 = vmax.f32 %v6952, 0.0
      %v6985 = vmax.f32 %v6953, 0.0
      %v6986 = vmax.f32 %v6954, 0.0
      %v6987 = vmax.f32 %v6955, 0.0
      %v6988 = vmax.f32 %v6956, 0.0
      %v6989 = vmax.f32 %v6957, 0.0
      %v6990 = vmax.f32 %v6958, 0.0
      %v6991 = vmax.f32 %v6959, 0.0
      %v6992 = vmax.f32 %v6960, 0.0
      %v6993 = vmax.f32 %v6961, 0.0
      %v6994 = vmax.f32 %v6962, 0.0
      %v6995 = vmax.f32 %v6963, 0.0
      %v6996 = vmax.f32 %v6964, 0.0
      %v6997 = vmax.f32 %v6965, 0.0
      %v6998 = vmax.f32 %v6966, 0.0
      %v6999 = vmax.f32 %v6967, 0.0
      %v7000 = vmax.f32 %v6968, 0.0
      %v7001 = vmax.f32 %v6969, 0.0
      %v7002 = vmax.f32 %v6970, 0.0
      %v7003 = vmax.f32 %v6971, 0.0
      %v7004 = vmax.f32 %v6972, 0.0
      %v7005 = vmax.f32 %v6973, 0.0
      %v7006 = vmax.f32 %v6974, 0.0
      %v7007 = vmax.f32 %v6975, 0.0
      %7008 = vst.msk [vmem:[%s233 + $0x1] sm:$0xff] %vm145, %v6976
      %7009 = vst.msk [vmem:[%s233 + $0x9] sm:$0xff] %vm145, %v6977
      %7010 = vst.msk [vmem:[%s233 + $0x19] sm:$0xff] %vm145, %v6978
      %7011 = vst.msk [vmem:[%s233 + $0x21] sm:$0xff] %vm145, %v6979
      %7012 = vst.msk [vmem:[%s233 + $0x31] sm:$0xff] %vm145, %v6980
      %7013 = vst.msk [vmem:[%s233 + $0x39] sm:$0xff] %vm145, %v6981
      %7014 = vst.msk [vmem:[%s233 + $0x49] sm:$0xff] %vm145, %v6982
      %7015 = vst.msk [vmem:[%s233 + $0x51] sm:$0xff] %vm145, %v6983
      %7016 = vst.msk [vmem:[%s233 + $0x61] sm:$0xff] %vm145, %v6984
      %7017 = vst.msk [vmem:[%s233 + $0x69] sm:$0xff] %vm145, %v6985
      %7018 = vst.msk [vmem:[%s233 + $0x79] sm:$0xff] %vm145, %v6986
      %7019 = vst.msk [vmem:[%s233 + $0x81] sm:$0xff] %vm145, %v6987
      %7020 = vst.msk [vmem:[%s233 + $0x91] sm:$0xff] %vm145, %v6988
      %7021 = vst.msk [vmem:[%s233 + $0x99] sm:$0xff] %vm145, %v6989
      %7022 = vst.msk [vmem:[%s233 + $0xa9] sm:$0xff] %vm145, %v6990
      %7023 = vst.msk [vmem:[%s233 + $0xb1] sm:$0xff] %vm145, %v6991
      %7024 = vst.msk [vmem:[%s233 + $0xc1] sm:$0xff] %vm145, %v6992
      %7025 = vst.msk [vmem:[%s233 + $0xc9] sm:$0xff] %vm145, %v6993
      %7026 = vst.msk [vmem:[%s233 + $0xd9] sm:$0xff] %vm145, %v6994
      %7027 = vst.msk [vmem:[%s233 + $0xe1] sm:$0xff] %vm145, %v6995
      %7028 = vst.msk [vmem:[%s233 + $0xf1] sm:$0xff] %vm145, %v6996
      %7029 = vst.msk [vmem:[%s233 + $0xf9] sm:$0xff] %vm145, %v6997
      %7030 = vst.msk [vmem:[%s233 + $0x109] sm:$0xff] %vm145, %v6998
      %7031 = vst.msk [vmem:[%s233 + $0x111] sm:$0xff] %vm145, %v6999
      %7032 = vst.msk [vmem:[%s233 + $0x121] sm:$0xff] %vm145, %v7000
      %7033 = vst.msk [vmem:[%s233 + $0x129] sm:$0xff] %vm145, %v7001
      %7034 = vst.msk [vmem:[%s233 + $0x139] sm:$0xff] %vm145, %v7002
      %7035 = vst.msk [vmem:[%s233 + $0x141] sm:$0xff] %vm145, %v7003
      %7036 = vst.msk [vmem:[%s233 + $0x151] sm:$0xff] %vm145, %v7004
      %7037 = vst.msk [vmem:[%s233 + $0x159] sm:$0xff] %vm145, %v7005
      %7038 = vst.msk [vmem:[%s233 + $0x169] sm:$0xff] %vm145, %v7006
      %7039 = vst.msk [vmem:[%s233 + $0x171] sm:$0xff] %vm145, %v7007
      %v7040 = vld [vmem:[#allocation2] sm:$0xff]
      %v7041 = vld [vmem:[#allocation2 + $0x8] sm:$0xff]
      %v7042 = vld [vmem:[#allocation2 + $0x18] sm:$0xff]
      %v7043 = vld [vmem:[#allocation2 + $0x20] sm:$0xff]
      %v7044 = vld [vmem:[#allocation2 + $0x30] sm:$0xff]
      %v7045 = vld [vmem:[#allocation2 + $0x38] sm:$0xff]
      %v7046 = vld [vmem:[#allocation2 + $0x48] sm:$0xff]
      %v7047 = vld [vmem:[#allocation2 + $0x50] sm:$0xff]
      %v7048 = vld [vmem:[#allocation2 + $0x60] sm:$0xff]
      %v7049 = vld [vmem:[#allocation2 + $0x68] sm:$0xff]
      %v7050 = vld [vmem:[#allocation2 + $0x78] sm:$0xff]
      %v7051 = vld [vmem:[#allocation2 + $0x80] sm:$0xff]
      %v7052 = vld [vmem:[#allocation2 + $0x90] sm:$0xff]
      %v7053 = vld [vmem:[#allocation2 + $0x98] sm:$0xff]
      %v7054 = vld [vmem:[#allocation2 + $0xa8] sm:$0xff]
      %v7055 = vld [vmem:[#allocation2 + $0xb0] sm:$0xff]
      %v7056 = vld [vmem:[#allocation2 + $0xc0] sm:$0xff]
      %v7057 = vld [vmem:[#allocation2 + $0xc8] sm:$0xff]
      %v7058 = vld [vmem:[#allocation2 + $0xd8] sm:$0xff]
      %v7059 = vld [vmem:[#allocation2 + $0xe0] sm:$0xff]
      %v7060 = vld [vmem:[#allocation2 + $0xf0] sm:$0xff]
      %v7061 = vld [vmem:[#allocation2 + $0xf8] sm:$0xff]
      %v7062 = vld [vmem:[#allocation2 + $0x108] sm:$0xff]
      %v7063 = vld [vmem:[#allocation2 + $0x110] sm:$0xff]
      %v7064 = vld [vmem:[#allocation2 + $0x120] sm:$0xff]
      %v7065 = vld [vmem:[#allocation2 + $0x128] sm:$0xff]
      %v7066 = vld [vmem:[#allocation2 + $0x138] sm:$0xff]
      %v7067 = vld [vmem:[#allocation2 + $0x140] sm:$0xff]
      %v7068 = vld [vmem:[#allocation2 + $0x150] sm:$0xff]
      %v7069 = vld [vmem:[#allocation2 + $0x158] sm:$0xff]
      %v7070 = vld [vmem:[#allocation2 + $0x168] sm:$0xff]
      %v7071 = vld [vmem:[#allocation2 + $0x170] sm:$0xff]
      %v7072 = vpack.c.bf16 %v7041, %v7040
      %v7073 = vpack.c.bf16 %v7043, %v7042
      %v7074 = vpack.c.bf16 %v7045, %v7044
      %v7075 = vpack.c.bf16 %v7047, %v7046
      %v7076 = vpack.c.bf16 %v7049, %v7048
      %v7077 = vpack.c.bf16 %v7051, %v7050
      %v7078 = vpack.c.bf16 %v7053, %v7052
      %v7079 = vpack.c.bf16 %v7055, %v7054
      %v7080 = vpack.c.bf16 %v7057, %v7056
      %v7081 = vpack.c.bf16 %v7059, %v7058
      %v7082 = vpack.c.bf16 %v7061, %v7060
      %v7083 = vpack.c.bf16 %v7063, %v7062
      %v7084 = vpack.c.bf16 %v7065, %v7064
      %v7085 = vpack.c.bf16 %v7067, %v7066
      %v7086 = vpack.c.bf16 %v7069, %v7068
      %v7087 = vpack.c.bf16 %v7071, %v7070
      %v7088 = vld [vmem:[#allocation2 + $0x1] sm:$0xff]
      %v7089 = vld [vmem:[#allocation2 + $0x9] sm:$0xff]
      %v7090 = vld [vmem:[#allocation2 + $0x19] sm:$0xff]
      %v7091 = vld [vmem:[#allocation2 + $0x21] sm:$0xff]
      %v7092 = vld [vmem:[#allocation2 + $0x31] sm:$0xff]
      %v7093 = vld [vmem:[#allocation2 + $0x39] sm:$0xff]
      %v7094 = vld [vmem:[#allocation2 + $0x49] sm:$0xff]
      %v7095 = vld [vmem:[#allocation2 + $0x51] sm:$0xff]
      %v7096 = vld [vmem:[#allocation2 + $0x61] sm:$0xff]
      %v7097 = vld [vmem:[#allocation2 + $0x69] sm:$0xff]
      %v7098 = vld [vmem:[#allocation2 + $0x79] sm:$0xff]
      %v7099 = vld [vmem:[#allocation2 + $0x81] sm:$0xff]
      %v7100 = vld [vmem:[#allocation2 + $0x91] sm:$0xff]
      %v7101 = vld [vmem:[#allocation2 + $0x99] sm:$0xff]
      %v7102 = vld [vmem:[#allocation2 + $0xa9] sm:$0xff]
      %v7103 = vld [vmem:[#allocation2 + $0xb1] sm:$0xff]
      %v7104 = vld [vmem:[#allocation2 + $0xc1] sm:$0xff]
      %v7105 = vld [vmem:[#allocation2 + $0xc9] sm:$0xff]
      %v7106 = vld [vmem:[#allocation2 + $0xd9] sm:$0xff]
      %v7107 = vld [vmem:[#allocation2 + $0xe1] sm:$0xff]
      %v7108 = vld [vmem:[#allocation2 + $0xf1] sm:$0xff]
      %v7109 = vld [vmem:[#allocation2 + $0xf9] sm:$0xff]
      %v7110 = vld [vmem:[#allocation2 + $0x109] sm:$0xff]
      %v7111 = vld [vmem:[#allocation2 + $0x111] sm:$0xff]
      %v7112 = vld [vmem:[#allocation2 + $0x121] sm:$0xff]
      %v7113 = vld [vmem:[#allocation2 + $0x129] sm:$0xff]
      %v7114 = vld [vmem:[#allocation2 + $0x139] sm:$0xff]
      %v7115 = vld [vmem:[#allocation2 + $0x141] sm:$0xff]
      %v7116 = vld [vmem:[#allocation2 + $0x151] sm:$0xff]
      %v7117 = vld [vmem:[#allocation2 + $0x159] sm:$0xff]
      %v7118 = vld [vmem:[#allocation2 + $0x169] sm:$0xff]
      %v7119 = vld [vmem:[#allocation2 + $0x171] sm:$0xff]
      %v7120 = vpack.c.bf16 %v7089, %v7088
      %v7121 = vpack.c.bf16 %v7091, %v7090
      %v7122 = vpack.c.bf16 %v7093, %v7092
      %v7123 = vpack.c.bf16 %v7095, %v7094
      %v7124 = vpack.c.bf16 %v7097, %v7096
      %v7125 = vpack.c.bf16 %v7099, %v7098
      %v7126 = vpack.c.bf16 %v7101, %v7100
      %v7127 = vpack.c.bf16 %v7103, %v7102
      %v7128 = vpack.c.bf16 %v7105, %v7104
      %v7129 = vpack.c.bf16 %v7107, %v7106
      %v7130 = vpack.c.bf16 %v7109, %v7108
      %v7131 = vpack.c.bf16 %v7111, %v7110
      %v7132 = vpack.c.bf16 %v7113, %v7112
      %v7133 = vpack.c.bf16 %v7115, %v7114
      %v7134 = vpack.c.bf16 %v7117, %v7116
      %v7135 = vpack.c.bf16 %v7119, %v7118
      %v7137 = vunpack.c.l.b16 %v4760
      %v7138 = vpack.c.b16 %v7137, %v7137
      %v7139 = vrot.slane %v7138, 2
      %v7141 = vsel %vm145, %v7120, 0
      %v7144 = vsel %vm145, %v7121, 0
      %v7147 = vsel %vm145, %v7122, 0
      %v7150 = vsel %vm145, %v7123, 0
      %v7153 = vsel %vm145, %v7124, 0
      %v7156 = vsel %vm145, %v7125, 0
      %v7159 = vsel %vm145, %v7126, 0
      %v7162 = vsel %vm145, %v7127, 0
      %v7165 = vsel %vm145, %v7128, 0
      %v7168 = vsel %vm145, %v7129, 0
      %v7171 = vsel %vm145, %v7130, 0
      %v7174 = vsel %vm145, %v7131, 0
      %v7177 = vsel %vm145, %v7132, 0
      %v7180 = vsel %vm145, %v7133, 0
      %v7183 = vsel %vm145, %v7134, 0
      %v7186 = vsel %vm145, %v7135, 0
      %v7189 = vsel %vm414, %v7139, 0
      %7191 = vmatpush.bf16.msra.mxu0 0
      %7192 = vmatpush.bf16.msra.mxu0 0
      %7193 = vmatpush.bf16.msra.mxu0 0
      %7194 = vmatpush.bf16.msra.mxu0 0
      %7195 = vmatpush.bf16.msra.mxu0 0
      %7196 = vmatpush.bf16.msra.mxu0 0
      %7197 = vmatpush.bf16.msra.mxu0 0
      %7198 = vmatpush.bf16.msra.mxu0 %v7189
      %7199 = vmatmul.bf16.gmra.mxu0 %v7141
      %v7200 = vpop.f32.mrf.mxu0
      %v7201 = vadd.f32 0.0, %v7200
      %v7202 = vpop.f32.mrf.mxu0
      %v7203 = vadd.f32 0.0, %v7202
      %7204 = vmatmul.bf16.gmra.mxu0 %v7144
      %v7205 = vpop.f32.mrf.mxu0
      %v7206 = vadd.f32 0.0, %v7205
      %v7207 = vpop.f32.mrf.mxu0
      %v7208 = vadd.f32 0.0, %v7207
      %7209 = vmatmul.bf16.gmra.mxu0 %v7147
      %v7210 = vpop.f32.mrf.mxu0
      %v7211 = vadd.f32 0.0, %v7210
      %v7212 = vpop.f32.mrf.mxu0
      %v7213 = vadd.f32 0.0, %v7212
      %7214 = vmatmul.bf16.gmra.mxu0 %v7150
      %v7215 = vpop.f32.mrf.mxu0
      %v7216 = vadd.f32 0.0, %v7215
      %v7217 = vpop.f32.mrf.mxu0
      %v7218 = vadd.f32 0.0, %v7217
      %7219 = vmatmul.bf16.gmra.mxu0 %v7153
      %v7220 = vpop.f32.mrf.mxu0
      %v7221 = vadd.f32 0.0, %v7220
      %v7222 = vpop.f32.mrf.mxu0
      %v7223 = vadd.f32 0.0, %v7222
      %7224 = vmatmul.bf16.gmra.mxu0 %v7156
      %v7225 = vpop.f32.mrf.mxu0
      %v7226 = vadd.f32 0.0, %v7225
      %v7227 = vpop.f32.mrf.mxu0
      %v7228 = vadd.f32 0.0, %v7227
      %7229 = vmatmul.bf16.gmra.mxu0 %v7159
      %v7230 = vpop.f32.mrf.mxu0
      %v7231 = vadd.f32 0.0, %v7230
      %v7232 = vpop.f32.mrf.mxu0
      %v7233 = vadd.f32 0.0, %v7232
      %7234 = vmatmul.bf16.gmra.mxu0 %v7162
      %v7235 = vpop.f32.mrf.mxu0
      %v7236 = vadd.f32 0.0, %v7235
      %v7237 = vpop.f32.mrf.mxu0
      %v7238 = vadd.f32 0.0, %v7237
      %7239 = vmatmul.bf16.gmra.mxu0 %v7165
      %v7240 = vpop.f32.mrf.mxu0
      %v7241 = vadd.f32 0.0, %v7240
      %v7242 = vpop.f32.mrf.mxu0
      %v7243 = vadd.f32 0.0, %v7242
      %7244 = vmatmul.bf16.gmra.mxu0 %v7168
      %v7245 = vpop.f32.mrf.mxu0
      %v7246 = vadd.f32 0.0, %v7245
      %v7247 = vpop.f32.mrf.mxu0
      %v7248 = vadd.f32 0.0, %v7247
      %7249 = vmatmul.bf16.gmra.mxu0 %v7171
      %v7250 = vpop.f32.mrf.mxu0
      %v7251 = vadd.f32 0.0, %v7250
      %v7252 = vpop.f32.mrf.mxu0
      %v7253 = vadd.f32 0.0, %v7252
      %7254 = vmatmul.bf16.gmra.mxu0 %v7174
      %v7255 = vpop.f32.mrf.mxu0
      %v7256 = vadd.f32 0.0, %v7255
      %v7257 = vpop.f32.mrf.mxu0
      %v7258 = vadd.f32 0.0, %v7257
      %7259 = vmatmul.bf16.gmra.mxu0 %v7177
      %v7260 = vpop.f32.mrf.mxu0
      %v7261 = vadd.f32 0.0, %v7260
      %v7262 = vpop.f32.mrf.mxu0
      %v7263 = vadd.f32 0.0, %v7262
      %7264 = vmatmul.bf16.gmra.mxu0 %v7180
      %v7265 = vpop.f32.mrf.mxu0
      %v7266 = vadd.f32 0.0, %v7265
      %v7267 = vpop.f32.mrf.mxu0
      %v7268 = vadd.f32 0.0, %v7267
      %7269 = vmatmul.bf16.gmra.mxu0 %v7183
      %v7270 = vpop.f32.mrf.mxu0
      %v7271 = vadd.f32 0.0, %v7270
      %v7272 = vpop.f32.mrf.mxu0
      %v7273 = vadd.f32 0.0, %v7272
      %7274 = vmatmul.bf16.gmra.mxu0 %v7186
      %v7275 = vpop.f32.mrf.mxu0
      %v7276 = vadd.f32 0.0, %v7275
      %v7277 = vpop.f32.mrf.mxu0
      %v7278 = vadd.f32 0.0, %v7277
      %7279 = vdwg.mxu0
      %v7281 = vsel %vm145, %v7072, 0
      %v7284 = vsel %vm145, %v7073, 0
      %v7287 = vsel %vm145, %v7074, 0
      %v7290 = vsel %vm145, %v7075, 0
      %v7293 = vsel %vm145, %v7076, 0
      %v7296 = vsel %vm145, %v7077, 0
      %v7299 = vsel %vm145, %v7078, 0
      %v7302 = vsel %vm145, %v7079, 0
      %v7305 = vsel %vm145, %v7080, 0
      %v7308 = vsel %vm145, %v7081, 0
      %v7311 = vsel %vm145, %v7082, 0
      %v7314 = vsel %vm145, %v7083, 0
      %v7317 = vsel %vm145, %v7084, 0
      %v7320 = vsel %vm145, %v7085, 0
      %v7323 = vsel %vm145, %v7086, 0
      %v7326 = vsel %vm145, %v7087, 0
      %v7329 = vsel %vm414, %v4760, 0
      %7331 = vmatpush.bf16.msra.mxu0 0
      %7332 = vmatpush.bf16.msra.mxu0 0
      %7333 = vmatpush.bf16.msra.mxu0 0
      %7334 = vmatpush.bf16.msra.mxu0 0
      %7335 = vmatpush.bf16.msra.mxu0 0
      %7336 = vmatpush.bf16.msra.mxu0 0
      %7337 = vmatpush.bf16.msra.mxu0 0
      %7338 = vmatpush.bf16.msra.mxu0 %v7329
      %7339 = vmatmul.bf16.gmra.mxu0 %v7281
      %v7340 = vpop.f32.mrf.mxu0
      %v7341 = vadd.f32 %v7201, %v7340
      %v7342 = vpop.f32.mrf.mxu0
      %v7343 = vadd.f32 %v7203, %v7342
      %7344 = vmatmul.bf16.gmra.mxu0 %v7284
      %v7345 = vpop.f32.mrf.mxu0
      %v7346 = vadd.f32 %v7206, %v7345
      %v7347 = vpop.f32.mrf.mxu0
      %v7348 = vadd.f32 %v7208, %v7347
      %7349 = vmatmul.bf16.gmra.mxu0 %v7287
      %v7350 = vpop.f32.mrf.mxu0
      %v7351 = vadd.f32 %v7211, %v7350
      %v7352 = vpop.f32.mrf.mxu0
      %v7353 = vadd.f32 %v7213, %v7352
      %7354 = vmatmul.bf16.gmra.mxu0 %v7290
      %v7355 = vpop.f32.mrf.mxu0
      %v7356 = vadd.f32 %v7216, %v7355
      %v7357 = vpop.f32.mrf.mxu0
      %v7358 = vadd.f32 %v7218, %v7357
      %7359 = vmatmul.bf16.gmra.mxu0 %v7293
      %v7360 = vpop.f32.mrf.mxu0
      %v7361 = vadd.f32 %v7221, %v7360
      %v7362 = vpop.f32.mrf.mxu0
      %v7363 = vadd.f32 %v7223, %v7362
      %7364 = vmatmul.bf16.gmra.mxu0 %v7296
      %v7365 = vpop.f32.mrf.mxu0
      %v7366 = vadd.f32 %v7226, %v7365
      %v7367 = vpop.f32.mrf.mxu0
      %v7368 = vadd.f32 %v7228, %v7367
      %7369 = vmatmul.bf16.gmra.mxu0 %v7299
      %v7370 = vpop.f32.mrf.mxu0
      %v7371 = vadd.f32 %v7231, %v7370
      %v7372 = vpop.f32.mrf.mxu0
      %v7373 = vadd.f32 %v7233, %v7372
      %7374 = vmatmul.bf16.gmra.mxu0 %v7302
      %v7375 = vpop.f32.mrf.mxu0
      %v7376 = vadd.f32 %v7236, %v7375
      %v7377 = vpop.f32.mrf.mxu0
      %v7378 = vadd.f32 %v7238, %v7377
      %7379 = vmatmul.bf16.gmra.mxu0 %v7305
      %v7380 = vpop.f32.mrf.mxu0
      %v7381 = vadd.f32 %v7241, %v7380
      %v7382 = vpop.f32.mrf.mxu0
      %v7383 = vadd.f32 %v7243, %v7382
      %7384 = vmatmul.bf16.gmra.mxu0 %v7308
      %v7385 = vpop.f32.mrf.mxu0
      %v7386 = vadd.f32 %v7246, %v7385
      %v7387 = vpop.f32.mrf.mxu0
      %v7388 = vadd.f32 %v7248, %v7387
      %7389 = vmatmul.bf16.gmra.mxu0 %v7311
      %v7390 = vpop.f32.mrf.mxu0
      %v7391 = vadd.f32 %v7251, %v7390
      %v7392 = vpop.f32.mrf.mxu0
      %v7393 = vadd.f32 %v7253, %v7392
      %7394 = vmatmul.bf16.gmra.mxu0 %v7314
      %v7395 = vpop.f32.mrf.mxu0
      %v7396 = vadd.f32 %v7256, %v7395
      %v7397 = vpop.f32.mrf.mxu0
      %v7398 = vadd.f32 %v7258, %v7397
      %7399 = vmatmul.bf16.gmra.mxu0 %v7317
      %v7400 = vpop.f32.mrf.mxu0
      %v7401 = vadd.f32 %v7261, %v7400
      %v7402 = vpop.f32.mrf.mxu0
      %v7403 = vadd.f32 %v7263, %v7402
      %7404 = vmatmul.bf16.gmra.mxu0 %v7320
      %v7405 = vpop.f32.mrf.mxu0
      %v7406 = vadd.f32 %v7266, %v7405
      %v7407 = vpop.f32.mrf.mxu0
      %v7408 = vadd.f32 %v7268, %v7407
      %7409 = vmatmul.bf16.gmra.mxu0 %v7323
      %v7410 = vpop.f32.mrf.mxu0
      %v7411 = vadd.f32 %v7271, %v7410
      %v7412 = vpop.f32.mrf.mxu0
      %v7413 = vadd.f32 %v7273, %v7412
      %7414 = vmatmul.bf16.gmra.mxu0 %v7326
      %v7415 = vpop.f32.mrf.mxu0
      %v7416 = vadd.f32 %v7276, %v7415
      %v7417 = vpop.f32.mrf.mxu0
      %v7418 = vadd.f32 %v7278, %v7417
      %7419 = vdwg.mxu0
      %v7420 = vld [vmem:[#allocation2 + $0x2] sm:$0xff]
      %v7421 = vld [vmem:[#allocation2 + $0xa] sm:$0xff]
      %v7422 = vld [vmem:[#allocation2 + $0x1a] sm:$0xff]
      %v7423 = vld [vmem:[#allocation2 + $0x22] sm:$0xff]
      %v7424 = vld [vmem:[#allocation2 + $0x32] sm:$0xff]
      %v7425 = vld [vmem:[#allocation2 + $0x3a] sm:$0xff]
      %v7426 = vld [vmem:[#allocation2 + $0x4a] sm:$0xff]
      %v7427 = vld [vmem:[#allocation2 + $0x52] sm:$0xff]
      %v7428 = vld [vmem:[#allocation2 + $0x62] sm:$0xff]
      %v7429 = vld [vmem:[#allocation2 + $0x6a] sm:$0xff]
      %v7430 = vld [vmem:[#allocation2 + $0x7a] sm:$0xff]
      %v7431 = vld [vmem:[#allocation2 + $0x82] sm:$0xff]
      %v7432 = vld [vmem:[#allocation2 + $0x92] sm:$0xff]
      %v7433 = vld [vmem:[#allocation2 + $0x9a] sm:$0xff]
      %v7434 = vld [vmem:[#allocation2 + $0xaa] sm:$0xff]
      %v7435 = vld [vmem:[#allocation2 + $0xb2] sm:$0xff]
      %v7436 = vld [vmem:[#allocation2 + $0xc2] sm:$0xff]
      %v7437 = vld [vmem:[#allocation2 + $0xca] sm:$0xff]
      %v7438 = vld [vmem:[#allocation2 + $0xda] sm:$0xff]
      %v7439 = vld [vmem:[#allocation2 + $0xe2] sm:$0xff]
      %v7440 = vld [vmem:[#allocation2 + $0xf2] sm:$0xff]
      %v7441 = vld [vmem:[#allocation2 + $0xfa] sm:$0xff]
      %v7442 = vld [vmem:[#allocation2 + $0x10a] sm:$0xff]
      %v7443 = vld [vmem:[#allocation2 + $0x112] sm:$0xff]
      %v7444 = vld [vmem:[#allocation2 + $0x122] sm:$0xff]
      %v7445 = vld [vmem:[#allocation2 + $0x12a] sm:$0xff]
      %v7446 = vld [vmem:[#allocation2 + $0x13a] sm:$0xff]
      %v7447 = vld [vmem:[#allocation2 + $0x142] sm:$0xff]
      %v7448 = vld [vmem:[#allocation2 + $0x152] sm:$0xff]
      %v7449 = vld [vmem:[#allocation2 + $0x15a] sm:$0xff]
      %v7450 = vld [vmem:[#allocation2 + $0x16a] sm:$0xff]
      %v7451 = vld [vmem:[#allocation2 + $0x172] sm:$0xff]
      %v7452 = vpack.c.bf16 %v7421, %v7420
      %v7453 = vpack.c.bf16 %v7423, %v7422
      %v7454 = vpack.c.bf16 %v7425, %v7424
      %v7455 = vpack.c.bf16 %v7427, %v7426
      %v7456 = vpack.c.bf16 %v7429, %v7428
      %v7457 = vpack.c.bf16 %v7431, %v7430
      %v7458 = vpack.c.bf16 %v7433, %v7432
      %v7459 = vpack.c.bf16 %v7435, %v7434
      %v7460 = vpack.c.bf16 %v7437, %v7436
      %v7461 = vpack.c.bf16 %v7439, %v7438
      %v7462 = vpack.c.bf16 %v7441, %v7440
      %v7463 = vpack.c.bf16 %v7443, %v7442
      %v7464 = vpack.c.bf16 %v7445, %v7444
      %v7465 = vpack.c.bf16 %v7447, %v7446
      %v7466 = vpack.c.bf16 %v7449, %v7448
      %v7467 = vpack.c.bf16 %v7451, %v7450
      %v7469 = vsel %vm145, %v7452, 0
      %v7472 = vsel %vm145, %v7453, 0
      %v7475 = vsel %vm145, %v7454, 0
      %v7478 = vsel %vm145, %v7455, 0
      %v7481 = vsel %vm145, %v7456, 0
      %v7484 = vsel %vm145, %v7457, 0
      %v7487 = vsel %vm145, %v7458, 0
      %v7490 = vsel %vm145, %v7459, 0
      %v7493 = vsel %vm145, %v7460, 0
      %v7496 = vsel %vm145, %v7461, 0
      %v7499 = vsel %vm145, %v7462, 0
      %v7502 = vsel %vm145, %v7463, 0
      %v7505 = vsel %vm145, %v7464, 0
      %v7508 = vsel %vm145, %v7465, 0
      %v7511 = vsel %vm145, %v7466, 0
      %v7514 = vsel %vm145, %v7467, 0
      %v7517 = vsel %vm414, %v4761, 0
      %7519 = vmatpush.bf16.msra.mxu0 0
      %7520 = vmatpush.bf16.msra.mxu0 0
      %7521 = vmatpush.bf16.msra.mxu0 0
      %7522 = vmatpush.bf16.msra.mxu0 0
      %7523 = vmatpush.bf16.msra.mxu0 0
      %7524 = vmatpush.bf16.msra.mxu0 0
      %7525 = vmatpush.bf16.msra.mxu0 0
      %7526 = vmatpush.bf16.msra.mxu0 %v7517
      %7527 = vmatmul.bf16.gmra.mxu0 %v7469
      %v7528 = vpop.f32.mrf.mxu0
      %v7529 = vadd.f32 0.0, %v7528
      %v7530 = vpop.f32.mrf.mxu0
      %v7531 = vadd.f32 0.0, %v7530
      %7532 = vmatmul.bf16.gmra.mxu0 %v7472
      %v7533 = vpop.f32.mrf.mxu0
      %v7534 = vadd.f32 0.0, %v7533
      %v7535 = vpop.f32.mrf.mxu0
      %v7536 = vadd.f32 0.0, %v7535
      %7537 = vmatmul.bf16.gmra.mxu0 %v7475
      %v7538 = vpop.f32.mrf.mxu0
      %v7539 = vadd.f32 0.0, %v7538
      %v7540 = vpop.f32.mrf.mxu0
      %v7541 = vadd.f32 0.0, %v7540
      %7542 = vmatmul.bf16.gmra.mxu0 %v7478
      %v7543 = vpop.f32.mrf.mxu0
      %v7544 = vadd.f32 0.0, %v7543
      %v7545 = vpop.f32.mrf.mxu0
      %v7546 = vadd.f32 0.0, %v7545
      %7547 = vmatmul.bf16.gmra.mxu0 %v7481
      %v7548 = vpop.f32.mrf.mxu0
      %v7549 = vadd.f32 0.0, %v7548
      %v7550 = vpop.f32.mrf.mxu0
      %v7551 = vadd.f32 0.0, %v7550
      %7552 = vmatmul.bf16.gmra.mxu0 %v7484
      %v7553 = vpop.f32.mrf.mxu0
      %v7554 = vadd.f32 0.0, %v7553
      %v7555 = vpop.f32.mrf.mxu0
      %v7556 = vadd.f32 0.0, %v7555
      %7557 = vmatmul.bf16.gmra.mxu0 %v7487
      %v7558 = vpop.f32.mrf.mxu0
      %v7559 = vadd.f32 0.0, %v7558
      %v7560 = vpop.f32.mrf.mxu0
      %v7561 = vadd.f32 0.0, %v7560
      %7562 = vmatmul.bf16.gmra.mxu0 %v7490
      %v7563 = vpop.f32.mrf.mxu0
      %v7564 = vadd.f32 0.0, %v7563
      %v7565 = vpop.f32.mrf.mxu0
      %v7566 = vadd.f32 0.0, %v7565
      %7567 = vmatmul.bf16.gmra.mxu0 %v7493
      %v7568 = vpop.f32.mrf.mxu0
      %v7569 = vadd.f32 0.0, %v7568
      %v7570 = vpop.f32.mrf.mxu0
      %v7571 = vadd.f32 0.0, %v7570
      %7572 = vmatmul.bf16.gmra.mxu0 %v7496
      %v7573 = vpop.f32.mrf.mxu0
      %v7574 = vadd.f32 0.0, %v7573
      %v7575 = vpop.f32.mrf.mxu0
      %v7576 = vadd.f32 0.0, %v7575
      %7577 = vmatmul.bf16.gmra.mxu0 %v7499
      %v7578 = vpop.f32.mrf.mxu0
      %v7579 = vadd.f32 0.0, %v7578
      %v7580 = vpop.f32.mrf.mxu0
      %v7581 = vadd.f32 0.0, %v7580
      %7582 = vmatmul.bf16.gmra.mxu0 %v7502
      %v7583 = vpop.f32.mrf.mxu0
      %v7584 = vadd.f32 0.0, %v7583
      %v7585 = vpop.f32.mrf.mxu0
      %v7586 = vadd.f32 0.0, %v7585
      %7587 = vmatmul.bf16.gmra.mxu0 %v7505
      %v7588 = vpop.f32.mrf.mxu0
      %v7589 = vadd.f32 0.0, %v7588
      %v7590 = vpop.f32.mrf.mxu0
      %v7591 = vadd.f32 0.0, %v7590
      %7592 = vmatmul.bf16.gmra.mxu0 %v7508
      %v7593 = vpop.f32.mrf.mxu0
      %v7594 = vadd.f32 0.0, %v7593
      %v7595 = vpop.f32.mrf.mxu0
      %v7596 = vadd.f32 0.0, %v7595
      %7597 = vmatmul.bf16.gmra.mxu0 %v7511
      %v7598 = vpop.f32.mrf.mxu0
      %v7599 = vadd.f32 0.0, %v7598
      %v7600 = vpop.f32.mrf.mxu0
      %v7601 = vadd.f32 0.0, %v7600
      %7602 = vmatmul.bf16.gmra.mxu0 %v7514
      %v7603 = vpop.f32.mrf.mxu0
      %v7604 = vadd.f32 0.0, %v7603
      %v7605 = vpop.f32.mrf.mxu0
      %v7606 = vadd.f32 0.0, %v7605
      %7607 = vdwg.mxu0
      %v7608 = vadd.f32 %v7341, %v7529
      %v7609 = vadd.f32 %v7343, %v7531
      %v7610 = vadd.f32 %v7346, %v7534
      %v7611 = vadd.f32 %v7348, %v7536
      %v7612 = vadd.f32 %v7351, %v7539
      %v7613 = vadd.f32 %v7353, %v7541
      %v7614 = vadd.f32 %v7356, %v7544
      %v7615 = vadd.f32 %v7358, %v7546
      %v7616 = vadd.f32 %v7361, %v7549
      %v7617 = vadd.f32 %v7363, %v7551
      %v7618 = vadd.f32 %v7366, %v7554
      %v7619 = vadd.f32 %v7368, %v7556
      %v7620 = vadd.f32 %v7371, %v7559
      %v7621 = vadd.f32 %v7373, %v7561
      %v7622 = vadd.f32 %v7376, %v7564
      %v7623 = vadd.f32 %v7378, %v7566
      %v7624 = vadd.f32 %v7381, %v7569
      %v7625 = vadd.f32 %v7383, %v7571
      %v7626 = vadd.f32 %v7386, %v7574
      %v7627 = vadd.f32 %v7388, %v7576
      %v7628 = vadd.f32 %v7391, %v7579
      %v7629 = vadd.f32 %v7393, %v7581
      %v7630 = vadd.f32 %v7396, %v7584
      %v7631 = vadd.f32 %v7398, %v7586
      %v7632 = vadd.f32 %v7401, %v7589
      %v7633 = vadd.f32 %v7403, %v7591
      %v7634 = vadd.f32 %v7406, %v7594
      %v7635 = vadd.f32 %v7408, %v7596
      %v7636 = vadd.f32 %v7411, %v7599
      %v7637 = vadd.f32 %v7413, %v7601
      %v7638 = vadd.f32 %v7416, %v7604
      %v7639 = vadd.f32 %v7418, %v7606
      %v7640 = vld [vmem:[%s233] sm:$0xff]
      %v7641 = vld [vmem:[%s233 + $0x8] sm:$0xff]
      %v7642 = vld [vmem:[%s233 + $0x18] sm:$0xff]
      %v7643 = vld [vmem:[%s233 + $0x20] sm:$0xff]
      %v7644 = vld [vmem:[%s233 + $0x30] sm:$0xff]
      %v7645 = vld [vmem:[%s233 + $0x38] sm:$0xff]
      %v7646 = vld [vmem:[%s233 + $0x48] sm:$0xff]
      %v7647 = vld [vmem:[%s233 + $0x50] sm:$0xff]
      %v7648 = vld [vmem:[%s233 + $0x60] sm:$0xff]
      %v7649 = vld [vmem:[%s233 + $0x68] sm:$0xff]
      %v7650 = vld [vmem:[%s233 + $0x78] sm:$0xff]
      %v7651 = vld [vmem:[%s233 + $0x80] sm:$0xff]
      %v7652 = vld [vmem:[%s233 + $0x90] sm:$0xff]
      %v7653 = vld [vmem:[%s233 + $0x98] sm:$0xff]
      %v7654 = vld [vmem:[%s233 + $0xa8] sm:$0xff]
      %v7655 = vld [vmem:[%s233 + $0xb0] sm:$0xff]
      %v7656 = vld [vmem:[%s233 + $0xc0] sm:$0xff]
      %v7657 = vld [vmem:[%s233 + $0xc8] sm:$0xff]
      %v7658 = vld [vmem:[%s233 + $0xd8] sm:$0xff]
      %v7659 = vld [vmem:[%s233 + $0xe0] sm:$0xff]
      %v7660 = vld [vmem:[%s233 + $0xf0] sm:$0xff]
      %v7661 = vld [vmem:[%s233 + $0xf8] sm:$0xff]
      %v7662 = vld [vmem:[%s233 + $0x108] sm:$0xff]
      %v7663 = vld [vmem:[%s233 + $0x110] sm:$0xff]
      %v7664 = vld [vmem:[%s233 + $0x120] sm:$0xff]
      %v7665 = vld [vmem:[%s233 + $0x128] sm:$0xff]
      %v7666 = vld [vmem:[%s233 + $0x138] sm:$0xff]
      %v7667 = vld [vmem:[%s233 + $0x140] sm:$0xff]
      %v7668 = vld [vmem:[%s233 + $0x150] sm:$0xff]
      %v7669 = vld [vmem:[%s233 + $0x158] sm:$0xff]
      %v7670 = vld [vmem:[%s233 + $0x168] sm:$0xff]
      %v7671 = vld [vmem:[%s233 + $0x170] sm:$0xff]
      %v7672 = vpack.c.bf16 %v7641, %v7640
      %v7673 = vpack.c.bf16 %v7643, %v7642
      %v7674 = vpack.c.bf16 %v7645, %v7644
      %v7675 = vpack.c.bf16 %v7647, %v7646
      %v7676 = vpack.c.bf16 %v7649, %v7648
      %v7677 = vpack.c.bf16 %v7651, %v7650
      %v7678 = vpack.c.bf16 %v7653, %v7652
      %v7679 = vpack.c.bf16 %v7655, %v7654
      %v7680 = vpack.c.bf16 %v7657, %v7656
      %v7681 = vpack.c.bf16 %v7659, %v7658
      %v7682 = vpack.c.bf16 %v7661, %v7660
      %v7683 = vpack.c.bf16 %v7663, %v7662
      %v7684 = vpack.c.bf16 %v7665, %v7664
      %v7685 = vpack.c.bf16 %v7667, %v7666
      %v7686 = vpack.c.bf16 %v7669, %v7668
      %v7687 = vpack.c.bf16 %v7671, %v7670
      %v7689 = vunpack.c.l.b16 %v4761
      %v7690 = vpack.c.b16 %v7689, %v7689
      %v7691 = vrot.slane %v7690, 2
      %v7693 = vsel %vm145, %v7672, 0
      %v7696 = vsel %vm145, %v7673, 0
      %v7699 = vsel %vm145, %v7674, 0
      %v7702 = vsel %vm145, %v7675, 0
      %v7705 = vsel %vm145, %v7676, 0
      %v7708 = vsel %vm145, %v7677, 0
      %v7711 = vsel %vm145, %v7678, 0
      %v7714 = vsel %vm145, %v7679, 0
      %v7717 = vsel %vm145, %v7680, 0
      %v7720 = vsel %vm145, %v7681, 0
      %v7723 = vsel %vm145, %v7682, 0
      %v7726 = vsel %vm145, %v7683, 0
      %v7729 = vsel %vm145, %v7684, 0
      %v7732 = vsel %vm145, %v7685, 0
      %v7735 = vsel %vm145, %v7686, 0
      %v7738 = vsel %vm145, %v7687, 0
      %v7741 = vsel %vm414, %v7691, 0
      %7743 = vmatpush.bf16.msra.mxu0 0
      %7744 = vmatpush.bf16.msra.mxu0 0
      %7745 = vmatpush.bf16.msra.mxu0 0
      %7746 = vmatpush.bf16.msra.mxu0 0
      %7747 = vmatpush.bf16.msra.mxu0 0
      %7748 = vmatpush.bf16.msra.mxu0 0
      %7749 = vmatpush.bf16.msra.mxu0 0
      %7750 = vmatpush.bf16.msra.mxu0 %v7741
      %7751 = vmatmul.bf16.gmra.mxu0 %v7693
      %v7752 = vpop.f32.mrf.mxu0
      %v7753 = vadd.f32 0.0, %v7752
      %v7754 = vpop.f32.mrf.mxu0
      %v7755 = vadd.f32 0.0, %v7754
      %7756 = vmatmul.bf16.gmra.mxu0 %v7696
      %v7757 = vpop.f32.mrf.mxu0
      %v7758 = vadd.f32 0.0, %v7757
      %v7759 = vpop.f32.mrf.mxu0
      %v7760 = vadd.f32 0.0, %v7759
      %7761 = vmatmul.bf16.gmra.mxu0 %v7699
      %v7762 = vpop.f32.mrf.mxu0
      %v7763 = vadd.f32 0.0, %v7762
      %v7764 = vpop.f32.mrf.mxu0
      %v7765 = vadd.f32 0.0, %v7764
      %7766 = vmatmul.bf16.gmra.mxu0 %v7702
      %v7767 = vpop.f32.mrf.mxu0
      %v7768 = vadd.f32 0.0, %v7767
      %v7769 = vpop.f32.mrf.mxu0
      %v7770 = vadd.f32 0.0, %v7769
      %7771 = vmatmul.bf16.gmra.mxu0 %v7705
      %v7772 = vpop.f32.mrf.mxu0
      %v7773 = vadd.f32 0.0, %v7772
      %v7774 = vpop.f32.mrf.mxu0
      %v7775 = vadd.f32 0.0, %v7774
      %7776 = vmatmul.bf16.gmra.mxu0 %v7708
      %v7777 = vpop.f32.mrf.mxu0
      %v7778 = vadd.f32 0.0, %v7777
      %v7779 = vpop.f32.mrf.mxu0
      %v7780 = vadd.f32 0.0, %v7779
      %7781 = vmatmul.bf16.gmra.mxu0 %v7711
      %v7782 = vpop.f32.mrf.mxu0
      %v7783 = vadd.f32 0.0, %v7782
      %v7784 = vpop.f32.mrf.mxu0
      %v7785 = vadd.f32 0.0, %v7784
      %7786 = vmatmul.bf16.gmra.mxu0 %v7714
      %v7787 = vpop.f32.mrf.mxu0
      %v7788 = vadd.f32 0.0, %v7787
      %v7789 = vpop.f32.mrf.mxu0
      %v7790 = vadd.f32 0.0, %v7789
      %7791 = vmatmul.bf16.gmra.mxu0 %v7717
      %v7792 = vpop.f32.mrf.mxu0
      %v7793 = vadd.f32 0.0, %v7792
      %v7794 = vpop.f32.mrf.mxu0
      %v7795 = vadd.f32 0.0, %v7794
      %7796 = vmatmul.bf16.gmra.mxu0 %v7720
      %v7797 = vpop.f32.mrf.mxu0
      %v7798 = vadd.f32 0.0, %v7797
      %v7799 = vpop.f32.mrf.mxu0
      %v7800 = vadd.f32 0.0, %v7799
      %7801 = vmatmul.bf16.gmra.mxu0 %v7723
      %v7802 = vpop.f32.mrf.mxu0
      %v7803 = vadd.f32 0.0, %v7802
      %v7804 = vpop.f32.mrf.mxu0
      %v7805 = vadd.f32 0.0, %v7804
      %7806 = vmatmul.bf16.gmra.mxu0 %v7726
      %v7807 = vpop.f32.mrf.mxu0
      %v7808 = vadd.f32 0.0, %v7807
      %v7809 = vpop.f32.mrf.mxu0
      %v7810 = vadd.f32 0.0, %v7809
      %7811 = vmatmul.bf16.gmra.mxu0 %v7729
      %v7812 = vpop.f32.mrf.mxu0
      %v7813 = vadd.f32 0.0, %v7812
      %v7814 = vpop.f32.mrf.mxu0
      %v7815 = vadd.f32 0.0, %v7814
      %7816 = vmatmul.bf16.gmra.mxu0 %v7732
      %v7817 = vpop.f32.mrf.mxu0
      %v7818 = vadd.f32 0.0, %v7817
      %v7819 = vpop.f32.mrf.mxu0
      %v7820 = vadd.f32 0.0, %v7819
      %7821 = vmatmul.bf16.gmra.mxu0 %v7735
      %v7822 = vpop.f32.mrf.mxu0
      %v7823 = vadd.f32 0.0, %v7822
      %v7824 = vpop.f32.mrf.mxu0
      %v7825 = vadd.f32 0.0, %v7824
      %7826 = vmatmul.bf16.gmra.mxu0 %v7738
      %v7827 = vpop.f32.mrf.mxu0
      %v7828 = vadd.f32 0.0, %v7827
      %v7829 = vpop.f32.mrf.mxu0
      %v7830 = vadd.f32 0.0, %v7829
      %7831 = vdwg.mxu0
      %v7832 = vadd.f32 %v7608, %v7753
      %v7833 = vadd.f32 %v7609, %v7755
      %v7834 = vadd.f32 %v7610, %v7758
      %v7835 = vadd.f32 %v7611, %v7760
      %v7836 = vadd.f32 %v7612, %v7763
      %v7837 = vadd.f32 %v7613, %v7765
      %v7838 = vadd.f32 %v7614, %v7768
      %v7839 = vadd.f32 %v7615, %v7770
      %v7840 = vadd.f32 %v7616, %v7773
      %v7841 = vadd.f32 %v7617, %v7775
      %v7842 = vadd.f32 %v7618, %v7778
      %v7843 = vadd.f32 %v7619, %v7780
      %v7844 = vadd.f32 %v7620, %v7783
      %v7845 = vadd.f32 %v7621, %v7785
      %v7846 = vadd.f32 %v7622, %v7788
      %v7847 = vadd.f32 %v7623, %v7790
      %v7848 = vadd.f32 %v7624, %v7793
      %v7849 = vadd.f32 %v7625, %v7795
      %v7850 = vadd.f32 %v7626, %v7798
      %v7851 = vadd.f32 %v7627, %v7800
      %v7852 = vadd.f32 %v7628, %v7803
      %v7853 = vadd.f32 %v7629, %v7805
      %v7854 = vadd.f32 %v7630, %v7808
      %v7855 = vadd.f32 %v7631, %v7810
      %v7856 = vadd.f32 %v7632, %v7813
      %v7857 = vadd.f32 %v7633, %v7815
      %v7858 = vadd.f32 %v7634, %v7818
      %v7859 = vadd.f32 %v7635, %v7820
      %v7860 = vadd.f32 %v7636, %v7823
      %v7861 = vadd.f32 %v7637, %v7825
      %v7862 = vadd.f32 %v7638, %v7828
      %v7863 = vadd.f32 %v7639, %v7830
      %v7864 = vld [vmem:[%s233 + $0x1] sm:$0xff]
      %v7865 = vld [vmem:[%s233 + $0x9] sm:$0xff]
      %v7866 = vld [vmem:[%s233 + $0x19] sm:$0xff]
      %v7867 = vld [vmem:[%s233 + $0x21] sm:$0xff]
      %v7868 = vld [vmem:[%s233 + $0x31] sm:$0xff]
      %v7869 = vld [vmem:[%s233 + $0x39] sm:$0xff]
      %v7870 = vld [vmem:[%s233 + $0x49] sm:$0xff]
      %v7871 = vld [vmem:[%s233 + $0x51] sm:$0xff]
      %v7872 = vld [vmem:[%s233 + $0x61] sm:$0xff]
      %v7873 = vld [vmem:[%s233 + $0x69] sm:$0xff]
      %v7874 = vld [vmem:[%s233 + $0x79] sm:$0xff]
      %v7875 = vld [vmem:[%s233 + $0x81] sm:$0xff]
      %v7876 = vld [vmem:[%s233 + $0x91] sm:$0xff]
      %v7877 = vld [vmem:[%s233 + $0x99] sm:$0xff]
      %v7878 = vld [vmem:[%s233 + $0xa9] sm:$0xff]
      %v7879 = vld [vmem:[%s233 + $0xb1] sm:$0xff]
      %v7880 = vld [vmem:[%s233 + $0xc1] sm:$0xff]
      %v7881 = vld [vmem:[%s233 + $0xc9] sm:$0xff]
      %v7882 = vld [vmem:[%s233 + $0xd9] sm:$0xff]
      %v7883 = vld [vmem:[%s233 + $0xe1] sm:$0xff]
      %v7884 = vld [vmem:[%s233 + $0xf1] sm:$0xff]
      %v7885 = vld [vmem:[%s233 + $0xf9] sm:$0xff]
      %v7886 = vld [vmem:[%s233 + $0x109] sm:$0xff]
      %v7887 = vld [vmem:[%s233 + $0x111] sm:$0xff]
      %v7888 = vld [vmem:[%s233 + $0x121] sm:$0xff]
      %v7889 = vld [vmem:[%s233 + $0x129] sm:$0xff]
      %v7890 = vld [vmem:[%s233 + $0x139] sm:$0xff]
      %v7891 = vld [vmem:[%s233 + $0x141] sm:$0xff]
      %v7892 = vld [vmem:[%s233 + $0x151] sm:$0xff]
      %v7893 = vld [vmem:[%s233 + $0x159] sm:$0xff]
      %v7894 = vld [vmem:[%s233 + $0x169] sm:$0xff]
      %v7895 = vld [vmem:[%s233 + $0x171] sm:$0xff]
      %v7896 = vpack.c.bf16 %v7865, %v7864
      %v7897 = vpack.c.bf16 %v7867, %v7866
      %v7898 = vpack.c.bf16 %v7869, %v7868
      %v7899 = vpack.c.bf16 %v7871, %v7870
      %v7900 = vpack.c.bf16 %v7873, %v7872
      %v7901 = vpack.c.bf16 %v7875, %v7874
      %v7902 = vpack.c.bf16 %v7877, %v7876
      %v7903 = vpack.c.bf16 %v7879, %v7878
      %v7904 = vpack.c.bf16 %v7881, %v7880
      %v7905 = vpack.c.bf16 %v7883, %v7882
      %v7906 = vpack.c.bf16 %v7885, %v7884
      %v7907 = vpack.c.bf16 %v7887, %v7886
      %v7908 = vpack.c.bf16 %v7889, %v7888
      %v7909 = vpack.c.bf16 %v7891, %v7890
      %v7910 = vpack.c.bf16 %v7893, %v7892
      %v7911 = vpack.c.bf16 %v7895, %v7894
      %v7913 = vsel %vm145, %v7896, 0
      %v7916 = vsel %vm145, %v7897, 0
      %v7919 = vsel %vm145, %v7898, 0
      %v7922 = vsel %vm145, %v7899, 0
      %v7925 = vsel %vm145, %v7900, 0
      %v7928 = vsel %vm145, %v7901, 0
      %v7931 = vsel %vm145, %v7902, 0
      %v7934 = vsel %vm145, %v7903, 0
      %v7937 = vsel %vm145, %v7904, 0
      %v7940 = vsel %vm145, %v7905, 0
      %v7943 = vsel %vm145, %v7906, 0
      %v7946 = vsel %vm145, %v7907, 0
      %v7949 = vsel %vm145, %v7908, 0
      %v7952 = vsel %vm145, %v7909, 0
      %v7955 = vsel %vm145, %v7910, 0
      %v7958 = vsel %vm145, %v7911, 0
      %v7961 = vsel %vm414, %v4762, 0
      %7963 = vmatpush.bf16.msra.mxu0 0
      %7964 = vmatpush.bf16.msra.mxu0 0
      %7965 = vmatpush.bf16.msra.mxu0 0
      %7966 = vmatpush.bf16.msra.mxu0 0
      %7967 = vmatpush.bf16.msra.mxu0 0
      %7968 = vmatpush.bf16.msra.mxu0 0
      %7969 = vmatpush.bf16.msra.mxu0 0
      %7970 = vmatpush.bf16.msra.mxu0 %v7961
      %7971 = vmatmul.bf16.gmra.mxu0 %v7913
      %v7972 = vpop.f32.mrf.mxu0
      %v7973 = vadd.f32 0.0, %v7972
      %v7974 = vpop.f32.mrf.mxu0
      %v7975 = vadd.f32 0.0, %v7974
      %7976 = vmatmul.bf16.gmra.mxu0 %v7916
      %v7977 = vpop.f32.mrf.mxu0
      %v7978 = vadd.f32 0.0, %v7977
      %v7979 = vpop.f32.mrf.mxu0
      %v7980 = vadd.f32 0.0, %v7979
      %7981 = vmatmul.bf16.gmra.mxu0 %v7919
      %v7982 = vpop.f32.mrf.mxu0
      %v7983 = vadd.f32 0.0, %v7982
      %v7984 = vpop.f32.mrf.mxu0
      %v7985 = vadd.f32 0.0, %v7984
      %7986 = vmatmul.bf16.gmra.mxu0 %v7922
      %v7987 = vpop.f32.mrf.mxu0
      %v7988 = vadd.f32 0.0, %v7987
      %v7989 = vpop.f32.mrf.mxu0
      %v7990 = vadd.f32 0.0, %v7989
      %7991 = vmatmul.bf16.gmra.mxu0 %v7925
      %v7992 = vpop.f32.mrf.mxu0
      %v7993 = vadd.f32 0.0, %v7992
      %v7994 = vpop.f32.mrf.mxu0
      %v7995 = vadd.f32 0.0, %v7994
      %7996 = vmatmul.bf16.gmra.mxu0 %v7928
      %v7997 = vpop.f32.mrf.mxu0
      %v7998 = vadd.f32 0.0, %v7997
      %v7999 = vpop.f32.mrf.mxu0
      %v8000 = vadd.f32 0.0, %v7999
      %8001 = vmatmul.bf16.gmra.mxu0 %v7931
      %v8002 = vpop.f32.mrf.mxu0
      %v8003 = vadd.f32 0.0, %v8002
      %v8004 = vpop.f32.mrf.mxu0
      %v8005 = vadd.f32 0.0, %v8004
      %8006 = vmatmul.bf16.gmra.mxu0 %v7934
      %v8007 = vpop.f32.mrf.mxu0
      %v8008 = vadd.f32 0.0, %v8007
      %v8009 = vpop.f32.mrf.mxu0
      %v8010 = vadd.f32 0.0, %v8009
      %8011 = vmatmul.bf16.gmra.mxu0 %v7937
      %v8012 = vpop.f32.mrf.mxu0
      %v8013 = vadd.f32 0.0, %v8012
      %v8014 = vpop.f32.mrf.mxu0
      %v8015 = vadd.f32 0.0, %v8014
      %8016 = vmatmul.bf16.gmra.mxu0 %v7940
      %v8017 = vpop.f32.mrf.mxu0
      %v8018 = vadd.f32 0.0, %v8017
      %v8019 = vpop.f32.mrf.mxu0
      %v8020 = vadd.f32 0.0, %v8019
      %8021 = vmatmul.bf16.gmra.mxu0 %v7943
      %v8022 = vpop.f32.mrf.mxu0
      %v8023 = vadd.f32 0.0, %v8022
      %v8024 = vpop.f32.mrf.mxu0
      %v8025 = vadd.f32 0.0, %v8024
      %8026 = vmatmul.bf16.gmra.mxu0 %v7946
      %v8027 = vpop.f32.mrf.mxu0
      %v8028 = vadd.f32 0.0, %v8027
      %v8029 = vpop.f32.mrf.mxu0
      %v8030 = vadd.f32 0.0, %v8029
      %8031 = vmatmul.bf16.gmra.mxu0 %v7949
      %v8032 = vpop.f32.mrf.mxu0
      %v8033 = vadd.f32 0.0, %v8032
      %v8034 = vpop.f32.mrf.mxu0
      %v8035 = vadd.f32 0.0, %v8034
      %8036 = vmatmul.bf16.gmra.mxu0 %v7952
      %v8037 = vpop.f32.mrf.mxu0
      %v8038 = vadd.f32 0.0, %v8037
      %v8039 = vpop.f32.mrf.mxu0
      %v8040 = vadd.f32 0.0, %v8039
      %8041 = vmatmul.bf16.gmra.mxu0 %v7955
      %v8042 = vpop.f32.mrf.mxu0
      %v8043 = vadd.f32 0.0, %v8042
      %v8044 = vpop.f32.mrf.mxu0
      %v8045 = vadd.f32 0.0, %v8044
      %8046 = vmatmul.bf16.gmra.mxu0 %v7958
      %v8047 = vpop.f32.mrf.mxu0
      %v8048 = vadd.f32 0.0, %v8047
      %v8049 = vpop.f32.mrf.mxu0
      %v8050 = vadd.f32 0.0, %v8049
      %8051 = vdwg.mxu0
      %v8052 = vadd.f32 %v7832, %v7973
      %v8053 = vadd.f32 %v7833, %v7975
      %v8054 = vadd.f32 %v7834, %v7978
      %v8055 = vadd.f32 %v7835, %v7980
      %v8056 = vadd.f32 %v7836, %v7983
      %v8057 = vadd.f32 %v7837, %v7985
      %v8058 = vadd.f32 %v7838, %v7988
      %v8059 = vadd.f32 %v7839, %v7990
      %v8060 = vadd.f32 %v7840, %v7993
      %v8061 = vadd.f32 %v7841, %v7995
      %v8062 = vadd.f32 %v7842, %v7998
      %v8063 = vadd.f32 %v7843, %v8000
      %v8064 = vadd.f32 %v7844, %v8003
      %v8065 = vadd.f32 %v7845, %v8005
      %v8066 = vadd.f32 %v7846, %v8008
      %v8067 = vadd.f32 %v7847, %v8010
      %v8068 = vadd.f32 %v7848, %v8013
      %v8069 = vadd.f32 %v7849, %v8015
      %v8070 = vadd.f32 %v7850, %v8018
      %v8071 = vadd.f32 %v7851, %v8020
      %v8072 = vadd.f32 %v7852, %v8023
      %v8073 = vadd.f32 %v7853, %v8025
      %v8074 = vadd.f32 %v7854, %v8028
      %v8075 = vadd.f32 %v7855, %v8030
      %v8076 = vadd.f32 %v7856, %v8033
      %v8077 = vadd.f32 %v7857, %v8035
      %v8078 = vadd.f32 %v7858, %v8038
      %v8079 = vadd.f32 %v7859, %v8040
      %v8080 = vadd.f32 %v7860, %v8043
      %v8081 = vadd.f32 %v7861, %v8045
      %v8082 = vadd.f32 %v7862, %v8048
      %v8083 = vadd.f32 %v7863, %v8050
      %v8084 = vld [vmem:[%s233 + $0x2] sm:$0xff]
      %v8085 = vld [vmem:[%s233 + $0xa] sm:$0xff]
      %v8086 = vld [vmem:[%s233 + $0x1a] sm:$0xff]
      %v8087 = vld [vmem:[%s233 + $0x22] sm:$0xff]
      %v8088 = vld [vmem:[%s233 + $0x32] sm:$0xff]
      %v8089 = vld [vmem:[%s233 + $0x3a] sm:$0xff]
      %v8090 = vld [vmem:[%s233 + $0x4a] sm:$0xff]
      %v8091 = vld [vmem:[%s233 + $0x52] sm:$0xff]
      %v8092 = vld [vmem:[%s233 + $0x62] sm:$0xff]
      %v8093 = vld [vmem:[%s233 + $0x6a] sm:$0xff]
      %v8094 = vld [vmem:[%s233 + $0x7a] sm:$0xff]
      %v8095 = vld [vmem:[%s233 + $0x82] sm:$0xff]
      %v8096 = vld [vmem:[%s233 + $0x92] sm:$0xff]
      %v8097 = vld [vmem:[%s233 + $0x9a] sm:$0xff]
      %v8098 = vld [vmem:[%s233 + $0xaa] sm:$0xff]
      %v8099 = vld [vmem:[%s233 + $0xb2] sm:$0xff]
      %v8100 = vld [vmem:[%s233 + $0xc2] sm:$0xff]
      %v8101 = vld [vmem:[%s233 + $0xca] sm:$0xff]
      %v8102 = vld [vmem:[%s233 + $0xda] sm:$0xff]
      %v8103 = vld [vmem:[%s233 + $0xe2] sm:$0xff]
      %v8104 = vld [vmem:[%s233 + $0xf2] sm:$0xff]
      %v8105 = vld [vmem:[%s233 + $0xfa] sm:$0xff]
      %v8106 = vld [vmem:[%s233 + $0x10a] sm:$0xff]
      %v8107 = vld [vmem:[%s233 + $0x112] sm:$0xff]
      %v8108 = vld [vmem:[%s233 + $0x122] sm:$0xff]
      %v8109 = vld [vmem:[%s233 + $0x12a] sm:$0xff]
      %v8110 = vld [vmem:[%s233 + $0x13a] sm:$0xff]
      %v8111 = vld [vmem:[%s233 + $0x142] sm:$0xff]
      %v8112 = vld [vmem:[%s233 + $0x152] sm:$0xff]
      %v8113 = vld [vmem:[%s233 + $0x15a] sm:$0xff]
      %v8114 = vld [vmem:[%s233 + $0x16a] sm:$0xff]
      %v8115 = vld [vmem:[%s233 + $0x172] sm:$0xff]
      %v8116 = vpack.c.bf16 %v8085, %v8084
      %v8117 = vpack.c.bf16 %v8087, %v8086
      %v8118 = vpack.c.bf16 %v8089, %v8088
      %v8119 = vpack.c.bf16 %v8091, %v8090
      %v8120 = vpack.c.bf16 %v8093, %v8092
      %v8121 = vpack.c.bf16 %v8095, %v8094
      %v8122 = vpack.c.bf16 %v8097, %v8096
      %v8123 = vpack.c.bf16 %v8099, %v8098
      %v8124 = vpack.c.bf16 %v8101, %v8100
      %v8125 = vpack.c.bf16 %v8103, %v8102
      %v8126 = vpack.c.bf16 %v8105, %v8104
      %v8127 = vpack.c.bf16 %v8107, %v8106
      %v8128 = vpack.c.bf16 %v8109, %v8108
      %v8129 = vpack.c.bf16 %v8111, %v8110
      %v8130 = vpack.c.bf16 %v8113, %v8112
      %v8131 = vpack.c.bf16 %v8115, %v8114
      %v8133 = vunpack.c.l.b16 %v4762
      %v8134 = vpack.c.b16 %v8133, %v8133
      %v8135 = vrot.slane %v8134, 2
      %v8137 = vsel %vm145, %v8116, 0
      %v8140 = vsel %vm145, %v8117, 0
      %v8143 = vsel %vm145, %v8118, 0
      %v8146 = vsel %vm145, %v8119, 0
      %v8149 = vsel %vm145, %v8120, 0
      %v8152 = vsel %vm145, %v8121, 0
      %v8155 = vsel %vm145, %v8122, 0
      %v8158 = vsel %vm145, %v8123, 0
      %v8161 = vsel %vm145, %v8124, 0
      %v8164 = vsel %vm145, %v8125, 0
      %v8167 = vsel %vm145, %v8126, 0
      %v8170 = vsel %vm145, %v8127, 0
      %v8173 = vsel %vm145, %v8128, 0
      %v8176 = vsel %vm145, %v8129, 0
      %v8179 = vsel %vm145, %v8130, 0
      %v8182 = vsel %vm145, %v8131, 0
      %v8185 = vsel %vm414, %v8135, 0
      %8187 = vmatpush.bf16.msra.mxu0 0
      %8188 = vmatpush.bf16.msra.mxu0 0
      %8189 = vmatpush.bf16.msra.mxu0 0
      %8190 = vmatpush.bf16.msra.mxu0 0
      %8191 = vmatpush.bf16.msra.mxu0 0
      %8192 = vmatpush.bf16.msra.mxu0 0
      %8193 = vmatpush.bf16.msra.mxu0 0
      %8194 = vmatpush.bf16.msra.mxu0 %v8185
      %8195 = vmatmul.bf16.gmra.mxu0 %v8137
      %v8196 = vpop.f32.mrf.mxu0
      %v8197 = vadd.f32 0.0, %v8196
      %v8198 = vpop.f32.mrf.mxu0
      %v8199 = vadd.f32 0.0, %v8198
      %8200 = vmatmul.bf16.gmra.mxu0 %v8140
      %v8201 = vpop.f32.mrf.mxu0
      %v8202 = vadd.f32 0.0, %v8201
      %v8203 = vpop.f32.mrf.mxu0
      %v8204 = vadd.f32 0.0, %v8203
      %8205 = vmatmul.bf16.gmra.mxu0 %v8143
      %v8206 = vpop.f32.mrf.mxu0
      %v8207 = vadd.f32 0.0, %v8206
      %v8208 = vpop.f32.mrf.mxu0
      %v8209 = vadd.f32 0.0, %v8208
      %8210 = vmatmul.bf16.gmra.mxu0 %v8146
      %v8211 = vpop.f32.mrf.mxu0
      %v8212 = vadd.f32 0.0, %v8211
      %v8213 = vpop.f32.mrf.mxu0
      %v8214 = vadd.f32 0.0, %v8213
      %8215 = vmatmul.bf16.gmra.mxu0 %v8149
      %v8216 = vpop.f32.mrf.mxu0
      %v8217 = vadd.f32 0.0, %v8216
      %v8218 = vpop.f32.mrf.mxu0
      %v8219 = vadd.f32 0.0, %v8218
      %8220 = vmatmul.bf16.gmra.mxu0 %v8152
      %v8221 = vpop.f32.mrf.mxu0
      %v8222 = vadd.f32 0.0, %v8221
      %v8223 = vpop.f32.mrf.mxu0
      %v8224 = vadd.f32 0.0, %v8223
      %8225 = vmatmul.bf16.gmra.mxu0 %v8155
      %v8226 = vpop.f32.mrf.mxu0
      %v8227 = vadd.f32 0.0, %v8226
      %v8228 = vpop.f32.mrf.mxu0
      %v8229 = vadd.f32 0.0, %v8228
      %8230 = vmatmul.bf16.gmra.mxu0 %v8158
      %v8231 = vpop.f32.mrf.mxu0
      %v8232 = vadd.f32 0.0, %v8231
      %v8233 = vpop.f32.mrf.mxu0
      %v8234 = vadd.f32 0.0, %v8233
      %8235 = vmatmul.bf16.gmra.mxu0 %v8161
      %v8236 = vpop.f32.mrf.mxu0
      %v8237 = vadd.f32 0.0, %v8236
      %v8238 = vpop.f32.mrf.mxu0
      %v8239 = vadd.f32 0.0, %v8238
      %8240 = vmatmul.bf16.gmra.mxu0 %v8164
      %v8241 = vpop.f32.mrf.mxu0
      %v8242 = vadd.f32 0.0, %v8241
      %v8243 = vpop.f32.mrf.mxu0
      %v8244 = vadd.f32 0.0, %v8243
      %8245 = vmatmul.bf16.gmra.mxu0 %v8167
      %v8246 = vpop.f32.mrf.mxu0
      %v8247 = vadd.f32 0.0, %v8246
      %v8248 = vpop.f32.mrf.mxu0
      %v8249 = vadd.f32 0.0, %v8248
      %8250 = vmatmul.bf16.gmra.mxu0 %v8170
      %v8251 = vpop.f32.mrf.mxu0
      %v8252 = vadd.f32 0.0, %v8251
      %v8253 = vpop.f32.mrf.mxu0
      %v8254 = vadd.f32 0.0, %v8253
      %8255 = vmatmul.bf16.gmra.mxu0 %v8173
      %v8256 = vpop.f32.mrf.mxu0
      %v8257 = vadd.f32 0.0, %v8256
      %v8258 = vpop.f32.mrf.mxu0
      %v8259 = vadd.f32 0.0, %v8258
      %8260 = vmatmul.bf16.gmra.mxu0 %v8176
      %v8261 = vpop.f32.mrf.mxu0
      %v8262 = vadd.f32 0.0, %v8261
      %v8263 = vpop.f32.mrf.mxu0
      %v8264 = vadd.f32 0.0, %v8263
      %8265 = vmatmul.bf16.gmra.mxu0 %v8179
      %v8266 = vpop.f32.mrf.mxu0
      %v8267 = vadd.f32 0.0, %v8266
      %v8268 = vpop.f32.mrf.mxu0
      %v8269 = vadd.f32 0.0, %v8268
      %8270 = vmatmul.bf16.gmra.mxu0 %v8182
      %v8271 = vpop.f32.mrf.mxu0
      %v8272 = vadd.f32 0.0, %v8271
      %v8273 = vpop.f32.mrf.mxu0
      %v8274 = vadd.f32 0.0, %v8273
      %8275 = vdwg.mxu0
      %v8276 = vadd.f32 %v8052, %v8197
      %v8277 = vadd.f32 %v8053, %v8199
      %v8278 = vadd.f32 %v8054, %v8202
      %v8279 = vadd.f32 %v8055, %v8204
      %v8280 = vadd.f32 %v8056, %v8207
      %v8281 = vadd.f32 %v8057, %v8209
      %v8282 = vadd.f32 %v8058, %v8212
      %v8283 = vadd.f32 %v8059, %v8214
      %v8284 = vadd.f32 %v8060, %v8217
      %v8285 = vadd.f32 %v8061, %v8219
      %v8286 = vadd.f32 %v8062, %v8222
      %v8287 = vadd.f32 %v8063, %v8224
      %v8288 = vadd.f32 %v8064, %v8227
      %v8289 = vadd.f32 %v8065, %v8229
      %v8290 = vadd.f32 %v8066, %v8232
      %v8291 = vadd.f32 %v8067, %v8234
      %v8292 = vadd.f32 %v8068, %v8237
      %v8293 = vadd.f32 %v8069, %v8239
      %v8294 = vadd.f32 %v8070, %v8242
      %v8295 = vadd.f32 %v8071, %v8244
      %v8296 = vadd.f32 %v8072, %v8247
      %v8297 = vadd.f32 %v8073, %v8249
      %v8298 = vadd.f32 %v8074, %v8252
      %v8299 = vadd.f32 %v8075, %v8254
      %v8300 = vadd.f32 %v8076, %v8257
      %v8301 = vadd.f32 %v8077, %v8259
      %v8302 = vadd.f32 %v8078, %v8262
      %v8303 = vadd.f32 %v8079, %v8264
      %v8304 = vadd.f32 %v8080, %v8267
      %v8305 = vadd.f32 %v8081, %v8269
      %v8306 = vadd.f32 %v8082, %v8272
      %v8307 = vadd.f32 %v8083, %v8274
      %v8308 = vld [vmem:[%s1535] sm:$0xff]
      %v8309 = vld [vmem:[%s1535 + $0x8] sm:$0xff]
      %v8310 = vld [vmem:[%s1535 + $0x18] sm:$0xff]
      %v8311 = vld [vmem:[%s1535 + $0x20] sm:$0xff]
      %v8312 = vld [vmem:[%s1535 + $0x30] sm:$0xff]
      %v8313 = vld [vmem:[%s1535 + $0x38] sm:$0xff]
      %v8314 = vld [vmem:[%s1535 + $0x48] sm:$0xff]
      %v8315 = vld [vmem:[%s1535 + $0x50] sm:$0xff]
      %v8316 = vld [vmem:[%s1535 + $0x60] sm:$0xff]
      %v8317 = vld [vmem:[%s1535 + $0x68] sm:$0xff]
      %v8318 = vld [vmem:[%s1535 + $0x78] sm:$0xff]
      %v8319 = vld [vmem:[%s1535 + $0x80] sm:$0xff]
      %v8320 = vld [vmem:[%s1535 + $0x90] sm:$0xff]
      %v8321 = vld [vmem:[%s1535 + $0x98] sm:$0xff]
      %v8322 = vld [vmem:[%s1535 + $0xa8] sm:$0xff]
      %v8323 = vld [vmem:[%s1535 + $0xb0] sm:$0xff]
      %v8324 = vld [vmem:[%s1535 + $0xc0] sm:$0xff]
      %v8325 = vld [vmem:[%s1535 + $0xc8] sm:$0xff]
      %v8326 = vld [vmem:[%s1535 + $0xd8] sm:$0xff]
      %v8327 = vld [vmem:[%s1535 + $0xe0] sm:$0xff]
      %v8328 = vld [vmem:[%s1535 + $0xf0] sm:$0xff]
      %v8329 = vld [vmem:[%s1535 + $0xf8] sm:$0xff]
      %v8330 = vld [vmem:[%s1535 + $0x108] sm:$0xff]
      %v8331 = vld [vmem:[%s1535 + $0x110] sm:$0xff]
      %v8332 = vld [vmem:[%s1535 + $0x120] sm:$0xff]
      %v8333 = vld [vmem:[%s1535 + $0x128] sm:$0xff]
      %v8334 = vld [vmem:[%s1535 + $0x138] sm:$0xff]
      %v8335 = vld [vmem:[%s1535 + $0x140] sm:$0xff]
      %v8336 = vld [vmem:[%s1535 + $0x150] sm:$0xff]
      %v8337 = vld [vmem:[%s1535 + $0x158] sm:$0xff]
      %v8338 = vld [vmem:[%s1535 + $0x168] sm:$0xff]
      %v8339 = vld [vmem:[%s1535 + $0x170] sm:$0xff]
      %v8340 = vpack.c.bf16 %v8309, %v8308
      %v8341 = vpack.c.bf16 %v8311, %v8310
      %v8342 = vpack.c.bf16 %v8313, %v8312
      %v8343 = vpack.c.bf16 %v8315, %v8314
      %v8344 = vpack.c.bf16 %v8317, %v8316
      %v8345 = vpack.c.bf16 %v8319, %v8318
      %v8346 = vpack.c.bf16 %v8321, %v8320
      %v8347 = vpack.c.bf16 %v8323, %v8322
      %v8348 = vpack.c.bf16 %v8325, %v8324
      %v8349 = vpack.c.bf16 %v8327, %v8326
      %v8350 = vpack.c.bf16 %v8329, %v8328
      %v8351 = vpack.c.bf16 %v8331, %v8330
      %v8352 = vpack.c.bf16 %v8333, %v8332
      %v8353 = vpack.c.bf16 %v8335, %v8334
      %v8354 = vpack.c.bf16 %v8337, %v8336
      %v8355 = vpack.c.bf16 %v8339, %v8338
      %v8357 = vsel %vm145, %v8340, 0
      %v8360 = vsel %vm145, %v8341, 0
      %v8363 = vsel %vm145, %v8342, 0
      %v8366 = vsel %vm145, %v8343, 0
      %v8369 = vsel %vm145, %v8344, 0
      %v8372 = vsel %vm145, %v8345, 0
      %v8375 = vsel %vm145, %v8346, 0
      %v8378 = vsel %vm145, %v8347, 0
      %v8381 = vsel %vm145, %v8348, 0
      %v8384 = vsel %vm145, %v8349, 0
      %v8387 = vsel %vm145, %v8350, 0
      %v8390 = vsel %vm145, %v8351, 0
      %v8393 = vsel %vm145, %v8352, 0
      %v8396 = vsel %vm145, %v8353, 0
      %v8399 = vsel %vm145, %v8354, 0
      %v8402 = vsel %vm145, %v8355, 0
      %v8405 = vsel %vm414, %v4763, 0
      %8407 = vmatpush.bf16.msra.mxu0 0
      %8408 = vmatpush.bf16.msra.mxu0 0
      %8409 = vmatpush.bf16.msra.mxu0 0
      %8410 = vmatpush.bf16.msra.mxu0 0
      %8411 = vmatpush.bf16.msra.mxu0 0
      %8412 = vmatpush.bf16.msra.mxu0 0
      %8413 = vmatpush.bf16.msra.mxu0 0
      %8414 = vmatpush.bf16.msra.mxu0 %v8405
      %8415 = vmatmul.bf16.gmra.mxu0 %v8357
      %v8416 = vpop.f32.mrf.mxu0
      %v8417 = vadd.f32 0.0, %v8416
      %v8418 = vpop.f32.mrf.mxu0
      %v8419 = vadd.f32 0.0, %v8418
      %8420 = vmatmul.bf16.gmra.mxu0 %v8360
      %v8421 = vpop.f32.mrf.mxu0
      %v8422 = vadd.f32 0.0, %v8421
      %v8423 = vpop.f32.mrf.mxu0
      %v8424 = vadd.f32 0.0, %v8423
      %8425 = vmatmul.bf16.gmra.mxu0 %v8363
      %v8426 = vpop.f32.mrf.mxu0
      %v8427 = vadd.f32 0.0, %v8426
      %v8428 = vpop.f32.mrf.mxu0
      %v8429 = vadd.f32 0.0, %v8428
      %8430 = vmatmul.bf16.gmra.mxu0 %v8366
      %v8431 = vpop.f32.mrf.mxu0
      %v8432 = vadd.f32 0.0, %v8431
      %v8433 = vpop.f32.mrf.mxu0
      %v8434 = vadd.f32 0.0, %v8433
      %8435 = vmatmul.bf16.gmra.mxu0 %v8369
      %v8436 = vpop.f32.mrf.mxu0
      %v8437 = vadd.f32 0.0, %v8436
      %v8438 = vpop.f32.mrf.mxu0
      %v8439 = vadd.f32 0.0, %v8438
      %8440 = vmatmul.bf16.gmra.mxu0 %v8372
      %v8441 = vpop.f32.mrf.mxu0
      %v8442 = vadd.f32 0.0, %v8441
      %v8443 = vpop.f32.mrf.mxu0
      %v8444 = vadd.f32 0.0, %v8443
      %8445 = vmatmul.bf16.gmra.mxu0 %v8375
      %v8446 = vpop.f32.mrf.mxu0
      %v8447 = vadd.f32 0.0, %v8446
      %v8448 = vpop.f32.mrf.mxu0
      %v8449 = vadd.f32 0.0, %v8448
      %8450 = vmatmul.bf16.gmra.mxu0 %v8378
      %v8451 = vpop.f32.mrf.mxu0
      %v8452 = vadd.f32 0.0, %v8451
      %v8453 = vpop.f32.mrf.mxu0
      %v8454 = vadd.f32 0.0, %v8453
      %8455 = vmatmul.bf16.gmra.mxu0 %v8381
      %v8456 = vpop.f32.mrf.mxu0
      %v8457 = vadd.f32 0.0, %v8456
      %v8458 = vpop.f32.mrf.mxu0
      %v8459 = vadd.f32 0.0, %v8458
      %8460 = vmatmul.bf16.gmra.mxu0 %v8384
      %v8461 = vpop.f32.mrf.mxu0
      %v8462 = vadd.f32 0.0, %v8461
      %v8463 = vpop.f32.mrf.mxu0
      %v8464 = vadd.f32 0.0, %v8463
      %8465 = vmatmul.bf16.gmra.mxu0 %v8387
      %v8466 = vpop.f32.mrf.mxu0
      %v8467 = vadd.f32 0.0, %v8466
      %v8468 = vpop.f32.mrf.mxu0
      %v8469 = vadd.f32 0.0, %v8468
      %8470 = vmatmul.bf16.gmra.mxu0 %v8390
      %v8471 = vpop.f32.mrf.mxu0
      %v8472 = vadd.f32 0.0, %v8471
      %v8473 = vpop.f32.mrf.mxu0
      %v8474 = vadd.f32 0.0, %v8473
      %8475 = vmatmul.bf16.gmra.mxu0 %v8393
      %v8476 = vpop.f32.mrf.mxu0
      %v8477 = vadd.f32 0.0, %v8476
      %v8478 = vpop.f32.mrf.mxu0
      %v8479 = vadd.f32 0.0, %v8478
      %8480 = vmatmul.bf16.gmra.mxu0 %v8396
      %v8481 = vpop.f32.mrf.mxu0
      %v8482 = vadd.f32 0.0, %v8481
      %v8483 = vpop.f32.mrf.mxu0
      %v8484 = vadd.f32 0.0, %v8483
      %8485 = vmatmul.bf16.gmra.mxu0 %v8399
      %v8486 = vpop.f32.mrf.mxu0
      %v8487 = vadd.f32 0.0, %v8486
      %v8488 = vpop.f32.mrf.mxu0
      %v8489 = vadd.f32 0.0, %v8488
      %8490 = vmatmul.bf16.gmra.mxu0 %v8402
      %v8491 = vpop.f32.mrf.mxu0
      %v8492 = vadd.f32 0.0, %v8491
      %v8493 = vpop.f32.mrf.mxu0
      %v8494 = vadd.f32 0.0, %v8493
      %8495 = vdwg.mxu0
      %v8496 = vadd.f32 %v8276, %v8417
      %v8497 = vadd.f32 %v8277, %v8419
      %v8498 = vadd.f32 %v8278, %v8422
      %v8499 = vadd.f32 %v8279, %v8424
      %v8500 = vadd.f32 %v8280, %v8427
      %v8501 = vadd.f32 %v8281, %v8429
      %v8502 = vadd.f32 %v8282, %v8432
      %v8503 = vadd.f32 %v8283, %v8434
      %v8504 = vadd.f32 %v8284, %v8437
      %v8505 = vadd.f32 %v8285, %v8439
      %v8506 = vadd.f32 %v8286, %v8442
      %v8507 = vadd.f32 %v8287, %v8444
      %v8508 = vadd.f32 %v8288, %v8447
      %v8509 = vadd.f32 %v8289, %v8449
      %v8510 = vadd.f32 %v8290, %v8452
      %v8511 = vadd.f32 %v8291, %v8454
      %v8512 = vadd.f32 %v8292, %v8457
      %v8513 = vadd.f32 %v8293, %v8459
      %v8514 = vadd.f32 %v8294, %v8462
      %v8515 = vadd.f32 %v8295, %v8464
      %v8516 = vadd.f32 %v8296, %v8467
      %v8517 = vadd.f32 %v8297, %v8469
      %v8518 = vadd.f32 %v8298, %v8472
      %v8519 = vadd.f32 %v8299, %v8474
      %v8520 = vadd.f32 %v8300, %v8477
      %v8521 = vadd.f32 %v8301, %v8479
      %v8522 = vadd.f32 %v8302, %v8482
      %v8523 = vadd.f32 %v8303, %v8484
      %v8524 = vadd.f32 %v8304, %v8487
      %v8525 = vadd.f32 %v8305, %v8489
      %v8526 = vadd.f32 %v8306, %v8492
      %v8527 = vadd.f32 %v8307, %v8494
      %v8528 = vld [vmem:[%s1535 + $0x1] sm:$0xff]
      %v8529 = vld [vmem:[%s1535 + $0x9] sm:$0xff]
      %v8530 = vld [vmem:[%s1535 + $0x19] sm:$0xff]
      %v8531 = vld [vmem:[%s1535 + $0x21] sm:$0xff]
      %v8532 = vld [vmem:[%s1535 + $0x31] sm:$0xff]
      %v8533 = vld [vmem:[%s1535 + $0x39] sm:$0xff]
      %v8534 = vld [vmem:[%s1535 + $0x49] sm:$0xff]
      %v8535 = vld [vmem:[%s1535 + $0x51] sm:$0xff]
      %v8536 = vld [vmem:[%s1535 + $0x61] sm:$0xff]
      %v8537 = vld [vmem:[%s1535 + $0x69] sm:$0xff]
      %v8538 = vld [vmem:[%s1535 + $0x79] sm:$0xff]
      %v8539 = vld [vmem:[%s1535 + $0x81] sm:$0xff]
      %v8540 = vld [vmem:[%s1535 + $0x91] sm:$0xff]
      %v8541 = vld [vmem:[%s1535 + $0x99] sm:$0xff]
      %v8542 = vld [vmem:[%s1535 + $0xa9] sm:$0xff]
      %v8543 = vld [vmem:[%s1535 + $0xb1] sm:$0xff]
      %v8544 = vld [vmem:[%s1535 + $0xc1] sm:$0xff]
      %v8545 = vld [vmem:[%s1535 + $0xc9] sm:$0xff]
      %v8546 = vld [vmem:[%s1535 + $0xd9] sm:$0xff]
      %v8547 = vld [vmem:[%s1535 + $0xe1] sm:$0xff]
      %v8548 = vld [vmem:[%s1535 + $0xf1] sm:$0xff]
      %v8549 = vld [vmem:[%s1535 + $0xf9] sm:$0xff]
      %v8550 = vld [vmem:[%s1535 + $0x109] sm:$0xff]
      %v8551 = vld [vmem:[%s1535 + $0x111] sm:$0xff]
      %v8552 = vld [vmem:[%s1535 + $0x121] sm:$0xff]
      %v8553 = vld [vmem:[%s1535 + $0x129] sm:$0xff]
      %v8554 = vld [vmem:[%s1535 + $0x139] sm:$0xff]
      %v8555 = vld [vmem:[%s1535 + $0x141] sm:$0xff]
      %v8556 = vld [vmem:[%s1535 + $0x151] sm:$0xff]
      %v8557 = vld [vmem:[%s1535 + $0x159] sm:$0xff]
      %v8558 = vld [vmem:[%s1535 + $0x169] sm:$0xff]
      %v8559 = vld [vmem:[%s1535 + $0x171] sm:$0xff]
      %v8560 = vpack.c.bf16 %v8529, %v8528
      %v8561 = vpack.c.bf16 %v8531, %v8530
      %v8562 = vpack.c.bf16 %v8533, %v8532
      %v8563 = vpack.c.bf16 %v8535, %v8534
      %v8564 = vpack.c.bf16 %v8537, %v8536
      %v8565 = vpack.c.bf16 %v8539, %v8538
      %v8566 = vpack.c.bf16 %v8541, %v8540
      %v8567 = vpack.c.bf16 %v8543, %v8542
      %v8568 = vpack.c.bf16 %v8545, %v8544
      %v8569 = vpack.c.bf16 %v8547, %v8546
      %v8570 = vpack.c.bf16 %v8549, %v8548
      %v8571 = vpack.c.bf16 %v8551, %v8550
      %v8572 = vpack.c.bf16 %v8553, %v8552
      %v8573 = vpack.c.bf16 %v8555, %v8554
      %v8574 = vpack.c.bf16 %v8557, %v8556
      %v8575 = vpack.c.bf16 %v8559, %v8558
      %v8577 = vunpack.c.l.b16 %v4763
      %v8578 = vpack.c.b16 %v8577, %v8577
      %v8579 = vrot.slane %v8578, 2
      %v8581 = vsel %vm145, %v8560, 0
      %v8584 = vsel %vm145, %v8561, 0
      %v8587 = vsel %vm145, %v8562, 0
      %v8590 = vsel %vm145, %v8563, 0
      %v8593 = vsel %vm145, %v8564, 0
      %v8596 = vsel %vm145, %v8565, 0
      %v8599 = vsel %vm145, %v8566, 0
      %v8602 = vsel %vm145, %v8567, 0
      %v8605 = vsel %vm145, %v8568, 0
      %v8608 = vsel %vm145, %v8569, 0
      %v8611 = vsel %vm145, %v8570, 0
      %v8614 = vsel %vm145, %v8571, 0
      %v8617 = vsel %vm145, %v8572, 0
      %v8620 = vsel %vm145, %v8573, 0
      %v8623 = vsel %vm145, %v8574, 0
      %v8626 = vsel %vm145, %v8575, 0
      %v8629 = vsel %vm414, %v8579, 0
      %8631 = vmatpush.bf16.msra.mxu0 0
      %8632 = vmatpush.bf16.msra.mxu0 0
      %8633 = vmatpush.bf16.msra.mxu0 0
      %8634 = vmatpush.bf16.msra.mxu0 0
      %8635 = vmatpush.bf16.msra.mxu0 0
      %8636 = vmatpush.bf16.msra.mxu0 0
      %8637 = vmatpush.bf16.msra.mxu0 0
      %8638 = vmatpush.bf16.msra.mxu0 %v8629
      %8639 = vmatmul.bf16.gmra.mxu0 %v8581
      %v8640 = vpop.f32.mrf.mxu0
      %v8641 = vadd.f32 0.0, %v8640
      %v8642 = vpop.f32.mrf.mxu0
      %v8643 = vadd.f32 0.0, %v8642
      %8644 = vmatmul.bf16.gmra.mxu0 %v8584
      %v8645 = vpop.f32.mrf.mxu0
      %v8646 = vadd.f32 0.0, %v8645
      %v8647 = vpop.f32.mrf.mxu0
      %v8648 = vadd.f32 0.0, %v8647
      %8649 = vmatmul.bf16.gmra.mxu0 %v8587
      %v8650 = vpop.f32.mrf.mxu0
      %v8651 = vadd.f32 0.0, %v8650
      %v8652 = vpop.f32.mrf.mxu0
      %v8653 = vadd.f32 0.0, %v8652
      %8654 = vmatmul.bf16.gmra.mxu0 %v8590
      %v8655 = vpop.f32.mrf.mxu0
      %v8656 = vadd.f32 0.0, %v8655
      %v8657 = vpop.f32.mrf.mxu0
      %v8658 = vadd.f32 0.0, %v8657
      %8659 = vmatmul.bf16.gmra.mxu0 %v8593
      %v8660 = vpop.f32.mrf.mxu0
      %v8661 = vadd.f32 0.0, %v8660
      %v8662 = vpop.f32.mrf.mxu0
      %v8663 = vadd.f32 0.0, %v8662
      %8664 = vmatmul.bf16.gmra.mxu0 %v8596
      %v8665 = vpop.f32.mrf.mxu0
      %v8666 = vadd.f32 0.0, %v8665
      %v8667 = vpop.f32.mrf.mxu0
      %v8668 = vadd.f32 0.0, %v8667
      %8669 = vmatmul.bf16.gmra.mxu0 %v8599
      %v8670 = vpop.f32.mrf.mxu0
      %v8671 = vadd.f32 0.0, %v8670
      %v8672 = vpop.f32.mrf.mxu0
      %v8673 = vadd.f32 0.0, %v8672
      %8674 = vmatmul.bf16.gmra.mxu0 %v8602
      %v8675 = vpop.f32.mrf.mxu0
      %v8676 = vadd.f32 0.0, %v8675
      %v8677 = vpop.f32.mrf.mxu0
      %v8678 = vadd.f32 0.0, %v8677
      %8679 = vmatmul.bf16.gmra.mxu0 %v8605
      %v8680 = vpop.f32.mrf.mxu0
      %v8681 = vadd.f32 0.0, %v8680
      %v8682 = vpop.f32.mrf.mxu0
      %v8683 = vadd.f32 0.0, %v8682
      %8684 = vmatmul.bf16.gmra.mxu0 %v8608
      %v8685 = vpop.f32.mrf.mxu0
      %v8686 = vadd.f32 0.0, %v8685
      %v8687 = vpop.f32.mrf.mxu0
      %v8688 = vadd.f32 0.0, %v8687
      %8689 = vmatmul.bf16.gmra.mxu0 %v8611
      %v8690 = vpop.f32.mrf.mxu0
      %v8691 = vadd.f32 0.0, %v8690
      %v8692 = vpop.f32.mrf.mxu0
      %v8693 = vadd.f32 0.0, %v8692
      %8694 = vmatmul.bf16.gmra.mxu0 %v8614
      %v8695 = vpop.f32.mrf.mxu0
      %v8696 = vadd.f32 0.0, %v8695
      %v8697 = vpop.f32.mrf.mxu0
      %v8698 = vadd.f32 0.0, %v8697
      %8699 = vmatmul.bf16.gmra.mxu0 %v8617
      %v8700 = vpop.f32.mrf.mxu0
      %v8701 = vadd.f32 0.0, %v8700
      %v8702 = vpop.f32.mrf.mxu0
      %v8703 = vadd.f32 0.0, %v8702
      %8704 = vmatmul.bf16.gmra.mxu0 %v8620
      %v8705 = vpop.f32.mrf.mxu0
      %v8706 = vadd.f32 0.0, %v8705
      %v8707 = vpop.f32.mrf.mxu0
      %v8708 = vadd.f32 0.0, %v8707
      %8709 = vmatmul.bf16.gmra.mxu0 %v8623
      %v8710 = vpop.f32.mrf.mxu0
      %v8711 = vadd.f32 0.0, %v8710
      %v8712 = vpop.f32.mrf.mxu0
      %v8713 = vadd.f32 0.0, %v8712
      %8714 = vmatmul.bf16.gmra.mxu0 %v8626
      %v8715 = vpop.f32.mrf.mxu0
      %v8716 = vadd.f32 0.0, %v8715
      %v8717 = vpop.f32.mrf.mxu0
      %v8718 = vadd.f32 0.0, %v8717
      %8719 = vdwg.mxu0
      %v8720 = vadd.f32 %v8496, %v8641
      %v8721 = vadd.f32 %v8497, %v8643
      %v8722 = vadd.f32 %v8498, %v8646
      %v8723 = vadd.f32 %v8499, %v8648
      %v8724 = vadd.f32 %v8500, %v8651
      %v8725 = vadd.f32 %v8501, %v8653
      %v8726 = vadd.f32 %v8502, %v8656
      %v8727 = vadd.f32 %v8503, %v8658
      %v8728 = vadd.f32 %v8504, %v8661
      %v8729 = vadd.f32 %v8505, %v8663
      %v8730 = vadd.f32 %v8506, %v8666
      %v8731 = vadd.f32 %v8507, %v8668
      %v8732 = vadd.f32 %v8508, %v8671
      %v8733 = vadd.f32 %v8509, %v8673
      %v8734 = vadd.f32 %v8510, %v8676
      %v8735 = vadd.f32 %v8511, %v8678
      %v8736 = vadd.f32 %v8512, %v8681
      %v8737 = vadd.f32 %v8513, %v8683
      %v8738 = vadd.f32 %v8514, %v8686
      %v8739 = vadd.f32 %v8515, %v8688
      %v8740 = vadd.f32 %v8516, %v8691
      %v8741 = vadd.f32 %v8517, %v8693
      %v8742 = vadd.f32 %v8518, %v8696
      %v8743 = vadd.f32 %v8519, %v8698
      %v8744 = vadd.f32 %v8520, %v8701
      %v8745 = vadd.f32 %v8521, %v8703
      %v8746 = vadd.f32 %v8522, %v8706
      %v8747 = vadd.f32 %v8523, %v8708
      %v8748 = vadd.f32 %v8524, %v8711
      %v8749 = vadd.f32 %v8525, %v8713
      %v8750 = vadd.f32 %v8526, %v8716
      %v8751 = vadd.f32 %v8527, %v8718
      %v8752 = vld [vmem:[%s1535 + $0x2] sm:$0xff]
      %v8753 = vld [vmem:[%s1535 + $0xa] sm:$0xff]
      %v8754 = vld [vmem:[%s1535 + $0x1a] sm:$0xff]
      %v8755 = vld [vmem:[%s1535 + $0x22] sm:$0xff]
      %v8756 = vld [vmem:[%s1535 + $0x32] sm:$0xff]
      %v8757 = vld [vmem:[%s1535 + $0x3a] sm:$0xff]
      %v8758 = vld [vmem:[%s1535 + $0x4a] sm:$0xff]
      %v8759 = vld [vmem:[%s1535 + $0x52] sm:$0xff]
      %v8760 = vld [vmem:[%s1535 + $0x62] sm:$0xff]
      %v8761 = vld [vmem:[%s1535 + $0x6a] sm:$0xff]
      %v8762 = vld [vmem:[%s1535 + $0x7a] sm:$0xff]
      %v8763 = vld [vmem:[%s1535 + $0x82] sm:$0xff]
      %v8764 = vld [vmem:[%s1535 + $0x92] sm:$0xff]
      %v8765 = vld [vmem:[%s1535 + $0x9a] sm:$0xff]
      %v8766 = vld [vmem:[%s1535 + $0xaa] sm:$0xff]
      %v8767 = vld [vmem:[%s1535 + $0xb2] sm:$0xff]
      %v8768 = vld [vmem:[%s1535 + $0xc2] sm:$0xff]
      %v8769 = vld [vmem:[%s1535 + $0xca] sm:$0xff]
      %v8770 = vld [vmem:[%s1535 + $0xda] sm:$0xff]
      %v8771 = vld [vmem:[%s1535 + $0xe2] sm:$0xff]
      %v8772 = vld [vmem:[%s1535 + $0xf2] sm:$0xff]
      %v8773 = vld [vmem:[%s1535 + $0xfa] sm:$0xff]
      %v8774 = vld [vmem:[%s1535 + $0x10a] sm:$0xff]
      %v8775 = vld [vmem:[%s1535 + $0x112] sm:$0xff]
      %v8776 = vld [vmem:[%s1535 + $0x122] sm:$0xff]
      %v8777 = vld [vmem:[%s1535 + $0x12a] sm:$0xff]
      %v8778 = vld [vmem:[%s1535 + $0x13a] sm:$0xff]
      %v8779 = vld [vmem:[%s1535 + $0x142] sm:$0xff]
      %v8780 = vld [vmem:[%s1535 + $0x152] sm:$0xff]
      %v8781 = vld [vmem:[%s1535 + $0x15a] sm:$0xff]
      %v8782 = vld [vmem:[%s1535 + $0x16a] sm:$0xff]
      %v8783 = vld [vmem:[%s1535 + $0x172] sm:$0xff]
      %v8784 = vpack.c.bf16 %v8753, %v8752
      %v8785 = vpack.c.bf16 %v8755, %v8754
      %v8786 = vpack.c.bf16 %v8757, %v8756
      %v8787 = vpack.c.bf16 %v8759, %v8758
      %v8788 = vpack.c.bf16 %v8761, %v8760
      %v8789 = vpack.c.bf16 %v8763, %v8762
      %v8790 = vpack.c.bf16 %v8765, %v8764
      %v8791 = vpack.c.bf16 %v8767, %v8766
      %v8792 = vpack.c.bf16 %v8769, %v8768
      %v8793 = vpack.c.bf16 %v8771, %v8770
      %v8794 = vpack.c.bf16 %v8773, %v8772
      %v8795 = vpack.c.bf16 %v8775, %v8774
      %v8796 = vpack.c.bf16 %v8777, %v8776
      %v8797 = vpack.c.bf16 %v8779, %v8778
      %v8798 = vpack.c.bf16 %v8781, %v8780
      %v8799 = vpack.c.bf16 %v8783, %v8782
      %v8801 = vsel %vm145, %v8784, 0
      %v8804 = vsel %vm145, %v8785, 0
      %v8807 = vsel %vm145, %v8786, 0
      %v8810 = vsel %vm145, %v8787, 0
      %v8813 = vsel %vm145, %v8788, 0
      %v8816 = vsel %vm145, %v8789, 0
      %v8819 = vsel %vm145, %v8790, 0
      %v8822 = vsel %vm145, %v8791, 0
      %v8825 = vsel %vm145, %v8792, 0
      %v8828 = vsel %vm145, %v8793, 0
      %v8831 = vsel %vm145, %v8794, 0
      %v8834 = vsel %vm145, %v8795, 0
      %v8837 = vsel %vm145, %v8796, 0
      %v8840 = vsel %vm145, %v8797, 0
      %v8843 = vsel %vm145, %v8798, 0
      %v8846 = vsel %vm145, %v8799, 0
      %v8849 = vsel %vm414, %v4764, 0
      %8851 = vmatpush.bf16.msra.mxu0 0
      %8852 = vmatpush.bf16.msra.mxu0 0
      %8853 = vmatpush.bf16.msra.mxu0 0
      %8854 = vmatpush.bf16.msra.mxu0 0
      %8855 = vmatpush.bf16.msra.mxu0 0
      %8856 = vmatpush.bf16.msra.mxu0 0
      %8857 = vmatpush.bf16.msra.mxu0 0
      %8858 = vmatpush.bf16.msra.mxu0 %v8849
      %8859 = vmatmul.bf16.gmra.mxu0 %v8801
      %v8860 = vpop.f32.mrf.mxu0
      %v8861 = vadd.f32 0.0, %v8860
      %v8862 = vpop.f32.mrf.mxu0
      %v8863 = vadd.f32 0.0, %v8862
      %8864 = vmatmul.bf16.gmra.mxu0 %v8804
      %v8865 = vpop.f32.mrf.mxu0
      %v8866 = vadd.f32 0.0, %v8865
      %v8867 = vpop.f32.mrf.mxu0
      %v8868 = vadd.f32 0.0, %v8867
      %8869 = vmatmul.bf16.gmra.mxu0 %v8807
      %v8870 = vpop.f32.mrf.mxu0
      %v8871 = vadd.f32 0.0, %v8870
      %v8872 = vpop.f32.mrf.mxu0
      %v8873 = vadd.f32 0.0, %v8872
      %8874 = vmatmul.bf16.gmra.mxu0 %v8810
      %v8875 = vpop.f32.mrf.mxu0
      %v8876 = vadd.f32 0.0, %v8875
      %v8877 = vpop.f32.mrf.mxu0
      %v8878 = vadd.f32 0.0, %v8877
      %8879 = vmatmul.bf16.gmra.mxu0 %v8813
      %v8880 = vpop.f32.mrf.mxu0
      %v8881 = vadd.f32 0.0, %v8880
      %v8882 = vpop.f32.mrf.mxu0
      %v8883 = vadd.f32 0.0, %v8882
      %8884 = vmatmul.bf16.gmra.mxu0 %v8816
      %v8885 = vpop.f32.mrf.mxu0
      %v8886 = vadd.f32 0.0, %v8885
      %v8887 = vpop.f32.mrf.mxu0
      %v8888 = vadd.f32 0.0, %v8887
      %8889 = vmatmul.bf16.gmra.mxu0 %v8819
      %v8890 = vpop.f32.mrf.mxu0
      %v8891 = vadd.f32 0.0, %v8890
      %v8892 = vpop.f32.mrf.mxu0
      %v8893 = vadd.f32 0.0, %v8892
      %8894 = vmatmul.bf16.gmra.mxu0 %v8822
      %v8895 = vpop.f32.mrf.mxu0
      %v8896 = vadd.f32 0.0, %v8895
      %v8897 = vpop.f32.mrf.mxu0
      %v8898 = vadd.f32 0.0, %v8897
      %8899 = vmatmul.bf16.gmra.mxu0 %v8825
      %v8900 = vpop.f32.mrf.mxu0
      %v8901 = vadd.f32 0.0, %v8900
      %v8902 = vpop.f32.mrf.mxu0
      %v8903 = vadd.f32 0.0, %v8902
      %8904 = vmatmul.bf16.gmra.mxu0 %v8828
      %v8905 = vpop.f32.mrf.mxu0
      %v8906 = vadd.f32 0.0, %v8905
      %v8907 = vpop.f32.mrf.mxu0
      %v8908 = vadd.f32 0.0, %v8907
      %8909 = vmatmul.bf16.gmra.mxu0 %v8831
      %v8910 = vpop.f32.mrf.mxu0
      %v8911 = vadd.f32 0.0, %v8910
      %v8912 = vpop.f32.mrf.mxu0
      %v8913 = vadd.f32 0.0, %v8912
      %8914 = vmatmul.bf16.gmra.mxu0 %v8834
      %v8915 = vpop.f32.mrf.mxu0
      %v8916 = vadd.f32 0.0, %v8915
      %v8917 = vpop.f32.mrf.mxu0
      %v8918 = vadd.f32 0.0, %v8917
      %8919 = vmatmul.bf16.gmra.mxu0 %v8837
      %v8920 = vpop.f32.mrf.mxu0
      %v8921 = vadd.f32 0.0, %v8920
      %v8922 = vpop.f32.mrf.mxu0
      %v8923 = vadd.f32 0.0, %v8922
      %8924 = vmatmul.bf16.gmra.mxu0 %v8840
      %v8925 = vpop.f32.mrf.mxu0
      %v8926 = vadd.f32 0.0, %v8925
      %v8927 = vpop.f32.mrf.mxu0
      %v8928 = vadd.f32 0.0, %v8927
      %8929 = vmatmul.bf16.gmra.mxu0 %v8843
      %v8930 = vpop.f32.mrf.mxu0
      %v8931 = vadd.f32 0.0, %v8930
      %v8932 = vpop.f32.mrf.mxu0
      %v8933 = vadd.f32 0.0, %v8932
      %8934 = vmatmul.bf16.gmra.mxu0 %v8846
      %v8935 = vpop.f32.mrf.mxu0
      %v8936 = vadd.f32 0.0, %v8935
      %v8937 = vpop.f32.mrf.mxu0
      %v8938 = vadd.f32 0.0, %v8937
      %8939 = vdwg.mxu0
      %v8940 = vadd.f32 %v8720, %v8861
      %v8941 = vadd.f32 %v8721, %v8863
      %v8942 = vadd.f32 %v8722, %v8866
      %v8943 = vadd.f32 %v8723, %v8868
      %v8944 = vadd.f32 %v8724, %v8871
      %v8945 = vadd.f32 %v8725, %v8873
      %v8946 = vadd.f32 %v8726, %v8876
      %v8947 = vadd.f32 %v8727, %v8878
      %v8948 = vadd.f32 %v8728, %v8881
      %v8949 = vadd.f32 %v8729, %v8883
      %v8950 = vadd.f32 %v8730, %v8886
      %v8951 = vadd.f32 %v8731, %v8888
      %v8952 = vadd.f32 %v8732, %v8891
      %v8953 = vadd.f32 %v8733, %v8893
      %v8954 = vadd.f32 %v8734, %v8896
      %v8955 = vadd.f32 %v8735, %v8898
      %v8956 = vadd.f32 %v8736, %v8901
      %v8957 = vadd.f32 %v8737, %v8903
      %v8958 = vadd.f32 %v8738, %v8906
      %v8959 = vadd.f32 %v8739, %v8908
      %v8960 = vadd.f32 %v8740, %v8911
      %v8961 = vadd.f32 %v8741, %v8913
      %v8962 = vadd.f32 %v8742, %v8916
      %v8963 = vadd.f32 %v8743, %v8918
      %v8964 = vadd.f32 %v8744, %v8921
      %v8965 = vadd.f32 %v8745, %v8923
      %v8966 = vadd.f32 %v8746, %v8926
      %v8967 = vadd.f32 %v8747, %v8928
      %v8968 = vadd.f32 %v8748, %v8931
      %v8969 = vadd.f32 %v8749, %v8933
      %v8970 = vadd.f32 %v8750, %v8936
      %v8971 = vadd.f32 %v8751, %v8938
      %v8972 = vsel %vm145, %v8940, 0.0
      %v8973 = vsel %vm145, %v8941, 0.0
      %v8974 = vadd.f32 %v8972, %v8973
      %v8975 = vsel %vm145, %v8942, 0.0
      %v8976 = vadd.f32 %v8974, %v8975
      %v8977 = vsel %vm145, %v8943, 0.0
      %v8978 = vadd.f32 %v8976, %v8977
      %v8979 = vsel %vm145, %v8944, 0.0
      %v8980 = vadd.f32 %v8978, %v8979
      %v8981 = vsel %vm145, %v8945, 0.0
      %v8982 = vadd.f32 %v8980, %v8981
      %v8983 = vsel %vm145, %v8946, 0.0
      %v8984 = vadd.f32 %v8982, %v8983
      %v8985 = vsel %vm145, %v8947, 0.0
      %v8986 = vadd.f32 %v8984, %v8985
      %v8987 = vsel %vm145, %v8948, 0.0
      %v8988 = vadd.f32 %v8986, %v8987
      %v8989 = vsel %vm145, %v8949, 0.0
      %v8990 = vadd.f32 %v8988, %v8989
      %v8991 = vsel %vm145, %v8950, 0.0
      %v8992 = vadd.f32 %v8990, %v8991
      %v8993 = vsel %vm145, %v8951, 0.0
      %v8994 = vadd.f32 %v8992, %v8993
      %v8995 = vsel %vm145, %v8952, 0.0
      %v8996 = vadd.f32 %v8994, %v8995
      %v8997 = vsel %vm145, %v8953, 0.0
      %v8998 = vadd.f32 %v8996, %v8997
      %v8999 = vsel %vm145, %v8954, 0.0
      %v9000 = vadd.f32 %v8998, %v8999
      %v9001 = vsel %vm145, %v8955, 0.0
      %v9002 = vadd.f32 %v9000, %v9001
      %v9003 = vsel %vm145, %v8956, 0.0
      %v9004 = vadd.f32 %v9002, %v9003
      %v9005 = vsel %vm145, %v8957, 0.0
      %v9006 = vadd.f32 %v9004, %v9005
      %v9007 = vsel %vm145, %v8958, 0.0
      %v9008 = vadd.f32 %v9006, %v9007
      %v9009 = vsel %vm145, %v8959, 0.0
      %v9010 = vadd.f32 %v9008, %v9009
      %v9011 = vsel %vm145, %v8960, 0.0
      %v9012 = vadd.f32 %v9010, %v9011
      %v9013 = vsel %vm145, %v8961, 0.0
      %v9014 = vadd.f32 %v9012, %v9013
      %v9015 = vsel %vm145, %v8962, 0.0
      %v9016 = vadd.f32 %v9014, %v9015
      %v9017 = vsel %vm145, %v8963, 0.0
      %v9018 = vadd.f32 %v9016, %v9017
      %v9019 = vsel %vm145, %v8964, 0.0
      %v9020 = vadd.f32 %v9018, %v9019
      %v9021 = vsel %vm145, %v8965, 0.0
      %v9022 = vadd.f32 %v9020, %v9021
      %v9023 = vsel %vm145, %v8966, 0.0
      %v9024 = vadd.f32 %v9022, %v9023
      %v9025 = vsel %vm145, %v8967, 0.0
      %v9026 = vadd.f32 %v9024, %v9025
      %v9027 = vsel %vm145, %v8968, 0.0
      %v9028 = vadd.f32 %v9026, %v9027
      %v9029 = vsel %vm145, %v8969, 0.0
      %v9030 = vadd.f32 %v9028, %v9029
      %v9031 = vsel %vm145, %v8970, 0.0
      %v9032 = vadd.f32 %v9030, %v9031
      %v9033 = vsel %vm145, %v8971, 0.0
      %v9034 = vadd.f32 %v9032, %v9033
      %v9035 = vrot.slane %v9034, 4
      %v9036 = vadd.f32 %v9034, %v9035
      %v9037 = vrot.slane %v9036, 2
      %v9038 = vadd.f32 %v9036, %v9037
      %v9039 = vrot.slane %v9038, 1
      %v9040 = vadd.f32 %v9038, %v9039
      %v9041 = vmul.f32 %v9040, 0.00390625
      %v9042 = vsub.f32 %v8940, %v9041
      %v9043 = vsub.f32 %v8941, %v9041
      %v9044 = vsub.f32 %v8942, %v9041
      %v9045 = vsub.f32 %v8943, %v9041
      %v9046 = vsub.f32 %v8944, %v9041
      %v9047 = vsub.f32 %v8945, %v9041
      %v9048 = vsub.f32 %v8946, %v9041
      %v9049 = vsub.f32 %v8947, %v9041
      %v9050 = vsub.f32 %v8948, %v9041
      %v9051 = vsub.f32 %v8949, %v9041
      %v9052 = vsub.f32 %v8950, %v9041
      %v9053 = vsub.f32 %v8951, %v9041
      %v9054 = vsub.f32 %v8952, %v9041
      %v9055 = vsub.f32 %v8953, %v9041
      %v9056 = vsub.f32 %v8954, %v9041
      %v9057 = vsub.f32 %v8955, %v9041
      %v9058 = vsub.f32 %v8956, %v9041
      %v9059 = vsub.f32 %v8957, %v9041
      %v9060 = vsub.f32 %v8958, %v9041
      %v9061 = vsub.f32 %v8959, %v9041
      %v9062 = vsub.f32 %v8960, %v9041
      %v9063 = vsub.f32 %v8961, %v9041
      %v9064 = vsub.f32 %v8962, %v9041
      %v9065 = vsub.f32 %v8963, %v9041
      %v9066 = vsub.f32 %v8964, %v9041
      %v9067 = vsub.f32 %v8965, %v9041
      %v9068 = vsub.f32 %v8966, %v9041
      %v9069 = vsub.f32 %v8967, %v9041
      %v9070 = vsub.f32 %v8968, %v9041
      %v9071 = vsub.f32 %v8969, %v9041
      %v9072 = vsub.f32 %v8970, %v9041
      %v9073 = vsub.f32 %v8971, %v9041
      %v9074 = vmul.f32 %v9042, %v9042
      %v9075 = vmul.f32 %v9043, %v9043
      %v9076 = vmul.f32 %v9044, %v9044
      %v9077 = vmul.f32 %v9045, %v9045
      %v9078 = vmul.f32 %v9046, %v9046
      %v9079 = vmul.f32 %v9047, %v9047
      %v9080 = vmul.f32 %v9048, %v9048
      %v9081 = vmul.f32 %v9049, %v9049
      %v9082 = vmul.f32 %v9050, %v9050
      %v9083 = vmul.f32 %v9051, %v9051
      %v9084 = vmul.f32 %v9052, %v9052
      %v9085 = vmul.f32 %v9053, %v9053
      %v9086 = vmul.f32 %v9054, %v9054
      %v9087 = vmul.f32 %v9055, %v9055
      %v9088 = vmul.f32 %v9056, %v9056
      %v9089 = vmul.f32 %v9057, %v9057
      %v9090 = vmul.f32 %v9058, %v9058
      %v9091 = vmul.f32 %v9059, %v9059
      %v9092 = vmul.f32 %v9060, %v9060
      %v9093 = vmul.f32 %v9061, %v9061
      %v9094 = vmul.f32 %v9062, %v9062
      %v9095 = vmul.f32 %v9063, %v9063
      %v9096 = vmul.f32 %v9064, %v9064
      %v9097 = vmul.f32 %v9065, %v9065
      %v9098 = vmul.f32 %v9066, %v9066
      %v9099 = vmul.f32 %v9067, %v9067
      %v9100 = vmul.f32 %v9068, %v9068
      %v9101 = vmul.f32 %v9069, %v9069
      %v9102 = vmul.f32 %v9070, %v9070
      %v9103 = vmul.f32 %v9071, %v9071
      %v9104 = vmul.f32 %v9072, %v9072
      %v9105 = vmul.f32 %v9073, %v9073
      %v9106 = vsel %vm145, %v9074, 0.0
      %v9107 = vsel %vm145, %v9075, 0.0
      %v9108 = vadd.f32 %v9106, %v9107
      %v9109 = vsel %vm145, %v9076, 0.0
      %v9110 = vadd.f32 %v9108, %v9109
      %v9111 = vsel %vm145, %v9077, 0.0
      %v9112 = vadd.f32 %v9110, %v9111
      %v9113 = vsel %vm145, %v9078, 0.0
      %v9114 = vadd.f32 %v9112, %v9113
      %v9115 = vsel %vm145, %v9079, 0.0
      %v9116 = vadd.f32 %v9114, %v9115
      %v9117 = vsel %vm145, %v9080, 0.0
      %v9118 = vadd.f32 %v9116, %v9117
      %v9119 = vsel %vm145, %v9081, 0.0
      %v9120 = vadd.f32 %v9118, %v9119
      %v9121 = vsel %vm145, %v9082, 0.0
      %v9122 = vadd.f32 %v9120, %v9121
      %v9123 = vsel %vm145, %v9083, 0.0
      %v9124 = vadd.f32 %v9122, %v9123
      %v9125 = vsel %vm145, %v9084, 0.0
      %v9126 = vadd.f32 %v9124, %v9125
      %v9127 = vsel %vm145, %v9085, 0.0
      %v9128 = vadd.f32 %v9126, %v9127
      %v9129 = vsel %vm145, %v9086, 0.0
      %v9130 = vadd.f32 %v9128, %v9129
      %v9131 = vsel %vm145, %v9087, 0.0
      %v9132 = vadd.f32 %v9130, %v9131
      %v9133 = vsel %vm145, %v9088, 0.0
      %v9134 = vadd.f32 %v9132, %v9133
      %v9135 = vsel %vm145, %v9089, 0.0
      %v9136 = vadd.f32 %v9134, %v9135
      %v9137 = vsel %vm145, %v9090, 0.0
      %v9138 = vadd.f32 %v9136, %v9137
      %v9139 = vsel %vm145, %v9091, 0.0
      %v9140 = vadd.f32 %v9138, %v9139
      %v9141 = vsel %vm145, %v9092, 0.0
      %v9142 = vadd.f32 %v9140, %v9141
      %v9143 = vsel %vm145, %v9093, 0.0
      %v9144 = vadd.f32 %v9142, %v9143
      %v9145 = vsel %vm145, %v9094, 0.0
      %v9146 = vadd.f32 %v9144, %v9145
      %v9147 = vsel %vm145, %v9095, 0.0
      %v9148 = vadd.f32 %v9146, %v9147
      %v9149 = vsel %vm145, %v9096, 0.0
      %v9150 = vadd.f32 %v9148, %v9149
      %v9151 = vsel %vm145, %v9097, 0.0
      %v9152 = vadd.f32 %v9150, %v9151
      %v9153 = vsel %vm145, %v9098, 0.0
      %v9154 = vadd.f32 %v9152, %v9153
      %v9155 = vsel %vm145, %v9099, 0.0
      %v9156 = vadd.f32 %v9154, %v9155
      %v9157 = vsel %vm145, %v9100, 0.0
      %v9158 = vadd.f32 %v9156, %v9157
      %v9159 = vsel %vm145, %v9101, 0.0
      %v9160 = vadd.f32 %v9158, %v9159
      %v9161 = vsel %vm145, %v9102, 0.0
      %v9162 = vadd.f32 %v9160, %v9161
      %v9163 = vsel %vm145, %v9103, 0.0
      %v9164 = vadd.f32 %v9162, %v9163
      %v9165 = vsel %vm145, %v9104, 0.0
      %v9166 = vadd.f32 %v9164, %v9165
      %v9167 = vsel %vm145, %v9105, 0.0
      %v9168 = vadd.f32 %v9166, %v9167
      %v9169 = vrot.slane %v9168, 4
      %v9170 = vadd.f32 %v9168, %v9169
      %v9171 = vrot.slane %v9170, 2
      %v9172 = vadd.f32 %v9170, %v9171
      %v9173 = vrot.slane %v9172, 1
      %v9174 = vadd.f32 %v9172, %v9173
      %v9175 = vmul.f32 %v9174, 0.00390625
      %v9176 = vadd.f32 %v9175, 1e-05
      %v9177 = vrsqrt.pop %v9176
      %v9178 = vmul.f32 %v9177, %v9176
      %v9179 = vmul.f32 %v9178, %v9177
      %v9180 = vmul.f32 0.5, %v9179
      %v9181 = vsub.f32 1.5, %v9180
      %v9182 = vmul.f32 %v9177, %v9181
      %vm9183 = vweird.f32 %v9176
      %vm9184 = vweird.f32 %v9177
      %vm9185 = vmor %vm9183, %vm9184
      %v9186 = vsel %vm9185, %v9177, %v9182
      %v9187 = vmul.f32 %v9042, %v9186
      %v9188 = vmul.f32 %v9043, %v9186
      %v9189 = vmul.f32 %v9044, %v9186
      %v9190 = vmul.f32 %v9045, %v9186
      %v9191 = vmul.f32 %v9046, %v9186
      %v9192 = vmul.f32 %v9047, %v9186
      %v9193 = vmul.f32 %v9048, %v9186
      %v9194 = vmul.f32 %v9049, %v9186
      %v9195 = vmul.f32 %v9050, %v9186
      %v9196 = vmul.f32 %v9051, %v9186
      %v9197 = vmul.f32 %v9052, %v9186
      %v9198 = vmul.f32 %v9053, %v9186
      %v9199 = vmul.f32 %v9054, %v9186
      %v9200 = vmul.f32 %v9055, %v9186
      %v9201 = vmul.f32 %v9056, %v9186
      %v9202 = vmul.f32 %v9057, %v9186
      %v9203 = vmul.f32 %v9058, %v9186
      %v9204 = vmul.f32 %v9059, %v9186
      %v9205 = vmul.f32 %v9060, %v9186
      %v9206 = vmul.f32 %v9061, %v9186
      %v9207 = vmul.f32 %v9062, %v9186
      %v9208 = vmul.f32 %v9063, %v9186
      %v9209 = vmul.f32 %v9064, %v9186
      %v9210 = vmul.f32 %v9065, %v9186
      %v9211 = vmul.f32 %v9066, %v9186
      %v9212 = vmul.f32 %v9067, %v9186
      %v9213 = vmul.f32 %v9068, %v9186
      %v9214 = vmul.f32 %v9069, %v9186
      %v9215 = vmul.f32 %v9070, %v9186
      %v9216 = vmul.f32 %v9071, %v9186
      %v9217 = vmul.f32 %v9072, %v9186
      %v9218 = vmul.f32 %v9073, %v9186
      %v9219 = vmul.f32 %v9187, 0.1
      %v9220 = vmul.f32 %v9188, 0.1
      %v9221 = vmul.f32 %v9189, 0.1
      %v9222 = vmul.f32 %v9190, 0.1
      %v9223 = vmul.f32 %v9191, 0.1
      %v9224 = vmul.f32 %v9192, 0.1
      %v9225 = vmul.f32 %v9193, 0.1
      %v9226 = vmul.f32 %v9194, 0.1
      %v9227 = vmul.f32 %v9195, 0.1
      %v9228 = vmul.f32 %v9196, 0.1
      %v9229 = vmul.f32 %v9197, 0.1
      %v9230 = vmul.f32 %v9198, 0.1
      %v9231 = vmul.f32 %v9199, 0.1
      %v9232 = vmul.f32 %v9200, 0.1
      %v9233 = vmul.f32 %v9201, 0.1
      %v9234 = vmul.f32 %v9202, 0.1
      %v9235 = vmul.f32 %v9203, 0.1
      %v9236 = vmul.f32 %v9204, 0.1
      %v9237 = vmul.f32 %v9205, 0.1
      %v9238 = vmul.f32 %v9206, 0.1
      %v9239 = vmul.f32 %v9207, 0.1
      %v9240 = vmul.f32 %v9208, 0.1
      %v9241 = vmul.f32 %v9209, 0.1
      %v9242 = vmul.f32 %v9210, 0.1
      %v9243 = vmul.f32 %v9211, 0.1
      %v9244 = vmul.f32 %v9212, 0.1
      %v9245 = vmul.f32 %v9213, 0.1
      %v9246 = vmul.f32 %v9214, 0.1
      %v9247 = vmul.f32 %v9215, 0.1
      %v9248 = vmul.f32 %v9216, 0.1
      %v9249 = vmul.f32 %v9217, 0.1
      %v9250 = vmul.f32 %v9218, 0.1
      %v9251 = vadd.f32 %v4722, %v9219
      %v9252 = vadd.f32 %v4723, %v9220
      %v9253 = vadd.f32 %v4724, %v9221
      %v9254 = vadd.f32 %v4725, %v9222
      %v9255 = vadd.f32 %v4726, %v9223
      %v9256 = vadd.f32 %v4727, %v9224
      %v9257 = vadd.f32 %v4728, %v9225
      %v9258 = vadd.f32 %v4729, %v9226
      %v9259 = vadd.f32 %v4730, %v9227
      %v9260 = vadd.f32 %v4731, %v9228
      %v9261 = vadd.f32 %v4732, %v9229
      %v9262 = vadd.f32 %v4733, %v9230
      %v9263 = vadd.f32 %v4734, %v9231
      %v9264 = vadd.f32 %v4735, %v9232
      %v9265 = vadd.f32 %v4736, %v9233
      %v9266 = vadd.f32 %v4737, %v9234
      %v9267 = vadd.f32 %v4738, %v9235
      %v9268 = vadd.f32 %v4739, %v9236
      %v9269 = vadd.f32 %v4740, %v9237
      %v9270 = vadd.f32 %v4741, %v9238
      %v9271 = vadd.f32 %v4742, %v9239
      %v9272 = vadd.f32 %v4743, %v9240
      %v9273 = vadd.f32 %v4744, %v9241
      %v9274 = vadd.f32 %v4745, %v9242
      %v9275 = vadd.f32 %v4746, %v9243
      %v9276 = vadd.f32 %v4747, %v9244
      %v9277 = vadd.f32 %v4748, %v9245
      %v9278 = vadd.f32 %v4749, %v9246
      %v9279 = vadd.f32 %v4750, %v9247
      %v9280 = vadd.f32 %v4751, %v9248
      %v9281 = vadd.f32 %v4752, %v9249
      %v9282 = vadd.f32 %v4753, %v9250
      %9283 = vst.msk [vmem:[%s143] sm:$0xff] %vm145, %v9251
      %9284 = vst.msk [vmem:[%s143 + $0x8] sm:$0xff] %vm145, %v9252
      %9285 = vst.msk [vmem:[%s143 + $0x10] sm:$0xff] %vm145, %v9253
      %9286 = vst.msk [vmem:[%s143 + $0x18] sm:$0xff] %vm145, %v9254
      %9287 = vst.msk [vmem:[%s143 + $0x20] sm:$0xff] %vm145, %v9255
      %9288 = vst.msk [vmem:[%s143 + $0x28] sm:$0xff] %vm145, %v9256
      %9289 = vst.msk [vmem:[%s143 + $0x30] sm:$0xff] %vm145, %v9257
      %9290 = vst.msk [vmem:[%s143 + $0x38] sm:$0xff] %vm145, %v9258
      %9291 = vst.msk [vmem:[%s143 + $0x40] sm:$0xff] %vm145, %v9259
      %9292 = vst.msk [vmem:[%s143 + $0x48] sm:$0xff] %vm145, %v9260
      %9293 = vst.msk [vmem:[%s143 + $0x50] sm:$0xff] %vm145, %v9261
      %9294 = vst.msk [vmem:[%s143 + $0x58] sm:$0xff] %vm145, %v9262
      %9295 = vst.msk [vmem:[%s143 + $0x60] sm:$0xff] %vm145, %v9263
      %9296 = vst.msk [vmem:[%s143 + $0x68] sm:$0xff] %vm145, %v9264
      %9297 = vst.msk [vmem:[%s143 + $0x70] sm:$0xff] %vm145, %v9265
      %9298 = vst.msk [vmem:[%s143 + $0x78] sm:$0xff] %vm145, %v9266
      %9299 = vst.msk [vmem:[%s143 + $0x80] sm:$0xff] %vm145, %v9267
      %9300 = vst.msk [vmem:[%s143 + $0x88] sm:$0xff] %vm145, %v9268
      %9301 = vst.msk [vmem:[%s143 + $0x90] sm:$0xff] %vm145, %v9269
      %9302 = vst.msk [vmem:[%s143 + $0x98] sm:$0xff] %vm145, %v9270
      %9303 = vst.msk [vmem:[%s143 + $0xa0] sm:$0xff] %vm145, %v9271
      %9304 = vst.msk [vmem:[%s143 + $0xa8] sm:$0xff] %vm145, %v9272
      %9305 = vst.msk [vmem:[%s143 + $0xb0] sm:$0xff] %vm145, %v9273
      %9306 = vst.msk [vmem:[%s143 + $0xb8] sm:$0xff] %vm145, %v9274
      %9307 = vst.msk [vmem:[%s143 + $0xc0] sm:$0xff] %vm145, %v9275
      %9308 = vst.msk [vmem:[%s143 + $0xc8] sm:$0xff] %vm145, %v9276
      %9309 = vst.msk [vmem:[%s143 + $0xd0] sm:$0xff] %vm145, %v9277
      %9310 = vst.msk [vmem:[%s143 + $0xd8] sm:$0xff] %vm145, %v9278
      %9311 = vst.msk [vmem:[%s143 + $0xe0] sm:$0xff] %vm145, %v9279
      %9312 = vst.msk [vmem:[%s143 + $0xe8] sm:$0xff] %vm145, %v9280
      %9313 = vst.msk [vmem:[%s143 + $0xf0] sm:$0xff] %vm145, %v9281
      %9314 = vst.msk [vmem:[%s143 + $0xf8] sm:$0xff] %vm145, %v9282
      %p9315 = scmp.lt.s32.totalorder %s13, 1
      %s9316 = scalar_select %p9315, %s13, 1
      %s9317 = smul.addr %s9316, 32
      %s9318 = smul.addr %s9317, 8
      %s9319 = scalar_lea.vmem %s2, %s9318
      // Predicated region
      $region29: #{res_blocks_forward.1} parent=27 // pred_check
        %p9320 = pneg %p78
      $region30: #{res_blocks_forward.1} parent=27 // pred_check_branch
        %9322 = sbr.rel (%p9320) target = $region32
      $region31: #{res_blocks_forward.1} parent=27 // pred_region
        _
      $region32: #{res_blocks_forward.1} parent=27 // pred_fallthru
        _
    $region28: #{res_blocks_forward.1} parent=5 // pred_fallthru
      _
    %p9323 = scmp.le.s32.totalorder 2, %s8
    // Predicated region
    $region33: #{res_blocks_forward.1} parent=5 // pred_check
      %p9324 = pneg %p9323
    $region34: #{res_blocks_forward.1} parent=5 // pred_check_branch
      %9326 = sbr.rel (%p9324) target = $region36
    $region35: #{res_blocks_forward.1} parent=5 // pred_region
      %s9327 = ssub.s32 %s8, 2
      // Predicated region
      $region37: #{res_blocks_forward.1} parent=35 // pred_check
        %p9328 = pneg %p84
      $region38: #{res_blocks_forward.1} parent=35 // pred_check_branch
        %9330 = sbr.rel (%p9328) target = $region40
      $region39: #{res_blocks_forward.1} parent=35 // pred_region
        %p9331 = scmp.lt.s32.totalorder %s14, 1
        %s9332 = scalar_select %p9331, %s14, 1
        %s9333 = smul.addr %s9332, 32
        %s9334 = smul.addr %s9333, 8
        %s9335 = scalar_lea.vmem %s2, %s9334
      $region40: #{res_blocks_forward.1} parent=35 // pred_fallthru
        _
    $region36: #{res_blocks_forward.1} parent=5 // pred_fallthru
      _
  $region6: #{res_blocks_forward.1} parent=0 // loop_footer
    %s12 = sadd.s32 1, %s8
  $region7: #{res_blocks_forward.1} parent=0 // loop_footer_branch
    %7 = sbr.rel target = $region3
  $region8: #{res_blocks_forward.1} parent=0 // loop_exit
    _

</llo_original>
